<compile_context>
chip_gen: v7x
topology: tpu7x:2x2x1
jax: 0.10.0
libtpu: 0.0.40
codegen_flags: <defaults>
</compile_context>

<pallas_src>
import numpy as np
import jax
import jax.numpy as jnp
from jax.experimental import pallas as pl
from jax.experimental.pallas import tpu as pltpu


# --------------------------------------------------------------------------
# static helpers
# --------------------------------------------------------------------------
def _tap_offsets_and_masks(D, H, W, K, dilation, pad):
    """Flat-index offsets and zero-padding validity masks for each dilated tap.

    Tap order is kd-major / kw-minor and matches the column ordering of the
    reshaped conv2 weight (tap-major, C1-minor).
    """
    z = np.arange(D)[:, None, None]
    y = np.arange(H)[None, :, None]
    x = np.arange(W)[None, None, :]
    offsets, masks = [], []
    for kd in range(K):
        dz = kd * dilation - pad
        for kh in range(K):
            dy = kh * dilation - pad
            for kw in range(K):
                dx = kw * dilation - pad
                offsets.append((dz * H + dy) * W + dx)
                m = ((z + dz >= 0) & (z + dz < D) &
                     (y + dy >= 0) & (y + dy < H) &
                     (x + dx >= 0) & (x + dx < W))
                masks.append(m.reshape(-1))
    return offsets, np.stack(masks).astype(np.float32)


# --------------------------------------------------------------------------
# fused DilatedBlock kernel
# --------------------------------------------------------------------------
def _make_dilated_block_kernel(offsets, union_cat):
    def kernel(x_ref, w1_ref, b1_ref, w2_ref, b2_ref, mask_ref, out_ref,
               y1_ref, patch_ref):
        # x_ref:     (1, Cin, S)       channel-major, spatial flattened
        # w1_ref:    (C1, Cin)         1x1x1 conv weight
        # b1_ref:    (C1, 1)
        # w2_ref:    (C2, K^3*C1)      dilated-conv weight, tap-major columns
        # b2_ref:    (C2, 1)
        # mask_ref:  (K^3, S)          per-tap 0/1 zero-padding masks
        # out_ref:   (1, Cout, S)
        # y1_ref:    (C1, S)           VMEM scratch
        # patch_ref: (K^3*C1, S)       VMEM scratch (im2col, S on lanes)
        Cin = x_ref.shape[1]
        S = x_ref.shape[2]
        C1 = w1_ref.shape[0]
        C2 = w2_ref.shape[0]

        # ---- conv1 ('cr'): transposed pointwise GEMM + bias + ReLU ---------
        y1 = jnp.dot(w1_ref[...], x_ref[0], preferred_element_type=jnp.float32)
        y1_ref[...] = jnp.maximum(y1 + b1_ref[...], 0.0)

        # ---- im2col for the dilated conv -----------------------------------
        # Per tap: XLU lane roll of the whole (C1, S) slab, VPU multiply by a
        # 0/1 validity mask (implements the zero padding; also kills any
        # wrapped-around lanes), aligned full-width store into patch rows.
        y1v = y1_ref[...]
        for t, off in enumerate(offsets):
            shift = (-off) % S
            shifted = pltpu.roll(y1v, shift, axis=1) if shift else y1v
            patch_ref[pl.ds(t * C1, C1), :] = (
                shifted * mask_ref[pl.ds(t, 1), :])

        # ---- conv2 ('c'): one MXU GEMM, contraction = K^3*C1, + bias -------
        y2 = jnp.dot(w2_ref[...], patch_ref[...],
                     preferred_element_type=jnp.float32) + b2_ref[...]

        # ---- union with x and final ReLU, lane-dense stores -----------------
        if union_cat:
            out_ref[0, pl.ds(0, C2), :] = (
                jnp.maximum(y2, 0.0).astype(out_ref.dtype))
            out_ref[0, pl.ds(C2, Cin), :] = (
                jnp.maximum(x_ref[0], 0.0).astype(out_ref.dtype))
        else:  # union_type == 'sum'
            out_ref[0] = jnp.maximum(
                y2 + x_ref[0].astype(jnp.float32), 0.0).astype(out_ref.dtype)

    return kernel


def dilated_block_pallas(x, w1, b1, w2, b2, *, dilation=2, padding_dilated=2,
                         union_type='cat'):
    """x: (N, Cin, D, H, W); w1: (C1, Cin, 1, 1, 1); w2: (C2, C1, K, K, K)."""
    N, Cin, D, H, W = x.shape
    C1 = w1.shape[0]
    C2, _, K, _, _ = w2.shape
    assert w1.shape[1:] == (Cin, 1, 1, 1), "conv1 must be a 1x1x1 conv"
    assert w2.shape[1] == C1
    # 'same' spatial size required so cat/sum with x is well defined
    assert 2 * padding_dilated == dilation * (K - 1), \
        "only size-preserving dilated conv is supported"
    union_cat = union_type == 'cat'
    if not union_cat:
        assert union_type == 'sum' and C2 == Cin
    Cout = C2 + Cin if union_cat else C2
    S = D * H * W
    KC = K * K * K * C1

    # Channel-major, spatial-flattened layout. These reshapes only merge /
    # split trailing dims of row-major arrays, so they are free (no HBM
    # transpose around the kernel).
    x_f = x.reshape(N, Cin, S)
    w1m = w1.reshape(C1, Cin)
    # (C2,C1,kd,kh,kw) -> (C2,kd,kh,kw,C1) -> (C2, K^3*C1): columns ordered
    # tap-major / C1-minor to match the im2col patch rows (tiny weight array).
    w2f = jnp.transpose(w2, (0, 2, 3, 4, 1)).reshape(C2, KC)
    b1r = b1.reshape(C1, 1).astype(jnp.float32)
    b2r = b2.reshape(C2, 1).astype(jnp.float32)

    offsets, masks_np = _tap_offsets_and_masks(D, H, W, K, dilation,
                                               padding_dilated)
    masks = jnp.asarray(masks_np)                               # (K^3, S)

    kernel = _make_dilated_block_kernel(offsets, union_cat)

    # VMEM: patch + y1 scratches plus double-buffered in/out/mask blocks.
    # Request only what is needed (with headroom), never the whole per-core
    # VMEM (v7x has only 64 MiB / TensorCore).
    need = 4 * (KC * S + C1 * S
                + 2 * (Cin * S + Cout * S + K * K * K * S)
                + C1 * Cin + C2 * KC + C1 + C2)
    vmem_limit = int(min(max(2 * need, 8 * 1024 * 1024), 48 * 1024 * 1024))

    # TODO(synk): for large volumes (e.g. 64^3, C1>=32) add a spatial slab
    # grid axis (D slabs with a `padding_dilated`-deep halo) so the im2col
    # scratch fits v7x's 64 MiB VMEM and both v7x TensorCores get parallel
    # steps; whole-volume-per-batch blocks are fine at these sizes.
    # TODO(synk): optionally keep y1/patch scratches in bf16 (bf16 MXU inputs,
    # f32 accumulation) to halve scratch size and VMEM load traffic.
    out = pl.pallas_call(
        kernel,
        out_shape=jax.ShapeDtypeStruct((N, Cout, S), x.dtype),
        grid=(N,),
        in_specs=[
            pl.BlockSpec((1, Cin, S), lambda n: (n, 0, 0)),
            pl.BlockSpec((C1, Cin), lambda n: (0, 0)),
            pl.BlockSpec((C1, 1), lambda n: (0, 0)),
            pl.BlockSpec((C2, KC), lambda n: (0, 0)),
            pl.BlockSpec((C2, 1), lambda n: (0, 0)),
            pl.BlockSpec((K * K * K, S), lambda n: (0, 0)),
        ],
        out_specs=pl.BlockSpec((1, Cout, S), lambda n: (n, 0, 0)),
        scratch_shapes=[
            pltpu.VMEM((C1, S), jnp.float32),
            pltpu.VMEM((KC, S), jnp.float32),
        ],
        compiler_params=pltpu.CompilerParams(
            dimension_semantics=("parallel",),
            vmem_limit_bytes=vmem_limit),
    )(x_f, w1m, b1r, w2f, b2r, masks)
    return out.reshape(N, Cout, D, H, W)                       # free split


# --------------------------------------------------------------------------
# module-equivalent wrappers
# --------------------------------------------------------------------------
def dilated_block_init(in_channels, out_channels_conv, out_channels_dilated_conv,
                       kernel_size_conv=1, kernel_size_dilated_conv=3,
                       order='cr', num_groups=8, dilation=2, padding_conv=0,
                       padding_dilated=2, union_type='cat', key=None):
    # TODO(synk): only the default order='cr' is translated (conv+ReLU, then a
    # plain conv); 'g'/'b'/'s'/'i' norms and LeakyReLU/ELU orders are not.
    assert order == 'cr'
    assert kernel_size_conv == 1 and padding_conv == 0
    K = kernel_size_dilated_conv
    C1, C2 = out_channels_conv, out_channels_dilated_conv
    k1, k2, k3, k4 = jax.random.split(key, 4)
    return dict(
        w1=0.1 * jax.random.normal(k1, (C1, in_channels, 1, 1, 1), jnp.float32),
        b1=0.1 * jax.random.normal(k2, (C1,), jnp.float32),
        w2=0.1 * jax.random.normal(k3, (C2, C1, K, K, K), jnp.float32),
        b2=0.1 * jax.random.normal(k4, (C2,), jnp.float32),
        dilation=dilation, padding_dilated=padding_dilated,
        union_type=union_type)


def dilated_block_forward(params, x):
    return dilated_block_pallas(
        x, params['w1'], params['b1'], params['w2'], params['b2'],
        dilation=params['dilation'], padding_dilated=params['padding_dilated'],
        union_type=params['union_type'])


# --------------------------------------------------------------------------
# pure-JAX reference
# --------------------------------------------------------------------------
def dilated_block_ref(x, w1, b1, w2, b2, *, dilation=2, padding=2,
                      union_type='cat'):
    C1, Cin = w1.shape[0], w1.shape[1]
    hi = jax.lax.Precision.HIGHEST
    y1 = jnp.einsum('ncdhw,oc->nodhw', x, w1.reshape(C1, Cin), precision=hi)
    y1 = jnp.maximum(y1 + b1.reshape(1, -1, 1, 1, 1), 0.0)
    y2 = jax.lax.conv_general_dilated(
        y1, w2, window_strides=(1, 1, 1),
        padding=[(padding, padding)] * 3, rhs_dilation=(dilation,) * 3,
        dimension_numbers=('NCDHW', 'OIDHW', 'NCDHW'), precision=hi)
    y2 = y2 + b2.reshape(1, -1, 1, 1, 1)
    if union_type == 'cat':
        out = jnp.concatenate([y2, x], axis=1)
    else:
        out = y2 + x
    return jnp.maximum(out, 0.0)


if __name__ == "__main__":
    key = jax.random.PRNGKey(0)
    kx, kp, kps = jax.random.split(key, 3)

    N, Cin = 2, 4
    C1, C2 = 8, 8
    D = H = W = 16   # S = 4096 keeps the flattened spatial axis lane-aligned

    x = jax.random.normal(kx, (N, Cin, D, H, W), jnp.float32)

    # default DilatedBlock: order='cr', k_conv=1, k_dil=3, dilation=2, 'cat'
    params = dilated_block_init(Cin, C1, C2, key=kp)
    out = dilated_block_forward(params, x)
    jax.block_until_ready(out)
    assert out.shape == (N, C2 + Cin, D, H, W), out.shape
    ref = dilated_block_ref(x, params['w1'], params['b1'],
                            params['w2'], params['b2'], union_type='cat')
    err = float(jnp.max(jnp.abs(out - ref)))
    assert jnp.allclose(out, ref, atol=1e-3, rtol=1e-3), err

    # union_type='sum' variant (needs out_channels_dilated_conv == in_channels)
    params_s = dilated_block_init(Cin, C1, Cin, union_type='sum', key=kps)
    out_s = dilated_block_forward(params_s, x)
    jax.block_until_ready(out_s)
    assert out_s.shape == (N, Cin, D, H, W), out_s.shape
    ref_s = dilated_block_ref(x, params_s['w1'], params_s['b1'],
                              params_s['w2'], params_s['b2'], union_type='sum')
    err_s = float(jnp.max(jnp.abs(out_s - ref_s)))
    assert jnp.allclose(out_s, ref_s, atol=1e-3, rtol=1e-3), err_s

    print("KERNEL_OK")
</pallas_src>

<mosaic_0001>
module attributes {stable_mosaic.version = 11 : i64} {
  func.func @kernel(%arg0: i32, %arg1: memref<1x4x4096xf32, #tpu.memory_space<vmem>>, %arg2: memref<8x4xf32, #tpu.memory_space<vmem>>, %arg3: memref<8x1xf32, #tpu.memory_space<vmem>>, %arg4: memref<8x216xf32, #tpu.memory_space<vmem>>, %arg5: memref<8x1xf32, #tpu.memory_space<vmem>>, %arg6: memref<27x4096xf32, #tpu.memory_space<vmem>>, %arg7: memref<1x12x4096xf32, #tpu.memory_space<vmem>>, %arg8: memref<8x4096xf32, #tpu.memory_space<vmem>>, %arg9: memref<216x4096xf32, #tpu.memory_space<vmem>>) attributes {dimension_semantics = [#tpu.dimension_semantics<parallel>], iteration_bounds = array<i64: 2>, scalar_prefetch = 0 : i64, scratch_operands = 2 : i64, tpu.core_type = #tpu.core_type<tc>, window_params = [{transform_indices = @transform_0, window_bounds = array<i64: 1, 4, 4096>}, {pipeline_mode = #tpu.pipeline_mode<synchronous>, transform_indices = @transform_1, window_bounds = array<i64: 8, 4>}, {pipeline_mode = #tpu.pipeline_mode<synchronous>, transform_indices = @transform_2, window_bounds = array<i64: 8, 1>}, {pipeline_mode = #tpu.pipeline_mode<synchronous>, transform_indices = @transform_3, window_bounds = array<i64: 8, 216>}, {pipeline_mode = #tpu.pipeline_mode<synchronous>, transform_indices = @transform_4, window_bounds = array<i64: 8, 1>}, {pipeline_mode = #tpu.pipeline_mode<synchronous>, transform_indices = @transform_5, window_bounds = array<i64: 27, 4096>}, {transform_indices = @transform_6, window_bounds = array<i64: 1, 12, 4096>}]} {
    %c0 = arith.constant 0 : index
    %c0_0 = arith.constant 0 : index
    %0 = vector.load %arg2[%c0, %c0_0] : memref<8x4xf32, #tpu.memory_space<vmem>>, vector<8x4xf32>
    %c0_1 = arith.constant 0 : index
    %c0_2 = arith.constant 0 : index
    %c0_3 = arith.constant 0 : index
    %1 = vector.load %arg1[%c0_1, %c0_2, %c0_3] : memref<1x4x4096xf32, #tpu.memory_space<vmem>>, vector<1x4x4096xf32>
    %2 = vector.shape_cast %1 : vector<1x4x4096xf32> to vector<4x4096xf32>
    %cst = arith.constant dense<0.000000e+00> : vector<8x4096xf32>
    %3 = tpu.matmul %0, %2, %cst {dimension_numbers = #tpu.dot_dimension_numbers<[1], [0], [0], [1], [0, 0, 1, 1], [], []>} : vector<8x4xf32>, vector<4x4096xf32>, vector<8x4096xf32> -> vector<8x4096xf32>
    %c0_4 = arith.constant 0 : index
    %c0_5 = arith.constant 0 : index
    %4 = vector.load %arg3[%c0_4, %c0_5] : memref<8x1xf32, #tpu.memory_space<vmem>>, vector<8x1xf32>
    %5 = vector.broadcast %4 : vector<8x1xf32> to vector<8x4096xf32>
    %6 = arith.addf %3, %5 : vector<8x4096xf32>
    %cst_6 = arith.constant 0.000000e+00 : f32
    %7 = vector.broadcast %cst_6 : f32 to vector<8x4096xf32>
    %8 = arith.maximumf %6, %7 : vector<8x4096xf32>
    %c0_7 = arith.constant 0 : index
    %c0_8 = arith.constant 0 : index
    %9 = vector.load %arg8[%c0_7, %c0_8] : memref<8x4096xf32, #tpu.memory_space<vmem>>, vector<8x4096xf32>
    tpu.vector_store %arg8[%c0_7, %c0_8], %8 {strides = array<i32>} : memref<8x4096xf32, #tpu.memory_space<vmem>>, vector<8x4096xf32>,
    %c0_9 = arith.constant 0 : index
    %c0_10 = arith.constant 0 : index
    %10 = vector.load %arg8[%c0_9, %c0_10] : memref<8x4096xf32, #tpu.memory_space<vmem>>, vector<8x4096xf32>
    %c546_i32 = arith.constant 546 : i32
    %11 = tpu.dynamic_rotate %10 by %c546_i32 dim 1 : vector<8x4096xf32>, i32 -> vector<8x4096xf32>
    %c0_11 = arith.constant 0 : index
    %c0_12 = arith.constant 0 : index
    %12 = vector.load %arg6[%c0_11, %c0_12] : memref<27x4096xf32, #tpu.memory_space<vmem>>, vector<1x4096xf32>
    %13 = vector.broadcast %12 : vector<1x4096xf32> to vector<8x4096xf32>
    %14 = arith.mulf %11, %13 : vector<8x4096xf32>
    %c0_13 = arith.constant 0 : index
    %c0_14 = arith.constant 0 : index
    %15 = vector.load %arg9[%c0_13, %c0_14] : memref<216x4096xf32, #tpu.memory_space<vmem>>, vector<8x4096xf32>
    tpu.vector_store %arg9[%c0_13, %c0_14], %14 {strides = array<i32>} : memref<216x4096xf32, #tpu.memory_space<vmem>>, vector<8x4096xf32>,
    %c544_i32 = arith.constant 544 : i32
    %16 = tpu.dynamic_rotate %10 by %c544_i32 dim 1 : vector<8x4096xf32>, i32 -> vector<8x4096xf32>
    %c1 = arith.constant 1 : index
    %c0_15 = arith.constant 0 : index
    %17 = vector.load %arg6[%c1, %c0_15] : memref<27x4096xf32, #tpu.memory_space<vmem>>, vector<1x4096xf32>
    %18 = vector.broadcast %17 : vector<1x4096xf32> to vector<8x4096xf32>
    %19 = arith.mulf %16, %18 : vector<8x4096xf32>
    %c8 = arith.constant 8 : index
    %c0_16 = arith.constant 0 : index
    %20 = vector.load %arg9[%c8, %c0_16] : memref<216x4096xf32, #tpu.memory_space<vmem>>, vector<8x4096xf32>
    tpu.vector_store %arg9[%c8, %c0_16], %19 {strides = array<i32>} : memref<216x4096xf32, #tpu.memory_space<vmem>>, vector<8x4096xf32>,
    %c542_i32 = arith.constant 542 : i32
    %21 = tpu.dynamic_rotate %10 by %c542_i32 dim 1 : vector<8x4096xf32>, i32 -> vector<8x4096xf32>
    %c2 = arith.constant 2 : index
    %c0_17 = arith.constant 0 : index
    %22 = vector.load %arg6[%c2, %c0_17] : memref<27x4096xf32, #tpu.memory_space<vmem>>, vector<1x4096xf32>
    %23 = vector.broadcast %22 : vector<1x4096xf32> to vector<8x4096xf32>
    %24 = arith.mulf %21, %23 : vector<8x4096xf32>
    %c16 = arith.constant 16 : index
    %c0_18 = arith.constant 0 : index
    %25 = vector.load %arg9[%c16, %c0_18] : memref<216x4096xf32, #tpu.memory_space<vmem>>, vector<8x4096xf32>
    tpu.vector_store %arg9[%c16, %c0_18], %24 {strides = array<i32>} : memref<216x4096xf32, #tpu.memory_space<vmem>>, vector<8x4096xf32>,
    %c514_i32 = arith.constant 514 : i32
    %26 = tpu.dynamic_rotate %10 by %c514_i32 dim 1 : vector<8x4096xf32>, i32 -> vector<8x4096xf32>
    %c3 = arith.constant 3 : index
    %c0_19 = arith.constant 0 : index
    %27 = vector.load %arg6[%c3, %c0_19] : memref<27x4096xf32, #tpu.memory_space<vmem>>, vector<1x4096xf32>
    %28 = vector.broadcast %27 : vector<1x4096xf32> to vector<8x4096xf32>
    %29 = arith.mulf %26, %28 : vector<8x4096xf32>
    %c24 = arith.constant 24 : index
    %c0_20 = arith.constant 0 : index
    %30 = vector.load %arg9[%c24, %c0_20] : memref<216x4096xf32, #tpu.memory_space<vmem>>, vector<8x4096xf32>
    tpu.vector_store %arg9[%c24, %c0_20], %29 {strides = array<i32>} : memref<216x4096xf32, #tpu.memory_space<vmem>>, vector<8x4096xf32>,
    %c512_i32 = arith.constant 512 : i32
    %31 = tpu.dynamic_rotate %10 by %c512_i32 dim 1 : vector<8x4096xf32>, i32 -> vector<8x4096xf32>
    %c4 = arith.constant 4 : index
    %c0_21 = arith.constant 0 : index
    %32 = vector.load %arg6[%c4, %c0_21] : memref<27x4096xf32, #tpu.memory_space<vmem>>, vector<1x4096xf32>
    %33 = vector.broadcast %32 : vector<1x4096xf32> to vector<8x4096xf32>
    %34 = arith.mulf %31, %33 : vector<8x4096xf32>
    %c32 = arith.constant 32 : index
    %c0_22 = arith.constant 0 : index
    %35 = vector.load %arg9[%c32, %c0_22] : memref<216x4096xf32, #tpu.memory_space<vmem>>, vector<8x4096xf32>
    tpu.vector_store %arg9[%c32, %c0_22], %34 {strides = array<i32>} : memref<216x4096xf32, #tpu.memory_space<vmem>>, vector<8x4096xf32>,
    %c510_i32 = arith.constant 510 : i32
    %36 = tpu.dynamic_rotate %10 by %c510_i32 dim 1 : vector<8x4096xf32>, i32 -> vector<8x4096xf32>
    %c5 = arith.constant 5 : index
    %c0_23 = arith.constant 0 : index
    %37 = vector.load %arg6[%c5, %c0_23] : memref<27x4096xf32, #tpu.memory_space<vmem>>, vector<1x4096xf32>
    %38 = vector.broadcast %37 : vector<1x4096xf32> to vector<8x4096xf32>
    %39 = arith.mulf %36, %38 : vector<8x4096xf32>
    %c40 = arith.constant 40 : index
    %c0_24 = arith.constant 0 : index
    %40 = vector.load %arg9[%c40, %c0_24] : memref<216x4096xf32, #tpu.memory_space<vmem>>, vector<8x4096xf32>
    tpu.vector_store %arg9[%c40, %c0_24], %39 {strides = array<i32>} : memref<216x4096xf32, #tpu.memory_space<vmem>>, vector<8x4096xf32>,
    %c482_i32 = arith.constant 482 : i32
    %41 = tpu.dynamic_rotate %10 by %c482_i32 dim 1 : vector<8x4096xf32>, i32 -> vector<8x4096xf32>
    %c6 = arith.constant 6 : index
    %c0_25 = arith.constant 0 : index
    %42 = vector.load %arg6[%c6, %c0_25] : memref<27x4096xf32, #tpu.memory_space<vmem>>, vector<1x4096xf32>
    %43 = vector.broadcast %42 : vector<1x4096xf32> to vector<8x4096xf32>
    %44 = arith.mulf %41, %43 : vector<8x4096xf32>
    %c48 = arith.constant 48 : index
    %c0_26 = arith.constant 0 : index
    %45 = vector.load %arg9[%c48, %c0_26] : memref<216x4096xf32, #tpu.memory_space<vmem>>, vector<8x4096xf32>
    tpu.vector_store %arg9[%c48, %c0_26], %44 {strides = array<i32>} : memref<216x4096xf32, #tpu.memory_space<vmem>>, vector<8x4096xf32>,
    %c480_i32 = arith.constant 480 : i32
    %46 = tpu.dynamic_rotate %10 by %c480_i32 dim 1 : vector<8x4096xf32>, i32 -> vector<8x4096xf32>
    %c7 = arith.constant 7 : index
    %c0_27 = arith.constant 0 : index
    %47 = vector.load %arg6[%c7, %c0_27] : memref<27x4096xf32, #tpu.memory_space<vmem>>, vector<1x4096xf32>
    %48 = vector.broadcast %47 : vector<1x4096xf32> to vector<8x4096xf32>
    %49 = arith.mulf %46, %48 : vector<8x4096xf32>
    %c56 = arith.constant 56 : index
    %c0_28 = arith.constant 0 : index
    %50 = vector.load %arg9[%c56, %c0_28] : memref<216x4096xf32, #tpu.memory_space<vmem>>, vector<8x4096xf32>
    tpu.vector_store %arg9[%c56, %c0_28], %49 {strides = array<i32>} : memref<216x4096xf32, #tpu.memory_space<vmem>>, vector<8x4096xf32>,
    %c478_i32 = arith.constant 478 : i32
    %51 = tpu.dynamic_rotate %10 by %c478_i32 dim 1 : vector<8x4096xf32>, i32 -> vector<8x4096xf32>
    %c8_29 = arith.constant 8 : index
    %c0_30 = arith.constant 0 : index
    %52 = vector.load %arg6[%c8_29, %c0_30] : memref<27x4096xf32, #tpu.memory_space<vmem>>, vector<1x4096xf32>
    %53 = vector.broadcast %52 : vector<1x4096xf32> to vector<8x4096xf32>
    %54 = arith.mulf %51, %53 : vector<8x4096xf32>
    %c64 = arith.constant 64 : index
    %c0_31 = arith.constant 0 : index
    %55 = vector.load %arg9[%c64, %c0_31] : memref<216x4096xf32, #tpu.memory_space<vmem>>, vector<8x4096xf32>
    tpu.vector_store %arg9[%c64, %c0_31], %54 {strides = array<i32>} : memref<216x4096xf32, #tpu.memory_space<vmem>>, vector<8x4096xf32>,
    %c34_i32 = arith.constant 34 : i32
    %56 = tpu.dynamic_rotate %10 by %c34_i32 dim 1 : vector<8x4096xf32>, i32 -> vector<8x4096xf32>
    %c9 = arith.constant 9 : index
    %c0_32 = arith.constant 0 : index
    %57 = vector.load %arg6[%c9, %c0_32] : memref<27x4096xf32, #tpu.memory_space<vmem>>, vector<1x4096xf32>
    %58 = vector.broadcast %57 : vector<1x4096xf32> to vector<8x4096xf32>
    %59 = arith.mulf %56, %58 : vector<8x4096xf32>
    %c72 = arith.constant 72 : index
    %c0_33 = arith.constant 0 : index
    %60 = vector.load %arg9[%c72, %c0_33] : memref<216x4096xf32, #tpu.memory_space<vmem>>, vector<8x4096xf32>
    tpu.vector_store %arg9[%c72, %c0_33], %59 {strides = array<i32>} : memref<216x4096xf32, #tpu.memory_space<vmem>>, vector<8x4096xf32>,
    %c32_i32 = arith.constant 32 : i32
    %61 = tpu.dynamic_rotate %10 by %c32_i32 dim 1 : vector<8x4096xf32>, i32 -> vector<8x4096xf32>
    %c10 = arith.constant 10 : index
    %c0_34 = arith.constant 0 : index
    %62 = vector.load %arg6[%c10, %c0_34] : memref<27x4096xf32, #tpu.memory_space<vmem>>, vector<1x4096xf32>
    %63 = vector.broadcast %62 : vector<1x4096xf32> to vector<8x4096xf32>
    %64 = arith.mulf %61, %63 : vector<8x4096xf32>
    %c80 = arith.constant 80 : index
    %c0_35 = arith.constant 0 : index
    %65 = vector.load %arg9[%c80, %c0_35] : memref<216x4096xf32, #tpu.memory_space<vmem>>, vector<8x4096xf32>
    tpu.vector_store %arg9[%c80, %c0_35], %64 {strides = array<i32>} : memref<216x4096xf32, #tpu.memory_space<vmem>>, vector<8x4096xf32>,
    %c30_i32 = arith.constant 30 : i32
    %66 = tpu.dynamic_rotate %10 by %c30_i32 dim 1 : vector<8x4096xf32>, i32 -> vector<8x4096xf32>
    %c11 = arith.constant 11 : index
    %c0_36 = arith.constant 0 : index
    %67 = vector.load %arg6[%c11, %c0_36] : memref<27x4096xf32, #tpu.memory_space<vmem>>, vector<1x4096xf32>
    %68 = vector.broadcast %67 : vector<1x4096xf32> to vector<8x4096xf32>
    %69 = arith.mulf %66, %68 : vector<8x4096xf32>
    %c88 = arith.constant 88 : index
    %c0_37 = arith.constant 0 : index
    %70 = vector.load %arg9[%c88, %c0_37] : memref<216x4096xf32, #tpu.memory_space<vmem>>, vector<8x4096xf32>
    tpu.vector_store %arg9[%c88, %c0_37], %69 {strides = array<i32>} : memref<216x4096xf32, #tpu.memory_space<vmem>>, vector<8x4096xf32>,
    %c2_i32 = arith.constant 2 : i32
    %71 = tpu.dynamic_rotate %10 by %c2_i32 dim 1 : vector<8x4096xf32>, i32 -> vector<8x4096xf32>
    %c12 = arith.constant 12 : index
    %c0_38 = arith.constant 0 : index
    %72 = vector.load %arg6[%c12, %c0_38] : memref<27x4096xf32, #tpu.memory_space<vmem>>, vector<1x4096xf32>
    %73 = vector.broadcast %72 : vector<1x4096xf32> to vector<8x4096xf32>
    %74 = arith.mulf %71, %73 : vector<8x4096xf32>
    %c96 = arith.constant 96 : index
    %c0_39 = arith.constant 0 : index
    %75 = vector.load %arg9[%c96, %c0_39] : memref<216x4096xf32, #tpu.memory_space<vmem>>, vector<8x4096xf32>
    tpu.vector_store %arg9[%c96, %c0_39], %74 {strides = array<i32>} : memref<216x4096xf32, #tpu.memory_space<vmem>>, vector<8x4096xf32>,
    %c13 = arith.constant 13 : index
    %c0_40 = arith.constant 0 : index
    %76 = vector.load %arg6[%c13, %c0_40] : memref<27x4096xf32, #tpu.memory_space<vmem>>, vector<1x4096xf32>
    %77 = vector.broadcast %76 : vector<1x4096xf32> to vector<8x4096xf32>
    %78 = arith.mulf %10, %77 : vector<8x4096xf32>
    %c104 = arith.constant 104 : index
    %c0_41 = arith.constant 0 : index
    %79 = vector.load %arg9[%c104, %c0_41] : memref<216x4096xf32, #tpu.memory_space<vmem>>, vector<8x4096xf32>
    tpu.vector_store %arg9[%c104, %c0_41], %78 {strides = array<i32>} : memref<216x4096xf32, #tpu.memory_space<vmem>>, vector<8x4096xf32>,
    %c4094_i32 = arith.constant 4094 : i32
    %80 = tpu.dynamic_rotate %10 by %c4094_i32 dim 1 : vector<8x4096xf32>, i32 -> vector<8x4096xf32>
    %c14 = arith.constant 14 : index
    %c0_42 = arith.constant 0 : index
    %81 = vector.load %arg6[%c14, %c0_42] : memref<27x4096xf32, #tpu.memory_space<vmem>>, vector<1x4096xf32>
    %82 = vector.broadcast %81 : vector<1x4096xf32> to vector<8x4096xf32>
    %83 = arith.mulf %80, %82 : vector<8x4096xf32>
    %c112 = arith.constant 112 : index
    %c0_43 = arith.constant 0 : index
    %84 = vector.load %arg9[%c112, %c0_43] : memref<216x4096xf32, #tpu.memory_space<vmem>>, vector<8x4096xf32>
    tpu.vector_store %arg9[%c112, %c0_43], %83 {strides = array<i32>} : memref<216x4096xf32, #tpu.memory_space<vmem>>, vector<8x4096xf32>,
    %c4066_i32 = arith.constant 4066 : i32
    %85 = tpu.dynamic_rotate %10 by %c4066_i32 dim 1 : vector<8x4096xf32>, i32 -> vector<8x4096xf32>
    %c15 = arith.constant 15 : index
    %c0_44 = arith.constant 0 : index
    %86 = vector.load %arg6[%c15, %c0_44] : memref<27x4096xf32, #tpu.memory_space<vmem>>, vector<1x4096xf32>
    %87 = vector.broadcast %86 : vector<1x4096xf32> to vector<8x4096xf32>
    %88 = arith.mulf %85, %87 : vector<8x4096xf32>
    %c120 = arith.constant 120 : index
    %c0_45 = arith.constant 0 : index
    %89 = vector.load %arg9[%c120, %c0_45] : memref<216x4096xf32, #tpu.memory_space<vmem>>, vector<8x4096xf32>
    tpu.vector_store %arg9[%c120, %c0_45], %88 {strides = array<i32>} : memref<216x4096xf32, #tpu.memory_space<vmem>>, vector<8x4096xf32>,
    %c4064_i32 = arith.constant 4064 : i32
    %90 = tpu.dynamic_rotate %10 by %c4064_i32 dim 1 : vector<8x4096xf32>, i32 -> vector<8x4096xf32>
    %c16_46 = arith.constant 16 : index
    %c0_47 = arith.constant 0 : index
    %91 = vector.load %arg6[%c16_46, %c0_47] : memref<27x4096xf32, #tpu.memory_space<vmem>>, vector<1x4096xf32>
    %92 = vector.broadcast %91 : vector<1x4096xf32> to vector<8x4096xf32>
    %93 = arith.mulf %90, %92 : vector<8x4096xf32>
    %c128 = arith.constant 128 : index
    %c0_48 = arith.constant 0 : index
    %94 = vector.load %arg9[%c128, %c0_48] : memref<216x4096xf32, #tpu.memory_space<vmem>>, vector<8x4096xf32>
    tpu.vector_store %arg9[%c128, %c0_48], %93 {strides = array<i32>} : memref<216x4096xf32, #tpu.memory_space<vmem>>, vector<8x4096xf32>,
    %c4062_i32 = arith.constant 4062 : i32
    %95 = tpu.dynamic_rotate %10 by %c4062_i32 dim 1 : vector<8x4096xf32>, i32 -> vector<8x4096xf32>
    %c17 = arith.constant 17 : index
    %c0_49 = arith.constant 0 : index
    %96 = vector.load %arg6[%c17, %c0_49] : memref<27x4096xf32, #tpu.memory_space<vmem>>, vector<1x4096xf32>
    %97 = vector.broadcast %96 : vector<1x4096xf32> to vector<8x4096xf32>
    %98 = arith.mulf %95, %97 : vector<8x4096xf32>
    %c136 = arith.constant 136 : index
    %c0_50 = arith.constant 0 : index
    %99 = vector.load %arg9[%c136, %c0_50] : memref<216x4096xf32, #tpu.memory_space<vmem>>, vector<8x4096xf32>
    tpu.vector_store %arg9[%c136, %c0_50], %98 {strides = array<i32>} : memref<216x4096xf32, #tpu.memory_space<vmem>>, vector<8x4096xf32>,
    %c3618_i32 = arith.constant 3618 : i32
    %100 = tpu.dynamic_rotate %10 by %c3618_i32 dim 1 : vector<8x4096xf32>, i32 -> vector<8x4096xf32>
    %c18 = arith.constant 18 : index
    %c0_51 = arith.constant 0 : index
    %101 = vector.load %arg6[%c18, %c0_51] : memref<27x4096xf32, #tpu.memory_space<vmem>>, vector<1x4096xf32>
    %102 = vector.broadcast %101 : vector<1x4096xf32> to vector<8x4096xf32>
    %103 = arith.mulf %100, %102 : vector<8x4096xf32>
    %c144 = arith.constant 144 : index
    %c0_52 = arith.constant 0 : index
    %104 = vector.load %arg9[%c144, %c0_52] : memref<216x4096xf32, #tpu.memory_space<vmem>>, vector<8x4096xf32>
    tpu.vector_store %arg9[%c144, %c0_52], %103 {strides = array<i32>} : memref<216x4096xf32, #tpu.memory_space<vmem>>, vector<8x4096xf32>,
    %c3616_i32 = arith.constant 3616 : i32
    %105 = tpu.dynamic_rotate %10 by %c3616_i32 dim 1 : vector<8x4096xf32>, i32 -> vector<8x4096xf32>
    %c19 = arith.constant 19 : index
    %c0_53 = arith.constant 0 : index
    %106 = vector.load %arg6[%c19, %c0_53] : memref<27x4096xf32, #tpu.memory_space<vmem>>, vector<1x4096xf32>
    %107 = vector.broadcast %106 : vector<1x4096xf32> to vector<8x4096xf32>
    %108 = arith.mulf %105, %107 : vector<8x4096xf32>
    %c152 = arith.constant 152 : index
    %c0_54 = arith.constant 0 : index
    %109 = vector.load %arg9[%c152, %c0_54] : memref<216x4096xf32, #tpu.memory_space<vmem>>, vector<8x4096xf32>
    tpu.vector_store %arg9[%c152, %c0_54], %108 {strides = array<i32>} : memref<216x4096xf32, #tpu.memory_space<vmem>>, vector<8x4096xf32>,
    %c3614_i32 = arith.constant 3614 : i32
    %110 = tpu.dynamic_rotate %10 by %c3614_i32 dim 1 : vector<8x4096xf32>, i32 -> vector<8x4096xf32>
    %c20 = arith.constant 20 : index
    %c0_55 = arith.constant 0 : index
    %111 = vector.load %arg6[%c20, %c0_55] : memref<27x4096xf32, #tpu.memory_space<vmem>>, vector<1x4096xf32>
    %112 = vector.broadcast %111 : vector<1x4096xf32> to vector<8x4096xf32>
    %113 = arith.mulf %110, %112 : vector<8x4096xf32>
    %c160 = arith.constant 160 : index
    %c0_56 = arith.constant 0 : index
    %114 = vector.load %arg9[%c160, %c0_56] : memref<216x4096xf32, #tpu.memory_space<vmem>>, vector<8x4096xf32>
    tpu.vector_store %arg9[%c160, %c0_56], %113 {strides = array<i32>} : memref<216x4096xf32, #tpu.memory_space<vmem>>, vector<8x4096xf32>,
    %c3586_i32 = arith.constant 3586 : i32
    %115 = tpu.dynamic_rotate %10 by %c3586_i32 dim 1 : vector<8x4096xf32>, i32 -> vector<8x4096xf32>
    %c21 = arith.constant 21 : index
    %c0_57 = arith.constant 0 : index
    %116 = vector.load %arg6[%c21, %c0_57] : memref<27x4096xf32, #tpu.memory_space<vmem>>, vector<1x4096xf32>
    %117 = vector.broadcast %116 : vector<1x4096xf32> to vector<8x4096xf32>
    %118 = arith.mulf %115, %117 : vector<8x4096xf32>
    %c168 = arith.constant 168 : index
    %c0_58 = arith.constant 0 : index
    %119 = vector.load %arg9[%c168, %c0_58] : memref<216x4096xf32, #tpu.memory_space<vmem>>, vector<8x4096xf32>
    tpu.vector_store %arg9[%c168, %c0_58], %118 {strides = array<i32>} : memref<216x4096xf32, #tpu.memory_space<vmem>>, vector<8x4096xf32>,
    %c3584_i32 = arith.constant 3584 : i32
    %120 = tpu.dynamic_rotate %10 by %c3584_i32 dim 1 : vector<8x4096xf32>, i32 -> vector<8x4096xf32>
    %c22 = arith.constant 22 : index
    %c0_59 = arith.constant 0 : index
    %121 = vector.load %arg6[%c22, %c0_59] : memref<27x4096xf32, #tpu.memory_space<vmem>>, vector<1x4096xf32>
    %122 = vector.broadcast %121 : vector<1x4096xf32> to vector<8x4096xf32>
    %123 = arith.mulf %120, %122 : vector<8x4096xf32>
    %c176 = arith.constant 176 : index
    %c0_60 = arith.constant 0 : index
    %124 = vector.load %arg9[%c176, %c0_60] : memref<216x4096xf32, #tpu.memory_space<vmem>>, vector<8x4096xf32>
    tpu.vector_store %arg9[%c176, %c0_60], %123 {strides = array<i32>} : memref<216x4096xf32, #tpu.memory_space<vmem>>, vector<8x4096xf32>,
    %c3582_i32 = arith.constant 3582 : i32
    %125 = tpu.dynamic_rotate %10 by %c3582_i32 dim 1 : vector<8x4096xf32>, i32 -> vector<8x4096xf32>
    %c23 = arith.constant 23 : index
    %c0_61 = arith.constant 0 : index
    %126 = vector.load %arg6[%c23, %c0_61] : memref<27x4096xf32, #tpu.memory_space<vmem>>, vector<1x4096xf32>
    %127 = vector.broadcast %126 : vector<1x4096xf32> to vector<8x4096xf32>
    %128 = arith.mulf %125, %127 : vector<8x4096xf32>
    %c184 = arith.constant 184 : index
    %c0_62 = arith.constant 0 : index
    %129 = vector.load %arg9[%c184, %c0_62] : memref<216x4096xf32, #tpu.memory_space<vmem>>, vector<8x4096xf32>
    tpu.vector_store %arg9[%c184, %c0_62], %128 {strides = array<i32>} : memref<216x4096xf32, #tpu.memory_space<vmem>>, vector<8x4096xf32>,
    %c3554_i32 = arith.constant 3554 : i32
    %130 = tpu.dynamic_rotate %10 by %c3554_i32 dim 1 : vector<8x4096xf32>, i32 -> vector<8x4096xf32>
    %c24_63 = arith.constant 24 : index
    %c0_64 = arith.constant 0 : index
    %131 = vector.load %arg6[%c24_63, %c0_64] : memref<27x4096xf32, #tpu.memory_space<vmem>>, vector<1x4096xf32>
    %132 = vector.broadcast %131 : vector<1x4096xf32> to vector<8x4096xf32>
    %133 = arith.mulf %130, %132 : vector<8x4096xf32>
    %c192 = arith.constant 192 : index
    %c0_65 = arith.constant 0 : index
    %134 = vector.load %arg9[%c192, %c0_65] : memref<216x4096xf32, #tpu.memory_space<vmem>>, vector<8x4096xf32>
    tpu.vector_store %arg9[%c192, %c0_65], %133 {strides = array<i32>} : memref<216x4096xf32, #tpu.memory_space<vmem>>, vector<8x4096xf32>,
    %c3552_i32 = arith.constant 3552 : i32
    %135 = tpu.dynamic_rotate %10 by %c3552_i32 dim 1 : vector<8x4096xf32>, i32 -> vector<8x4096xf32>
    %c25 = arith.constant 25 : index
    %c0_66 = arith.constant 0 : index
    %136 = vector.load %arg6[%c25, %c0_66] : memref<27x4096xf32, #tpu.memory_space<vmem>>, vector<1x4096xf32>
    %137 = vector.broadcast %136 : vector<1x4096xf32> to vector<8x4096xf32>
    %138 = arith.mulf %135, %137 : vector<8x4096xf32>
    %c200 = arith.constant 200 : index
    %c0_67 = arith.constant 0 : index
    %139 = vector.load %arg9[%c200, %c0_67] : memref<216x4096xf32, #tpu.memory_space<vmem>>, vector<8x4096xf32>
    tpu.vector_store %arg9[%c200, %c0_67], %138 {strides = array<i32>} : memref<216x4096xf32, #tpu.memory_space<vmem>>, vector<8x4096xf32>,
    %c3550_i32 = arith.constant 3550 : i32
    %140 = tpu.dynamic_rotate %10 by %c3550_i32 dim 1 : vector<8x4096xf32>, i32 -> vector<8x4096xf32>
    %c26 = arith.constant 26 : index
    %c0_68 = arith.constant 0 : index
    %141 = vector.load %arg6[%c26, %c0_68] : memref<27x4096xf32, #tpu.memory_space<vmem>>, vector<1x4096xf32>
    %142 = vector.broadcast %141 : vector<1x4096xf32> to vector<8x4096xf32>
    %143 = arith.mulf %140, %142 : vector<8x4096xf32>
    %c208 = arith.constant 208 : index
    %c0_69 = arith.constant 0 : index
    %144 = vector.load %arg9[%c208, %c0_69] : memref<216x4096xf32, #tpu.memory_space<vmem>>, vector<8x4096xf32>
    tpu.vector_store %arg9[%c208, %c0_69], %143 {strides = array<i32>} : memref<216x4096xf32, #tpu.memory_space<vmem>>, vector<8x4096xf32>,
    %c0_70 = arith.constant 0 : index
    %c0_71 = arith.constant 0 : index
    %145 = vector.load %arg4[%c0_70, %c0_71] : memref<8x216xf32, #tpu.memory_space<vmem>>, vector<8x216xf32>
    %c0_72 = arith.constant 0 : index
    %c0_73 = arith.constant 0 : index
    %146 = vector.load %arg9[%c0_72, %c0_73] : memref<216x4096xf32, #tpu.memory_space<vmem>>, vector<216x4096xf32>
    %cst_74 = arith.constant dense<0.000000e+00> : vector<8x4096xf32>
    %147 = tpu.matmul %145, %146, %cst_74 {dimension_numbers = #tpu.dot_dimension_numbers<[1], [0], [0], [1], [0, 0, 1, 1], [], []>} : vector<8x216xf32>, vector<216x4096xf32>, vector<8x4096xf32> -> vector<8x4096xf32>
    %c0_75 = arith.constant 0 : index
    %c0_76 = arith.constant 0 : index
    %148 = vector.load %arg5[%c0_75, %c0_76] : memref<8x1xf32, #tpu.memory_space<vmem>>, vector<8x1xf32>
    %149 = vector.broadcast %148 : vector<8x1xf32> to vector<8x4096xf32>
    %150 = arith.addf %147, %149 : vector<8x4096xf32>
    %cst_77 = arith.constant 0.000000e+00 : f32
    %151 = vector.broadcast %cst_77 : f32 to vector<8x4096xf32>
    %152 = arith.maximumf %150, %151 : vector<8x4096xf32>
    %c0_78 = arith.constant 0 : index
    %c0_79 = arith.constant 0 : index
    %c0_80 = arith.constant 0 : index
    %153 = vector.load %arg7[%c0_78, %c0_79, %c0_80] : memref<1x12x4096xf32, #tpu.memory_space<vmem>>, vector<1x8x4096xf32>
    %154 = vector.shape_cast %153 : vector<1x8x4096xf32> to vector<8x4096xf32>
    %155 = vector.shape_cast %152 : vector<8x4096xf32> to vector<1x8x4096xf32>
    tpu.vector_store %arg7[%c0_78, %c0_79, %c0_80], %155 {strides = array<i32>} : memref<1x12x4096xf32, #tpu.memory_space<vmem>>, vector<1x8x4096xf32>,
    %c0_81 = arith.constant 0 : index
    %c0_82 = arith.constant 0 : index
    %c0_83 = arith.constant 0 : index
    %156 = vector.load %arg1[%c0_81, %c0_82, %c0_83] : memref<1x4x4096xf32, #tpu.memory_space<vmem>>, vector<1x4x4096xf32>
    %157 = vector.shape_cast %156 : vector<1x4x4096xf32> to vector<4x4096xf32>
    %cst_84 = arith.constant 0.000000e+00 : f32
    %158 = vector.broadcast %cst_84 : f32 to vector<4x4096xf32>
    %159 = arith.maximumf %157, %158 : vector<4x4096xf32>
    %c0_85 = arith.constant 0 : index
    %c8_86 = arith.constant 8 : index
    %c0_87 = arith.constant 0 : index
    %160 = vector.load %arg7[%c0_85, %c8_86, %c0_87] : memref<1x12x4096xf32, #tpu.memory_space<vmem>>, vector<1x4x4096xf32>
    %161 = vector.shape_cast %160 : vector<1x4x4096xf32> to vector<4x4096xf32>
    %162 = vector.shape_cast %159 : vector<4x4096xf32> to vector<1x4x4096xf32>
    tpu.vector_store %arg7[%c0_85, %c8_86, %c0_87], %162 {strides = array<i32>} : memref<1x12x4096xf32, #tpu.memory_space<vmem>>, vector<1x4x4096xf32>,
    return
  }
  func.func @transform_0(%arg0: i32) -> (i32, i32, i32) {
    %c0_i32 = arith.constant 0 : i32
    %c0_i32_0 = arith.constant 0 : i32
    %c0_i32_1 = arith.constant 0 : i32
    return %arg0, %c0_i32, %c0_i32_0 : i32, i32, i32
  }
  func.func @transform_1(%arg0: i32) -> (i32, i32) {
    %c0_i32 = arith.constant 0 : i32
    %c0_i32_0 = arith.constant 0 : i32
    %c0_i32_1 = arith.constant 0 : i32
    return %c0_i32, %c0_i32_0 : i32, i32
  }
  func.func @transform_2(%arg0: i32) -> (i32, i32) {
    %c0_i32 = arith.constant 0 : i32
    %c0_i32_0 = arith.constant 0 : i32
    %c0_i32_1 = arith.constant 0 : i32
    return %c0_i32, %c0_i32_0 : i32, i32
  }
  func.func @transform_3(%arg0: i32) -> (i32, i32) {
    %c0_i32 = arith.constant 0 : i32
    %c0_i32_0 = arith.constant 0 : i32
    %c0_i32_1 = arith.constant 0 : i32
    return %c0_i32, %c0_i32_0 : i32, i32
  }
  func.func @transform_4(%arg0: i32) -> (i32, i32) {
    %c0_i32 = arith.constant 0 : i32
    %c0_i32_0 = arith.constant 0 : i32
    %c0_i32_1 = arith.constant 0 : i32
    return %c0_i32, %c0_i32_0 : i32, i32
  }
  func.func @transform_5(%arg0: i32) -> (i32, i32) {
    %c0_i32 = arith.constant 0 : i32
    %c0_i32_0 = arith.constant 0 : i32
    %c0_i32_1 = arith.constant 0 : i32
    return %c0_i32, %c0_i32_0 : i32, i32
  }
  func.func @transform_6(%arg0: i32) -> (i32, i32, i32) {
    %c0_i32 = arith.constant 0 : i32
    %c0_i32_0 = arith.constant 0 : i32
    %c0_i32_1 = arith.constant 0 : i32
    return %arg0, %c0_i32, %c0_i32_0 : i32, i32, i32
  }
}

</mosaic_0001>

<llo_original>
// kernel: tpu_custom_call.1
$region0: #{tpu_custom_call.1}
  #allocation0 [shape = 'u32[]', space=smem, size = 0x4, offset = 0x4, fixed_abs, tag = 'smem constant byte address 0x4 - core index']
  #allocation1 [shape = 'u32[144,128]{1,0:T(1,128)}', space=vmem, size = 0x12000, scoped, tag = 'internal scratch']
  #allocation2 [shape = 'f32[8,4096]{1,0:T(8,128)}', space=vmem, size = 0x20000, scoped, tag = 'scratch operand']
  #allocation3 [shape = 'f32[216,4096]{1,0:T(8,128)}', space=vmem, size = 0x360000, scoped, tag = 'scratch operand']
  %s0 = inlined_call_operand.hbm [shape: f32[2,4,4096], index: 0, kind: input, shape index: {}]
  %s1 = inlined_call_operand.vmem [shape: f32[8,4], index: 1, kind: input, shape index: {}]
  %s2 = inlined_call_operand.vmem [shape: f32[8,1], index: 2, kind: input, shape index: {}]
  %s3 = inlined_call_operand.vmem [shape: f32[8,216], index: 3, kind: input, shape index: {}]
  %s4 = inlined_call_operand.vmem [shape: f32[8,1], index: 4, kind: input, shape index: {}]
  %s5 = inlined_call_operand.hbm [shape: f32[27,4096], index: 5, kind: input, shape index: {}]
  %s6 = inlined_call_operand.vmem [shape: f32[2,12,4096], index: 6, kind: output, shape index: {}]
  %s7 = sld [smem:[#allocation0]]
  $region65: #{tpu_custom_call.1} parent=0
    _
  %s9 = ssub.s32 1, %s7
  %s10 = scalar_select 0, %s9, %s7
  $region1: #{tpu_custom_call.1} parent=0
    #allocation4 [shape = 'u8[131072]{0}', space=vmem, size = 0x20000, scoped, tag = 'input window, operand 0']
    #allocation5 [shape = 's32[2]{0}', space=sflag, size = 0x8, scoped, tag = 'scoped memory for tpu_custom_call.1']
    #allocation6 [shape = 'u8[524288]{0}', space=vmem, size = 0x80000, scoped, tag = 'input window, operand 5, single buffered']
    #allocation7 [shape = 's32[1]{0}', space=sflag, size = 0x4, scoped, tag = 'scoped memory for tpu_custom_call.1']
    %11 = vsyncpa [#allocation5], 0
    %s12 = scalar_lea.sflag [#allocation5], 1
    %13 = vsyncpa %s12, 0
    %14 = vsyncpa [#allocation7], 0
    loop: start=0, step=1, limit=4
    $region2: #{tpu_custom_call.1} parent=1 // loop_pre_header
      _
    $region3: #{tpu_custom_call.1} parent=1 // loop_header
      %s16 = sphi 0, %s20
      %p17 = scmp.ge.s32.totalorder %s16, 4
      %s26 = sphi 0, %s28
      %s29 = sphi 0, %s26
      %s30 = sphi 0, %s29
      %s46 = sphi 0, %s30
      %s50 = sphi 0, %s50
      %s52 = sphi 0, %s50
      %s53 = sphi 0, %s52
      %s67 = sphi 0, %s53
      %s71 = sphi 0, %s71
      %s73 = sphi 0, %s71
      %s74 = sphi 0, %s73
      %s88 = sphi 0, %s74
      %s92 = sphi 0, %s92
      %s94 = sphi 0, %s92
      %s95 = sphi 0, %s94
      %s109 = sphi 0, %s95
      %s113 = sphi 0, %s113
      %s115 = sphi 0, %s113
      %s116 = sphi 0, %s115
      %s130 = sphi 0, %s116
      %s134 = sphi 0, %s134
      %s136 = sphi 0, %s134
      %s137 = sphi 0, %s136
      %s151 = sphi 0, %s137
      %s157 = sphi 0, %s159
      %s160 = sphi 0, %s157
      %s161 = sphi 0, %s160
      %s177 = sphi 0, %s161
    $region4: #{tpu_custom_call.1} parent=1 // loop_header_branch
      %19 = sbr.rel (%p17) target = $region8
    $region5: #{tpu_custom_call.1} parent=1 // loop_body
      %s21 = ssub.s32 %s16, 1
      %s22 = ssub.s32 %s16, 2
      %s23 = sadd.s32 %s16, 1
      %s24 = ssub.s32 %s16, %s23
      %p25 = scmp.eq.s32.totalorder %s24, 0
      %s27 = sadd.s32 %s26, 1
      %s28 = scalar_select %p25, %s26, %s27
      %p31 = pneg %p25
      %p32 = scmp.eq.s32.totalorder %s16, 1
      %p33 = por %p31, %p32
      %p34 = scmp.ne.s32.totalorder %s26, %s29
      %p35 = scmp.eq.s32.totalorder %s16, 0
      %p36 = por %p34, %p35
      %p37 = scmp.ne.s32.totalorder %s26, %s29
      %p38 = scmp.eq.s32.totalorder %s21, 1
      %p39 = por %p37, %p38
      %p40 = scmp.ne.s32.totalorder %s29, %s30
      %p41 = scmp.eq.s32.totalorder %s21, 0
      %p42 = por %p40, %p41
      %p43 = scmp.ne.s32.totalorder %s29, %s30
      %p44 = scmp.eq.s32.totalorder %s22, 1
      %p45 = por %p43, %p44
      %p47 = scmp.ne.s32.totalorder %s30, %s46
      %p48 = scmp.eq.s32.totalorder %s22, 0
      %p49 = por %p47, %p48
      %s51 = sadd.s32 %s50, 1
      %p54 = scmp.eq.s32.totalorder %s16, 1
      %p55 = scmp.ne.s32.totalorder %s50, %s52
      %p56 = scmp.eq.s32.totalorder %s16, 0
      %p57 = por %p55, %p56
      %p58 = scmp.ne.s32.totalorder %s50, %s52
      %p59 = scmp.eq.s32.totalorder %s21, 1
      %p60 = por %p58, %p59
      %p61 = scmp.ne.s32.totalorder %s52, %s53
      %p62 = scmp.eq.s32.totalorder %s21, 0
      %p63 = por %p61, %p62
      %p64 = scmp.ne.s32.totalorder %s52, %s53
      %p65 = scmp.eq.s32.totalorder %s22, 1
      %p66 = por %p64, %p65
      %p68 = scmp.ne.s32.totalorder %s53, %s67
      %p69 = scmp.eq.s32.totalorder %s22, 0
      %p70 = por %p68, %p69
      %s72 = sadd.s32 %s71, 1
      %p75 = scmp.eq.s32.totalorder %s16, 1
      %p76 = scmp.ne.s32.totalorder %s71, %s73
      %p77 = scmp.eq.s32.totalorder %s16, 0
      %p78 = por %p76, %p77
      %p79 = scmp.ne.s32.totalorder %s71, %s73
      %p80 = scmp.eq.s32.totalorder %s21, 1
      %p81 = por %p79, %p80
      %p82 = scmp.ne.s32.totalorder %s73, %s74
      %p83 = scmp.eq.s32.totalorder %s21, 0
      %p84 = por %p82, %p83
      %p85 = scmp.ne.s32.totalorder %s73, %s74
      %p86 = scmp.eq.s32.totalorder %s22, 1
      %p87 = por %p85, %p86
      %p89 = scmp.ne.s32.totalorder %s74, %s88
      %p90 = scmp.eq.s32.totalorder %s22, 0
      %p91 = por %p89, %p90
      %s93 = sadd.s32 %s92, 1
      %p96 = scmp.eq.s32.totalorder %s16, 1
      %p97 = scmp.ne.s32.totalorder %s92, %s94
      %p98 = scmp.eq.s32.totalorder %s16, 0
      %p99 = por %p97, %p98
      %p100 = scmp.ne.s32.totalorder %s92, %s94
      %p101 = scmp.eq.s32.totalorder %s21, 1
      %p102 = por %p100, %p101
      %p103 = scmp.ne.s32.totalorder %s94, %s95
      %p104 = scmp.eq.s32.totalorder %s21, 0
      %p105 = por %p103, %p104
      %p106 = scmp.ne.s32.totalorder %s94, %s95
      %p107 = scmp.eq.s32.totalorder %s22, 1
      %p108 = por %p106, %p107
      %p110 = scmp.ne.s32.totalorder %s95, %s109
      %p111 = scmp.eq.s32.totalorder %s22, 0
      %p112 = por %p110, %p111
      %s114 = sadd.s32 %s113, 1
      %p117 = scmp.eq.s32.totalorder %s16, 1
      %p118 = scmp.ne.s32.totalorder %s113, %s115
      %p119 = scmp.eq.s32.totalorder %s16, 0
      %p120 = por %p118, %p119
      %p121 = scmp.ne.s32.totalorder %s113, %s115
      %p122 = scmp.eq.s32.totalorder %s21, 1
      %p123 = por %p121, %p122
      %p124 = scmp.ne.s32.totalorder %s115, %s116
      %p125 = scmp.eq.s32.totalorder %s21, 0
      %p126 = por %p124, %p125
      %p127 = scmp.ne.s32.totalorder %s115, %s116
      %p128 = scmp.eq.s32.totalorder %s22, 1
      %p129 = por %p127, %p128
      %p131 = scmp.ne.s32.totalorder %s116, %s130
      %p132 = scmp.eq.s32.totalorder %s22, 0
      %p133 = por %p131, %p132
      %s135 = sadd.s32 %s134, 1
      %p138 = scmp.eq.s32.totalorder %s16, 1
      %p139 = scmp.ne.s32.totalorder %s134, %s136
      %p140 = scmp.eq.s32.totalorder %s16, 0
      %p141 = por %p139, %p140
      %p142 = scmp.ne.s32.totalorder %s134, %s136
      %p143 = scmp.eq.s32.totalorder %s21, 1
      %p144 = por %p142, %p143
      %p145 = scmp.ne.s32.totalorder %s136, %s137
      %p146 = scmp.eq.s32.totalorder %s21, 0
      %p147 = por %p145, %p146
      %p148 = scmp.ne.s32.totalorder %s136, %s137
      %p149 = scmp.eq.s32.totalorder %s22, 1
      %p150 = por %p148, %p149
      %p152 = scmp.ne.s32.totalorder %s137, %s151
      %p153 = scmp.eq.s32.totalorder %s22, 0
      %p154 = por %p152, %p153
      %s155 = ssub.s32 %s16, %s23
      %p156 = scmp.eq.s32.totalorder %s155, 0
      %s158 = sadd.s32 %s157, 1
      %s159 = scalar_select %p156, %s157, %s158
      %p162 = pneg %p156
      %p163 = scmp.eq.s32.totalorder %s16, 1
      %p164 = por %p162, %p163
      %p165 = scmp.ne.s32.totalorder %s157, %s160
      %p166 = scmp.eq.s32.totalorder %s16, 0
      %p167 = por %p165, %p166
      %p168 = scmp.ne.s32.totalorder %s157, %s160
      %p169 = scmp.eq.s32.totalorder %s21, 1
      %p170 = por %p168, %p169
      %p171 = scmp.ne.s32.totalorder %s160, %s161
      %p172 = scmp.eq.s32.totalorder %s21, 0
      %p173 = por %p171, %p172
      %p174 = scmp.ne.s32.totalorder %s160, %s161
      %p175 = scmp.eq.s32.totalorder %s22, 1
      %p176 = por %p174, %p175
      %p178 = scmp.ne.s32.totalorder %s161, %s177
      %p179 = scmp.eq.s32.totalorder %s22, 0
      %p180 = por %p178, %p179
      %p181 = scmp.le.s32.totalorder 1, %s16
      %p182 = scmp.lt.s32.totalorder %s16, 3
      %p183 = pnand %p181, %p182
      %p184 = pneg %p183
      // Predicated region
      $region9: #{tpu_custom_call.1} parent=5 // pred_check
        _
      $region10: #{tpu_custom_call.1} parent=5 // pred_check_branch
        %186 = sbr.rel (%p183) target = $region12
      $region11: #{tpu_custom_call.1} parent=5 // pred_region
        %s187 = ssub.s32 %s16, 1
        // Predicated region
        $region13: #{tpu_custom_call.1} parent=11 // pred_check
          %p188 = pneg %p63
        $region14: #{tpu_custom_call.1} parent=11 // pred_check_branch
          %190 = sbr.rel (%p188) target = $region16
        $region15: #{tpu_custom_call.1} parent=11 // pred_region
          _
        $region16: #{tpu_custom_call.1} parent=11 // pred_fallthru
          _
        // Predicated region
        $region17: #{tpu_custom_call.1} parent=11 // pred_check
          %p191 = pneg %p84
        $region18: #{tpu_custom_call.1} parent=11 // pred_check_branch
          %193 = sbr.rel (%p191) target = $region20
        $region19: #{tpu_custom_call.1} parent=11 // pred_region
          _
        $region20: #{tpu_custom_call.1} parent=11 // pred_fallthru
          _
        // Predicated region
        $region21: #{tpu_custom_call.1} parent=11 // pred_check
          %p194 = pneg %p105
        $region22: #{tpu_custom_call.1} parent=11 // pred_check_branch
          %196 = sbr.rel (%p194) target = $region24
        $region23: #{tpu_custom_call.1} parent=11 // pred_region
          _
        $region24: #{tpu_custom_call.1} parent=11 // pred_fallthru
          _
        // Predicated region
        $region25: #{tpu_custom_call.1} parent=11 // pred_check
          %p197 = pneg %p126
        $region26: #{tpu_custom_call.1} parent=11 // pred_check_branch
          %199 = sbr.rel (%p197) target = $region28
        $region27: #{tpu_custom_call.1} parent=11 // pred_region
          _
        $region28: #{tpu_custom_call.1} parent=11 // pred_fallthru
          _
        // Predicated region
        $region29: #{tpu_custom_call.1} parent=11 // pred_check
          %p200 = pneg %p147
        $region30: #{tpu_custom_call.1} parent=11 // pred_check_branch
          %202 = sbr.rel (%p200) target = $region32
        $region31: #{tpu_custom_call.1} parent=11 // pred_region
          %s204 = ssub.s32 16384, 16384
          %205 = vsyncadd [#allocation7], %s204
          %s206 = sshll.u32 [#allocation6], 4
          %s207 = int_to_ptr.vmem [resolvable:$true] %s206
          %212 = dma.hbm_to_vmem [thread:$0]  %s5, 16384, %s207, [#allocation7], 4096, 4096, 256
        $region32: #{tpu_custom_call.1} parent=11 // pred_fallthru
          _
      $region12: #{tpu_custom_call.1} parent=5 // pred_fallthru
        _
      %p213 = scmp.lt.s32.totalorder %s16, 2
      // Predicated region
      $region33: #{tpu_custom_call.1} parent=5 // pred_check
        %p214 = pneg %p213
      $region34: #{tpu_custom_call.1} parent=5 // pred_check_branch
        %216 = sbr.rel (%p214) target = $region36
      $region35: #{tpu_custom_call.1} parent=5 // pred_region
        // Predicated region
        $region37: #{tpu_custom_call.1} parent=35 // pred_check
          %p217 = pneg %p36
        $region38: #{tpu_custom_call.1} parent=35 // pred_check_branch
          %219 = sbr.rel (%p217) target = $region40
        $region39: #{tpu_custom_call.1} parent=35 // pred_region
          %s220 = sand.u32 %s26, 1
          %s221 = scalar_lea.sflag [#allocation5], %s220
          %s222 = sand.u32 %s26, 1
          %s223 = smul.addr %s222, 128
          %s224 = scalar_lea.vmem [#allocation4], %s223
          %s226 = ssub.s32 2048, 2048
          %227 = vsyncadd %s221, %s226
          %s228 = smul.addr %s16, 32
          %s229 = smul.addr %s228, 64
          %s230 = scalar_lea.hbm %s0, %s229
          %s232 = sshll.u32 %s224, 4
          %s233 = int_to_ptr.vmem [resolvable:$true] %s232
          %235 = dma.hbm_to_vmem [thread:$0]  %s230, 2048, %s233, %s221
        $region40: #{tpu_custom_call.1} parent=35 // pred_fallthru
          _
      $region36: #{tpu_custom_call.1} parent=5 // pred_fallthru
        _
      %p236 = scmp.le.s32.totalorder 1, %s16
      %p237 = scmp.lt.s32.totalorder %s16, 3
      %p238 = pnand %p236, %p237
      %p239 = pneg %p238
      // Predicated region
      $region41: #{tpu_custom_call.1} parent=5 // pred_check
        _
      $region42: #{tpu_custom_call.1} parent=5 // pred_check_branch
        %241 = sbr.rel (%p238) target = $region44
      $region43: #{tpu_custom_call.1} parent=5 // pred_region
        %s242 = ssub.s32 %s16, 1
        %s243 = sand.u32 %s29, 1
        %s244 = scalar_lea.sflag [#allocation5], %s243
        %s245 = sand.u32 %s29, 1
        %s246 = smul.addr %s245, 128
        %s247 = scalar_lea.vmem [#allocation4], %s246
        // Predicated region
        $region45: #{tpu_custom_call.1} parent=43 // pred_check
          %p248 = pneg %p42
        $region46: #{tpu_custom_call.1} parent=43 // pred_check_branch
          %250 = sbr.rel (%p248) target = $region48
        $region47: #{tpu_custom_call.1} parent=43 // pred_region
          %251 = dma.done %s244, 2048
        $region48: #{tpu_custom_call.1} parent=43 // pred_fallthru
          _
        // Predicated region
        $region49: #{tpu_custom_call.1} parent=43 // pred_check
          %p252 = pneg %p147
        $region50: #{tpu_custom_call.1} parent=43 // pred_check_branch
          %254 = sbr.rel (%p252) target = $region52
        $region51: #{tpu_custom_call.1} parent=43 // pred_region
          %255 = dma.done [#allocation7], 16384
        $region52: #{tpu_custom_call.1} parent=43 // pred_fallthru
          _
        %s256 = sand.u32 %s29, 1
        %s257 = scalar_lea.sflag [#allocation5], %s256
        %s258 = sand.u32 %s29, 1
        %s259 = smul.addr %s258, 128
        %s260 = scalar_lea.vmem [#allocation4], %s259
        %p261 = pneg %p42
        %p262 = pneg %p39
        %p263 = pneg %p63
        %p264 = pneg %p60
        %p265 = pneg %p84
        %p266 = pneg %p81
        %p267 = pneg %p105
        %p268 = pneg %p102
        %p269 = pneg %p126
        %p270 = pneg %p123
        %p271 = pneg %p147
        %p272 = pneg %p144
        %p273 = pneg %p173
        %p274 = pneg %p170
        %p275 = scmp.lt.s32.totalorder %s21, 1
        %s276 = scalar_select %p275, %s21, 1
        %s277 = smul.addr %s276, 64
        %s278 = smul.addr %s277, 8
        %s279 = scalar_lea.vmem %s6, %s278
        %p280 = scmp.lt.s32.totalorder %s21, 1
        %s281 = scalar_select %p280, %s21, 1
        %s282 = smul.addr %s281, 64
        %s283 = smul.addr %s282, 8
        %s284 = scalar_lea.vmem %s6, %s283
        %v285 = vld [vmem:[%s1] sm:$0xff]
        %v286 = vld [vmem:[%s247] sm:$0xff]
        %v287 = vld [vmem:[%s247 + $0x8] sm:$0xff]
        %v288 = vld [vmem:[%s247 + $0x10] sm:$0xff]
        %v289 = vld [vmem:[%s247 + $0x18] sm:$0xff]
        %v290 = vld [vmem:[%s247 + $0x20] sm:$0xff]
        %v291 = vld [vmem:[%s247 + $0x28] sm:$0xff]
        %v292 = vld [vmem:[%s247 + $0x30] sm:$0xff]
        %v293 = vld [vmem:[%s247 + $0x38] sm:$0xff]
        %v294 = vld [vmem:[%s247 + $0x40] sm:$0xff]
        %v295 = vld [vmem:[%s247 + $0x48] sm:$0xff]
        %v296 = vld [vmem:[%s247 + $0x50] sm:$0xff]
        %v297 = vld [vmem:[%s247 + $0x58] sm:$0xff]
        %v298 = vld [vmem:[%s247 + $0x60] sm:$0xff]
        %v299 = vld [vmem:[%s247 + $0x68] sm:$0xff]
        %v300 = vld [vmem:[%s247 + $0x70] sm:$0xff]
        %v301 = vld [vmem:[%s247 + $0x78] sm:$0xff]
        %v302 = vld [vmem:[%s2] sm:$0xff]
        %304 = vset.pattern.permute.xlu0 0
        %305 = vperm.xlu0 %304, %v302
        %v306 = vpop.permute.xlu0 %305
        %v324 = vcombine.high %v286, %v286
        %v325 = vcombine.high %v287, %v287
        %v326 = vcombine.high %v288, %v288
        %v327 = vcombine.high %v289, %v289
        %v328 = vcombine.high %v290, %v290
        %v329 = vcombine.high %v291, %v291
        %v330 = vcombine.high %v292, %v292
        %v331 = vcombine.high %v293, %v293
        %v332 = vcombine.high %v294, %v294
        %v333 = vcombine.high %v295, %v295
        %v334 = vcombine.high %v296, %v296
        %v335 = vcombine.high %v297, %v297
        %v336 = vcombine.high %v298, %v298
        %v337 = vcombine.high %v299, %v299
        %v338 = vcombine.high %v300, %v300
        %v339 = vcombine.high %v301, %v301
        %vm340 = vcmask 31744
        %v342 = vsel %vm340, %v285, 0
        %vm344 = vcmask 1043456
        %v345 = vsel %vm344, %v286, 0
        %v347 = vsel %vm344, %v324, 0
        %v349 = vsel %vm344, %v287, 0
        %v351 = vsel %vm344, %v325, 0
        %v353 = vsel %vm344, %v288, 0
        %v355 = vsel %vm344, %v326, 0
        %v357 = vsel %vm344, %v289, 0
        %v359 = vsel %vm344, %v327, 0
        %v361 = vsel %vm344, %v290, 0
        %v363 = vsel %vm344, %v328, 0
        %v365 = vsel %vm344, %v291, 0
        %v367 = vsel %vm344, %v329, 0
        %v369 = vsel %vm344, %v292, 0
        %v371 = vsel %vm344, %v330, 0
        %v373 = vsel %vm344, %v293, 0
        %v375 = vsel %vm344, %v331, 0
        %v377 = vsel %vm344, %v294, 0
        %v379 = vsel %vm344, %v332, 0
        %v381 = vsel %vm344, %v295, 0
        %v383 = vsel %vm344, %v333, 0
        %v385 = vsel %vm344, %v296, 0
        %v387 = vsel %vm344, %v334, 0
        %v389 = vsel %vm344, %v297, 0
        %v391 = vsel %vm344, %v335, 0
        %v393 = vsel %vm344, %v298, 0
        %v395 = vsel %vm344, %v336, 0
        %v397 = vsel %vm344, %v299, 0
        %v399 = vsel %vm344, %v337, 0
        %v401 = vsel %vm344, %v300, 0
        %v403 = vsel %vm344, %v338, 0
        %v405 = vsel %vm344, %v301, 0
        %v407 = vsel %vm344, %v339, 0
        %409 = vmatprep.subr.mxu0 %v347
        %410 = vmatpush1.msra.mxu0 %v345
        %411 = vmatprep.subr.mxu0 0.0
        %412 = vmatpush1.msra.mxu0 0.0
        %413 = vmatprep.subr.mxu0 0.0
        %414 = vmatpush1.msra.mxu0 0.0
        %415 = vmatprep.subr.mxu0 0.0
        %416 = vmatpush1.msra.mxu0 0.0
        %417 = vmatprep.subr.mxu0 0.0
        %418 = vmatpush1.msra.mxu0 0.0
        %419 = vmatprep.subr.mxu0 0.0
        %420 = vmatpush1.msra.mxu0 0.0
        %421 = vmatprep.subr.mxu0 0.0
        %422 = vmatpush1.msra.mxu0 0.0
        %423 = vmatprep.subr.mxu0 0.0
        %424 = vmatpush1.msra.mxu0 0.0
        %425 = vmatprep.subr.mxu0 0.0
        %426 = vmatpush1.msra.mxu0 0.0
        %427 = vmatprep.subr.mxu0 0.0
        %428 = vmatpush1.msra.mxu0 0.0
        %429 = vmatprep.subr.mxu0 0.0
        %430 = vmatpush1.msra.mxu0 0.0
        %431 = vmatprep.subr.mxu0 0.0
        %432 = vmatpush1.msra.mxu0 0.0
        %433 = vmatprep.subr.mxu0 0.0
        %434 = vmatpush1.msra.mxu0 0.0
        %435 = vmatprep.subr.mxu0 0.0
        %436 = vmatpush1.msra.mxu0 0.0
        %437 = vmatprep.subr.mxu0 0.0
        %438 = vmatpush1.msra.mxu0 0.0
        %439 = vmatprep.subr.mxu0 0.0
        %440 = vmatpush1.msra.mxu0 0.0
        %441 = vmatprep.subr.mxu0 0.0
        %442 = vmatpush1.msra.mxu0 0.0
        %443 = vmatprep.subr.mxu0 0.0
        %444 = vmatpush1.msra.mxu0 0.0
        %445 = vmatprep.subr.mxu0 0.0
        %446 = vmatpush1.msra.mxu0 0.0
        %447 = vmatprep.subr.mxu0 0.0
        %448 = vmatpush1.msra.mxu0 0.0
        %449 = vmatprep.subr.mxu0 0.0
        %450 = vmatpush1.msra.mxu0 0.0
        %451 = vmatprep.subr.mxu0 0.0
        %452 = vmatpush1.msra.mxu0 0.0
        %453 = vmatprep.subr.mxu0 0.0
        %454 = vmatpush1.msra.mxu0 0.0
        %455 = vmatprep.subr.mxu0 0.0
        %456 = vmatpush1.msra.mxu0 0.0
        %457 = vmatprep.subr.mxu0 0.0
        %458 = vmatpush1.msra.mxu0 0.0
        %459 = vmatprep.subr.mxu0 0.0
        %460 = vmatpush1.msra.mxu0 0.0
        %461 = vmatprep.subr.mxu0 0.0
        %462 = vmatpush1.msra.mxu0 0.0
        %463 = vmatprep.subr.mxu0 0.0
        %464 = vmatpush1.msra.mxu0 0.0
        %465 = vmatprep.subr.mxu0 0.0
        %466 = vmatpush1.msra.mxu0 0.0
        %467 = vmatprep.subr.mxu0 0.0
        %468 = vmatpush1.msra.mxu0 0.0
        %469 = vmatprep.subr.mxu0 0.0
        %470 = vmatpush1.msra.mxu0 0.0
        %471 = vmatprep.subr.mxu0 0.0
        %472 = vmatpush1.msra.mxu0 0.0
        %473 = vmatprep.mubr.f32.mxu0 0.0
        %474 = vmatmul.mubr.f32.gmra.mrb[0].mxu0 %v342
        %v475 = vpop.f32.mrb[0].mxu0
        %v476 = vadd.f32 %v306, %v475
        %v477 = vpop.f32.mrb[0].mxu0
        %v478 = vadd.f32 %v306, %v477
        %479 = vdwg.mxu0
        %480 = vmatprep.subr.mxu0 %v351
        %481 = vmatpush1.msra.mxu0 %v349
        %482 = vmatprep.subr.mxu0 0.0
        %483 = vmatpush1.msra.mxu0 0.0
        %484 = vmatprep.subr.mxu0 0.0
        %485 = vmatpush1.msra.mxu0 0.0
        %486 = vmatprep.subr.mxu0 0.0
        %487 = vmatpush1.msra.mxu0 0.0
        %488 = vmatprep.subr.mxu0 0.0
        %489 = vmatpush1.msra.mxu0 0.0
        %490 = vmatprep.subr.mxu0 0.0
        %491 = vmatpush1.msra.mxu0 0.0
        %492 = vmatprep.subr.mxu0 0.0
        %493 = vmatpush1.msra.mxu0 0.0
        %494 = vmatprep.subr.mxu0 0.0
        %495 = vmatpush1.msra.mxu0 0.0
        %496 = vmatprep.subr.mxu0 0.0
        %497 = vmatpush1.msra.mxu0 0.0
        %498 = vmatprep.subr.mxu0 0.0
        %499 = vmatpush1.msra.mxu0 0.0
        %500 = vmatprep.subr.mxu0 0.0
        %501 = vmatpush1.msra.mxu0 0.0
        %502 = vmatprep.subr.mxu0 0.0
        %503 = vmatpush1.msra.mxu0 0.0
        %504 = vmatprep.subr.mxu0 0.0
        %505 = vmatpush1.msra.mxu0 0.0
        %506 = vmatprep.subr.mxu0 0.0
        %507 = vmatpush1.msra.mxu0 0.0
        %508 = vmatprep.subr.mxu0 0.0
        %509 = vmatpush1.msra.mxu0 0.0
        %510 = vmatprep.subr.mxu0 0.0
        %511 = vmatpush1.msra.mxu0 0.0
        %512 = vmatprep.subr.mxu0 0.0
        %513 = vmatpush1.msra.mxu0 0.0
        %514 = vmatprep.subr.mxu0 0.0
        %515 = vmatpush1.msra.mxu0 0.0
        %516 = vmatprep.subr.mxu0 0.0
        %517 = vmatpush1.msra.mxu0 0.0
        %518 = vmatprep.subr.mxu0 0.0
        %519 = vmatpush1.msra.mxu0 0.0
        %520 = vmatprep.subr.mxu0 0.0
        %521 = vmatpush1.msra.mxu0 0.0
        %522 = vmatprep.subr.mxu0 0.0
        %523 = vmatpush1.msra.mxu0 0.0
        %524 = vmatprep.subr.mxu0 0.0
        %525 = vmatpush1.msra.mxu0 0.0
        %526 = vmatprep.subr.mxu0 0.0
        %527 = vmatpush1.msra.mxu0 0.0
        %528 = vmatprep.subr.mxu0 0.0
        %529 = vmatpush1.msra.mxu0 0.0
        %530 = vmatprep.subr.mxu0 0.0
        %531 = vmatpush1.msra.mxu0 0.0
        %532 = vmatprep.subr.mxu0 0.0
        %533 = vmatpush1.msra.mxu0 0.0
        %534 = vmatprep.subr.mxu0 0.0
        %535 = vmatpush1.msra.mxu0 0.0
        %536 = vmatprep.subr.mxu0 0.0
        %537 = vmatpush1.msra.mxu0 0.0
        %538 = vmatprep.subr.mxu0 0.0
        %539 = vmatpush1.msra.mxu0 0.0
        %540 = vmatprep.subr.mxu0 0.0
        %541 = vmatpush1.msra.mxu0 0.0
        %542 = vmatprep.subr.mxu0 0.0
        %543 = vmatpush1.msra.mxu0 0.0
        %544 = vmatprep.mubr.f32.mxu0 0.0
        %545 = vmatmul.mubr.f32.gmra.mrb[0].mxu0 %v342
        %v546 = vpop.f32.mrb[0].mxu0
        %v547 = vadd.f32 %v306, %v546
        %v548 = vpop.f32.mrb[0].mxu0
        %v549 = vadd.f32 %v306, %v548
        %550 = vdwg.mxu0
        %551 = vmatprep.subr.mxu0 %v355
        %552 = vmatpush1.msra.mxu0 %v353
        %553 = vmatprep.subr.mxu0 0.0
        %554 = vmatpush1.msra.mxu0 0.0
        %555 = vmatprep.subr.mxu0 0.0
        %556 = vmatpush1.msra.mxu0 0.0
        %557 = vmatprep.subr.mxu0 0.0
        %558 = vmatpush1.msra.mxu0 0.0
        %559 = vmatprep.subr.mxu0 0.0
        %560 = vmatpush1.msra.mxu0 0.0
        %561 = vmatprep.subr.mxu0 0.0
        %562 = vmatpush1.msra.mxu0 0.0
        %563 = vmatprep.subr.mxu0 0.0
        %564 = vmatpush1.msra.mxu0 0.0
        %565 = vmatprep.subr.mxu0 0.0
        %566 = vmatpush1.msra.mxu0 0.0
        %567 = vmatprep.subr.mxu0 0.0
        %568 = vmatpush1.msra.mxu0 0.0
        %569 = vmatprep.subr.mxu0 0.0
        %570 = vmatpush1.msra.mxu0 0.0
        %571 = vmatprep.subr.mxu0 0.0
        %572 = vmatpush1.msra.mxu0 0.0
        %573 = vmatprep.subr.mxu0 0.0
        %574 = vmatpush1.msra.mxu0 0.0
        %575 = vmatprep.subr.mxu0 0.0
        %576 = vmatpush1.msra.mxu0 0.0
        %577 = vmatprep.subr.mxu0 0.0
        %578 = vmatpush1.msra.mxu0 0.0
        %579 = vmatprep.subr.mxu0 0.0
        %580 = vmatpush1.msra.mxu0 0.0
        %581 = vmatprep.subr.mxu0 0.0
        %582 = vmatpush1.msra.mxu0 0.0
        %583 = vmatprep.subr.mxu0 0.0
        %584 = vmatpush1.msra.mxu0 0.0
        %585 = vmatprep.subr.mxu0 0.0
        %586 = vmatpush1.msra.mxu0 0.0
        %587 = vmatprep.subr.mxu0 0.0
        %588 = vmatpush1.msra.mxu0 0.0
        %589 = vmatprep.subr.mxu0 0.0
        %590 = vmatpush1.msra.mxu0 0.0
        %591 = vmatprep.subr.mxu0 0.0
        %592 = vmatpush1.msra.mxu0 0.0
        %593 = vmatprep.subr.mxu0 0.0
        %594 = vmatpush1.msra.mxu0 0.0
        %595 = vmatprep.subr.mxu0 0.0
        %596 = vmatpush1.msra.mxu0 0.0
        %597 = vmatprep.subr.mxu0 0.0
        %598 = vmatpush1.msra.mxu0 0.0
        %599 = vmatprep.subr.mxu0 0.0
        %600 = vmatpush1.msra.mxu0 0.0
        %601 = vmatprep.subr.mxu0 0.0
        %602 = vmatpush1.msra.mxu0 0.0
        %603 = vmatprep.subr.mxu0 0.0
        %604 = vmatpush1.msra.mxu0 0.0
        %605 = vmatprep.subr.mxu0 0.0
        %606 = vmatpush1.msra.mxu0 0.0
        %607 = vmatprep.subr.mxu0 0.0
        %608 = vmatpush1.msra.mxu0 0.0
        %609 = vmatprep.subr.mxu0 0.0
        %610 = vmatpush1.msra.mxu0 0.0
        %611 = vmatprep.subr.mxu0 0.0
        %612 = vmatpush1.msra.mxu0 0.0
        %613 = vmatprep.subr.mxu0 0.0
        %614 = vmatpush1.msra.mxu0 0.0
        %615 = vmatprep.mubr.f32.mxu0 0.0
        %616 = vmatmul.mubr.f32.gmra.mrb[0].mxu0 %v342
        %v617 = vpop.f32.mrb[0].mxu0
        %v618 = vadd.f32 %v306, %v617
        %v619 = vpop.f32.mrb[0].mxu0
        %v620 = vadd.f32 %v306, %v619
        %621 = vdwg.mxu0
        %622 = vmatprep.subr.mxu0 %v359
        %623 = vmatpush1.msra.mxu0 %v357
        %624 = vmatprep.subr.mxu0 0.0
        %625 = vmatpush1.msra.mxu0 0.0
        %626 = vmatprep.subr.mxu0 0.0
        %627 = vmatpush1.msra.mxu0 0.0
        %628 = vmatprep.subr.mxu0 0.0
        %629 = vmatpush1.msra.mxu0 0.0
        %630 = vmatprep.subr.mxu0 0.0
        %631 = vmatpush1.msra.mxu0 0.0
        %632 = vmatprep.subr.mxu0 0.0
        %633 = vmatpush1.msra.mxu0 0.0
        %634 = vmatprep.subr.mxu0 0.0
        %635 = vmatpush1.msra.mxu0 0.0
        %636 = vmatprep.subr.mxu0 0.0
        %637 = vmatpush1.msra.mxu0 0.0
        %638 = vmatprep.subr.mxu0 0.0
        %639 = vmatpush1.msra.mxu0 0.0
        %640 = vmatprep.subr.mxu0 0.0
        %641 = vmatpush1.msra.mxu0 0.0
        %642 = vmatprep.subr.mxu0 0.0
        %643 = vmatpush1.msra.mxu0 0.0
        %644 = vmatprep.subr.mxu0 0.0
        %645 = vmatpush1.msra.mxu0 0.0
        %646 = vmatprep.subr.mxu0 0.0
        %647 = vmatpush1.msra.mxu0 0.0
        %648 = vmatprep.subr.mxu0 0.0
        %649 = vmatpush1.msra.mxu0 0.0
        %650 = vmatprep.subr.mxu0 0.0
        %651 = vmatpush1.msra.mxu0 0.0
        %652 = vmatprep.subr.mxu0 0.0
        %653 = vmatpush1.msra.mxu0 0.0
        %654 = vmatprep.subr.mxu0 0.0
        %655 = vmatpush1.msra.mxu0 0.0
        %656 = vmatprep.subr.mxu0 0.0
        %657 = vmatpush1.msra.mxu0 0.0
        %658 = vmatprep.subr.mxu0 0.0
        %659 = vmatpush1.msra.mxu0 0.0
        %660 = vmatprep.subr.mxu0 0.0
        %661 = vmatpush1.msra.mxu0 0.0
        %662 = vmatprep.subr.mxu0 0.0
        %663 = vmatpush1.msra.mxu0 0.0
        %664 = vmatprep.subr.mxu0 0.0
        %665 = vmatpush1.msra.mxu0 0.0
        %666 = vmatprep.subr.mxu0 0.0
        %667 = vmatpush1.msra.mxu0 0.0
        %668 = vmatprep.subr.mxu0 0.0
        %669 = vmatpush1.msra.mxu0 0.0
        %670 = vmatprep.subr.mxu0 0.0
        %671 = vmatpush1.msra.mxu0 0.0
        %672 = vmatprep.subr.mxu0 0.0
        %673 = vmatpush1.msra.mxu0 0.0
        %674 = vmatprep.subr.mxu0 0.0
        %675 = vmatpush1.msra.mxu0 0.0
        %676 = vmatprep.subr.mxu0 0.0
        %677 = vmatpush1.msra.mxu0 0.0
        %678 = vmatprep.subr.mxu0 0.0
        %679 = vmatpush1.msra.mxu0 0.0
        %680 = vmatprep.subr.mxu0 0.0
        %681 = vmatpush1.msra.mxu0 0.0
        %682 = vmatprep.subr.mxu0 0.0
        %683 = vmatpush1.msra.mxu0 0.0
        %684 = vmatprep.subr.mxu0 0.0
        %685 = vmatpush1.msra.mxu0 0.0
        %686 = vmatprep.mubr.f32.mxu0 0.0
        %687 = vmatmul.mubr.f32.gmra.mrb[0].mxu0 %v342
        %v688 = vpop.f32.mrb[0].mxu0
        %v689 = vadd.f32 %v306, %v688
        %v690 = vpop.f32.mrb[0].mxu0
        %v691 = vadd.f32 %v306, %v690
        %692 = vdwg.mxu0
        %693 = vmatprep.subr.mxu0 %v363
        %694 = vmatpush1.msra.mxu0 %v361
        %695 = vmatprep.subr.mxu0 0.0
        %696 = vmatpush1.msra.mxu0 0.0
        %697 = vmatprep.subr.mxu0 0.0
        %698 = vmatpush1.msra.mxu0 0.0
        %699 = vmatprep.subr.mxu0 0.0
        %700 = vmatpush1.msra.mxu0 0.0
        %701 = vmatprep.subr.mxu0 0.0
        %702 = vmatpush1.msra.mxu0 0.0
        %703 = vmatprep.subr.mxu0 0.0
        %704 = vmatpush1.msra.mxu0 0.0
        %705 = vmatprep.subr.mxu0 0.0
        %706 = vmatpush1.msra.mxu0 0.0
        %707 = vmatprep.subr.mxu0 0.0
        %708 = vmatpush1.msra.mxu0 0.0
        %709 = vmatprep.subr.mxu0 0.0
        %710 = vmatpush1.msra.mxu0 0.0
        %711 = vmatprep.subr.mxu0 0.0
        %712 = vmatpush1.msra.mxu0 0.0
        %713 = vmatprep.subr.mxu0 0.0
        %714 = vmatpush1.msra.mxu0 0.0
        %715 = vmatprep.subr.mxu0 0.0
        %716 = vmatpush1.msra.mxu0 0.0
        %717 = vmatprep.subr.mxu0 0.0
        %718 = vmatpush1.msra.mxu0 0.0
        %719 = vmatprep.subr.mxu0 0.0
        %720 = vmatpush1.msra.mxu0 0.0
        %721 = vmatprep.subr.mxu0 0.0
        %722 = vmatpush1.msra.mxu0 0.0
        %723 = vmatprep.subr.mxu0 0.0
        %724 = vmatpush1.msra.mxu0 0.0
        %725 = vmatprep.subr.mxu0 0.0
        %726 = vmatpush1.msra.mxu0 0.0
        %727 = vmatprep.subr.mxu0 0.0
        %728 = vmatpush1.msra.mxu0 0.0
        %729 = vmatprep.subr.mxu0 0.0
        %730 = vmatpush1.msra.mxu0 0.0
        %731 = vmatprep.subr.mxu0 0.0
        %732 = vmatpush1.msra.mxu0 0.0
        %733 = vmatprep.subr.mxu0 0.0
        %734 = vmatpush1.msra.mxu0 0.0
        %735 = vmatprep.subr.mxu0 0.0
        %736 = vmatpush1.msra.mxu0 0.0
        %737 = vmatprep.subr.mxu0 0.0
        %738 = vmatpush1.msra.mxu0 0.0
        %739 = vmatprep.subr.mxu0 0.0
        %740 = vmatpush1.msra.mxu0 0.0
        %741 = vmatprep.subr.mxu0 0.0
        %742 = vmatpush1.msra.mxu0 0.0
        %743 = vmatprep.subr.mxu0 0.0
        %744 = vmatpush1.msra.mxu0 0.0
        %745 = vmatprep.subr.mxu0 0.0
        %746 = vmatpush1.msra.mxu0 0.0
        %747 = vmatprep.subr.mxu0 0.0
        %748 = vmatpush1.msra.mxu0 0.0
        %749 = vmatprep.subr.mxu0 0.0
        %750 = vmatpush1.msra.mxu0 0.0
        %751 = vmatprep.subr.mxu0 0.0
        %752 = vmatpush1.msra.mxu0 0.0
        %753 = vmatprep.subr.mxu0 0.0
        %754 = vmatpush1.msra.mxu0 0.0
        %755 = vmatprep.subr.mxu0 0.0
        %756 = vmatpush1.msra.mxu0 0.0
        %757 = vmatprep.mubr.f32.mxu0 0.0
        %758 = vmatmul.mubr.f32.gmra.mrb[0].mxu0 %v342
        %v759 = vpop.f32.mrb[0].mxu0
        %v760 = vadd.f32 %v306, %v759
        %v761 = vpop.f32.mrb[0].mxu0
        %v762 = vadd.f32 %v306, %v761
        %763 = vdwg.mxu0
        %764 = vmatprep.subr.mxu0 %v367
        %765 = vmatpush1.msra.mxu0 %v365
        %766 = vmatprep.subr.mxu0 0.0
        %767 = vmatpush1.msra.mxu0 0.0
        %768 = vmatprep.subr.mxu0 0.0
        %769 = vmatpush1.msra.mxu0 0.0
        %770 = vmatprep.subr.mxu0 0.0
        %771 = vmatpush1.msra.mxu0 0.0
        %772 = vmatprep.subr.mxu0 0.0
        %773 = vmatpush1.msra.mxu0 0.0
        %774 = vmatprep.subr.mxu0 0.0
        %775 = vmatpush1.msra.mxu0 0.0
        %776 = vmatprep.subr.mxu0 0.0
        %777 = vmatpush1.msra.mxu0 0.0
        %778 = vmatprep.subr.mxu0 0.0
        %779 = vmatpush1.msra.mxu0 0.0
        %780 = vmatprep.subr.mxu0 0.0
        %781 = vmatpush1.msra.mxu0 0.0
        %782 = vmatprep.subr.mxu0 0.0
        %783 = vmatpush1.msra.mxu0 0.0
        %784 = vmatprep.subr.mxu0 0.0
        %785 = vmatpush1.msra.mxu0 0.0
        %786 = vmatprep.subr.mxu0 0.0
        %787 = vmatpush1.msra.mxu0 0.0
        %788 = vmatprep.subr.mxu0 0.0
        %789 = vmatpush1.msra.mxu0 0.0
        %790 = vmatprep.subr.mxu0 0.0
        %791 = vmatpush1.msra.mxu0 0.0
        %792 = vmatprep.subr.mxu0 0.0
        %793 = vmatpush1.msra.mxu0 0.0
        %794 = vmatprep.subr.mxu0 0.0
        %795 = vmatpush1.msra.mxu0 0.0
        %796 = vmatprep.subr.mxu0 0.0
        %797 = vmatpush1.msra.mxu0 0.0
        %798 = vmatprep.subr.mxu0 0.0
        %799 = vmatpush1.msra.mxu0 0.0
        %800 = vmatprep.subr.mxu0 0.0
        %801 = vmatpush1.msra.mxu0 0.0
        %802 = vmatprep.subr.mxu0 0.0
        %803 = vmatpush1.msra.mxu0 0.0
        %804 = vmatprep.subr.mxu0 0.0
        %805 = vmatpush1.msra.mxu0 0.0
        %806 = vmatprep.subr.mxu0 0.0
        %807 = vmatpush1.msra.mxu0 0.0
        %808 = vmatprep.subr.mxu0 0.0
        %809 = vmatpush1.msra.mxu0 0.0
        %810 = vmatprep.subr.mxu0 0.0
        %811 = vmatpush1.msra.mxu0 0.0
        %812 = vmatprep.subr.mxu0 0.0
        %813 = vmatpush1.msra.mxu0 0.0
        %814 = vmatprep.subr.mxu0 0.0
        %815 = vmatpush1.msra.mxu0 0.0
        %816 = vmatprep.subr.mxu0 0.0
        %817 = vmatpush1.msra.mxu0 0.0
        %818 = vmatprep.subr.mxu0 0.0
        %819 = vmatpush1.msra.mxu0 0.0
        %820 = vmatprep.subr.mxu0 0.0
        %821 = vmatpush1.msra.mxu0 0.0
        %822 = vmatprep.subr.mxu0 0.0
        %823 = vmatpush1.msra.mxu0 0.0
        %824 = vmatprep.subr.mxu0 0.0
        %825 = vmatpush1.msra.mxu0 0.0
        %826 = vmatprep.subr.mxu0 0.0
        %827 = vmatpush1.msra.mxu0 0.0
        %828 = vmatprep.mubr.f32.mxu0 0.0
        %829 = vmatmul.mubr.f32.gmra.mrb[0].mxu0 %v342
        %v830 = vpop.f32.mrb[0].mxu0
        %v831 = vadd.f32 %v306, %v830
        %v832 = vpop.f32.mrb[0].mxu0
        %v833 = vadd.f32 %v306, %v832
        %834 = vdwg.mxu0
        %835 = vmatprep.subr.mxu0 %v371
        %836 = vmatpush1.msra.mxu0 %v369
        %837 = vmatprep.subr.mxu0 0.0
        %838 = vmatpush1.msra.mxu0 0.0
        %839 = vmatprep.subr.mxu0 0.0
        %840 = vmatpush1.msra.mxu0 0.0
        %841 = vmatprep.subr.mxu0 0.0
        %842 = vmatpush1.msra.mxu0 0.0
        %843 = vmatprep.subr.mxu0 0.0
        %844 = vmatpush1.msra.mxu0 0.0
        %845 = vmatprep.subr.mxu0 0.0
        %846 = vmatpush1.msra.mxu0 0.0
        %847 = vmatprep.subr.mxu0 0.0
        %848 = vmatpush1.msra.mxu0 0.0
        %849 = vmatprep.subr.mxu0 0.0
        %850 = vmatpush1.msra.mxu0 0.0
        %851 = vmatprep.subr.mxu0 0.0
        %852 = vmatpush1.msra.mxu0 0.0
        %853 = vmatprep.subr.mxu0 0.0
        %854 = vmatpush1.msra.mxu0 0.0
        %855 = vmatprep.subr.mxu0 0.0
        %856 = vmatpush1.msra.mxu0 0.0
        %857 = vmatprep.subr.mxu0 0.0
        %858 = vmatpush1.msra.mxu0 0.0
        %859 = vmatprep.subr.mxu0 0.0
        %860 = vmatpush1.msra.mxu0 0.0
        %861 = vmatprep.subr.mxu0 0.0
        %862 = vmatpush1.msra.mxu0 0.0
        %863 = vmatprep.subr.mxu0 0.0
        %864 = vmatpush1.msra.mxu0 0.0
        %865 = vmatprep.subr.mxu0 0.0
        %866 = vmatpush1.msra.mxu0 0.0
        %867 = vmatprep.subr.mxu0 0.0
        %868 = vmatpush1.msra.mxu0 0.0
        %869 = vmatprep.subr.mxu0 0.0
        %870 = vmatpush1.msra.mxu0 0.0
        %871 = vmatprep.subr.mxu0 0.0
        %872 = vmatpush1.msra.mxu0 0.0
        %873 = vmatprep.subr.mxu0 0.0
        %874 = vmatpush1.msra.mxu0 0.0
        %875 = vmatprep.subr.mxu0 0.0
        %876 = vmatpush1.msra.mxu0 0.0
        %877 = vmatprep.subr.mxu0 0.0
        %878 = vmatpush1.msra.mxu0 0.0
        %879 = vmatprep.subr.mxu0 0.0
        %880 = vmatpush1.msra.mxu0 0.0
        %881 = vmatprep.subr.mxu0 0.0
        %882 = vmatpush1.msra.mxu0 0.0
        %883 = vmatprep.subr.mxu0 0.0
        %884 = vmatpush1.msra.mxu0 0.0
        %885 = vmatprep.subr.mxu0 0.0
        %886 = vmatpush1.msra.mxu0 0.0
        %887 = vmatprep.subr.mxu0 0.0
        %888 = vmatpush1.msra.mxu0 0.0
        %889 = vmatprep.subr.mxu0 0.0
        %890 = vmatpush1.msra.mxu0 0.0
        %891 = vmatprep.subr.mxu0 0.0
        %892 = vmatpush1.msra.mxu0 0.0
        %893 = vmatprep.subr.mxu0 0.0
        %894 = vmatpush1.msra.mxu0 0.0
        %895 = vmatprep.subr.mxu0 0.0
        %896 = vmatpush1.msra.mxu0 0.0
        %897 = vmatprep.subr.mxu0 0.0
        %898 = vmatpush1.msra.mxu0 0.0
        %899 = vmatprep.mubr.f32.mxu0 0.0
        %900 = vmatmul.mubr.f32.gmra.mrb[0].mxu0 %v342
        %v901 = vpop.f32.mrb[0].mxu0
        %v902 = vadd.f32 %v306, %v901
        %v903 = vpop.f32.mrb[0].mxu0
        %v904 = vadd.f32 %v306, %v903
        %905 = vdwg.mxu0
        %906 = vmatprep.subr.mxu0 %v375
        %907 = vmatpush1.msra.mxu0 %v373
        %908 = vmatprep.subr.mxu0 0.0
        %909 = vmatpush1.msra.mxu0 0.0
        %910 = vmatprep.subr.mxu0 0.0
        %911 = vmatpush1.msra.mxu0 0.0
        %912 = vmatprep.subr.mxu0 0.0
        %913 = vmatpush1.msra.mxu0 0.0
        %914 = vmatprep.subr.mxu0 0.0
        %915 = vmatpush1.msra.mxu0 0.0
        %916 = vmatprep.subr.mxu0 0.0
        %917 = vmatpush1.msra.mxu0 0.0
        %918 = vmatprep.subr.mxu0 0.0
        %919 = vmatpush1.msra.mxu0 0.0
        %920 = vmatprep.subr.mxu0 0.0
        %921 = vmatpush1.msra.mxu0 0.0
        %922 = vmatprep.subr.mxu0 0.0
        %923 = vmatpush1.msra.mxu0 0.0
        %924 = vmatprep.subr.mxu0 0.0
        %925 = vmatpush1.msra.mxu0 0.0
        %926 = vmatprep.subr.mxu0 0.0
        %927 = vmatpush1.msra.mxu0 0.0
        %928 = vmatprep.subr.mxu0 0.0
        %929 = vmatpush1.msra.mxu0 0.0
        %930 = vmatprep.subr.mxu0 0.0
        %931 = vmatpush1.msra.mxu0 0.0
        %932 = vmatprep.subr.mxu0 0.0
        %933 = vmatpush1.msra.mxu0 0.0
        %934 = vmatprep.subr.mxu0 0.0
        %935 = vmatpush1.msra.mxu0 0.0
        %936 = vmatprep.subr.mxu0 0.0
        %937 = vmatpush1.msra.mxu0 0.0
        %938 = vmatprep.subr.mxu0 0.0
        %939 = vmatpush1.msra.mxu0 0.0
        %940 = vmatprep.subr.mxu0 0.0
        %941 = vmatpush1.msra.mxu0 0.0
        %942 = vmatprep.subr.mxu0 0.0
        %943 = vmatpush1.msra.mxu0 0.0
        %944 = vmatprep.subr.mxu0 0.0
        %945 = vmatpush1.msra.mxu0 0.0
        %946 = vmatprep.subr.mxu0 0.0
        %947 = vmatpush1.msra.mxu0 0.0
        %948 = vmatprep.subr.mxu0 0.0
        %949 = vmatpush1.msra.mxu0 0.0
        %950 = vmatprep.subr.mxu0 0.0
        %951 = vmatpush1.msra.mxu0 0.0
        %952 = vmatprep.subr.mxu0 0.0
        %953 = vmatpush1.msra.mxu0 0.0
        %954 = vmatprep.subr.mxu0 0.0
        %955 = vmatpush1.msra.mxu0 0.0
        %956 = vmatprep.subr.mxu0 0.0
        %957 = vmatpush1.msra.mxu0 0.0
        %958 = vmatprep.subr.mxu0 0.0
        %959 = vmatpush1.msra.mxu0 0.0
        %960 = vmatprep.subr.mxu0 0.0
        %961 = vmatpush1.msra.mxu0 0.0
        %962 = vmatprep.subr.mxu0 0.0
        %963 = vmatpush1.msra.mxu0 0.0
        %964 = vmatprep.subr.mxu0 0.0
        %965 = vmatpush1.msra.mxu0 0.0
        %966 = vmatprep.subr.mxu0 0.0
        %967 = vmatpush1.msra.mxu0 0.0
        %968 = vmatprep.subr.mxu0 0.0
        %969 = vmatpush1.msra.mxu0 0.0
        %970 = vmatprep.mubr.f32.mxu0 0.0
        %971 = vmatmul.mubr.f32.gmra.mrb[0].mxu0 %v342
        %v972 = vpop.f32.mrb[0].mxu0
        %v973 = vadd.f32 %v306, %v972
        %v974 = vpop.f32.mrb[0].mxu0
        %v975 = vadd.f32 %v306, %v974
        %976 = vdwg.mxu0
        %977 = vmatprep.subr.mxu0 %v379
        %978 = vmatpush1.msra.mxu0 %v377
        %979 = vmatprep.subr.mxu0 0.0
        %980 = vmatpush1.msra.mxu0 0.0
        %981 = vmatprep.subr.mxu0 0.0
        %982 = vmatpush1.msra.mxu0 0.0
        %983 = vmatprep.subr.mxu0 0.0
        %984 = vmatpush1.msra.mxu0 0.0
        %985 = vmatprep.subr.mxu0 0.0
        %986 = vmatpush1.msra.mxu0 0.0
        %987 = vmatprep.subr.mxu0 0.0
        %988 = vmatpush1.msra.mxu0 0.0
        %989 = vmatprep.subr.mxu0 0.0
        %990 = vmatpush1.msra.mxu0 0.0
        %991 = vmatprep.subr.mxu0 0.0
        %992 = vmatpush1.msra.mxu0 0.0
        %993 = vmatprep.subr.mxu0 0.0
        %994 = vmatpush1.msra.mxu0 0.0
        %995 = vmatprep.subr.mxu0 0.0
        %996 = vmatpush1.msra.mxu0 0.0
        %997 = vmatprep.subr.mxu0 0.0
        %998 = vmatpush1.msra.mxu0 0.0
        %999 = vmatprep.subr.mxu0 0.0
        %1000 = vmatpush1.msra.mxu0 0.0
        %1001 = vmatprep.subr.mxu0 0.0
        %1002 = vmatpush1.msra.mxu0 0.0
        %1003 = vmatprep.subr.mxu0 0.0
        %1004 = vmatpush1.msra.mxu0 0.0
        %1005 = vmatprep.subr.mxu0 0.0
        %1006 = vmatpush1.msra.mxu0 0.0
        %1007 = vmatprep.subr.mxu0 0.0
        %1008 = vmatpush1.msra.mxu0 0.0
        %1009 = vmatprep.subr.mxu0 0.0
        %1010 = vmatpush1.msra.mxu0 0.0
        %1011 = vmatprep.subr.mxu0 0.0
        %1012 = vmatpush1.msra.mxu0 0.0
        %1013 = vmatprep.subr.mxu0 0.0
        %1014 = vmatpush1.msra.mxu0 0.0
        %1015 = vmatprep.subr.mxu0 0.0
        %1016 = vmatpush1.msra.mxu0 0.0
        %1017 = vmatprep.subr.mxu0 0.0
        %1018 = vmatpush1.msra.mxu0 0.0
        %1019 = vmatprep.subr.mxu0 0.0
        %1020 = vmatpush1.msra.mxu0 0.0
        %1021 = vmatprep.subr.mxu0 0.0
        %1022 = vmatpush1.msra.mxu0 0.0
        %1023 = vmatprep.subr.mxu0 0.0
        %1024 = vmatpush1.msra.mxu0 0.0
        %1025 = vmatprep.subr.mxu0 0.0
        %1026 = vmatpush1.msra.mxu0 0.0
        %1027 = vmatprep.subr.mxu0 0.0
        %1028 = vmatpush1.msra.mxu0 0.0
        %1029 = vmatprep.subr.mxu0 0.0
        %1030 = vmatpush1.msra.mxu0 0.0
        %1031 = vmatprep.subr.mxu0 0.0
        %1032 = vmatpush1.msra.mxu0 0.0
        %1033 = vmatprep.subr.mxu0 0.0
        %1034 = vmatpush1.msra.mxu0 0.0
        %1035 = vmatprep.subr.mxu0 0.0
        %1036 = vmatpush1.msra.mxu0 0.0
        %1037 = vmatprep.subr.mxu0 0.0
        %1038 = vmatpush1.msra.mxu0 0.0
        %1039 = vmatprep.subr.mxu0 0.0
        %1040 = vmatpush1.msra.mxu0 0.0
        %1041 = vmatprep.mubr.f32.mxu0 0.0
        %1042 = vmatmul.mubr.f32.gmra.mrb[0].mxu0 %v342
        %v1043 = vpop.f32.mrb[0].mxu0
        %v1044 = vadd.f32 %v306, %v1043
        %v1045 = vpop.f32.mrb[0].mxu0
        %v1046 = vadd.f32 %v306, %v1045
        %1047 = vdwg.mxu0
        %1048 = vmatprep.subr.mxu0 %v383
        %1049 = vmatpush1.msra.mxu0 %v381
        %1050 = vmatprep.subr.mxu0 0.0
        %1051 = vmatpush1.msra.mxu0 0.0
        %1052 = vmatprep.subr.mxu0 0.0
        %1053 = vmatpush1.msra.mxu0 0.0
        %1054 = vmatprep.subr.mxu0 0.0
        %1055 = vmatpush1.msra.mxu0 0.0
        %1056 = vmatprep.subr.mxu0 0.0
        %1057 = vmatpush1.msra.mxu0 0.0
        %1058 = vmatprep.subr.mxu0 0.0
        %1059 = vmatpush1.msra.mxu0 0.0
        %1060 = vmatprep.subr.mxu0 0.0
        %1061 = vmatpush1.msra.mxu0 0.0
        %1062 = vmatprep.subr.mxu0 0.0
        %1063 = vmatpush1.msra.mxu0 0.0
        %1064 = vmatprep.subr.mxu0 0.0
        %1065 = vmatpush1.msra.mxu0 0.0
        %1066 = vmatprep.subr.mxu0 0.0
        %1067 = vmatpush1.msra.mxu0 0.0
        %1068 = vmatprep.subr.mxu0 0.0
        %1069 = vmatpush1.msra.mxu0 0.0
        %1070 = vmatprep.subr.mxu0 0.0
        %1071 = vmatpush1.msra.mxu0 0.0
        %1072 = vmatprep.subr.mxu0 0.0
        %1073 = vmatpush1.msra.mxu0 0.0
        %1074 = vmatprep.subr.mxu0 0.0
        %1075 = vmatpush1.msra.mxu0 0.0
        %1076 = vmatprep.subr.mxu0 0.0
        %1077 = vmatpush1.msra.mxu0 0.0
        %1078 = vmatprep.subr.mxu0 0.0
        %1079 = vmatpush1.msra.mxu0 0.0
        %1080 = vmatprep.subr.mxu0 0.0
        %1081 = vmatpush1.msra.mxu0 0.0
        %1082 = vmatprep.subr.mxu0 0.0
        %1083 = vmatpush1.msra.mxu0 0.0
        %1084 = vmatprep.subr.mxu0 0.0
        %1085 = vmatpush1.msra.mxu0 0.0
        %1086 = vmatprep.subr.mxu0 0.0
        %1087 = vmatpush1.msra.mxu0 0.0
        %1088 = vmatprep.subr.mxu0 0.0
        %1089 = vmatpush1.msra.mxu0 0.0
        %1090 = vmatprep.subr.mxu0 0.0
        %1091 = vmatpush1.msra.mxu0 0.0
        %1092 = vmatprep.subr.mxu0 0.0
        %1093 = vmatpush1.msra.mxu0 0.0
        %1094 = vmatprep.subr.mxu0 0.0
        %1095 = vmatpush1.msra.mxu0 0.0
        %1096 = vmatprep.subr.mxu0 0.0
        %1097 = vmatpush1.msra.mxu0 0.0
        %1098 = vmatprep.subr.mxu0 0.0
        %1099 = vmatpush1.msra.mxu0 0.0
        %1100 = vmatprep.subr.mxu0 0.0
        %1101 = vmatpush1.msra.mxu0 0.0
        %1102 = vmatprep.subr.mxu0 0.0
        %1103 = vmatpush1.msra.mxu0 0.0
        %1104 = vmatprep.subr.mxu0 0.0
        %1105 = vmatpush1.msra.mxu0 0.0
        %1106 = vmatprep.subr.mxu0 0.0
        %1107 = vmatpush1.msra.mxu0 0.0
        %1108 = vmatprep.subr.mxu0 0.0
        %1109 = vmatpush1.msra.mxu0 0.0
        %1110 = vmatprep.subr.mxu0 0.0
        %1111 = vmatpush1.msra.mxu0 0.0
        %1112 = vmatprep.mubr.f32.mxu0 0.0
        %1113 = vmatmul.mubr.f32.gmra.mrb[0].mxu0 %v342
        %v1114 = vpop.f32.mrb[0].mxu0
        %v1115 = vadd.f32 %v306, %v1114
        %v1116 = vpop.f32.mrb[0].mxu0
        %v1117 = vadd.f32 %v306, %v1116
        %1118 = vdwg.mxu0
        %1119 = vmatprep.subr.mxu0 %v387
        %1120 = vmatpush1.msra.mxu0 %v385
        %1121 = vmatprep.subr.mxu0 0.0
        %1122 = vmatpush1.msra.mxu0 0.0
        %1123 = vmatprep.subr.mxu0 0.0
        %1124 = vmatpush1.msra.mxu0 0.0
        %1125 = vmatprep.subr.mxu0 0.0
        %1126 = vmatpush1.msra.mxu0 0.0
        %1127 = vmatprep.subr.mxu0 0.0
        %1128 = vmatpush1.msra.mxu0 0.0
        %1129 = vmatprep.subr.mxu0 0.0
        %1130 = vmatpush1.msra.mxu0 0.0
        %1131 = vmatprep.subr.mxu0 0.0
        %1132 = vmatpush1.msra.mxu0 0.0
        %1133 = vmatprep.subr.mxu0 0.0
        %1134 = vmatpush1.msra.mxu0 0.0
        %1135 = vmatprep.subr.mxu0 0.0
        %1136 = vmatpush1.msra.mxu0 0.0
        %1137 = vmatprep.subr.mxu0 0.0
        %1138 = vmatpush1.msra.mxu0 0.0
        %1139 = vmatprep.subr.mxu0 0.0
        %1140 = vmatpush1.msra.mxu0 0.0
        %1141 = vmatprep.subr.mxu0 0.0
        %1142 = vmatpush1.msra.mxu0 0.0
        %1143 = vmatprep.subr.mxu0 0.0
        %1144 = vmatpush1.msra.mxu0 0.0
        %1145 = vmatprep.subr.mxu0 0.0
        %1146 = vmatpush1.msra.mxu0 0.0
        %1147 = vmatprep.subr.mxu0 0.0
        %1148 = vmatpush1.msra.mxu0 0.0
        %1149 = vmatprep.subr.mxu0 0.0
        %1150 = vmatpush1.msra.mxu0 0.0
        %1151 = vmatprep.subr.mxu0 0.0
        %1152 = vmatpush1.msra.mxu0 0.0
        %1153 = vmatprep.subr.mxu0 0.0
        %1154 = vmatpush1.msra.mxu0 0.0
        %1155 = vmatprep.subr.mxu0 0.0
        %1156 = vmatpush1.msra.mxu0 0.0
        %1157 = vmatprep.subr.mxu0 0.0
        %1158 = vmatpush1.msra.mxu0 0.0
        %1159 = vmatprep.subr.mxu0 0.0
        %1160 = vmatpush1.msra.mxu0 0.0
        %1161 = vmatprep.subr.mxu0 0.0
        %1162 = vmatpush1.msra.mxu0 0.0
        %1163 = vmatprep.subr.mxu0 0.0
        %1164 = vmatpush1.msra.mxu0 0.0
        %1165 = vmatprep.subr.mxu0 0.0
        %1166 = vmatpush1.msra.mxu0 0.0
        %1167 = vmatprep.subr.mxu0 0.0
        %1168 = vmatpush1.msra.mxu0 0.0
        %1169 = vmatprep.subr.mxu0 0.0
        %1170 = vmatpush1.msra.mxu0 0.0
        %1171 = vmatprep.subr.mxu0 0.0
        %1172 = vmatpush1.msra.mxu0 0.0
        %1173 = vmatprep.subr.mxu0 0.0
        %1174 = vmatpush1.msra.mxu0 0.0
        %1175 = vmatprep.subr.mxu0 0.0
        %1176 = vmatpush1.msra.mxu0 0.0
        %1177 = vmatprep.subr.mxu0 0.0
        %1178 = vmatpush1.msra.mxu0 0.0
        %1179 = vmatprep.subr.mxu0 0.0
        %1180 = vmatpush1.msra.mxu0 0.0
        %1181 = vmatprep.subr.mxu0 0.0
        %1182 = vmatpush1.msra.mxu0 0.0
        %1183 = vmatprep.mubr.f32.mxu0 0.0
        %1184 = vmatmul.mubr.f32.gmra.mrb[0].mxu0 %v342
        %v1185 = vpop.f32.mrb[0].mxu0
        %v1186 = vadd.f32 %v306, %v1185
        %v1187 = vpop.f32.mrb[0].mxu0
        %v1188 = vadd.f32 %v306, %v1187
        %1189 = vdwg.mxu0
        %1190 = vmatprep.subr.mxu0 %v391
        %1191 = vmatpush1.msra.mxu0 %v389
        %1192 = vmatprep.subr.mxu0 0.0
        %1193 = vmatpush1.msra.mxu0 0.0
        %1194 = vmatprep.subr.mxu0 0.0
        %1195 = vmatpush1.msra.mxu0 0.0
        %1196 = vmatprep.subr.mxu0 0.0
        %1197 = vmatpush1.msra.mxu0 0.0
        %1198 = vmatprep.subr.mxu0 0.0
        %1199 = vmatpush1.msra.mxu0 0.0
        %1200 = vmatprep.subr.mxu0 0.0
        %1201 = vmatpush1.msra.mxu0 0.0
        %1202 = vmatprep.subr.mxu0 0.0
        %1203 = vmatpush1.msra.mxu0 0.0
        %1204 = vmatprep.subr.mxu0 0.0
        %1205 = vmatpush1.msra.mxu0 0.0
        %1206 = vmatprep.subr.mxu0 0.0
        %1207 = vmatpush1.msra.mxu0 0.0
        %1208 = vmatprep.subr.mxu0 0.0
        %1209 = vmatpush1.msra.mxu0 0.0
        %1210 = vmatprep.subr.mxu0 0.0
        %1211 = vmatpush1.msra.mxu0 0.0
        %1212 = vmatprep.subr.mxu0 0.0
        %1213 = vmatpush1.msra.mxu0 0.0
        %1214 = vmatprep.subr.mxu0 0.0
        %1215 = vmatpush1.msra.mxu0 0.0
        %1216 = vmatprep.subr.mxu0 0.0
        %1217 = vmatpush1.msra.mxu0 0.0
        %1218 = vmatprep.subr.mxu0 0.0
        %1219 = vmatpush1.msra.mxu0 0.0
        %1220 = vmatprep.subr.mxu0 0.0
        %1221 = vmatpush1.msra.mxu0 0.0
        %1222 = vmatprep.subr.mxu0 0.0
        %1223 = vmatpush1.msra.mxu0 0.0
        %1224 = vmatprep.subr.mxu0 0.0
        %1225 = vmatpush1.msra.mxu0 0.0
        %1226 = vmatprep.subr.mxu0 0.0
        %1227 = vmatpush1.msra.mxu0 0.0
        %1228 = vmatprep.subr.mxu0 0.0
        %1229 = vmatpush1.msra.mxu0 0.0
        %1230 = vmatprep.subr.mxu0 0.0
        %1231 = vmatpush1.msra.mxu0 0.0
        %1232 = vmatprep.subr.mxu0 0.0
        %1233 = vmatpush1.msra.mxu0 0.0
        %1234 = vmatprep.subr.mxu0 0.0
        %1235 = vmatpush1.msra.mxu0 0.0
        %1236 = vmatprep.subr.mxu0 0.0
        %1237 = vmatpush1.msra.mxu0 0.0
        %1238 = vmatprep.subr.mxu0 0.0
        %1239 = vmatpush1.msra.mxu0 0.0
        %1240 = vmatprep.subr.mxu0 0.0
        %1241 = vmatpush1.msra.mxu0 0.0
        %1242 = vmatprep.subr.mxu0 0.0
        %1243 = vmatpush1.msra.mxu0 0.0
        %1244 = vmatprep.subr.mxu0 0.0
        %1245 = vmatpush1.msra.mxu0 0.0
        %1246 = vmatprep.subr.mxu0 0.0
        %1247 = vmatpush1.msra.mxu0 0.0
        %1248 = vmatprep.subr.mxu0 0.0
        %1249 = vmatpush1.msra.mxu0 0.0
        %1250 = vmatprep.subr.mxu0 0.0
        %1251 = vmatpush1.msra.mxu0 0.0
        %1252 = vmatprep.subr.mxu0 0.0
        %1253 = vmatpush1.msra.mxu0 0.0
        %1254 = vmatprep.mubr.f32.mxu0 0.0
        %1255 = vmatmul.mubr.f32.gmra.mrb[0].mxu0 %v342
        %v1256 = vpop.f32.mrb[0].mxu0
        %v1257 = vadd.f32 %v306, %v1256
        %v1258 = vpop.f32.mrb[0].mxu0
        %v1259 = vadd.f32 %v306, %v1258
        %1260 = vdwg.mxu0
        %1261 = vmatprep.subr.mxu0 %v395
        %1262 = vmatpush1.msra.mxu0 %v393
        %1263 = vmatprep.subr.mxu0 0.0
        %1264 = vmatpush1.msra.mxu0 0.0
        %1265 = vmatprep.subr.mxu0 0.0
        %1266 = vmatpush1.msra.mxu0 0.0
        %1267 = vmatprep.subr.mxu0 0.0
        %1268 = vmatpush1.msra.mxu0 0.0
        %1269 = vmatprep.subr.mxu0 0.0
        %1270 = vmatpush1.msra.mxu0 0.0
        %1271 = vmatprep.subr.mxu0 0.0
        %1272 = vmatpush1.msra.mxu0 0.0
        %1273 = vmatprep.subr.mxu0 0.0
        %1274 = vmatpush1.msra.mxu0 0.0
        %1275 = vmatprep.subr.mxu0 0.0
        %1276 = vmatpush1.msra.mxu0 0.0
        %1277 = vmatprep.subr.mxu0 0.0
        %1278 = vmatpush1.msra.mxu0 0.0
        %1279 = vmatprep.subr.mxu0 0.0
        %1280 = vmatpush1.msra.mxu0 0.0
        %1281 = vmatprep.subr.mxu0 0.0
        %1282 = vmatpush1.msra.mxu0 0.0
        %1283 = vmatprep.subr.mxu0 0.0
        %1284 = vmatpush1.msra.mxu0 0.0
        %1285 = vmatprep.subr.mxu0 0.0
        %1286 = vmatpush1.msra.mxu0 0.0
        %1287 = vmatprep.subr.mxu0 0.0
        %1288 = vmatpush1.msra.mxu0 0.0
        %1289 = vmatprep.subr.mxu0 0.0
        %1290 = vmatpush1.msra.mxu0 0.0
        %1291 = vmatprep.subr.mxu0 0.0
        %1292 = vmatpush1.msra.mxu0 0.0
        %1293 = vmatprep.subr.mxu0 0.0
        %1294 = vmatpush1.msra.mxu0 0.0
        %1295 = vmatprep.subr.mxu0 0.0
        %1296 = vmatpush1.msra.mxu0 0.0
        %1297 = vmatprep.subr.mxu0 0.0
        %1298 = vmatpush1.msra.mxu0 0.0
        %1299 = vmatprep.subr.mxu0 0.0
        %1300 = vmatpush1.msra.mxu0 0.0
        %1301 = vmatprep.subr.mxu0 0.0
        %1302 = vmatpush1.msra.mxu0 0.0
        %1303 = vmatprep.subr.mxu0 0.0
        %1304 = vmatpush1.msra.mxu0 0.0
        %1305 = vmatprep.subr.mxu0 0.0
        %1306 = vmatpush1.msra.mxu0 0.0
        %1307 = vmatprep.subr.mxu0 0.0
        %1308 = vmatpush1.msra.mxu0 0.0
        %1309 = vmatprep.subr.mxu0 0.0
        %1310 = vmatpush1.msra.mxu0 0.0
        %1311 = vmatprep.subr.mxu0 0.0
        %1312 = vmatpush1.msra.mxu0 0.0
        %1313 = vmatprep.subr.mxu0 0.0
        %1314 = vmatpush1.msra.mxu0 0.0
        %1315 = vmatprep.subr.mxu0 0.0
        %1316 = vmatpush1.msra.mxu0 0.0
        %1317 = vmatprep.subr.mxu0 0.0
        %1318 = vmatpush1.msra.mxu0 0.0
        %1319 = vmatprep.subr.mxu0 0.0
        %1320 = vmatpush1.msra.mxu0 0.0
        %1321 = vmatprep.subr.mxu0 0.0
        %1322 = vmatpush1.msra.mxu0 0.0
        %1323 = vmatprep.subr.mxu0 0.0
        %1324 = vmatpush1.msra.mxu0 0.0
        %1325 = vmatprep.mubr.f32.mxu0 0.0
        %1326 = vmatmul.mubr.f32.gmra.mrb[0].mxu0 %v342
        %v1327 = vpop.f32.mrb[0].mxu0
        %v1328 = vadd.f32 %v306, %v1327
        %v1329 = vpop.f32.mrb[0].mxu0
        %v1330 = vadd.f32 %v306, %v1329
        %1331 = vdwg.mxu0
        %1332 = vmatprep.subr.mxu0 %v399
        %1333 = vmatpush1.msra.mxu0 %v397
        %1334 = vmatprep.subr.mxu0 0.0
        %1335 = vmatpush1.msra.mxu0 0.0
        %1336 = vmatprep.subr.mxu0 0.0
        %1337 = vmatpush1.msra.mxu0 0.0
        %1338 = vmatprep.subr.mxu0 0.0
        %1339 = vmatpush1.msra.mxu0 0.0
        %1340 = vmatprep.subr.mxu0 0.0
        %1341 = vmatpush1.msra.mxu0 0.0
        %1342 = vmatprep.subr.mxu0 0.0
        %1343 = vmatpush1.msra.mxu0 0.0
        %1344 = vmatprep.subr.mxu0 0.0
        %1345 = vmatpush1.msra.mxu0 0.0
        %1346 = vmatprep.subr.mxu0 0.0
        %1347 = vmatpush1.msra.mxu0 0.0
        %1348 = vmatprep.subr.mxu0 0.0
        %1349 = vmatpush1.msra.mxu0 0.0
        %1350 = vmatprep.subr.mxu0 0.0
        %1351 = vmatpush1.msra.mxu0 0.0
        %1352 = vmatprep.subr.mxu0 0.0
        %1353 = vmatpush1.msra.mxu0 0.0
        %1354 = vmatprep.subr.mxu0 0.0
        %1355 = vmatpush1.msra.mxu0 0.0
        %1356 = vmatprep.subr.mxu0 0.0
        %1357 = vmatpush1.msra.mxu0 0.0
        %1358 = vmatprep.subr.mxu0 0.0
        %1359 = vmatpush1.msra.mxu0 0.0
        %1360 = vmatprep.subr.mxu0 0.0
        %1361 = vmatpush1.msra.mxu0 0.0
        %1362 = vmatprep.subr.mxu0 0.0
        %1363 = vmatpush1.msra.mxu0 0.0
        %1364 = vmatprep.subr.mxu0 0.0
        %1365 = vmatpush1.msra.mxu0 0.0
        %1366 = vmatprep.subr.mxu0 0.0
        %1367 = vmatpush1.msra.mxu0 0.0
        %1368 = vmatprep.subr.mxu0 0.0
        %1369 = vmatpush1.msra.mxu0 0.0
        %1370 = vmatprep.subr.mxu0 0.0
        %1371 = vmatpush1.msra.mxu0 0.0
        %1372 = vmatprep.subr.mxu0 0.0
        %1373 = vmatpush1.msra.mxu0 0.0
        %1374 = vmatprep.subr.mxu0 0.0
        %1375 = vmatpush1.msra.mxu0 0.0
        %1376 = vmatprep.subr.mxu0 0.0
        %1377 = vmatpush1.msra.mxu0 0.0
        %1378 = vmatprep.subr.mxu0 0.0
        %1379 = vmatpush1.msra.mxu0 0.0
        %1380 = vmatprep.subr.mxu0 0.0
        %1381 = vmatpush1.msra.mxu0 0.0
        %1382 = vmatprep.subr.mxu0 0.0
        %1383 = vmatpush1.msra.mxu0 0.0
        %1384 = vmatprep.subr.mxu0 0.0
        %1385 = vmatpush1.msra.mxu0 0.0
        %1386 = vmatprep.subr.mxu0 0.0
        %1387 = vmatpush1.msra.mxu0 0.0
        %1388 = vmatprep.subr.mxu0 0.0
        %1389 = vmatpush1.msra.mxu0 0.0
        %1390 = vmatprep.subr.mxu0 0.0
        %1391 = vmatpush1.msra.mxu0 0.0
        %1392 = vmatprep.subr.mxu0 0.0
        %1393 = vmatpush1.msra.mxu0 0.0
        %1394 = vmatprep.subr.mxu0 0.0
        %1395 = vmatpush1.msra.mxu0 0.0
        %1396 = vmatprep.mubr.f32.mxu0 0.0
        %1397 = vmatmul.mubr.f32.gmra.mrb[0].mxu0 %v342
        %v1398 = vpop.f32.mrb[0].mxu0
        %v1399 = vadd.f32 %v306, %v1398
        %v1400 = vpop.f32.mrb[0].mxu0
        %v1401 = vadd.f32 %v306, %v1400
        %1402 = vdwg.mxu0
        %1403 = vmatprep.subr.mxu0 %v403
        %1404 = vmatpush1.msra.mxu0 %v401
        %1405 = vmatprep.subr.mxu0 0.0
        %1406 = vmatpush1.msra.mxu0 0.0
        %1407 = vmatprep.subr.mxu0 0.0
        %1408 = vmatpush1.msra.mxu0 0.0
        %1409 = vmatprep.subr.mxu0 0.0
        %1410 = vmatpush1.msra.mxu0 0.0
        %1411 = vmatprep.subr.mxu0 0.0
        %1412 = vmatpush1.msra.mxu0 0.0
        %1413 = vmatprep.subr.mxu0 0.0
        %1414 = vmatpush1.msra.mxu0 0.0
        %1415 = vmatprep.subr.mxu0 0.0
        %1416 = vmatpush1.msra.mxu0 0.0
        %1417 = vmatprep.subr.mxu0 0.0
        %1418 = vmatpush1.msra.mxu0 0.0
        %1419 = vmatprep.subr.mxu0 0.0
        %1420 = vmatpush1.msra.mxu0 0.0
        %1421 = vmatprep.subr.mxu0 0.0
        %1422 = vmatpush1.msra.mxu0 0.0
        %1423 = vmatprep.subr.mxu0 0.0
        %1424 = vmatpush1.msra.mxu0 0.0
        %1425 = vmatprep.subr.mxu0 0.0
        %1426 = vmatpush1.msra.mxu0 0.0
        %1427 = vmatprep.subr.mxu0 0.0
        %1428 = vmatpush1.msra.mxu0 0.0
        %1429 = vmatprep.subr.mxu0 0.0
        %1430 = vmatpush1.msra.mxu0 0.0
        %1431 = vmatprep.subr.mxu0 0.0
        %1432 = vmatpush1.msra.mxu0 0.0
        %1433 = vmatprep.subr.mxu0 0.0
        %1434 = vmatpush1.msra.mxu0 0.0
        %1435 = vmatprep.subr.mxu0 0.0
        %1436 = vmatpush1.msra.mxu0 0.0
        %1437 = vmatprep.subr.mxu0 0.0
        %1438 = vmatpush1.msra.mxu0 0.0
        %1439 = vmatprep.subr.mxu0 0.0
        %1440 = vmatpush1.msra.mxu0 0.0
        %1441 = vmatprep.subr.mxu0 0.0
        %1442 = vmatpush1.msra.mxu0 0.0
        %1443 = vmatprep.subr.mxu0 0.0
        %1444 = vmatpush1.msra.mxu0 0.0
        %1445 = vmatprep.subr.mxu0 0.0
        %1446 = vmatpush1.msra.mxu0 0.0
        %1447 = vmatprep.subr.mxu0 0.0
        %1448 = vmatpush1.msra.mxu0 0.0
        %1449 = vmatprep.subr.mxu0 0.0
        %1450 = vmatpush1.msra.mxu0 0.0
        %1451 = vmatprep.subr.mxu0 0.0
        %1452 = vmatpush1.msra.mxu0 0.0
        %1453 = vmatprep.subr.mxu0 0.0
        %1454 = vmatpush1.msra.mxu0 0.0
        %1455 = vmatprep.subr.mxu0 0.0
        %1456 = vmatpush1.msra.mxu0 0.0
        %1457 = vmatprep.subr.mxu0 0.0
        %1458 = vmatpush1.msra.mxu0 0.0
        %1459 = vmatprep.subr.mxu0 0.0
        %1460 = vmatpush1.msra.mxu0 0.0
        %1461 = vmatprep.subr.mxu0 0.0
        %1462 = vmatpush1.msra.mxu0 0.0
        %1463 = vmatprep.subr.mxu0 0.0
        %1464 = vmatpush1.msra.mxu0 0.0
        %1465 = vmatprep.subr.mxu0 0.0
        %1466 = vmatpush1.msra.mxu0 0.0
        %1467 = vmatprep.mubr.f32.mxu0 0.0
        %1468 = vmatmul.mubr.f32.gmra.mrb[0].mxu0 %v342
        %v1469 = vpop.f32.mrb[0].mxu0
        %v1470 = vadd.f32 %v306, %v1469
        %v1471 = vpop.f32.mrb[0].mxu0
        %v1472 = vadd.f32 %v306, %v1471
        %1473 = vdwg.mxu0
        %1474 = vmatprep.subr.mxu0 %v407
        %1475 = vmatpush1.msra.mxu0 %v405
        %1476 = vmatprep.subr.mxu0 0.0
        %1477 = vmatpush1.msra.mxu0 0.0
        %1478 = vmatprep.subr.mxu0 0.0
        %1479 = vmatpush1.msra.mxu0 0.0
        %1480 = vmatprep.subr.mxu0 0.0
        %1481 = vmatpush1.msra.mxu0 0.0
        %1482 = vmatprep.subr.mxu0 0.0
        %1483 = vmatpush1.msra.mxu0 0.0
        %1484 = vmatprep.subr.mxu0 0.0
        %1485 = vmatpush1.msra.mxu0 0.0
        %1486 = vmatprep.subr.mxu0 0.0
        %1487 = vmatpush1.msra.mxu0 0.0
        %1488 = vmatprep.subr.mxu0 0.0
        %1489 = vmatpush1.msra.mxu0 0.0
        %1490 = vmatprep.subr.mxu0 0.0
        %1491 = vmatpush1.msra.mxu0 0.0
        %1492 = vmatprep.subr.mxu0 0.0
        %1493 = vmatpush1.msra.mxu0 0.0
        %1494 = vmatprep.subr.mxu0 0.0
        %1495 = vmatpush1.msra.mxu0 0.0
        %1496 = vmatprep.subr.mxu0 0.0
        %1497 = vmatpush1.msra.mxu0 0.0
        %1498 = vmatprep.subr.mxu0 0.0
        %1499 = vmatpush1.msra.mxu0 0.0
        %1500 = vmatprep.subr.mxu0 0.0
        %1501 = vmatpush1.msra.mxu0 0.0
        %1502 = vmatprep.subr.mxu0 0.0
        %1503 = vmatpush1.msra.mxu0 0.0
        %1504 = vmatprep.subr.mxu0 0.0
        %1505 = vmatpush1.msra.mxu0 0.0
        %1506 = vmatprep.subr.mxu0 0.0
        %1507 = vmatpush1.msra.mxu0 0.0
        %1508 = vmatprep.subr.mxu0 0.0
        %1509 = vmatpush1.msra.mxu0 0.0
        %1510 = vmatprep.subr.mxu0 0.0
        %1511 = vmatpush1.msra.mxu0 0.0
        %1512 = vmatprep.subr.mxu0 0.0
        %1513 = vmatpush1.msra.mxu0 0.0
        %1514 = vmatprep.subr.mxu0 0.0
        %1515 = vmatpush1.msra.mxu0 0.0
        %1516 = vmatprep.subr.mxu0 0.0
        %1517 = vmatpush1.msra.mxu0 0.0
        %1518 = vmatprep.subr.mxu0 0.0
        %1519 = vmatpush1.msra.mxu0 0.0
        %1520 = vmatprep.subr.mxu0 0.0
        %1521 = vmatpush1.msra.mxu0 0.0
        %1522 = vmatprep.subr.mxu0 0.0
        %1523 = vmatpush1.msra.mxu0 0.0
        %1524 = vmatprep.subr.mxu0 0.0
        %1525 = vmatpush1.msra.mxu0 0.0
        %1526 = vmatprep.subr.mxu0 0.0
        %1527 = vmatpush1.msra.mxu0 0.0
        %1528 = vmatprep.subr.mxu0 0.0
        %1529 = vmatpush1.msra.mxu0 0.0
        %1530 = vmatprep.subr.mxu0 0.0
        %1531 = vmatpush1.msra.mxu0 0.0
        %1532 = vmatprep.subr.mxu0 0.0
        %1533 = vmatpush1.msra.mxu0 0.0
        %1534 = vmatprep.subr.mxu0 0.0
        %1535 = vmatpush1.msra.mxu0 0.0
        %1536 = vmatprep.subr.mxu0 0.0
        %1537 = vmatpush1.msra.mxu0 0.0
        %1538 = vmatprep.mubr.f32.mxu0 0.0
        %1539 = vmatmul.mubr.f32.gmra.mrb[0].mxu0 %v342
        %v1540 = vpop.f32.mrb[0].mxu0
        %v1541 = vadd.f32 %v306, %v1540
        %v1542 = vpop.f32.mrb[0].mxu0
        %v1543 = vadd.f32 %v306, %v1542
        %1544 = vdwg.mxu0
        %v1545 = vmax.f32 %v476, 0.0
        %v1546 = vmax.f32 %v478, 0.0
        %v1547 = vmax.f32 %v547, 0.0
        %v1548 = vmax.f32 %v549, 0.0
        %v1549 = vmax.f32 %v618, 0.0
        %v1550 = vmax.f32 %v620, 0.0
        %v1551 = vmax.f32 %v689, 0.0
        %v1552 = vmax.f32 %v691, 0.0
        %v1553 = vmax.f32 %v760, 0.0
        %v1554 = vmax.f32 %v762, 0.0
        %v1555 = vmax.f32 %v831, 0.0
        %v1556 = vmax.f32 %v833, 0.0
        %v1557 = vmax.f32 %v902, 0.0
        %v1558 = vmax.f32 %v904, 0.0
        %v1559 = vmax.f32 %v973, 0.0
        %v1560 = vmax.f32 %v975, 0.0
        %v1561 = vmax.f32 %v1044, 0.0
        %v1562 = vmax.f32 %v1046, 0.0
        %v1563 = vmax.f32 %v1115, 0.0
        %v1564 = vmax.f32 %v1117, 0.0
        %v1565 = vmax.f32 %v1186, 0.0
        %v1566 = vmax.f32 %v1188, 0.0
        %v1567 = vmax.f32 %v1257, 0.0
        %v1568 = vmax.f32 %v1259, 0.0
        %v1569 = vmax.f32 %v1328, 0.0
        %v1570 = vmax.f32 %v1330, 0.0
        %v1571 = vmax.f32 %v1399, 0.0
        %v1572 = vmax.f32 %v1401, 0.0
        %v1573 = vmax.f32 %v1470, 0.0
        %v1574 = vmax.f32 %v1472, 0.0
        %v1575 = vmax.f32 %v1541, 0.0
        %v1576 = vmax.f32 %v1543, 0.0
        %1577 = vst [vmem:[#allocation2] sm:$0xff] %v1545
        %1578 = vst [vmem:[#allocation2 + $0x8] sm:$0xff] %v1546
        %1579 = vst [vmem:[#allocation2 + $0x10] sm:$0xff] %v1547
        %1580 = vst [vmem:[#allocation2 + $0x18] sm:$0xff] %v1548
        %1581 = vst [vmem:[#allocation2 + $0x20] sm:$0xff] %v1549
        %1582 = vst [vmem:[#allocation2 + $0x28] sm:$0xff] %v1550
        %1583 = vst [vmem:[#allocation2 + $0x30] sm:$0xff] %v1551
        %1584 = vst [vmem:[#allocation2 + $0x38] sm:$0xff] %v1552
        %1585 = vst [vmem:[#allocation2 + $0x40] sm:$0xff] %v1553
        %1586 = vst [vmem:[#allocation2 + $0x48] sm:$0xff] %v1554
        %1587 = vst [vmem:[#allocation2 + $0x50] sm:$0xff] %v1555
        %1588 = vst [vmem:[#allocation2 + $0x58] sm:$0xff] %v1556
        %1589 = vst [vmem:[#allocation2 + $0x60] sm:$0xff] %v1557
        %1590 = vst [vmem:[#allocation2 + $0x68] sm:$0xff] %v1558
        %1591 = vst [vmem:[#allocation2 + $0x70] sm:$0xff] %v1559
        %1592 = vst [vmem:[#allocation2 + $0x78] sm:$0xff] %v1560
        %1593 = vst [vmem:[#allocation2 + $0x80] sm:$0xff] %v1561
        %1594 = vst [vmem:[#allocation2 + $0x88] sm:$0xff] %v1562
        %1595 = vst [vmem:[#allocation2 + $0x90] sm:$0xff] %v1563
        %1596 = vst [vmem:[#allocation2 + $0x98] sm:$0xff] %v1564
        %1597 = vst [vmem:[#allocation2 + $0xa0] sm:$0xff] %v1565
        %1598 = vst [vmem:[#allocation2 + $0xa8] sm:$0xff] %v1566
        %1599 = vst [vmem:[#allocation2 + $0xb0] sm:$0xff] %v1567
        %1600 = vst [vmem:[#allocation2 + $0xb8] sm:$0xff] %v1568
        %1601 = vst [vmem:[#allocation2 + $0xc0] sm:$0xff] %v1569
        %1602 = vst [vmem:[#allocation2 + $0xc8] sm:$0xff] %v1570
        %1603 = vst [vmem:[#allocation2 + $0xd0] sm:$0xff] %v1571
        %1604 = vst [vmem:[#allocation2 + $0xd8] sm:$0xff] %v1572
        %1605 = vst [vmem:[#allocation2 + $0xe0] sm:$0xff] %v1573
        %1606 = vst [vmem:[#allocation2 + $0xe8] sm:$0xff] %v1574
        %1607 = vst [vmem:[#allocation2 + $0xf0] sm:$0xff] %v1575
        %1608 = vst [vmem:[#allocation2 + $0xf8] sm:$0xff] %v1576
        %v1609 = vld [vmem:[#allocation2] sm:$0xff]
        %v1610 = vld [vmem:[#allocation2 + $0x8] sm:$0xff]
        %v1611 = vld [vmem:[#allocation2 + $0x10] sm:$0xff]
        %v1612 = vld [vmem:[#allocation2 + $0x18] sm:$0xff]
        %v1613 = vld [vmem:[#allocation2 + $0x20] sm:$0xff]
        %v1614 = vld [vmem:[#allocation2 + $0x28] sm:$0xff]
        %v1615 = vld [vmem:[#allocation2 + $0x30] sm:$0xff]
        %v1616 = vld [vmem:[#allocation2 + $0x38] sm:$0xff]
        %v1617 = vld [vmem:[#allocation2 + $0x40] sm:$0xff]
        %v1618 = vld [vmem:[#allocation2 + $0x48] sm:$0xff]
        %v1619 = vld [vmem:[#allocation2 + $0x50] sm:$0xff]
        %v1620 = vld [vmem:[#allocation2 + $0x58] sm:$0xff]
        %v1621 = vld [vmem:[#allocation2 + $0x60] sm:$0xff]
        %v1622 = vld [vmem:[#allocation2 + $0x68] sm:$0xff]
        %v1623 = vld [vmem:[#allocation2 + $0x70] sm:$0xff]
        %v1624 = vld [vmem:[#allocation2 + $0x78] sm:$0xff]
        %v1625 = vld [vmem:[#allocation2 + $0x80] sm:$0xff]
        %v1626 = vld [vmem:[#allocation2 + $0x88] sm:$0xff]
        %v1627 = vld [vmem:[#allocation2 + $0x90] sm:$0xff]
        %v1628 = vld [vmem:[#allocation2 + $0x98] sm:$0xff]
        %v1629 = vld [vmem:[#allocation2 + $0xa0] sm:$0xff]
        %v1630 = vld [vmem:[#allocation2 + $0xa8] sm:$0xff]
        %v1631 = vld [vmem:[#allocation2 + $0xb0] sm:$0xff]
        %v1632 = vld [vmem:[#allocation2 + $0xb8] sm:$0xff]
        %v1633 = vld [vmem:[#allocation2 + $0xc0] sm:$0xff]
        %v1634 = vld [vmem:[#allocation2 + $0xc8] sm:$0xff]
        %v1635 = vld [vmem:[#allocation2 + $0xd0] sm:$0xff]
        %v1636 = vld [vmem:[#allocation2 + $0xd8] sm:$0xff]
        %v1637 = vld [vmem:[#allocation2 + $0xe0] sm:$0xff]
        %v1638 = vld [vmem:[#allocation2 + $0xe8] sm:$0xff]
        %v1639 = vld [vmem:[#allocation2 + $0xf0] sm:$0xff]
        %v1640 = vld [vmem:[#allocation2 + $0xf8] sm:$0xff]
        %1641 = vrot.lane.b32.xlu0 %v1609, 34
        %v1642 = vpop.permute.xlu0 %1641
        %1643 = vrot.lane.b32.xlu0 %v1610, 34
        %v1644 = vpop.permute.xlu0 %1643
        %1645 = vrot.lane.b32.xlu0 %v1611, 34
        %v1646 = vpop.permute.xlu0 %1645
        %1647 = vrot.lane.b32.xlu0 %v1612, 34
        %v1648 = vpop.permute.xlu0 %1647
        %1649 = vrot.lane.b32.xlu0 %v1613, 34
        %v1650 = vpop.permute.xlu0 %1649
        %1651 = vrot.lane.b32.xlu0 %v1614, 34
        %v1652 = vpop.permute.xlu0 %1651
        %1653 = vrot.lane.b32.xlu0 %v1615, 34
        %v1654 = vpop.permute.xlu0 %1653
        %1655 = vrot.lane.b32.xlu0 %v1616, 34
        %v1656 = vpop.permute.xlu0 %1655
        %1657 = vrot.lane.b32.xlu0 %v1617, 34
        %v1658 = vpop.permute.xlu0 %1657
        %1659 = vrot.lane.b32.xlu0 %v1618, 34
        %v1660 = vpop.permute.xlu0 %1659
        %1661 = vrot.lane.b32.xlu0 %v1619, 34
        %v1662 = vpop.permute.xlu0 %1661
        %1663 = vrot.lane.b32.xlu0 %v1620, 34
        %v1664 = vpop.permute.xlu0 %1663
        %1665 = vrot.lane.b32.xlu0 %v1621, 34
        %v1666 = vpop.permute.xlu0 %1665
        %1667 = vrot.lane.b32.xlu0 %v1622, 34
        %v1668 = vpop.permute.xlu0 %1667
        %1669 = vrot.lane.b32.xlu0 %v1623, 34
        %v1670 = vpop.permute.xlu0 %1669
        %1671 = vrot.lane.b32.xlu0 %v1624, 34
        %v1672 = vpop.permute.xlu0 %1671
        %1673 = vrot.lane.b32.xlu0 %v1625, 34
        %v1674 = vpop.permute.xlu0 %1673
        %1675 = vrot.lane.b32.xlu0 %v1626, 34
        %v1676 = vpop.permute.xlu0 %1675
        %1677 = vrot.lane.b32.xlu0 %v1627, 34
        %v1678 = vpop.permute.xlu0 %1677
        %1679 = vrot.lane.b32.xlu0 %v1628, 34
        %v1680 = vpop.permute.xlu0 %1679
        %1681 = vrot.lane.b32.xlu0 %v1629, 34
        %v1682 = vpop.permute.xlu0 %1681
        %1683 = vrot.lane.b32.xlu0 %v1630, 34
        %v1684 = vpop.permute.xlu0 %1683
        %1685 = vrot.lane.b32.xlu0 %v1631, 34
        %v1686 = vpop.permute.xlu0 %1685
        %1687 = vrot.lane.b32.xlu0 %v1632, 34
        %v1688 = vpop.permute.xlu0 %1687
        %1689 = vrot.lane.b32.xlu0 %v1633, 34
        %v1690 = vpop.permute.xlu0 %1689
        %1691 = vrot.lane.b32.xlu0 %v1634, 34
        %v1692 = vpop.permute.xlu0 %1691
        %1693 = vrot.lane.b32.xlu0 %v1635, 34
        %v1694 = vpop.permute.xlu0 %1693
        %1695 = vrot.lane.b32.xlu0 %v1636, 34
        %v1696 = vpop.permute.xlu0 %1695
        %1697 = vrot.lane.b32.xlu0 %v1637, 34
        %v1698 = vpop.permute.xlu0 %1697
        %1699 = vrot.lane.b32.xlu0 %v1638, 34
        %v1700 = vpop.permute.xlu0 %1699
        %1701 = vrot.lane.b32.xlu0 %v1639, 34
        %v1702 = vpop.permute.xlu0 %1701
        %1703 = vrot.lane.b32.xlu0 %v1640, 34
        %v1704 = vpop.permute.xlu0 %1703
        %v1705 = vlaneseq
        %v1706 = vand.u32 %v1705, 127
        %vm1707 = vcmp.lt.s32.totalorder %v1706, 34
        %v1708 = vsel %vm1707, %v1702, %v1704
        %v1709 = vsel %vm1707, %v1700, %v1702
        %v1710 = vsel %vm1707, %v1698, %v1700
        %v1711 = vsel %vm1707, %v1696, %v1698
        %v1712 = vsel %vm1707, %v1694, %v1696
        %v1713 = vsel %vm1707, %v1692, %v1694
        %v1714 = vsel %vm1707, %v1690, %v1692
        %v1715 = vsel %vm1707, %v1688, %v1690
        %v1716 = vsel %vm1707, %v1686, %v1688
        %v1717 = vsel %vm1707, %v1684, %v1686
        %v1718 = vsel %vm1707, %v1682, %v1684
        %v1719 = vsel %vm1707, %v1680, %v1682
        %v1720 = vsel %vm1707, %v1678, %v1680
        %v1721 = vsel %vm1707, %v1676, %v1678
        %v1722 = vsel %vm1707, %v1674, %v1676
        %v1723 = vsel %vm1707, %v1672, %v1674
        %v1724 = vsel %vm1707, %v1670, %v1672
        %v1725 = vsel %vm1707, %v1668, %v1670
        %v1726 = vsel %vm1707, %v1666, %v1668
        %v1727 = vsel %vm1707, %v1664, %v1666
        %v1728 = vsel %vm1707, %v1662, %v1664
        %v1729 = vsel %vm1707, %v1660, %v1662
        %v1730 = vsel %vm1707, %v1658, %v1660
        %v1731 = vsel %vm1707, %v1656, %v1658
        %v1732 = vsel %vm1707, %v1654, %v1656
        %v1733 = vsel %vm1707, %v1652, %v1654
        %v1734 = vsel %vm1707, %v1650, %v1652
        %v1735 = vsel %vm1707, %v1648, %v1650
        %v1736 = vsel %vm1707, %v1646, %v1648
        %v1737 = vsel %vm1707, %v1644, %v1646
        %v1738 = vsel %vm1707, %v1642, %v1644
        %v1739 = vsel %vm1707, %v1704, %v1642
        %v1740 = vld [vmem:[#allocation6] ss:$8 sm:$0xf]
        %v1741 = vld [vmem:[#allocation6] ss:$8 sm:$0xf0]
        %v1742 = vor.u32 %v1740, %v1741
        %s1743 = scalar_lea.vmem [#allocation6], 64
        %v1744 = vld [vmem:[%s1743] ss:$8 sm:$0xf]
        %v1745 = vld [vmem:[%s1743] ss:$8 sm:$0xf0]
        %v1746 = vor.u32 %v1744, %v1745
        %s1747 = scalar_lea.vmem [#allocation6], 128
        %v1748 = vld [vmem:[%s1747] ss:$8 sm:$0xf]
        %v1749 = vld [vmem:[%s1747] ss:$8 sm:$0xf0]
        %v1750 = vor.u32 %v1748, %v1749
        %s1751 = scalar_lea.vmem [#allocation6], 192
        %v1752 = vld [vmem:[%s1751] ss:$8 sm:$0xf]
        %v1753 = vld [vmem:[%s1751] ss:$8 sm:$0xf0]
        %v1754 = vor.u32 %v1752, %v1753
        %v1759 = vlaneseq
        %v1760 = vshrl.u32 %v1759, 7
        %v1761 = vsub.s32 0, %v1760
        %v1762 = vrot.slane %v1742, %v1761
        %v1763 = vlaneseq
        %v1764 = vshrl.u32 %v1763, 7
        %v1765 = vsub.s32 1, %v1764
        %v1766 = vrot.slane %v1742, %v1765
        %v1767 = vlaneseq
        %v1768 = vshrl.u32 %v1767, 7
        %v1769 = vsub.s32 2, %v1768
        %v1770 = vrot.slane %v1742, %v1769
        %v1771 = vlaneseq
        %v1772 = vshrl.u32 %v1771, 7
        %v1773 = vsub.s32 3, %v1772
        %v1774 = vrot.slane %v1742, %v1773
        %v1775 = vlaneseq
        %v1776 = vshrl.u32 %v1775, 7
        %v1777 = vsub.s32 4, %v1776
        %v1778 = vrot.slane %v1742, %v1777
        %v1779 = vlaneseq
        %v1780 = vshrl.u32 %v1779, 7
        %v1781 = vsub.s32 5, %v1780
        %v1782 = vrot.slane %v1742, %v1781
        %v1783 = vlaneseq
        %v1784 = vshrl.u32 %v1783, 7
        %v1785 = vsub.s32 6, %v1784
        %v1786 = vrot.slane %v1742, %v1785
        %v1787 = vlaneseq
        %v1788 = vshrl.u32 %v1787, 7
        %v1789 = vsub.s32 7, %v1788
        %v1790 = vrot.slane %v1742, %v1789
        %v1791 = vlaneseq
        %v1792 = vshrl.u32 %v1791, 7
        %v1793 = vsub.s32 0, %v1792
        %v1794 = vrot.slane %v1746, %v1793
        %v1795 = vlaneseq
        %v1796 = vshrl.u32 %v1795, 7
        %v1797 = vsub.s32 1, %v1796
        %v1798 = vrot.slane %v1746, %v1797
        %v1799 = vlaneseq
        %v1800 = vshrl.u32 %v1799, 7
        %v1801 = vsub.s32 2, %v1800
        %v1802 = vrot.slane %v1746, %v1801
        %v1803 = vlaneseq
        %v1804 = vshrl.u32 %v1803, 7
        %v1805 = vsub.s32 3, %v1804
        %v1806 = vrot.slane %v1746, %v1805
        %v1807 = vlaneseq
        %v1808 = vshrl.u32 %v1807, 7
        %v1809 = vsub.s32 4, %v1808
        %v1810 = vrot.slane %v1746, %v1809
        %v1811 = vlaneseq
        %v1812 = vshrl.u32 %v1811, 7
        %v1813 = vsub.s32 5, %v1812
        %v1814 = vrot.slane %v1746, %v1813
        %v1815 = vlaneseq
        %v1816 = vshrl.u32 %v1815, 7
        %v1817 = vsub.s32 6, %v1816
        %v1818 = vrot.slane %v1746, %v1817
        %v1819 = vlaneseq
        %v1820 = vshrl.u32 %v1819, 7
        %v1821 = vsub.s32 7, %v1820
        %v1822 = vrot.slane %v1746, %v1821
        %v1823 = vlaneseq
        %v1824 = vshrl.u32 %v1823, 7
        %v1825 = vsub.s32 0, %v1824
        %v1826 = vrot.slane %v1750, %v1825
        %v1827 = vlaneseq
        %v1828 = vshrl.u32 %v1827, 7
        %v1829 = vsub.s32 1, %v1828
        %v1830 = vrot.slane %v1750, %v1829
        %v1831 = vlaneseq
        %v1832 = vshrl.u32 %v1831, 7
        %v1833 = vsub.s32 2, %v1832
        %v1834 = vrot.slane %v1750, %v1833
        %v1835 = vlaneseq
        %v1836 = vshrl.u32 %v1835, 7
        %v1837 = vsub.s32 3, %v1836
        %v1838 = vrot.slane %v1750, %v1837
        %v1839 = vlaneseq
        %v1840 = vshrl.u32 %v1839, 7
        %v1841 = vsub.s32 4, %v1840
        %v1842 = vrot.slane %v1750, %v1841
        %v1843 = vlaneseq
        %v1844 = vshrl.u32 %v1843, 7
        %v1845 = vsub.s32 5, %v1844
        %v1846 = vrot.slane %v1750, %v1845
        %v1847 = vlaneseq
        %v1848 = vshrl.u32 %v1847, 7
        %v1849 = vsub.s32 6, %v1848
        %v1850 = vrot.slane %v1750, %v1849
        %v1851 = vlaneseq
        %v1852 = vshrl.u32 %v1851, 7
        %v1853 = vsub.s32 7, %v1852
        %v1854 = vrot.slane %v1750, %v1853
        %v1855 = vlaneseq
        %v1856 = vshrl.u32 %v1855, 7
        %v1857 = vsub.s32 0, %v1856
        %v1858 = vrot.slane %v1754, %v1857
        %v1859 = vlaneseq
        %v1860 = vshrl.u32 %v1859, 7
        %v1861 = vsub.s32 1, %v1860
        %v1862 = vrot.slane %v1754, %v1861
        %v1863 = vlaneseq
        %v1864 = vshrl.u32 %v1863, 7
        %v1865 = vsub.s32 2, %v1864
        %v1866 = vrot.slane %v1754, %v1865
        %v1867 = vlaneseq
        %v1868 = vshrl.u32 %v1867, 7
        %v1869 = vsub.s32 3, %v1868
        %v1870 = vrot.slane %v1754, %v1869
        %v1871 = vlaneseq
        %v1872 = vshrl.u32 %v1871, 7
        %v1873 = vsub.s32 4, %v1872
        %v1874 = vrot.slane %v1754, %v1873
        %v1875 = vlaneseq
        %v1876 = vshrl.u32 %v1875, 7
        %v1877 = vsub.s32 5, %v1876
        %v1878 = vrot.slane %v1754, %v1877
        %v1879 = vlaneseq
        %v1880 = vshrl.u32 %v1879, 7
        %v1881 = vsub.s32 6, %v1880
        %v1882 = vrot.slane %v1754, %v1881
        %v1883 = vlaneseq
        %v1884 = vshrl.u32 %v1883, 7
        %v1885 = vsub.s32 7, %v1884
        %v1886 = vrot.slane %v1754, %v1885
        %v1919 = vmul.f32 %v1711, %v1762
        %v1920 = vmul.f32 %v1710, %v1766
        %v1921 = vmul.f32 %v1709, %v1770
        %v1922 = vmul.f32 %v1708, %v1774
        %v1923 = vmul.f32 %v1739, %v1778
        %v1924 = vmul.f32 %v1738, %v1782
        %v1925 = vmul.f32 %v1737, %v1786
        %v1926 = vmul.f32 %v1736, %v1790
        %v1927 = vmul.f32 %v1735, %v1794
        %v1928 = vmul.f32 %v1734, %v1798
        %v1929 = vmul.f32 %v1733, %v1802
        %v1930 = vmul.f32 %v1732, %v1806
        %v1931 = vmul.f32 %v1731, %v1810
        %v1932 = vmul.f32 %v1730, %v1814
        %v1933 = vmul.f32 %v1729, %v1818
        %v1934 = vmul.f32 %v1728, %v1822
        %v1935 = vmul.f32 %v1727, %v1826
        %v1936 = vmul.f32 %v1726, %v1830
        %v1937 = vmul.f32 %v1725, %v1834
        %v1938 = vmul.f32 %v1724, %v1838
        %v1939 = vmul.f32 %v1723, %v1842
        %v1940 = vmul.f32 %v1722, %v1846
        %v1941 = vmul.f32 %v1721, %v1850
        %v1942 = vmul.f32 %v1720, %v1854
        %v1943 = vmul.f32 %v1719, %v1858
        %v1944 = vmul.f32 %v1718, %v1862
        %v1945 = vmul.f32 %v1717, %v1866
        %v1946 = vmul.f32 %v1716, %v1870
        %v1947 = vmul.f32 %v1715, %v1874
        %v1948 = vmul.f32 %v1714, %v1878
        %v1949 = vmul.f32 %v1713, %v1882
        %v1950 = vmul.f32 %v1712, %v1886
        %1951 = vst [vmem:[#allocation3] sm:$0xff] %v1919
        %1952 = vst [vmem:[#allocation3 + $0x8] sm:$0xff] %v1920
        %1953 = vst [vmem:[#allocation3 + $0x10] sm:$0xff] %v1921
        %1954 = vst [vmem:[#allocation3 + $0x18] sm:$0xff] %v1922
        %1955 = vst [vmem:[#allocation3 + $0x20] sm:$0xff] %v1923
        %1956 = vst [vmem:[#allocation3 + $0x28] sm:$0xff] %v1924
        %1957 = vst [vmem:[#allocation3 + $0x30] sm:$0xff] %v1925
        %1958 = vst [vmem:[#allocation3 + $0x38] sm:$0xff] %v1926
        %1959 = vst [vmem:[#allocation3 + $0x40] sm:$0xff] %v1927
        %1960 = vst [vmem:[#allocation3 + $0x48] sm:$0xff] %v1928
        %1961 = vst [vmem:[#allocation3 + $0x50] sm:$0xff] %v1929
        %1962 = vst [vmem:[#allocation3 + $0x58] sm:$0xff] %v1930
        %1963 = vst [vmem:[#allocation3 + $0x60] sm:$0xff] %v1931
        %1964 = vst [vmem:[#allocation3 + $0x68] sm:$0xff] %v1932
        %1965 = vst [vmem:[#allocation3 + $0x70] sm:$0xff] %v1933
        %1966 = vst [vmem:[#allocation3 + $0x78] sm:$0xff] %v1934
        %1967 = vst [vmem:[#allocation3 + $0x80] sm:$0xff] %v1935
        %1968 = vst [vmem:[#allocation3 + $0x88] sm:$0xff] %v1936
        %1969 = vst [vmem:[#allocation3 + $0x90] sm:$0xff] %v1937
        %1970 = vst [vmem:[#allocation3 + $0x98] sm:$0xff] %v1938
        %1971 = vst [vmem:[#allocation3 + $0xa0] sm:$0xff] %v1939
        %1972 = vst [vmem:[#allocation3 + $0xa8] sm:$0xff] %v1940
        %1973 = vst [vmem:[#allocation3 + $0xb0] sm:$0xff] %v1941
        %1974 = vst [vmem:[#allocation3 + $0xb8] sm:$0xff] %v1942
        %1975 = vst [vmem:[#allocation3 + $0xc0] sm:$0xff] %v1943
        %1976 = vst [vmem:[#allocation3 + $0xc8] sm:$0xff] %v1944
        %1977 = vst [vmem:[#allocation3 + $0xd0] sm:$0xff] %v1945
        %1978 = vst [vmem:[#allocation3 + $0xd8] sm:$0xff] %v1946
        %1979 = vst [vmem:[#allocation3 + $0xe0] sm:$0xff] %v1947
        %1980 = vst [vmem:[#allocation3 + $0xe8] sm:$0xff] %v1948
        %1981 = vst [vmem:[#allocation3 + $0xf0] sm:$0xff] %v1949
        %1982 = vst [vmem:[#allocation3 + $0xf8] sm:$0xff] %v1950
        %1983 = vrot.lane.b32.xlu0 %v1609, 32
        %v1984 = vpop.permute.xlu0 %1983
        %1985 = vrot.lane.b32.xlu0 %v1610, 32
        %v1986 = vpop.permute.xlu0 %1985
        %1987 = vrot.lane.b32.xlu0 %v1611, 32
        %v1988 = vpop.permute.xlu0 %1987
        %1989 = vrot.lane.b32.xlu0 %v1612, 32
        %v1990 = vpop.permute.xlu0 %1989
        %1991 = vrot.lane.b32.xlu0 %v1613, 32
        %v1992 = vpop.permute.xlu0 %1991
        %1993 = vrot.lane.b32.xlu0 %v1614, 32
        %v1994 = vpop.permute.xlu0 %1993
        %1995 = vrot.lane.b32.xlu0 %v1615, 32
        %v1996 = vpop.permute.xlu0 %1995
        %1997 = vrot.lane.b32.xlu0 %v1616, 32
        %v1998 = vpop.permute.xlu0 %1997
        %1999 = vrot.lane.b32.xlu0 %v1617, 32
        %v2000 = vpop.permute.xlu0 %1999
        %2001 = vrot.lane.b32.xlu0 %v1618, 32
        %v2002 = vpop.permute.xlu0 %2001
        %2003 = vrot.lane.b32.xlu0 %v1619, 32
        %v2004 = vpop.permute.xlu0 %2003
        %2005 = vrot.lane.b32.xlu0 %v1620, 32
        %v2006 = vpop.permute.xlu0 %2005
        %2007 = vrot.lane.b32.xlu0 %v1621, 32
        %v2008 = vpop.permute.xlu0 %2007
        %2009 = vrot.lane.b32.xlu0 %v1622, 32
        %v2010 = vpop.permute.xlu0 %2009
        %2011 = vrot.lane.b32.xlu0 %v1623, 32
        %v2012 = vpop.permute.xlu0 %2011
        %2013 = vrot.lane.b32.xlu0 %v1624, 32
        %v2014 = vpop.permute.xlu0 %2013
        %2015 = vrot.lane.b32.xlu0 %v1625, 32
        %v2016 = vpop.permute.xlu0 %2015
        %2017 = vrot.lane.b32.xlu0 %v1626, 32
        %v2018 = vpop.permute.xlu0 %2017
        %2019 = vrot.lane.b32.xlu0 %v1627, 32
        %v2020 = vpop.permute.xlu0 %2019
        %2021 = vrot.lane.b32.xlu0 %v1628, 32
        %v2022 = vpop.permute.xlu0 %2021
        %2023 = vrot.lane.b32.xlu0 %v1629, 32
        %v2024 = vpop.permute.xlu0 %2023
        %2025 = vrot.lane.b32.xlu0 %v1630, 32
        %v2026 = vpop.permute.xlu0 %2025
        %2027 = vrot.lane.b32.xlu0 %v1631, 32
        %v2028 = vpop.permute.xlu0 %2027
        %2029 = vrot.lane.b32.xlu0 %v1632, 32
        %v2030 = vpop.permute.xlu0 %2029
        %2031 = vrot.lane.b32.xlu0 %v1633, 32
        %v2032 = vpop.permute.xlu0 %2031
        %2033 = vrot.lane.b32.xlu0 %v1634, 32
        %v2034 = vpop.permute.xlu0 %2033
        %2035 = vrot.lane.b32.xlu0 %v1635, 32
        %v2036 = vpop.permute.xlu0 %2035
        %2037 = vrot.lane.b32.xlu0 %v1636, 32
        %v2038 = vpop.permute.xlu0 %2037
        %2039 = vrot.lane.b32.xlu0 %v1637, 32
        %v2040 = vpop.permute.xlu0 %2039
        %2041 = vrot.lane.b32.xlu0 %v1638, 32
        %v2042 = vpop.permute.xlu0 %2041
        %2043 = vrot.lane.b32.xlu0 %v1639, 32
        %v2044 = vpop.permute.xlu0 %2043
        %2045 = vrot.lane.b32.xlu0 %v1640, 32
        %v2046 = vpop.permute.xlu0 %2045
        %vm2047 = vcmp.lt.s32.totalorder %v1706, 32
        %v2048 = vsel %vm2047, %v2044, %v2046
        %v2049 = vsel %vm2047, %v2042, %v2044
        %v2050 = vsel %vm2047, %v2040, %v2042
        %v2051 = vsel %vm2047, %v2038, %v2040
        %v2052 = vsel %vm2047, %v2036, %v2038
        %v2053 = vsel %vm2047, %v2034, %v2036
        %v2054 = vsel %vm2047, %v2032, %v2034
        %v2055 = vsel %vm2047, %v2030, %v2032
        %v2056 = vsel %vm2047, %v2028, %v2030
        %v2057 = vsel %vm2047, %v2026, %v2028
        %v2058 = vsel %vm2047, %v2024, %v2026
        %v2059 = vsel %vm2047, %v2022, %v2024
        %v2060 = vsel %vm2047, %v2020, %v2022
        %v2061 = vsel %vm2047, %v2018, %v2020
        %v2062 = vsel %vm2047, %v2016, %v2018
        %v2063 = vsel %vm2047, %v2014, %v2016
        %v2064 = vsel %vm2047, %v2012, %v2014
        %v2065 = vsel %vm2047, %v2010, %v2012
        %v2066 = vsel %vm2047, %v2008, %v2010
        %v2067 = vsel %vm2047, %v2006, %v2008
        %v2068 = vsel %vm2047, %v2004, %v2006
        %v2069 = vsel %vm2047, %v2002, %v2004
        %v2070 = vsel %vm2047, %v2000, %v2002
        %v2071 = vsel %vm2047, %v1998, %v2000
        %v2072 = vsel %vm2047, %v1996, %v1998
        %v2073 = vsel %vm2047, %v1994, %v1996
        %v2074 = vsel %vm2047, %v1992, %v1994
        %v2075 = vsel %vm2047, %v1990, %v1992
        %v2076 = vsel %vm2047, %v1988, %v1990
        %v2077 = vsel %vm2047, %v1986, %v1988
        %v2078 = vsel %vm2047, %v1984, %v1986
        %v2079 = vsel %vm2047, %v2046, %v1984
        %s2080 = scalar_lea.vmem [#allocation6], 1
        %v2081 = vld [vmem:[%s2080] ss:$8 sm:$0xf]
        %v2082 = vld [vmem:[%s2080] ss:$8 sm:$0xf0]
        %v2083 = vor.u32 %v2081, %v2082
        %s2084 = scalar_lea.vmem [#allocation6], 65
        %v2085 = vld [vmem:[%s2084] ss:$8 sm:$0xf]
        %v2086 = vld [vmem:[%s2084] ss:$8 sm:$0xf0]
        %v2087 = vor.u32 %v2085, %v2086
        %s2088 = scalar_lea.vmem [#allocation6], 129
        %v2089 = vld [vmem:[%s2088] ss:$8 sm:$0xf]
        %v2090 = vld [vmem:[%s2088] ss:$8 sm:$0xf0]
        %v2091 = vor.u32 %v2089, %v2090
        %s2092 = scalar_lea.vmem [#allocation6], 193
        %v2093 = vld [vmem:[%s2092] ss:$8 sm:$0xf]
        %v2094 = vld [vmem:[%s2092] ss:$8 sm:$0xf0]
        %v2095 = vor.u32 %v2093, %v2094
        %v2100 = vlaneseq
        %v2101 = vshrl.u32 %v2100, 7
        %v2102 = vsub.s32 0, %v2101
        %v2103 = vrot.slane %v2083, %v2102
        %v2104 = vlaneseq
        %v2105 = vshrl.u32 %v2104, 7
        %v2106 = vsub.s32 1, %v2105
        %v2107 = vrot.slane %v2083, %v2106
        %v2108 = vlaneseq
        %v2109 = vshrl.u32 %v2108, 7
        %v2110 = vsub.s32 2, %v2109
        %v2111 = vrot.slane %v2083, %v2110
        %v2112 = vlaneseq
        %v2113 = vshrl.u32 %v2112, 7
        %v2114 = vsub.s32 3, %v2113
        %v2115 = vrot.slane %v2083, %v2114
        %v2116 = vlaneseq
        %v2117 = vshrl.u32 %v2116, 7
        %v2118 = vsub.s32 4, %v2117
        %v2119 = vrot.slane %v2083, %v2118
        %v2120 = vlaneseq
        %v2121 = vshrl.u32 %v2120, 7
        %v2122 = vsub.s32 5, %v2121
        %v2123 = vrot.slane %v2083, %v2122
        %v2124 = vlaneseq
        %v2125 = vshrl.u32 %v2124, 7
        %v2126 = vsub.s32 6, %v2125
        %v2127 = vrot.slane %v2083, %v2126
        %v2128 = vlaneseq
        %v2129 = vshrl.u32 %v2128, 7
        %v2130 = vsub.s32 7, %v2129
        %v2131 = vrot.slane %v2083, %v2130
        %v2132 = vlaneseq
        %v2133 = vshrl.u32 %v2132, 7
        %v2134 = vsub.s32 0, %v2133
        %v2135 = vrot.slane %v2087, %v2134
        %v2136 = vlaneseq
        %v2137 = vshrl.u32 %v2136, 7
        %v2138 = vsub.s32 1, %v2137
        %v2139 = vrot.slane %v2087, %v2138
        %v2140 = vlaneseq
        %v2141 = vshrl.u32 %v2140, 7
        %v2142 = vsub.s32 2, %v2141
        %v2143 = vrot.slane %v2087, %v2142
        %v2144 = vlaneseq
        %v2145 = vshrl.u32 %v2144, 7
        %v2146 = vsub.s32 3, %v2145
        %v2147 = vrot.slane %v2087, %v2146
        %v2148 = vlaneseq
        %v2149 = vshrl.u32 %v2148, 7
        %v2150 = vsub.s32 4, %v2149
        %v2151 = vrot.slane %v2087, %v2150
        %v2152 = vlaneseq
        %v2153 = vshrl.u32 %v2152, 7
        %v2154 = vsub.s32 5, %v2153
        %v2155 = vrot.slane %v2087, %v2154
        %v2156 = vlaneseq
        %v2157 = vshrl.u32 %v2156, 7
        %v2158 = vsub.s32 6, %v2157
        %v2159 = vrot.slane %v2087, %v2158
        %v2160 = vlaneseq
        %v2161 = vshrl.u32 %v2160, 7
        %v2162 = vsub.s32 7, %v2161
        %v2163 = vrot.slane %v2087, %v2162
        %v2164 = vlaneseq
        %v2165 = vshrl.u32 %v2164, 7
        %v2166 = vsub.s32 0, %v2165
        %v2167 = vrot.slane %v2091, %v2166
        %v2168 = vlaneseq
        %v2169 = vshrl.u32 %v2168, 7
        %v2170 = vsub.s32 1, %v2169
        %v2171 = vrot.slane %v2091, %v2170
        %v2172 = vlaneseq
        %v2173 = vshrl.u32 %v2172, 7
        %v2174 = vsub.s32 2, %v2173
        %v2175 = vrot.slane %v2091, %v2174
        %v2176 = vlaneseq
        %v2177 = vshrl.u32 %v2176, 7
        %v2178 = vsub.s32 3, %v2177
        %v2179 = vrot.slane %v2091, %v2178
        %v2180 = vlaneseq
        %v2181 = vshrl.u32 %v2180, 7
        %v2182 = vsub.s32 4, %v2181
        %v2183 = vrot.slane %v2091, %v2182
        %v2184 = vlaneseq
        %v2185 = vshrl.u32 %v2184, 7
        %v2186 = vsub.s32 5, %v2185
        %v2187 = vrot.slane %v2091, %v2186
        %v2188 = vlaneseq
        %v2189 = vshrl.u32 %v2188, 7
        %v2190 = vsub.s32 6, %v2189
        %v2191 = vrot.slane %v2091, %v2190
        %v2192 = vlaneseq
        %v2193 = vshrl.u32 %v2192, 7
        %v2194 = vsub.s32 7, %v2193
        %v2195 = vrot.slane %v2091, %v2194
        %v2196 = vlaneseq
        %v2197 = vshrl.u32 %v2196, 7
        %v2198 = vsub.s32 0, %v2197
        %v2199 = vrot.slane %v2095, %v2198
        %v2200 = vlaneseq
        %v2201 = vshrl.u32 %v2200, 7
        %v2202 = vsub.s32 1, %v2201
        %v2203 = vrot.slane %v2095, %v2202
        %v2204 = vlaneseq
        %v2205 = vshrl.u32 %v2204, 7
        %v2206 = vsub.s32 2, %v2205
        %v2207 = vrot.slane %v2095, %v2206
        %v2208 = vlaneseq
        %v2209 = vshrl.u32 %v2208, 7
        %v2210 = vsub.s32 3, %v2209
        %v2211 = vrot.slane %v2095, %v2210
        %v2212 = vlaneseq
        %v2213 = vshrl.u32 %v2212, 7
        %v2214 = vsub.s32 4, %v2213
        %v2215 = vrot.slane %v2095, %v2214
        %v2216 = vlaneseq
        %v2217 = vshrl.u32 %v2216, 7
        %v2218 = vsub.s32 5, %v2217
        %v2219 = vrot.slane %v2095, %v2218
        %v2220 = vlaneseq
        %v2221 = vshrl.u32 %v2220, 7
        %v2222 = vsub.s32 6, %v2221
        %v2223 = vrot.slane %v2095, %v2222
        %v2224 = vlaneseq
        %v2225 = vshrl.u32 %v2224, 7
        %v2226 = vsub.s32 7, %v2225
        %v2227 = vrot.slane %v2095, %v2226
        %v2260 = vmul.f32 %v2051, %v2103
        %v2261 = vmul.f32 %v2050, %v2107
        %v2262 = vmul.f32 %v2049, %v2111
        %v2263 = vmul.f32 %v2048, %v2115
        %v2264 = vmul.f32 %v2079, %v2119
        %v2265 = vmul.f32 %v2078, %v2123
        %v2266 = vmul.f32 %v2077, %v2127
        %v2267 = vmul.f32 %v2076, %v2131
        %v2268 = vmul.f32 %v2075, %v2135
        %v2269 = vmul.f32 %v2074, %v2139
        %v2270 = vmul.f32 %v2073, %v2143
        %v2271 = vmul.f32 %v2072, %v2147
        %v2272 = vmul.f32 %v2071, %v2151
        %v2273 = vmul.f32 %v2070, %v2155
        %v2274 = vmul.f32 %v2069, %v2159
        %v2275 = vmul.f32 %v2068, %v2163
        %v2276 = vmul.f32 %v2067, %v2167
        %v2277 = vmul.f32 %v2066, %v2171
        %v2278 = vmul.f32 %v2065, %v2175
        %v2279 = vmul.f32 %v2064, %v2179
        %v2280 = vmul.f32 %v2063, %v2183
        %v2281 = vmul.f32 %v2062, %v2187
        %v2282 = vmul.f32 %v2061, %v2191
        %v2283 = vmul.f32 %v2060, %v2195
        %v2284 = vmul.f32 %v2059, %v2199
        %v2285 = vmul.f32 %v2058, %v2203
        %v2286 = vmul.f32 %v2057, %v2207
        %v2287 = vmul.f32 %v2056, %v2211
        %v2288 = vmul.f32 %v2055, %v2215
        %v2289 = vmul.f32 %v2054, %v2219
        %v2290 = vmul.f32 %v2053, %v2223
        %v2291 = vmul.f32 %v2052, %v2227
        %2292 = vst [vmem:[#allocation3 + $0x100] sm:$0xff] %v2260
        %2293 = vst [vmem:[#allocation3 + $0x108] sm:$0xff] %v2261
        %2294 = vst [vmem:[#allocation3 + $0x110] sm:$0xff] %v2262
        %2295 = vst [vmem:[#allocation3 + $0x118] sm:$0xff] %v2263
        %2296 = vst [vmem:[#allocation3 + $0x120] sm:$0xff] %v2264
        %2297 = vst [vmem:[#allocation3 + $0x128] sm:$0xff] %v2265
        %2298 = vst [vmem:[#allocation3 + $0x130] sm:$0xff] %v2266
        %2299 = vst [vmem:[#allocation3 + $0x138] sm:$0xff] %v2267
        %2300 = vst [vmem:[#allocation3 + $0x140] sm:$0xff] %v2268
        %2301 = vst [vmem:[#allocation3 + $0x148] sm:$0xff] %v2269
        %2302 = vst [vmem:[#allocation3 + $0x150] sm:$0xff] %v2270
        %2303 = vst [vmem:[#allocation3 + $0x158] sm:$0xff] %v2271
        %2304 = vst [vmem:[#allocation3 + $0x160] sm:$0xff] %v2272
        %2305 = vst [vmem:[#allocation3 + $0x168] sm:$0xff] %v2273
        %2306 = vst [vmem:[#allocation3 + $0x170] sm:$0xff] %v2274
        %2307 = vst [vmem:[#allocation3 + $0x178] sm:$0xff] %v2275
        %2308 = vst [vmem:[#allocation3 + $0x180] sm:$0xff] %v2276
        %2309 = vst [vmem:[#allocation3 + $0x188] sm:$0xff] %v2277
        %2310 = vst [vmem:[#allocation3 + $0x190] sm:$0xff] %v2278
        %2311 = vst [vmem:[#allocation3 + $0x198] sm:$0xff] %v2279
        %2312 = vst [vmem:[#allocation3 + $0x1a0] sm:$0xff] %v2280
        %2313 = vst [vmem:[#allocation3 + $0x1a8] sm:$0xff] %v2281
        %2314 = vst [vmem:[#allocation3 + $0x1b0] sm:$0xff] %v2282
        %2315 = vst [vmem:[#allocation3 + $0x1b8] sm:$0xff] %v2283
        %2316 = vst [vmem:[#allocation3 + $0x1c0] sm:$0xff] %v2284
        %2317 = vst [vmem:[#allocation3 + $0x1c8] sm:$0xff] %v2285
        %2318 = vst [vmem:[#allocation3 + $0x1d0] sm:$0xff] %v2286
        %2319 = vst [vmem:[#allocation3 + $0x1d8] sm:$0xff] %v2287
        %2320 = vst [vmem:[#allocation3 + $0x1e0] sm:$0xff] %v2288
        %2321 = vst [vmem:[#allocation3 + $0x1e8] sm:$0xff] %v2289
        %2322 = vst [vmem:[#allocation3 + $0x1f0] sm:$0xff] %v2290
        %2323 = vst [vmem:[#allocation3 + $0x1f8] sm:$0xff] %v2291
        %2324 = vrot.lane.b32.xlu0 %v1609, 30
        %v2325 = vpop.permute.xlu0 %2324
        %2326 = vrot.lane.b32.xlu0 %v1610, 30
        %v2327 = vpop.permute.xlu0 %2326
        %2328 = vrot.lane.b32.xlu0 %v1611, 30
        %v2329 = vpop.permute.xlu0 %2328
        %2330 = vrot.lane.b32.xlu0 %v1612, 30
        %v2331 = vpop.permute.xlu0 %2330
        %2332 = vrot.lane.b32.xlu0 %v1613, 30
        %v2333 = vpop.permute.xlu0 %2332
        %2334 = vrot.lane.b32.xlu0 %v1614, 30
        %v2335 = vpop.permute.xlu0 %2334
        %2336 = vrot.lane.b32.xlu0 %v1615, 30
        %v2337 = vpop.permute.xlu0 %2336
        %2338 = vrot.lane.b32.xlu0 %v1616, 30
        %v2339 = vpop.permute.xlu0 %2338
        %2340 = vrot.lane.b32.xlu0 %v1617, 30
        %v2341 = vpop.permute.xlu0 %2340
        %2342 = vrot.lane.b32.xlu0 %v1618, 30
        %v2343 = vpop.permute.xlu0 %2342
        %2344 = vrot.lane.b32.xlu0 %v1619, 30
        %v2345 = vpop.permute.xlu0 %2344
        %2346 = vrot.lane.b32.xlu0 %v1620, 30
        %v2347 = vpop.permute.xlu0 %2346
        %2348 = vrot.lane.b32.xlu0 %v1621, 30
        %v2349 = vpop.permute.xlu0 %2348
        %2350 = vrot.lane.b32.xlu0 %v1622, 30
        %v2351 = vpop.permute.xlu0 %2350
        %2352 = vrot.lane.b32.xlu0 %v1623, 30
        %v2353 = vpop.permute.xlu0 %2352
        %2354 = vrot.lane.b32.xlu0 %v1624, 30
        %v2355 = vpop.permute.xlu0 %2354
        %2356 = vrot.lane.b32.xlu0 %v1625, 30
        %v2357 = vpop.permute.xlu0 %2356
        %2358 = vrot.lane.b32.xlu0 %v1626, 30
        %v2359 = vpop.permute.xlu0 %2358
        %2360 = vrot.lane.b32.xlu0 %v1627, 30
        %v2361 = vpop.permute.xlu0 %2360
        %2362 = vrot.lane.b32.xlu0 %v1628, 30
        %v2363 = vpop.permute.xlu0 %2362
        %2364 = vrot.lane.b32.xlu0 %v1629, 30
        %v2365 = vpop.permute.xlu0 %2364
        %2366 = vrot.lane.b32.xlu0 %v1630, 30
        %v2367 = vpop.permute.xlu0 %2366
        %2368 = vrot.lane.b32.xlu0 %v1631, 30
        %v2369 = vpop.permute.xlu0 %2368
        %2370 = vrot.lane.b32.xlu0 %v1632, 30
        %v2371 = vpop.permute.xlu0 %2370
        %2372 = vrot.lane.b32.xlu0 %v1633, 30
        %v2373 = vpop.permute.xlu0 %2372
        %2374 = vrot.lane.b32.xlu0 %v1634, 30
        %v2375 = vpop.permute.xlu0 %2374
        %2376 = vrot.lane.b32.xlu0 %v1635, 30
        %v2377 = vpop.permute.xlu0 %2376
        %2378 = vrot.lane.b32.xlu0 %v1636, 30
        %v2379 = vpop.permute.xlu0 %2378
        %2380 = vrot.lane.b32.xlu0 %v1637, 30
        %v2381 = vpop.permute.xlu0 %2380
        %2382 = vrot.lane.b32.xlu0 %v1638, 30
        %v2383 = vpop.permute.xlu0 %2382
        %2384 = vrot.lane.b32.xlu0 %v1639, 30
        %v2385 = vpop.permute.xlu0 %2384
        %2386 = vrot.lane.b32.xlu0 %v1640, 30
        %v2387 = vpop.permute.xlu0 %2386
        %vm2388 = vcmp.lt.s32.totalorder %v1706, 30
        %v2389 = vsel %vm2388, %v2385, %v2387
        %v2390 = vsel %vm2388, %v2383, %v2385
        %v2391 = vsel %vm2388, %v2381, %v2383
        %v2392 = vsel %vm2388, %v2379, %v2381
        %v2393 = vsel %vm2388, %v2377, %v2379
        %v2394 = vsel %vm2388, %v2375, %v2377
        %v2395 = vsel %vm2388, %v2373, %v2375
        %v2396 = vsel %vm2388, %v2371, %v2373
        %v2397 = vsel %vm2388, %v2369, %v2371
        %v2398 = vsel %vm2388, %v2367, %v2369
        %v2399 = vsel %vm2388, %v2365, %v2367
        %v2400 = vsel %vm2388, %v2363, %v2365
        %v2401 = vsel %vm2388, %v2361, %v2363
        %v2402 = vsel %vm2388, %v2359, %v2361
        %v2403 = vsel %vm2388, %v2357, %v2359
        %v2404 = vsel %vm2388, %v2355, %v2357
        %v2405 = vsel %vm2388, %v2353, %v2355
        %v2406 = vsel %vm2388, %v2351, %v2353
        %v2407 = vsel %vm2388, %v2349, %v2351
        %v2408 = vsel %vm2388, %v2347, %v2349
        %v2409 = vsel %vm2388, %v2345, %v2347
        %v2410 = vsel %vm2388, %v2343, %v2345
        %v2411 = vsel %vm2388, %v2341, %v2343
        %v2412 = vsel %vm2388, %v2339, %v2341
        %v2413 = vsel %vm2388, %v2337, %v2339
        %v2414 = vsel %vm2388, %v2335, %v2337
        %v2415 = vsel %vm2388, %v2333, %v2335
        %v2416 = vsel %vm2388, %v2331, %v2333
        %v2417 = vsel %vm2388, %v2329, %v2331
        %v2418 = vsel %vm2388, %v2327, %v2329
        %v2419 = vsel %vm2388, %v2325, %v2327
        %v2420 = vsel %vm2388, %v2387, %v2325
        %s2421 = scalar_lea.vmem [#allocation6], 2
        %v2422 = vld [vmem:[%s2421] ss:$8 sm:$0xf]
        %v2423 = vld [vmem:[%s2421] ss:$8 sm:$0xf0]
        %v2424 = vor.u32 %v2422, %v2423
        %s2425 = scalar_lea.vmem [#allocation6], 66
        %v2426 = vld [vmem:[%s2425] ss:$8 sm:$0xf]
        %v2427 = vld [vmem:[%s2425] ss:$8 sm:$0xf0]
        %v2428 = vor.u32 %v2426, %v2427
        %s2429 = scalar_lea.vmem [#allocation6], 130
        %v2430 = vld [vmem:[%s2429] ss:$8 sm:$0xf]
        %v2431 = vld [vmem:[%s2429] ss:$8 sm:$0xf0]
        %v2432 = vor.u32 %v2430, %v2431
        %s2433 = scalar_lea.vmem [#allocation6], 194
        %v2434 = vld [vmem:[%s2433] ss:$8 sm:$0xf]
        %v2435 = vld [vmem:[%s2433] ss:$8 sm:$0xf0]
        %v2436 = vor.u32 %v2434, %v2435
        %v2441 = vlaneseq
        %v2442 = vshrl.u32 %v2441, 7
        %v2443 = vsub.s32 0, %v2442
        %v2444 = vrot.slane %v2424, %v2443
        %v2445 = vlaneseq
        %v2446 = vshrl.u32 %v2445, 7
        %v2447 = vsub.s32 1, %v2446
        %v2448 = vrot.slane %v2424, %v2447
        %v2449 = vlaneseq
        %v2450 = vshrl.u32 %v2449, 7
        %v2451 = vsub.s32 2, %v2450
        %v2452 = vrot.slane %v2424, %v2451
        %v2453 = vlaneseq
        %v2454 = vshrl.u32 %v2453, 7
        %v2455 = vsub.s32 3, %v2454
        %v2456 = vrot.slane %v2424, %v2455
        %v2457 = vlaneseq
        %v2458 = vshrl.u32 %v2457, 7
        %v2459 = vsub.s32 4, %v2458
        %v2460 = vrot.slane %v2424, %v2459
        %v2461 = vlaneseq
        %v2462 = vshrl.u32 %v2461, 7
        %v2463 = vsub.s32 5, %v2462
        %v2464 = vrot.slane %v2424, %v2463
        %v2465 = vlaneseq
        %v2466 = vshrl.u32 %v2465, 7
        %v2467 = vsub.s32 6, %v2466
        %v2468 = vrot.slane %v2424, %v2467
        %v2469 = vlaneseq
        %v2470 = vshrl.u32 %v2469, 7
        %v2471 = vsub.s32 7, %v2470
        %v2472 = vrot.slane %v2424, %v2471
        %v2473 = vlaneseq
        %v2474 = vshrl.u32 %v2473, 7
        %v2475 = vsub.s32 0, %v2474
        %v2476 = vrot.slane %v2428, %v2475
        %v2477 = vlaneseq
        %v2478 = vshrl.u32 %v2477, 7
        %v2479 = vsub.s32 1, %v2478
        %v2480 = vrot.slane %v2428, %v2479
        %v2481 = vlaneseq
        %v2482 = vshrl.u32 %v2481, 7
        %v2483 = vsub.s32 2, %v2482
        %v2484 = vrot.slane %v2428, %v2483
        %v2485 = vlaneseq
        %v2486 = vshrl.u32 %v2485, 7
        %v2487 = vsub.s32 3, %v2486
        %v2488 = vrot.slane %v2428, %v2487
        %v2489 = vlaneseq
        %v2490 = vshrl.u32 %v2489, 7
        %v2491 = vsub.s32 4, %v2490
        %v2492 = vrot.slane %v2428, %v2491
        %v2493 = vlaneseq
        %v2494 = vshrl.u32 %v2493, 7
        %v2495 = vsub.s32 5, %v2494
        %v2496 = vrot.slane %v2428, %v2495
        %v2497 = vlaneseq
        %v2498 = vshrl.u32 %v2497, 7
        %v2499 = vsub.s32 6, %v2498
        %v2500 = vrot.slane %v2428, %v2499
        %v2501 = vlaneseq
        %v2502 = vshrl.u32 %v2501, 7
        %v2503 = vsub.s32 7, %v2502
        %v2504 = vrot.slane %v2428, %v2503
        %v2505 = vlaneseq
        %v2506 = vshrl.u32 %v2505, 7
        %v2507 = vsub.s32 0, %v2506
        %v2508 = vrot.slane %v2432, %v2507
        %v2509 = vlaneseq
        %v2510 = vshrl.u32 %v2509, 7
        %v2511 = vsub.s32 1, %v2510
        %v2512 = vrot.slane %v2432, %v2511
        %v2513 = vlaneseq
        %v2514 = vshrl.u32 %v2513, 7
        %v2515 = vsub.s32 2, %v2514
        %v2516 = vrot.slane %v2432, %v2515
        %v2517 = vlaneseq
        %v2518 = vshrl.u32 %v2517, 7
        %v2519 = vsub.s32 3, %v2518
        %v2520 = vrot.slane %v2432, %v2519
        %v2521 = vlaneseq
        %v2522 = vshrl.u32 %v2521, 7
        %v2523 = vsub.s32 4, %v2522
        %v2524 = vrot.slane %v2432, %v2523
        %v2525 = vlaneseq
        %v2526 = vshrl.u32 %v2525, 7
        %v2527 = vsub.s32 5, %v2526
        %v2528 = vrot.slane %v2432, %v2527
        %v2529 = vlaneseq
        %v2530 = vshrl.u32 %v2529, 7
        %v2531 = vsub.s32 6, %v2530
        %v2532 = vrot.slane %v2432, %v2531
        %v2533 = vlaneseq
        %v2534 = vshrl.u32 %v2533, 7
        %v2535 = vsub.s32 7, %v2534
        %v2536 = vrot.slane %v2432, %v2535
        %v2537 = vlaneseq
        %v2538 = vshrl.u32 %v2537, 7
        %v2539 = vsub.s32 0, %v2538
        %v2540 = vrot.slane %v2436, %v2539
        %v2541 = vlaneseq
        %v2542 = vshrl.u32 %v2541, 7
        %v2543 = vsub.s32 1, %v2542
        %v2544 = vrot.slane %v2436, %v2543
        %v2545 = vlaneseq
        %v2546 = vshrl.u32 %v2545, 7
        %v2547 = vsub.s32 2, %v2546
        %v2548 = vrot.slane %v2436, %v2547
        %v2549 = vlaneseq
        %v2550 = vshrl.u32 %v2549, 7
        %v2551 = vsub.s32 3, %v2550
        %v2552 = vrot.slane %v2436, %v2551
        %v2553 = vlaneseq
        %v2554 = vshrl.u32 %v2553, 7
        %v2555 = vsub.s32 4, %v2554
        %v2556 = vrot.slane %v2436, %v2555
        %v2557 = vlaneseq
        %v2558 = vshrl.u32 %v2557, 7
        %v2559 = vsub.s32 5, %v2558
        %v2560 = vrot.slane %v2436, %v2559
        %v2561 = vlaneseq
        %v2562 = vshrl.u32 %v2561, 7
        %v2563 = vsub.s32 6, %v2562
        %v2564 = vrot.slane %v2436, %v2563
        %v2565 = vlaneseq
        %v2566 = vshrl.u32 %v2565, 7
        %v2567 = vsub.s32 7, %v2566
        %v2568 = vrot.slane %v2436, %v2567
        %v2601 = vmul.f32 %v2392, %v2444
        %v2602 = vmul.f32 %v2391, %v2448
        %v2603 = vmul.f32 %v2390, %v2452
        %v2604 = vmul.f32 %v2389, %v2456
        %v2605 = vmul.f32 %v2420, %v2460
        %v2606 = vmul.f32 %v2419, %v2464
        %v2607 = vmul.f32 %v2418, %v2468
        %v2608 = vmul.f32 %v2417, %v2472
        %v2609 = vmul.f32 %v2416, %v2476
        %v2610 = vmul.f32 %v2415, %v2480
        %v2611 = vmul.f32 %v2414, %v2484
        %v2612 = vmul.f32 %v2413, %v2488
        %v2613 = vmul.f32 %v2412, %v2492
        %v2614 = vmul.f32 %v2411, %v2496
        %v2615 = vmul.f32 %v2410, %v2500
        %v2616 = vmul.f32 %v2409, %v2504
        %v2617 = vmul.f32 %v2408, %v2508
        %v2618 = vmul.f32 %v2407, %v2512
        %v2619 = vmul.f32 %v2406, %v2516
        %v2620 = vmul.f32 %v2405, %v2520
        %v2621 = vmul.f32 %v2404, %v2524
        %v2622 = vmul.f32 %v2403, %v2528
        %v2623 = vmul.f32 %v2402, %v2532
        %v2624 = vmul.f32 %v2401, %v2536
        %v2625 = vmul.f32 %v2400, %v2540
        %v2626 = vmul.f32 %v2399, %v2544
        %v2627 = vmul.f32 %v2398, %v2548
        %v2628 = vmul.f32 %v2397, %v2552
        %v2629 = vmul.f32 %v2396, %v2556
        %v2630 = vmul.f32 %v2395, %v2560
        %v2631 = vmul.f32 %v2394, %v2564
        %v2632 = vmul.f32 %v2393, %v2568
        %2633 = vst [vmem:[#allocation3 + $0x200] sm:$0xff] %v2601
        %2634 = vst [vmem:[#allocation3 + $0x208] sm:$0xff] %v2602
        %2635 = vst [vmem:[#allocation3 + $0x210] sm:$0xff] %v2603
        %2636 = vst [vmem:[#allocation3 + $0x218] sm:$0xff] %v2604
        %2637 = vst [vmem:[#allocation3 + $0x220] sm:$0xff] %v2605
        %2638 = vst [vmem:[#allocation3 + $0x228] sm:$0xff] %v2606
        %2639 = vst [vmem:[#allocation3 + $0x230] sm:$0xff] %v2607
        %2640 = vst [vmem:[#allocation3 + $0x238] sm:$0xff] %v2608
        %2641 = vst [vmem:[#allocation3 + $0x240] sm:$0xff] %v2609
        %2642 = vst [vmem:[#allocation3 + $0x248] sm:$0xff] %v2610
        %2643 = vst [vmem:[#allocation3 + $0x250] sm:$0xff] %v2611
        %2644 = vst [vmem:[#allocation3 + $0x258] sm:$0xff] %v2612
        %2645 = vst [vmem:[#allocation3 + $0x260] sm:$0xff] %v2613
        %2646 = vst [vmem:[#allocation3 + $0x268] sm:$0xff] %v2614
        %2647 = vst [vmem:[#allocation3 + $0x270] sm:$0xff] %v2615
        %2648 = vst [vmem:[#allocation3 + $0x278] sm:$0xff] %v2616
        %2649 = vst [vmem:[#allocation3 + $0x280] sm:$0xff] %v2617
        %2650 = vst [vmem:[#allocation3 + $0x288] sm:$0xff] %v2618
        %2651 = vst [vmem:[#allocation3 + $0x290] sm:$0xff] %v2619
        %2652 = vst [vmem:[#allocation3 + $0x298] sm:$0xff] %v2620
        %2653 = vst [vmem:[#allocation3 + $0x2a0] sm:$0xff] %v2621
        %2654 = vst [vmem:[#allocation3 + $0x2a8] sm:$0xff] %v2622
        %2655 = vst [vmem:[#allocation3 + $0x2b0] sm:$0xff] %v2623
        %2656 = vst [vmem:[#allocation3 + $0x2b8] sm:$0xff] %v2624
        %2657 = vst [vmem:[#allocation3 + $0x2c0] sm:$0xff] %v2625
        %2658 = vst [vmem:[#allocation3 + $0x2c8] sm:$0xff] %v2626
        %2659 = vst [vmem:[#allocation3 + $0x2d0] sm:$0xff] %v2627
        %2660 = vst [vmem:[#allocation3 + $0x2d8] sm:$0xff] %v2628
        %2661 = vst [vmem:[#allocation3 + $0x2e0] sm:$0xff] %v2629
        %2662 = vst [vmem:[#allocation3 + $0x2e8] sm:$0xff] %v2630
        %2663 = vst [vmem:[#allocation3 + $0x2f0] sm:$0xff] %v2631
        %2664 = vst [vmem:[#allocation3 + $0x2f8] sm:$0xff] %v2632
        %2665 = vrot.lane.b32.xlu0 %v1609, 2
        %v2666 = vpop.permute.xlu0 %2665
        %2667 = vrot.lane.b32.xlu0 %v1610, 2
        %v2668 = vpop.permute.xlu0 %2667
        %2669 = vrot.lane.b32.xlu0 %v1611, 2
        %v2670 = vpop.permute.xlu0 %2669
        %2671 = vrot.lane.b32.xlu0 %v1612, 2
        %v2672 = vpop.permute.xlu0 %2671
        %2673 = vrot.lane.b32.xlu0 %v1613, 2
        %v2674 = vpop.permute.xlu0 %2673
        %2675 = vrot.lane.b32.xlu0 %v1614, 2
        %v2676 = vpop.permute.xlu0 %2675
        %2677 = vrot.lane.b32.xlu0 %v1615, 2
        %v2678 = vpop.permute.xlu0 %2677
        %2679 = vrot.lane.b32.xlu0 %v1616, 2
        %v2680 = vpop.permute.xlu0 %2679
        %2681 = vrot.lane.b32.xlu0 %v1617, 2
        %v2682 = vpop.permute.xlu0 %2681
        %2683 = vrot.lane.b32.xlu0 %v1618, 2
        %v2684 = vpop.permute.xlu0 %2683
        %2685 = vrot.lane.b32.xlu0 %v1619, 2
        %v2686 = vpop.permute.xlu0 %2685
        %2687 = vrot.lane.b32.xlu0 %v1620, 2
        %v2688 = vpop.permute.xlu0 %2687
        %2689 = vrot.lane.b32.xlu0 %v1621, 2
        %v2690 = vpop.permute.xlu0 %2689
        %2691 = vrot.lane.b32.xlu0 %v1622, 2
        %v2692 = vpop.permute.xlu0 %2691
        %2693 = vrot.lane.b32.xlu0 %v1623, 2
        %v2694 = vpop.permute.xlu0 %2693
        %2695 = vrot.lane.b32.xlu0 %v1624, 2
        %v2696 = vpop.permute.xlu0 %2695
        %2697 = vrot.lane.b32.xlu0 %v1625, 2
        %v2698 = vpop.permute.xlu0 %2697
        %2699 = vrot.lane.b32.xlu0 %v1626, 2
        %v2700 = vpop.permute.xlu0 %2699
        %2701 = vrot.lane.b32.xlu0 %v1627, 2
        %v2702 = vpop.permute.xlu0 %2701
        %2703 = vrot.lane.b32.xlu0 %v1628, 2
        %v2704 = vpop.permute.xlu0 %2703
        %2705 = vrot.lane.b32.xlu0 %v1629, 2
        %v2706 = vpop.permute.xlu0 %2705
        %2707 = vrot.lane.b32.xlu0 %v1630, 2
        %v2708 = vpop.permute.xlu0 %2707
        %2709 = vrot.lane.b32.xlu0 %v1631, 2
        %v2710 = vpop.permute.xlu0 %2709
        %2711 = vrot.lane.b32.xlu0 %v1632, 2
        %v2712 = vpop.permute.xlu0 %2711
        %2713 = vrot.lane.b32.xlu0 %v1633, 2
        %v2714 = vpop.permute.xlu0 %2713
        %2715 = vrot.lane.b32.xlu0 %v1634, 2
        %v2716 = vpop.permute.xlu0 %2715
        %2717 = vrot.lane.b32.xlu0 %v1635, 2
        %v2718 = vpop.permute.xlu0 %2717
        %2719 = vrot.lane.b32.xlu0 %v1636, 2
        %v2720 = vpop.permute.xlu0 %2719
        %2721 = vrot.lane.b32.xlu0 %v1637, 2
        %v2722 = vpop.permute.xlu0 %2721
        %2723 = vrot.lane.b32.xlu0 %v1638, 2
        %v2724 = vpop.permute.xlu0 %2723
        %2725 = vrot.lane.b32.xlu0 %v1639, 2
        %v2726 = vpop.permute.xlu0 %2725
        %2727 = vrot.lane.b32.xlu0 %v1640, 2
        %v2728 = vpop.permute.xlu0 %2727
        %vm2729 = vcmp.lt.s32.totalorder %v1706, 2
        %v2730 = vsel %vm2729, %v2726, %v2728
        %v2731 = vsel %vm2729, %v2724, %v2726
        %v2732 = vsel %vm2729, %v2722, %v2724
        %v2733 = vsel %vm2729, %v2720, %v2722
        %v2734 = vsel %vm2729, %v2718, %v2720
        %v2735 = vsel %vm2729, %v2716, %v2718
        %v2736 = vsel %vm2729, %v2714, %v2716
        %v2737 = vsel %vm2729, %v2712, %v2714
        %v2738 = vsel %vm2729, %v2710, %v2712
        %v2739 = vsel %vm2729, %v2708, %v2710
        %v2740 = vsel %vm2729, %v2706, %v2708
        %v2741 = vsel %vm2729, %v2704, %v2706
        %v2742 = vsel %vm2729, %v2702, %v2704
        %v2743 = vsel %vm2729, %v2700, %v2702
        %v2744 = vsel %vm2729, %v2698, %v2700
        %v2745 = vsel %vm2729, %v2696, %v2698
        %v2746 = vsel %vm2729, %v2694, %v2696
        %v2747 = vsel %vm2729, %v2692, %v2694
        %v2748 = vsel %vm2729, %v2690, %v2692
        %v2749 = vsel %vm2729, %v2688, %v2690
        %v2750 = vsel %vm2729, %v2686, %v2688
        %v2751 = vsel %vm2729, %v2684, %v2686
        %v2752 = vsel %vm2729, %v2682, %v2684
        %v2753 = vsel %vm2729, %v2680, %v2682
        %v2754 = vsel %vm2729, %v2678, %v2680
        %v2755 = vsel %vm2729, %v2676, %v2678
        %v2756 = vsel %vm2729, %v2674, %v2676
        %v2757 = vsel %vm2729, %v2672, %v2674
        %v2758 = vsel %vm2729, %v2670, %v2672
        %v2759 = vsel %vm2729, %v2668, %v2670
        %v2760 = vsel %vm2729, %v2666, %v2668
        %v2761 = vsel %vm2729, %v2728, %v2666
        %s2762 = scalar_lea.vmem [#allocation6], 3
        %v2763 = vld [vmem:[%s2762] ss:$8 sm:$0xf]
        %v2764 = vld [vmem:[%s2762] ss:$8 sm:$0xf0]
        %v2765 = vor.u32 %v2763, %v2764
        %s2766 = scalar_lea.vmem [#allocation6], 67
        %v2767 = vld [vmem:[%s2766] ss:$8 sm:$0xf]
        %v2768 = vld [vmem:[%s2766] ss:$8 sm:$0xf0]
        %v2769 = vor.u32 %v2767, %v2768
        %s2770 = scalar_lea.vmem [#allocation6], 131
        %v2771 = vld [vmem:[%s2770] ss:$8 sm:$0xf]
        %v2772 = vld [vmem:[%s2770] ss:$8 sm:$0xf0]
        %v2773 = vor.u32 %v2771, %v2772
        %s2774 = scalar_lea.vmem [#allocation6], 195
        %v2775 = vld [vmem:[%s2774] ss:$8 sm:$0xf]
        %v2776 = vld [vmem:[%s2774] ss:$8 sm:$0xf0]
        %v2777 = vor.u32 %v2775, %v2776
        %v2782 = vlaneseq
        %v2783 = vshrl.u32 %v2782, 7
        %v2784 = vsub.s32 0, %v2783
        %v2785 = vrot.slane %v2765, %v2784
        %v2786 = vlaneseq
        %v2787 = vshrl.u32 %v2786, 7
        %v2788 = vsub.s32 1, %v2787
        %v2789 = vrot.slane %v2765, %v2788
        %v2790 = vlaneseq
        %v2791 = vshrl.u32 %v2790, 7
        %v2792 = vsub.s32 2, %v2791
        %v2793 = vrot.slane %v2765, %v2792
        %v2794 = vlaneseq
        %v2795 = vshrl.u32 %v2794, 7
        %v2796 = vsub.s32 3, %v2795
        %v2797 = vrot.slane %v2765, %v2796
        %v2798 = vlaneseq
        %v2799 = vshrl.u32 %v2798, 7
        %v2800 = vsub.s32 4, %v2799
        %v2801 = vrot.slane %v2765, %v2800
        %v2802 = vlaneseq
        %v2803 = vshrl.u32 %v2802, 7
        %v2804 = vsub.s32 5, %v2803
        %v2805 = vrot.slane %v2765, %v2804
        %v2806 = vlaneseq
        %v2807 = vshrl.u32 %v2806, 7
        %v2808 = vsub.s32 6, %v2807
        %v2809 = vrot.slane %v2765, %v2808
        %v2810 = vlaneseq
        %v2811 = vshrl.u32 %v2810, 7
        %v2812 = vsub.s32 7, %v2811
        %v2813 = vrot.slane %v2765, %v2812
        %v2814 = vlaneseq
        %v2815 = vshrl.u32 %v2814, 7
        %v2816 = vsub.s32 0, %v2815
        %v2817 = vrot.slane %v2769, %v2816
        %v2818 = vlaneseq
        %v2819 = vshrl.u32 %v2818, 7
        %v2820 = vsub.s32 1, %v2819
        %v2821 = vrot.slane %v2769, %v2820
        %v2822 = vlaneseq
        %v2823 = vshrl.u32 %v2822, 7
        %v2824 = vsub.s32 2, %v2823
        %v2825 = vrot.slane %v2769, %v2824
        %v2826 = vlaneseq
        %v2827 = vshrl.u32 %v2826, 7
        %v2828 = vsub.s32 3, %v2827
        %v2829 = vrot.slane %v2769, %v2828
        %v2830 = vlaneseq
        %v2831 = vshrl.u32 %v2830, 7
        %v2832 = vsub.s32 4, %v2831
        %v2833 = vrot.slane %v2769, %v2832
        %v2834 = vlaneseq
        %v2835 = vshrl.u32 %v2834, 7
        %v2836 = vsub.s32 5, %v2835
        %v2837 = vrot.slane %v2769, %v2836
        %v2838 = vlaneseq
        %v2839 = vshrl.u32 %v2838, 7
        %v2840 = vsub.s32 6, %v2839
        %v2841 = vrot.slane %v2769, %v2840
        %v2842 = vlaneseq
        %v2843 = vshrl.u32 %v2842, 7
        %v2844 = vsub.s32 7, %v2843
        %v2845 = vrot.slane %v2769, %v2844
        %v2846 = vlaneseq
        %v2847 = vshrl.u32 %v2846, 7
        %v2848 = vsub.s32 0, %v2847
        %v2849 = vrot.slane %v2773, %v2848
        %v2850 = vlaneseq
        %v2851 = vshrl.u32 %v2850, 7
        %v2852 = vsub.s32 1, %v2851
        %v2853 = vrot.slane %v2773, %v2852
        %v2854 = vlaneseq
        %v2855 = vshrl.u32 %v2854, 7
        %v2856 = vsub.s32 2, %v2855
        %v2857 = vrot.slane %v2773, %v2856
        %v2858 = vlaneseq
        %v2859 = vshrl.u32 %v2858, 7
        %v2860 = vsub.s32 3, %v2859
        %v2861 = vrot.slane %v2773, %v2860
        %v2862 = vlaneseq
        %v2863 = vshrl.u32 %v2862, 7
        %v2864 = vsub.s32 4, %v2863
        %v2865 = vrot.slane %v2773, %v2864
        %v2866 = vlaneseq
        %v2867 = vshrl.u32 %v2866, 7
        %v2868 = vsub.s32 5, %v2867
        %v2869 = vrot.slane %v2773, %v2868
        %v2870 = vlaneseq
        %v2871 = vshrl.u32 %v2870, 7
        %v2872 = vsub.s32 6, %v2871
        %v2873 = vrot.slane %v2773, %v2872
        %v2874 = vlaneseq
        %v2875 = vshrl.u32 %v2874, 7
        %v2876 = vsub.s32 7, %v2875
        %v2877 = vrot.slane %v2773, %v2876
        %v2878 = vlaneseq
        %v2879 = vshrl.u32 %v2878, 7
        %v2880 = vsub.s32 0, %v2879
        %v2881 = vrot.slane %v2777, %v2880
        %v2882 = vlaneseq
        %v2883 = vshrl.u32 %v2882, 7
        %v2884 = vsub.s32 1, %v2883
        %v2885 = vrot.slane %v2777, %v2884
        %v2886 = vlaneseq
        %v2887 = vshrl.u32 %v2886, 7
        %v2888 = vsub.s32 2, %v2887
        %v2889 = vrot.slane %v2777, %v2888
        %v2890 = vlaneseq
        %v2891 = vshrl.u32 %v2890, 7
        %v2892 = vsub.s32 3, %v2891
        %v2893 = vrot.slane %v2777, %v2892
        %v2894 = vlaneseq
        %v2895 = vshrl.u32 %v2894, 7
        %v2896 = vsub.s32 4, %v2895
        %v2897 = vrot.slane %v2777, %v2896
        %v2898 = vlaneseq
        %v2899 = vshrl.u32 %v2898, 7
        %v2900 = vsub.s32 5, %v2899
        %v2901 = vrot.slane %v2777, %v2900
        %v2902 = vlaneseq
        %v2903 = vshrl.u32 %v2902, 7
        %v2904 = vsub.s32 6, %v2903
        %v2905 = vrot.slane %v2777, %v2904
        %v2906 = vlaneseq
        %v2907 = vshrl.u32 %v2906, 7
        %v2908 = vsub.s32 7, %v2907
        %v2909 = vrot.slane %v2777, %v2908
        %v2942 = vmul.f32 %v2733, %v2785
        %v2943 = vmul.f32 %v2732, %v2789
        %v2944 = vmul.f32 %v2731, %v2793
        %v2945 = vmul.f32 %v2730, %v2797
        %v2946 = vmul.f32 %v2761, %v2801
        %v2947 = vmul.f32 %v2760, %v2805
        %v2948 = vmul.f32 %v2759, %v2809
        %v2949 = vmul.f32 %v2758, %v2813
        %v2950 = vmul.f32 %v2757, %v2817
        %v2951 = vmul.f32 %v2756, %v2821
        %v2952 = vmul.f32 %v2755, %v2825
        %v2953 = vmul.f32 %v2754, %v2829
        %v2954 = vmul.f32 %v2753, %v2833
        %v2955 = vmul.f32 %v2752, %v2837
        %v2956 = vmul.f32 %v2751, %v2841
        %v2957 = vmul.f32 %v2750, %v2845
        %v2958 = vmul.f32 %v2749, %v2849
        %v2959 = vmul.f32 %v2748, %v2853
        %v2960 = vmul.f32 %v2747, %v2857
        %v2961 = vmul.f32 %v2746, %v2861
        %v2962 = vmul.f32 %v2745, %v2865
        %v2963 = vmul.f32 %v2744, %v2869
        %v2964 = vmul.f32 %v2743, %v2873
        %v2965 = vmul.f32 %v2742, %v2877
        %v2966 = vmul.f32 %v2741, %v2881
        %v2967 = vmul.f32 %v2740, %v2885
        %v2968 = vmul.f32 %v2739, %v2889
        %v2969 = vmul.f32 %v2738, %v2893
        %v2970 = vmul.f32 %v2737, %v2897
        %v2971 = vmul.f32 %v2736, %v2901
        %v2972 = vmul.f32 %v2735, %v2905
        %v2973 = vmul.f32 %v2734, %v2909
        %2974 = vst [vmem:[#allocation3 + $0x300] sm:$0xff] %v2942
        %2975 = vst [vmem:[#allocation3 + $0x308] sm:$0xff] %v2943
        %2976 = vst [vmem:[#allocation3 + $0x310] sm:$0xff] %v2944
        %2977 = vst [vmem:[#allocation3 + $0x318] sm:$0xff] %v2945
        %2978 = vst [vmem:[#allocation3 + $0x320] sm:$0xff] %v2946
        %2979 = vst [vmem:[#allocation3 + $0x328] sm:$0xff] %v2947
        %2980 = vst [vmem:[#allocation3 + $0x330] sm:$0xff] %v2948
        %2981 = vst [vmem:[#allocation3 + $0x338] sm:$0xff] %v2949
        %2982 = vst [vmem:[#allocation3 + $0x340] sm:$0xff] %v2950
        %2983 = vst [vmem:[#allocation3 + $0x348] sm:$0xff] %v2951
        %2984 = vst [vmem:[#allocation3 + $0x350] sm:$0xff] %v2952
        %2985 = vst [vmem:[#allocation3 + $0x358] sm:$0xff] %v2953
        %2986 = vst [vmem:[#allocation3 + $0x360] sm:$0xff] %v2954
        %2987 = vst [vmem:[#allocation3 + $0x368] sm:$0xff] %v2955
        %2988 = vst [vmem:[#allocation3 + $0x370] sm:$0xff] %v2956
        %2989 = vst [vmem:[#allocation3 + $0x378] sm:$0xff] %v2957
        %2990 = vst [vmem:[#allocation3 + $0x380] sm:$0xff] %v2958
        %2991 = vst [vmem:[#allocation3 + $0x388] sm:$0xff] %v2959
        %2992 = vst [vmem:[#allocation3 + $0x390] sm:$0xff] %v2960
        %2993 = vst [vmem:[#allocation3 + $0x398] sm:$0xff] %v2961
        %2994 = vst [vmem:[#allocation3 + $0x3a0] sm:$0xff] %v2962
        %2995 = vst [vmem:[#allocation3 + $0x3a8] sm:$0xff] %v2963
        %2996 = vst [vmem:[#allocation3 + $0x3b0] sm:$0xff] %v2964
        %2997 = vst [vmem:[#allocation3 + $0x3b8] sm:$0xff] %v2965
        %2998 = vst [vmem:[#allocation3 + $0x3c0] sm:$0xff] %v2966
        %2999 = vst [vmem:[#allocation3 + $0x3c8] sm:$0xff] %v2967
        %3000 = vst [vmem:[#allocation3 + $0x3d0] sm:$0xff] %v2968
        %3001 = vst [vmem:[#allocation3 + $0x3d8] sm:$0xff] %v2969
        %3002 = vst [vmem:[#allocation3 + $0x3e0] sm:$0xff] %v2970
        %3003 = vst [vmem:[#allocation3 + $0x3e8] sm:$0xff] %v2971
        %3004 = vst [vmem:[#allocation3 + $0x3f0] sm:$0xff] %v2972
        %3005 = vst [vmem:[#allocation3 + $0x3f8] sm:$0xff] %v2973
        %s3006 = scalar_lea.vmem [#allocation6], 4
        %v3007 = vld [vmem:[%s3006] ss:$8 sm:$0xf]
        %v3008 = vld [vmem:[%s3006] ss:$8 sm:$0xf0]
        %v3009 = vor.u32 %v3007, %v3008
        %s3010 = scalar_lea.vmem [#allocation6], 68
        %v3011 = vld [vmem:[%s3010] ss:$8 sm:$0xf]
        %v3012 = vld [vmem:[%s3010] ss:$8 sm:$0xf0]
        %v3013 = vor.u32 %v3011, %v3012
        %s3014 = scalar_lea.vmem [#allocation6], 132
        %v3015 = vld [vmem:[%s3014] ss:$8 sm:$0xf]
        %v3016 = vld [vmem:[%s3014] ss:$8 sm:$0xf0]
        %v3017 = vor.u32 %v3015, %v3016
        %s3018 = scalar_lea.vmem [#allocation6], 196
        %v3019 = vld [vmem:[%s3018] ss:$8 sm:$0xf]
        %v3020 = vld [vmem:[%s3018] ss:$8 sm:$0xf0]
        %v3021 = vor.u32 %v3019, %v3020
        %v3026 = vlaneseq
        %v3027 = vshrl.u32 %v3026, 7
        %v3028 = vsub.s32 0, %v3027
        %v3029 = vrot.slane %v3009, %v3028
        %v3030 = vlaneseq
        %v3031 = vshrl.u32 %v3030, 7
        %v3032 = vsub.s32 1, %v3031
        %v3033 = vrot.slane %v3009, %v3032
        %v3034 = vlaneseq
        %v3035 = vshrl.u32 %v3034, 7
        %v3036 = vsub.s32 2, %v3035
        %v3037 = vrot.slane %v3009, %v3036
        %v3038 = vlaneseq
        %v3039 = vshrl.u32 %v3038, 7
        %v3040 = vsub.s32 3, %v3039
        %v3041 = vrot.slane %v3009, %v3040
        %v3042 = vlaneseq
        %v3043 = vshrl.u32 %v3042, 7
        %v3044 = vsub.s32 4, %v3043
        %v3045 = vrot.slane %v3009, %v3044
        %v3046 = vlaneseq
        %v3047 = vshrl.u32 %v3046, 7
        %v3048 = vsub.s32 5, %v3047
        %v3049 = vrot.slane %v3009, %v3048
        %v3050 = vlaneseq
        %v3051 = vshrl.u32 %v3050, 7
        %v3052 = vsub.s32 6, %v3051
        %v3053 = vrot.slane %v3009, %v3052
        %v3054 = vlaneseq
        %v3055 = vshrl.u32 %v3054, 7
        %v3056 = vsub.s32 7, %v3055
        %v3057 = vrot.slane %v3009, %v3056
        %v3058 = vlaneseq
        %v3059 = vshrl.u32 %v3058, 7
        %v3060 = vsub.s32 0, %v3059
        %v3061 = vrot.slane %v3013, %v3060
        %v3062 = vlaneseq
        %v3063 = vshrl.u32 %v3062, 7
        %v3064 = vsub.s32 1, %v3063
        %v3065 = vrot.slane %v3013, %v3064
        %v3066 = vlaneseq
        %v3067 = vshrl.u32 %v3066, 7
        %v3068 = vsub.s32 2, %v3067
        %v3069 = vrot.slane %v3013, %v3068
        %v3070 = vlaneseq
        %v3071 = vshrl.u32 %v3070, 7
        %v3072 = vsub.s32 3, %v3071
        %v3073 = vrot.slane %v3013, %v3072
        %v3074 = vlaneseq
        %v3075 = vshrl.u32 %v3074, 7
        %v3076 = vsub.s32 4, %v3075
        %v3077 = vrot.slane %v3013, %v3076
        %v3078 = vlaneseq
        %v3079 = vshrl.u32 %v3078, 7
        %v3080 = vsub.s32 5, %v3079
        %v3081 = vrot.slane %v3013, %v3080
        %v3082 = vlaneseq
        %v3083 = vshrl.u32 %v3082, 7
        %v3084 = vsub.s32 6, %v3083
        %v3085 = vrot.slane %v3013, %v3084
        %v3086 = vlaneseq
        %v3087 = vshrl.u32 %v3086, 7
        %v3088 = vsub.s32 7, %v3087
        %v3089 = vrot.slane %v3013, %v3088
        %v3090 = vlaneseq
        %v3091 = vshrl.u32 %v3090, 7
        %v3092 = vsub.s32 0, %v3091
        %v3093 = vrot.slane %v3017, %v3092
        %v3094 = vlaneseq
        %v3095 = vshrl.u32 %v3094, 7
        %v3096 = vsub.s32 1, %v3095
        %v3097 = vrot.slane %v3017, %v3096
        %v3098 = vlaneseq
        %v3099 = vshrl.u32 %v3098, 7
        %v3100 = vsub.s32 2, %v3099
        %v3101 = vrot.slane %v3017, %v3100
        %v3102 = vlaneseq
        %v3103 = vshrl.u32 %v3102, 7
        %v3104 = vsub.s32 3, %v3103
        %v3105 = vrot.slane %v3017, %v3104
        %v3106 = vlaneseq
        %v3107 = vshrl.u32 %v3106, 7
        %v3108 = vsub.s32 4, %v3107
        %v3109 = vrot.slane %v3017, %v3108
        %v3110 = vlaneseq
        %v3111 = vshrl.u32 %v3110, 7
        %v3112 = vsub.s32 5, %v3111
        %v3113 = vrot.slane %v3017, %v3112
        %v3114 = vlaneseq
        %v3115 = vshrl.u32 %v3114, 7
        %v3116 = vsub.s32 6, %v3115
        %v3117 = vrot.slane %v3017, %v3116
        %v3118 = vlaneseq
        %v3119 = vshrl.u32 %v3118, 7
        %v3120 = vsub.s32 7, %v3119
        %v3121 = vrot.slane %v3017, %v3120
        %v3122 = vlaneseq
        %v3123 = vshrl.u32 %v3122, 7
        %v3124 = vsub.s32 0, %v3123
        %v3125 = vrot.slane %v3021, %v3124
        %v3126 = vlaneseq
        %v3127 = vshrl.u32 %v3126, 7
        %v3128 = vsub.s32 1, %v3127
        %v3129 = vrot.slane %v3021, %v3128
        %v3130 = vlaneseq
        %v3131 = vshrl.u32 %v3130, 7
        %v3132 = vsub.s32 2, %v3131
        %v3133 = vrot.slane %v3021, %v3132
        %v3134 = vlaneseq
        %v3135 = vshrl.u32 %v3134, 7
        %v3136 = vsub.s32 3, %v3135
        %v3137 = vrot.slane %v3021, %v3136
        %v3138 = vlaneseq
        %v3139 = vshrl.u32 %v3138, 7
        %v3140 = vsub.s32 4, %v3139
        %v3141 = vrot.slane %v3021, %v3140
        %v3142 = vlaneseq
        %v3143 = vshrl.u32 %v3142, 7
        %v3144 = vsub.s32 5, %v3143
        %v3145 = vrot.slane %v3021, %v3144
        %v3146 = vlaneseq
        %v3147 = vshrl.u32 %v3146, 7
        %v3148 = vsub.s32 6, %v3147
        %v3149 = vrot.slane %v3021, %v3148
        %v3150 = vlaneseq
        %v3151 = vshrl.u32 %v3150, 7
        %v3152 = vsub.s32 7, %v3151
        %v3153 = vrot.slane %v3021, %v3152
        %v3186 = vmul.f32 %v1637, %v3029
        %v3187 = vmul.f32 %v1638, %v3033
        %v3188 = vmul.f32 %v1639, %v3037
        %v3189 = vmul.f32 %v1640, %v3041
        %v3190 = vmul.f32 %v1609, %v3045
        %v3191 = vmul.f32 %v1610, %v3049
        %v3192 = vmul.f32 %v1611, %v3053
        %v3193 = vmul.f32 %v1612, %v3057
        %v3194 = vmul.f32 %v1613, %v3061
        %v3195 = vmul.f32 %v1614, %v3065
        %v3196 = vmul.f32 %v1615, %v3069
        %v3197 = vmul.f32 %v1616, %v3073
        %v3198 = vmul.f32 %v1617, %v3077
        %v3199 = vmul.f32 %v1618, %v3081
        %v3200 = vmul.f32 %v1619, %v3085
        %v3201 = vmul.f32 %v1620, %v3089
        %v3202 = vmul.f32 %v1621, %v3093
        %v3203 = vmul.f32 %v1622, %v3097
        %v3204 = vmul.f32 %v1623, %v3101
        %v3205 = vmul.f32 %v1624, %v3105
        %v3206 = vmul.f32 %v1625, %v3109
        %v3207 = vmul.f32 %v1626, %v3113
        %v3208 = vmul.f32 %v1627, %v3117
        %v3209 = vmul.f32 %v1628, %v3121
        %v3210 = vmul.f32 %v1629, %v3125
        %v3211 = vmul.f32 %v1630, %v3129
        %v3212 = vmul.f32 %v1631, %v3133
        %v3213 = vmul.f32 %v1632, %v3137
        %v3214 = vmul.f32 %v1633, %v3141
        %v3215 = vmul.f32 %v1634, %v3145
        %v3216 = vmul.f32 %v1635, %v3149
        %v3217 = vmul.f32 %v1636, %v3153
        %3218 = vst [vmem:[#allocation3 + $0x400] sm:$0xff] %v3186
        %3219 = vst [vmem:[#allocation3 + $0x408] sm:$0xff] %v3187
        %3220 = vst [vmem:[#allocation3 + $0x410] sm:$0xff] %v3188
        %3221 = vst [vmem:[#allocation3 + $0x418] sm:$0xff] %v3189
        %3222 = vst [vmem:[#allocation3 + $0x420] sm:$0xff] %v3190
        %3223 = vst [vmem:[#allocation3 + $0x428] sm:$0xff] %v3191
        %3224 = vst [vmem:[#allocation3 + $0x430] sm:$0xff] %v3192
        %3225 = vst [vmem:[#allocation3 + $0x438] sm:$0xff] %v3193
        %3226 = vst [vmem:[#allocation3 + $0x440] sm:$0xff] %v3194
        %3227 = vst [vmem:[#allocation3 + $0x448] sm:$0xff] %v3195
        %3228 = vst [vmem:[#allocation3 + $0x450] sm:$0xff] %v3196
        %3229 = vst [vmem:[#allocation3 + $0x458] sm:$0xff] %v3197
        %3230 = vst [vmem:[#allocation3 + $0x460] sm:$0xff] %v3198
        %3231 = vst [vmem:[#allocation3 + $0x468] sm:$0xff] %v3199
        %3232 = vst [vmem:[#allocation3 + $0x470] sm:$0xff] %v3200
        %3233 = vst [vmem:[#allocation3 + $0x478] sm:$0xff] %v3201
        %3234 = vst [vmem:[#allocation3 + $0x480] sm:$0xff] %v3202
        %3235 = vst [vmem:[#allocation3 + $0x488] sm:$0xff] %v3203
        %3236 = vst [vmem:[#allocation3 + $0x490] sm:$0xff] %v3204
        %3237 = vst [vmem:[#allocation3 + $0x498] sm:$0xff] %v3205
        %3238 = vst [vmem:[#allocation3 + $0x4a0] sm:$0xff] %v3206
        %3239 = vst [vmem:[#allocation3 + $0x4a8] sm:$0xff] %v3207
        %3240 = vst [vmem:[#allocation3 + $0x4b0] sm:$0xff] %v3208
        %3241 = vst [vmem:[#allocation3 + $0x4b8] sm:$0xff] %v3209
        %3242 = vst [vmem:[#allocation3 + $0x4c0] sm:$0xff] %v3210
        %3243 = vst [vmem:[#allocation3 + $0x4c8] sm:$0xff] %v3211
        %3244 = vst [vmem:[#allocation3 + $0x4d0] sm:$0xff] %v3212
        %3245 = vst [vmem:[#allocation3 + $0x4d8] sm:$0xff] %v3213
        %3246 = vst [vmem:[#allocation3 + $0x4e0] sm:$0xff] %v3214
        %3247 = vst [vmem:[#allocation3 + $0x4e8] sm:$0xff] %v3215
        %3248 = vst [vmem:[#allocation3 + $0x4f0] sm:$0xff] %v3216
        %3249 = vst [vmem:[#allocation3 + $0x4f8] sm:$0xff] %v3217
        %3250 = vrot.lane.b32.xlu0 %v1609, 126
        %v3251 = vpop.permute.xlu0 %3250
        %3252 = vrot.lane.b32.xlu0 %v1610, 126
        %v3253 = vpop.permute.xlu0 %3252
        %3254 = vrot.lane.b32.xlu0 %v1611, 126
        %v3255 = vpop.permute.xlu0 %3254
        %3256 = vrot.lane.b32.xlu0 %v1612, 126
        %v3257 = vpop.permute.xlu0 %3256
        %3258 = vrot.lane.b32.xlu0 %v1613, 126
        %v3259 = vpop.permute.xlu0 %3258
        %3260 = vrot.lane.b32.xlu0 %v1614, 126
        %v3261 = vpop.permute.xlu0 %3260
        %3262 = vrot.lane.b32.xlu0 %v1615, 126
        %v3263 = vpop.permute.xlu0 %3262
        %3264 = vrot.lane.b32.xlu0 %v1616, 126
        %v3265 = vpop.permute.xlu0 %3264
        %3266 = vrot.lane.b32.xlu0 %v1617, 126
        %v3267 = vpop.permute.xlu0 %3266
        %3268 = vrot.lane.b32.xlu0 %v1618, 126
        %v3269 = vpop.permute.xlu0 %3268
        %3270 = vrot.lane.b32.xlu0 %v1619, 126
        %v3271 = vpop.permute.xlu0 %3270
        %3272 = vrot.lane.b32.xlu0 %v1620, 126
        %v3273 = vpop.permute.xlu0 %3272
        %3274 = vrot.lane.b32.xlu0 %v1621, 126
        %v3275 = vpop.permute.xlu0 %3274
        %3276 = vrot.lane.b32.xlu0 %v1622, 126
        %v3277 = vpop.permute.xlu0 %3276
        %3278 = vrot.lane.b32.xlu0 %v1623, 126
        %v3279 = vpop.permute.xlu0 %3278
        %3280 = vrot.lane.b32.xlu0 %v1624, 126
        %v3281 = vpop.permute.xlu0 %3280
        %3282 = vrot.lane.b32.xlu0 %v1625, 126
        %v3283 = vpop.permute.xlu0 %3282
        %3284 = vrot.lane.b32.xlu0 %v1626, 126
        %v3285 = vpop.permute.xlu0 %3284
        %3286 = vrot.lane.b32.xlu0 %v1627, 126
        %v3287 = vpop.permute.xlu0 %3286
        %3288 = vrot.lane.b32.xlu0 %v1628, 126
        %v3289 = vpop.permute.xlu0 %3288
        %3290 = vrot.lane.b32.xlu0 %v1629, 126
        %v3291 = vpop.permute.xlu0 %3290
        %3292 = vrot.lane.b32.xlu0 %v1630, 126
        %v3293 = vpop.permute.xlu0 %3292
        %3294 = vrot.lane.b32.xlu0 %v1631, 126
        %v3295 = vpop.permute.xlu0 %3294
        %3296 = vrot.lane.b32.xlu0 %v1632, 126
        %v3297 = vpop.permute.xlu0 %3296
        %3298 = vrot.lane.b32.xlu0 %v1633, 126
        %v3299 = vpop.permute.xlu0 %3298
        %3300 = vrot.lane.b32.xlu0 %v1634, 126
        %v3301 = vpop.permute.xlu0 %3300
        %3302 = vrot.lane.b32.xlu0 %v1635, 126
        %v3303 = vpop.permute.xlu0 %3302
        %3304 = vrot.lane.b32.xlu0 %v1636, 126
        %v3305 = vpop.permute.xlu0 %3304
        %3306 = vrot.lane.b32.xlu0 %v1637, 126
        %v3307 = vpop.permute.xlu0 %3306
        %3308 = vrot.lane.b32.xlu0 %v1638, 126
        %v3309 = vpop.permute.xlu0 %3308
        %3310 = vrot.lane.b32.xlu0 %v1639, 126
        %v3311 = vpop.permute.xlu0 %3310
        %3312 = vrot.lane.b32.xlu0 %v1640, 126
        %v3313 = vpop.permute.xlu0 %3312
        %vm3314 = vcmp.lt.s32.totalorder %v1706, 126
        %v3315 = vsel %vm3314, %v3311, %v3313
        %v3316 = vsel %vm3314, %v3309, %v3311
        %v3317 = vsel %vm3314, %v3307, %v3309
        %v3318 = vsel %vm3314, %v3305, %v3307
        %v3319 = vsel %vm3314, %v3303, %v3305
        %v3320 = vsel %vm3314, %v3301, %v3303
        %v3321 = vsel %vm3314, %v3299, %v3301
        %v3322 = vsel %vm3314, %v3297, %v3299
        %v3323 = vsel %vm3314, %v3295, %v3297
        %v3324 = vsel %vm3314, %v3293, %v3295
        %v3325 = vsel %vm3314, %v3291, %v3293
        %v3326 = vsel %vm3314, %v3289, %v3291
        %v3327 = vsel %vm3314, %v3287, %v3289
        %v3328 = vsel %vm3314, %v3285, %v3287
        %v3329 = vsel %vm3314, %v3283, %v3285
        %v3330 = vsel %vm3314, %v3281, %v3283
        %v3331 = vsel %vm3314, %v3279, %v3281
        %v3332 = vsel %vm3314, %v3277, %v3279
        %v3333 = vsel %vm3314, %v3275, %v3277
        %v3334 = vsel %vm3314, %v3273, %v3275
        %v3335 = vsel %vm3314, %v3271, %v3273
        %v3336 = vsel %vm3314, %v3269, %v3271
        %v3337 = vsel %vm3314, %v3267, %v3269
        %v3338 = vsel %vm3314, %v3265, %v3267
        %v3339 = vsel %vm3314, %v3263, %v3265
        %v3340 = vsel %vm3314, %v3261, %v3263
        %v3341 = vsel %vm3314, %v3259, %v3261
        %v3342 = vsel %vm3314, %v3257, %v3259
        %v3343 = vsel %vm3314, %v3255, %v3257
        %v3344 = vsel %vm3314, %v3253, %v3255
        %v3345 = vsel %vm3314, %v3251, %v3253
        %v3346 = vsel %vm3314, %v3313, %v3251
        %s3347 = scalar_lea.vmem [#allocation6], 5
        %v3348 = vld [vmem:[%s3347] ss:$8 sm:$0xf]
        %v3349 = vld [vmem:[%s3347] ss:$8 sm:$0xf0]
        %v3350 = vor.u32 %v3348, %v3349
        %s3351 = scalar_lea.vmem [#allocation6], 69
        %v3352 = vld [vmem:[%s3351] ss:$8 sm:$0xf]
        %v3353 = vld [vmem:[%s3351] ss:$8 sm:$0xf0]
        %v3354 = vor.u32 %v3352, %v3353
        %s3355 = scalar_lea.vmem [#allocation6], 133
        %v3356 = vld [vmem:[%s3355] ss:$8 sm:$0xf]
        %v3357 = vld [vmem:[%s3355] ss:$8 sm:$0xf0]
        %v3358 = vor.u32 %v3356, %v3357
        %s3359 = scalar_lea.vmem [#allocation6], 197
        %v3360 = vld [vmem:[%s3359] ss:$8 sm:$0xf]
        %v3361 = vld [vmem:[%s3359] ss:$8 sm:$0xf0]
        %v3362 = vor.u32 %v3360, %v3361
        %v3367 = vlaneseq
        %v3368 = vshrl.u32 %v3367, 7
        %v3369 = vsub.s32 0, %v3368
        %v3370 = vrot.slane %v3350, %v3369
        %v3371 = vlaneseq
        %v3372 = vshrl.u32 %v3371, 7
        %v3373 = vsub.s32 1, %v3372
        %v3374 = vrot.slane %v3350, %v3373
        %v3375 = vlaneseq
        %v3376 = vshrl.u32 %v3375, 7
        %v3377 = vsub.s32 2, %v3376
        %v3378 = vrot.slane %v3350, %v3377
        %v3379 = vlaneseq
        %v3380 = vshrl.u32 %v3379, 7
        %v3381 = vsub.s32 3, %v3380
        %v3382 = vrot.slane %v3350, %v3381
        %v3383 = vlaneseq
        %v3384 = vshrl.u32 %v3383, 7
        %v3385 = vsub.s32 4, %v3384
        %v3386 = vrot.slane %v3350, %v3385
        %v3387 = vlaneseq
        %v3388 = vshrl.u32 %v3387, 7
        %v3389 = vsub.s32 5, %v3388
        %v3390 = vrot.slane %v3350, %v3389
        %v3391 = vlaneseq
        %v3392 = vshrl.u32 %v3391, 7
        %v3393 = vsub.s32 6, %v3392
        %v3394 = vrot.slane %v3350, %v3393
        %v3395 = vlaneseq
        %v3396 = vshrl.u32 %v3395, 7
        %v3397 = vsub.s32 7, %v3396
        %v3398 = vrot.slane %v3350, %v3397
        %v3399 = vlaneseq
        %v3400 = vshrl.u32 %v3399, 7
        %v3401 = vsub.s32 0, %v3400
        %v3402 = vrot.slane %v3354, %v3401
        %v3403 = vlaneseq
        %v3404 = vshrl.u32 %v3403, 7
        %v3405 = vsub.s32 1, %v3404
        %v3406 = vrot.slane %v3354, %v3405
        %v3407 = vlaneseq
        %v3408 = vshrl.u32 %v3407, 7
        %v3409 = vsub.s32 2, %v3408
        %v3410 = vrot.slane %v3354, %v3409
        %v3411 = vlaneseq
        %v3412 = vshrl.u32 %v3411, 7
        %v3413 = vsub.s32 3, %v3412
        %v3414 = vrot.slane %v3354, %v3413
        %v3415 = vlaneseq
        %v3416 = vshrl.u32 %v3415, 7
        %v3417 = vsub.s32 4, %v3416
        %v3418 = vrot.slane %v3354, %v3417
        %v3419 = vlaneseq
        %v3420 = vshrl.u32 %v3419, 7
        %v3421 = vsub.s32 5, %v3420
        %v3422 = vrot.slane %v3354, %v3421
        %v3423 = vlaneseq
        %v3424 = vshrl.u32 %v3423, 7
        %v3425 = vsub.s32 6, %v3424
        %v3426 = vrot.slane %v3354, %v3425
        %v3427 = vlaneseq
        %v3428 = vshrl.u32 %v3427, 7
        %v3429 = vsub.s32 7, %v3428
        %v3430 = vrot.slane %v3354, %v3429
        %v3431 = vlaneseq
        %v3432 = vshrl.u32 %v3431, 7
        %v3433 = vsub.s32 0, %v3432
        %v3434 = vrot.slane %v3358, %v3433
        %v3435 = vlaneseq
        %v3436 = vshrl.u32 %v3435, 7
        %v3437 = vsub.s32 1, %v3436
        %v3438 = vrot.slane %v3358, %v3437
        %v3439 = vlaneseq
        %v3440 = vshrl.u32 %v3439, 7
        %v3441 = vsub.s32 2, %v3440
        %v3442 = vrot.slane %v3358, %v3441
        %v3443 = vlaneseq
        %v3444 = vshrl.u32 %v3443, 7
        %v3445 = vsub.s32 3, %v3444
        %v3446 = vrot.slane %v3358, %v3445
        %v3447 = vlaneseq
        %v3448 = vshrl.u32 %v3447, 7
        %v3449 = vsub.s32 4, %v3448
        %v3450 = vrot.slane %v3358, %v3449
        %v3451 = vlaneseq
        %v3452 = vshrl.u32 %v3451, 7
        %v3453 = vsub.s32 5, %v3452
        %v3454 = vrot.slane %v3358, %v3453
        %v3455 = vlaneseq
        %v3456 = vshrl.u32 %v3455, 7
        %v3457 = vsub.s32 6, %v3456
        %v3458 = vrot.slane %v3358, %v3457
        %v3459 = vlaneseq
        %v3460 = vshrl.u32 %v3459, 7
        %v3461 = vsub.s32 7, %v3460
        %v3462 = vrot.slane %v3358, %v3461
        %v3463 = vlaneseq
        %v3464 = vshrl.u32 %v3463, 7
        %v3465 = vsub.s32 0, %v3464
        %v3466 = vrot.slane %v3362, %v3465
        %v3467 = vlaneseq
        %v3468 = vshrl.u32 %v3467, 7
        %v3469 = vsub.s32 1, %v3468
        %v3470 = vrot.slane %v3362, %v3469
        %v3471 = vlaneseq
        %v3472 = vshrl.u32 %v3471, 7
        %v3473 = vsub.s32 2, %v3472
        %v3474 = vrot.slane %v3362, %v3473
        %v3475 = vlaneseq
        %v3476 = vshrl.u32 %v3475, 7
        %v3477 = vsub.s32 3, %v3476
        %v3478 = vrot.slane %v3362, %v3477
        %v3479 = vlaneseq
        %v3480 = vshrl.u32 %v3479, 7
        %v3481 = vsub.s32 4, %v3480
        %v3482 = vrot.slane %v3362, %v3481
        %v3483 = vlaneseq
        %v3484 = vshrl.u32 %v3483, 7
        %v3485 = vsub.s32 5, %v3484
        %v3486 = vrot.slane %v3362, %v3485
        %v3487 = vlaneseq
        %v3488 = vshrl.u32 %v3487, 7
        %v3489 = vsub.s32 6, %v3488
        %v3490 = vrot.slane %v3362, %v3489
        %v3491 = vlaneseq
        %v3492 = vshrl.u32 %v3491, 7
        %v3493 = vsub.s32 7, %v3492
        %v3494 = vrot.slane %v3362, %v3493
        %v3527 = vmul.f32 %v3317, %v3370
        %v3528 = vmul.f32 %v3316, %v3374
        %v3529 = vmul.f32 %v3315, %v3378
        %v3530 = vmul.f32 %v3346, %v3382
        %v3531 = vmul.f32 %v3345, %v3386
        %v3532 = vmul.f32 %v3344, %v3390
        %v3533 = vmul.f32 %v3343, %v3394
        %v3534 = vmul.f32 %v3342, %v3398
        %v3535 = vmul.f32 %v3341, %v3402
        %v3536 = vmul.f32 %v3340, %v3406
        %v3537 = vmul.f32 %v3339, %v3410
        %v3538 = vmul.f32 %v3338, %v3414
        %v3539 = vmul.f32 %v3337, %v3418
        %v3540 = vmul.f32 %v3336, %v3422
        %v3541 = vmul.f32 %v3335, %v3426
        %v3542 = vmul.f32 %v3334, %v3430
        %v3543 = vmul.f32 %v3333, %v3434
        %v3544 = vmul.f32 %v3332, %v3438
        %v3545 = vmul.f32 %v3331, %v3442
        %v3546 = vmul.f32 %v3330, %v3446
        %v3547 = vmul.f32 %v3329, %v3450
        %v3548 = vmul.f32 %v3328, %v3454
        %v3549 = vmul.f32 %v3327, %v3458
        %v3550 = vmul.f32 %v3326, %v3462
        %v3551 = vmul.f32 %v3325, %v3466
        %v3552 = vmul.f32 %v3324, %v3470
        %v3553 = vmul.f32 %v3323, %v3474
        %v3554 = vmul.f32 %v3322, %v3478
        %v3555 = vmul.f32 %v3321, %v3482
        %v3556 = vmul.f32 %v3320, %v3486
        %v3557 = vmul.f32 %v3319, %v3490
        %v3558 = vmul.f32 %v3318, %v3494
        %3559 = vst [vmem:[#allocation3 + $0x500] sm:$0xff] %v3527
        %3560 = vst [vmem:[#allocation3 + $0x508] sm:$0xff] %v3528
        %3561 = vst [vmem:[#allocation3 + $0x510] sm:$0xff] %v3529
        %3562 = vst [vmem:[#allocation3 + $0x518] sm:$0xff] %v3530
        %3563 = vst [vmem:[#allocation3 + $0x520] sm:$0xff] %v3531
        %3564 = vst [vmem:[#allocation3 + $0x528] sm:$0xff] %v3532
        %3565 = vst [vmem:[#allocation3 + $0x530] sm:$0xff] %v3533
        %3566 = vst [vmem:[#allocation3 + $0x538] sm:$0xff] %v3534
        %3567 = vst [vmem:[#allocation3 + $0x540] sm:$0xff] %v3535
        %3568 = vst [vmem:[#allocation3 + $0x548] sm:$0xff] %v3536
        %3569 = vst [vmem:[#allocation3 + $0x550] sm:$0xff] %v3537
        %3570 = vst [vmem:[#allocation3 + $0x558] sm:$0xff] %v3538
        %3571 = vst [vmem:[#allocation3 + $0x560] sm:$0xff] %v3539
        %3572 = vst [vmem:[#allocation3 + $0x568] sm:$0xff] %v3540
        %3573 = vst [vmem:[#allocation3 + $0x570] sm:$0xff] %v3541
        %3574 = vst [vmem:[#allocation3 + $0x578] sm:$0xff] %v3542
        %3575 = vst [vmem:[#allocation3 + $0x580] sm:$0xff] %v3543
        %3576 = vst [vmem:[#allocation3 + $0x588] sm:$0xff] %v3544
        %3577 = vst [vmem:[#allocation3 + $0x590] sm:$0xff] %v3545
        %3578 = vst [vmem:[#allocation3 + $0x598] sm:$0xff] %v3546
        %3579 = vst [vmem:[#allocation3 + $0x5a0] sm:$0xff] %v3547
        %3580 = vst [vmem:[#allocation3 + $0x5a8] sm:$0xff] %v3548
        %3581 = vst [vmem:[#allocation3 + $0x5b0] sm:$0xff] %v3549
        %3582 = vst [vmem:[#allocation3 + $0x5b8] sm:$0xff] %v3550
        %3583 = vst [vmem:[#allocation3 + $0x5c0] sm:$0xff] %v3551
        %3584 = vst [vmem:[#allocation3 + $0x5c8] sm:$0xff] %v3552
        %3585 = vst [vmem:[#allocation3 + $0x5d0] sm:$0xff] %v3553
        %3586 = vst [vmem:[#allocation3 + $0x5d8] sm:$0xff] %v3554
        %3587 = vst [vmem:[#allocation3 + $0x5e0] sm:$0xff] %v3555
        %3588 = vst [vmem:[#allocation3 + $0x5e8] sm:$0xff] %v3556
        %3589 = vst [vmem:[#allocation3 + $0x5f0] sm:$0xff] %v3557
        %3590 = vst [vmem:[#allocation3 + $0x5f8] sm:$0xff] %v3558
        %3591 = vrot.lane.b32.xlu0 %v1609, 98
        %v3592 = vpop.permute.xlu0 %3591
        %3593 = vrot.lane.b32.xlu0 %v1610, 98
        %v3594 = vpop.permute.xlu0 %3593
        %3595 = vrot.lane.b32.xlu0 %v1611, 98
        %v3596 = vpop.permute.xlu0 %3595
        %3597 = vrot.lane.b32.xlu0 %v1612, 98
        %v3598 = vpop.permute.xlu0 %3597
        %3599 = vrot.lane.b32.xlu0 %v1613, 98
        %v3600 = vpop.permute.xlu0 %3599
        %3601 = vrot.lane.b32.xlu0 %v1614, 98
        %v3602 = vpop.permute.xlu0 %3601
        %3603 = vrot.lane.b32.xlu0 %v1615, 98
        %v3604 = vpop.permute.xlu0 %3603
        %3605 = vrot.lane.b32.xlu0 %v1616, 98
        %v3606 = vpop.permute.xlu0 %3605
        %3607 = vrot.lane.b32.xlu0 %v1617, 98
        %v3608 = vpop.permute.xlu0 %3607
        %3609 = vrot.lane.b32.xlu0 %v1618, 98
        %v3610 = vpop.permute.xlu0 %3609
        %3611 = vrot.lane.b32.xlu0 %v1619, 98
        %v3612 = vpop.permute.xlu0 %3611
        %3613 = vrot.lane.b32.xlu0 %v1620, 98
        %v3614 = vpop.permute.xlu0 %3613
        %3615 = vrot.lane.b32.xlu0 %v1621, 98
        %v3616 = vpop.permute.xlu0 %3615
        %3617 = vrot.lane.b32.xlu0 %v1622, 98
        %v3618 = vpop.permute.xlu0 %3617
        %3619 = vrot.lane.b32.xlu0 %v1623, 98
        %v3620 = vpop.permute.xlu0 %3619
        %3621 = vrot.lane.b32.xlu0 %v1624, 98
        %v3622 = vpop.permute.xlu0 %3621
        %3623 = vrot.lane.b32.xlu0 %v1625, 98
        %v3624 = vpop.permute.xlu0 %3623
        %3625 = vrot.lane.b32.xlu0 %v1626, 98
        %v3626 = vpop.permute.xlu0 %3625
        %3627 = vrot.lane.b32.xlu0 %v1627, 98
        %v3628 = vpop.permute.xlu0 %3627
        %3629 = vrot.lane.b32.xlu0 %v1628, 98
        %v3630 = vpop.permute.xlu0 %3629
        %3631 = vrot.lane.b32.xlu0 %v1629, 98
        %v3632 = vpop.permute.xlu0 %3631
        %3633 = vrot.lane.b32.xlu0 %v1630, 98
        %v3634 = vpop.permute.xlu0 %3633
        %3635 = vrot.lane.b32.xlu0 %v1631, 98
        %v3636 = vpop.permute.xlu0 %3635
        %3637 = vrot.lane.b32.xlu0 %v1632, 98
        %v3638 = vpop.permute.xlu0 %3637
        %3639 = vrot.lane.b32.xlu0 %v1633, 98
        %v3640 = vpop.permute.xlu0 %3639
        %3641 = vrot.lane.b32.xlu0 %v1634, 98
        %v3642 = vpop.permute.xlu0 %3641
        %3643 = vrot.lane.b32.xlu0 %v1635, 98
        %v3644 = vpop.permute.xlu0 %3643
        %3645 = vrot.lane.b32.xlu0 %v1636, 98
        %v3646 = vpop.permute.xlu0 %3645
        %3647 = vrot.lane.b32.xlu0 %v1637, 98
        %v3648 = vpop.permute.xlu0 %3647
        %3649 = vrot.lane.b32.xlu0 %v1638, 98
        %v3650 = vpop.permute.xlu0 %3649
        %3651 = vrot.lane.b32.xlu0 %v1639, 98
        %v3652 = vpop.permute.xlu0 %3651
        %3653 = vrot.lane.b32.xlu0 %v1640, 98
        %v3654 = vpop.permute.xlu0 %3653
        %vm3655 = vcmp.lt.s32.totalorder %v1706, 98
        %v3656 = vsel %vm3655, %v3652, %v3654
        %v3657 = vsel %vm3655, %v3650, %v3652
        %v3658 = vsel %vm3655, %v3648, %v3650
        %v3659 = vsel %vm3655, %v3646, %v3648
        %v3660 = vsel %vm3655, %v3644, %v3646
        %v3661 = vsel %vm3655, %v3642, %v3644
        %v3662 = vsel %vm3655, %v3640, %v3642
        %v3663 = vsel %vm3655, %v3638, %v3640
        %v3664 = vsel %vm3655, %v3636, %v3638
        %v3665 = vsel %vm3655, %v3634, %v3636
        %v3666 = vsel %vm3655, %v3632, %v3634
        %v3667 = vsel %vm3655, %v3630, %v3632
        %v3668 = vsel %vm3655, %v3628, %v3630
        %v3669 = vsel %vm3655, %v3626, %v3628
        %v3670 = vsel %vm3655, %v3624, %v3626
        %v3671 = vsel %vm3655, %v3622, %v3624
        %v3672 = vsel %vm3655, %v3620, %v3622
        %v3673 = vsel %vm3655, %v3618, %v3620
        %v3674 = vsel %vm3655, %v3616, %v3618
        %v3675 = vsel %vm3655, %v3614, %v3616
        %v3676 = vsel %vm3655, %v3612, %v3614
        %v3677 = vsel %vm3655, %v3610, %v3612
        %v3678 = vsel %vm3655, %v3608, %v3610
        %v3679 = vsel %vm3655, %v3606, %v3608
        %v3680 = vsel %vm3655, %v3604, %v3606
        %v3681 = vsel %vm3655, %v3602, %v3604
        %v3682 = vsel %vm3655, %v3600, %v3602
        %v3683 = vsel %vm3655, %v3598, %v3600
        %v3684 = vsel %vm3655, %v3596, %v3598
        %v3685 = vsel %vm3655, %v3594, %v3596
        %v3686 = vsel %vm3655, %v3592, %v3594
        %v3687 = vsel %vm3655, %v3654, %v3592
        %s3688 = scalar_lea.vmem [#allocation6], 6
        %v3689 = vld [vmem:[%s3688] ss:$8 sm:$0xf]
        %v3690 = vld [vmem:[%s3688] ss:$8 sm:$0xf0]
        %v3691 = vor.u32 %v3689, %v3690
        %s3692 = scalar_lea.vmem [#allocation6], 70
        %v3693 = vld [vmem:[%s3692] ss:$8 sm:$0xf]
        %v3694 = vld [vmem:[%s3692] ss:$8 sm:$0xf0]
        %v3695 = vor.u32 %v3693, %v3694
        %s3696 = scalar_lea.vmem [#allocation6], 134
        %v3697 = vld [vmem:[%s3696] ss:$8 sm:$0xf]
        %v3698 = vld [vmem:[%s3696] ss:$8 sm:$0xf0]
        %v3699 = vor.u32 %v3697, %v3698
        %s3700 = scalar_lea.vmem [#allocation6], 198
        %v3701 = vld [vmem:[%s3700] ss:$8 sm:$0xf]
        %v3702 = vld [vmem:[%s3700] ss:$8 sm:$0xf0]
        %v3703 = vor.u32 %v3701, %v3702
        %v3708 = vlaneseq
        %v3709 = vshrl.u32 %v3708, 7
        %v3710 = vsub.s32 0, %v3709
        %v3711 = vrot.slane %v3691, %v3710
        %v3712 = vlaneseq
        %v3713 = vshrl.u32 %v3712, 7
        %v3714 = vsub.s32 1, %v3713
        %v3715 = vrot.slane %v3691, %v3714
        %v3716 = vlaneseq
        %v3717 = vshrl.u32 %v3716, 7
        %v3718 = vsub.s32 2, %v3717
        %v3719 = vrot.slane %v3691, %v3718
        %v3720 = vlaneseq
        %v3721 = vshrl.u32 %v3720, 7
        %v3722 = vsub.s32 3, %v3721
        %v3723 = vrot.slane %v3691, %v3722
        %v3724 = vlaneseq
        %v3725 = vshrl.u32 %v3724, 7
        %v3726 = vsub.s32 4, %v3725
        %v3727 = vrot.slane %v3691, %v3726
        %v3728 = vlaneseq
        %v3729 = vshrl.u32 %v3728, 7
        %v3730 = vsub.s32 5, %v3729
        %v3731 = vrot.slane %v3691, %v3730
        %v3732 = vlaneseq
        %v3733 = vshrl.u32 %v3732, 7
        %v3734 = vsub.s32 6, %v3733
        %v3735 = vrot.slane %v3691, %v3734
        %v3736 = vlaneseq
        %v3737 = vshrl.u32 %v3736, 7
        %v3738 = vsub.s32 7, %v3737
        %v3739 = vrot.slane %v3691, %v3738
        %v3740 = vlaneseq
        %v3741 = vshrl.u32 %v3740, 7
        %v3742 = vsub.s32 0, %v3741
        %v3743 = vrot.slane %v3695, %v3742
        %v3744 = vlaneseq
        %v3745 = vshrl.u32 %v3744, 7
        %v3746 = vsub.s32 1, %v3745
        %v3747 = vrot.slane %v3695, %v3746
        %v3748 = vlaneseq
        %v3749 = vshrl.u32 %v3748, 7
        %v3750 = vsub.s32 2, %v3749
        %v3751 = vrot.slane %v3695, %v3750
        %v3752 = vlaneseq
        %v3753 = vshrl.u32 %v3752, 7
        %v3754 = vsub.s32 3, %v3753
        %v3755 = vrot.slane %v3695, %v3754
        %v3756 = vlaneseq
        %v3757 = vshrl.u32 %v3756, 7
        %v3758 = vsub.s32 4, %v3757
        %v3759 = vrot.slane %v3695, %v3758
        %v3760 = vlaneseq
        %v3761 = vshrl.u32 %v3760, 7
        %v3762 = vsub.s32 5, %v3761
        %v3763 = vrot.slane %v3695, %v3762
        %v3764 = vlaneseq
        %v3765 = vshrl.u32 %v3764, 7
        %v3766 = vsub.s32 6, %v3765
        %v3767 = vrot.slane %v3695, %v3766
        %v3768 = vlaneseq
        %v3769 = vshrl.u32 %v3768, 7
        %v3770 = vsub.s32 7, %v3769
        %v3771 = vrot.slane %v3695, %v3770
        %v3772 = vlaneseq
        %v3773 = vshrl.u32 %v3772, 7
        %v3774 = vsub.s32 0, %v3773
        %v3775 = vrot.slane %v3699, %v3774
        %v3776 = vlaneseq
        %v3777 = vshrl.u32 %v3776, 7
        %v3778 = vsub.s32 1, %v3777
        %v3779 = vrot.slane %v3699, %v3778
        %v3780 = vlaneseq
        %v3781 = vshrl.u32 %v3780, 7
        %v3782 = vsub.s32 2, %v3781
        %v3783 = vrot.slane %v3699, %v3782
        %v3784 = vlaneseq
        %v3785 = vshrl.u32 %v3784, 7
        %v3786 = vsub.s32 3, %v3785
        %v3787 = vrot.slane %v3699, %v3786
        %v3788 = vlaneseq
        %v3789 = vshrl.u32 %v3788, 7
        %v3790 = vsub.s32 4, %v3789
        %v3791 = vrot.slane %v3699, %v3790
        %v3792 = vlaneseq
        %v3793 = vshrl.u32 %v3792, 7
        %v3794 = vsub.s32 5, %v3793
        %v3795 = vrot.slane %v3699, %v3794
        %v3796 = vlaneseq
        %v3797 = vshrl.u32 %v3796, 7
        %v3798 = vsub.s32 6, %v3797
        %v3799 = vrot.slane %v3699, %v3798
        %v3800 = vlaneseq
        %v3801 = vshrl.u32 %v3800, 7
        %v3802 = vsub.s32 7, %v3801
        %v3803 = vrot.slane %v3699, %v3802
        %v3804 = vlaneseq
        %v3805 = vshrl.u32 %v3804, 7
        %v3806 = vsub.s32 0, %v3805
        %v3807 = vrot.slane %v3703, %v3806
        %v3808 = vlaneseq
        %v3809 = vshrl.u32 %v3808, 7
        %v3810 = vsub.s32 1, %v3809
        %v3811 = vrot.slane %v3703, %v3810
        %v3812 = vlaneseq
        %v3813 = vshrl.u32 %v3812, 7
        %v3814 = vsub.s32 2, %v3813
        %v3815 = vrot.slane %v3703, %v3814
        %v3816 = vlaneseq
        %v3817 = vshrl.u32 %v3816, 7
        %v3818 = vsub.s32 3, %v3817
        %v3819 = vrot.slane %v3703, %v3818
        %v3820 = vlaneseq
        %v3821 = vshrl.u32 %v3820, 7
        %v3822 = vsub.s32 4, %v3821
        %v3823 = vrot.slane %v3703, %v3822
        %v3824 = vlaneseq
        %v3825 = vshrl.u32 %v3824, 7
        %v3826 = vsub.s32 5, %v3825
        %v3827 = vrot.slane %v3703, %v3826
        %v3828 = vlaneseq
        %v3829 = vshrl.u32 %v3828, 7
        %v3830 = vsub.s32 6, %v3829
        %v3831 = vrot.slane %v3703, %v3830
        %v3832 = vlaneseq
        %v3833 = vshrl.u32 %v3832, 7
        %v3834 = vsub.s32 7, %v3833
        %v3835 = vrot.slane %v3703, %v3834
        %v3868 = vmul.f32 %v3658, %v3711
        %v3869 = vmul.f32 %v3657, %v3715
        %v3870 = vmul.f32 %v3656, %v3719
        %v3871 = vmul.f32 %v3687, %v3723
        %v3872 = vmul.f32 %v3686, %v3727
        %v3873 = vmul.f32 %v3685, %v3731
        %v3874 = vmul.f32 %v3684, %v3735
        %v3875 = vmul.f32 %v3683, %v3739
        %v3876 = vmul.f32 %v3682, %v3743
        %v3877 = vmul.f32 %v3681, %v3747
        %v3878 = vmul.f32 %v3680, %v3751
        %v3879 = vmul.f32 %v3679, %v3755
        %v3880 = vmul.f32 %v3678, %v3759
        %v3881 = vmul.f32 %v3677, %v3763
        %v3882 = vmul.f32 %v3676, %v3767
        %v3883 = vmul.f32 %v3675, %v3771
        %v3884 = vmul.f32 %v3674, %v3775
        %v3885 = vmul.f32 %v3673, %v3779
        %v3886 = vmul.f32 %v3672, %v3783
        %v3887 = vmul.f32 %v3671, %v3787
        %v3888 = vmul.f32 %v3670, %v3791
        %v3889 = vmul.f32 %v3669, %v3795
        %v3890 = vmul.f32 %v3668, %v3799
        %v3891 = vmul.f32 %v3667, %v3803
        %v3892 = vmul.f32 %v3666, %v3807
        %v3893 = vmul.f32 %v3665, %v3811
        %v3894 = vmul.f32 %v3664, %v3815
        %v3895 = vmul.f32 %v3663, %v3819
        %v3896 = vmul.f32 %v3662, %v3823
        %v3897 = vmul.f32 %v3661, %v3827
        %v3898 = vmul.f32 %v3660, %v3831
        %v3899 = vmul.f32 %v3659, %v3835
        %3900 = vst [vmem:[#allocation3 + $0x600] sm:$0xff] %v3868
        %3901 = vst [vmem:[#allocation3 + $0x608] sm:$0xff] %v3869
        %3902 = vst [vmem:[#allocation3 + $0x610] sm:$0xff] %v3870
        %3903 = vst [vmem:[#allocation3 + $0x618] sm:$0xff] %v3871
        %3904 = vst [vmem:[#allocation3 + $0x620] sm:$0xff] %v3872
        %3905 = vst [vmem:[#allocation3 + $0x628] sm:$0xff] %v3873
        %3906 = vst [vmem:[#allocation3 + $0x630] sm:$0xff] %v3874
        %3907 = vst [vmem:[#allocation3 + $0x638] sm:$0xff] %v3875
        %3908 = vst [vmem:[#allocation3 + $0x640] sm:$0xff] %v3876
        %3909 = vst [vmem:[#allocation3 + $0x648] sm:$0xff] %v3877
        %3910 = vst [vmem:[#allocation3 + $0x650] sm:$0xff] %v3878
        %3911 = vst [vmem:[#allocation3 + $0x658] sm:$0xff] %v3879
        %3912 = vst [vmem:[#allocation3 + $0x660] sm:$0xff] %v3880
        %3913 = vst [vmem:[#allocation3 + $0x668] sm:$0xff] %v3881
        %3914 = vst [vmem:[#allocation3 + $0x670] sm:$0xff] %v3882
        %3915 = vst [vmem:[#allocation3 + $0x678] sm:$0xff] %v3883
        %3916 = vst [vmem:[#allocation3 + $0x680] sm:$0xff] %v3884
        %3917 = vst [vmem:[#allocation3 + $0x688] sm:$0xff] %v3885
        %3918 = vst [vmem:[#allocation3 + $0x690] sm:$0xff] %v3886
        %3919 = vst [vmem:[#allocation3 + $0x698] sm:$0xff] %v3887
        %3920 = vst [vmem:[#allocation3 + $0x6a0] sm:$0xff] %v3888
        %3921 = vst [vmem:[#allocation3 + $0x6a8] sm:$0xff] %v3889
        %3922 = vst [vmem:[#allocation3 + $0x6b0] sm:$0xff] %v3890
        %3923 = vst [vmem:[#allocation3 + $0x6b8] sm:$0xff] %v3891
        %3924 = vst [vmem:[#allocation3 + $0x6c0] sm:$0xff] %v3892
        %3925 = vst [vmem:[#allocation3 + $0x6c8] sm:$0xff] %v3893
        %3926 = vst [vmem:[#allocation3 + $0x6d0] sm:$0xff] %v3894
        %3927 = vst [vmem:[#allocation3 + $0x6d8] sm:$0xff] %v3895
        %3928 = vst [vmem:[#allocation3 + $0x6e0] sm:$0xff] %v3896
        %3929 = vst [vmem:[#allocation3 + $0x6e8] sm:$0xff] %v3897
        %3930 = vst [vmem:[#allocation3 + $0x6f0] sm:$0xff] %v3898
        %3931 = vst [vmem:[#allocation3 + $0x6f8] sm:$0xff] %v3899
        %3932 = vrot.lane.b32.xlu0 %v1609, 96
        %v3933 = vpop.permute.xlu0 %3932
        %3934 = vrot.lane.b32.xlu0 %v1610, 96
        %v3935 = vpop.permute.xlu0 %3934
        %3936 = vrot.lane.b32.xlu0 %v1611, 96
        %v3937 = vpop.permute.xlu0 %3936
        %3938 = vrot.lane.b32.xlu0 %v1612, 96
        %v3939 = vpop.permute.xlu0 %3938
        %3940 = vrot.lane.b32.xlu0 %v1613, 96
        %v3941 = vpop.permute.xlu0 %3940
        %3942 = vrot.lane.b32.xlu0 %v1614, 96
        %v3943 = vpop.permute.xlu0 %3942
        %3944 = vrot.lane.b32.xlu0 %v1615, 96
        %v3945 = vpop.permute.xlu0 %3944
        %3946 = vrot.lane.b32.xlu0 %v1616, 96
        %v3947 = vpop.permute.xlu0 %3946
        %3948 = vrot.lane.b32.xlu0 %v1617, 96
        %v3949 = vpop.permute.xlu0 %3948
        %3950 = vrot.lane.b32.xlu0 %v1618, 96
        %v3951 = vpop.permute.xlu0 %3950
        %3952 = vrot.lane.b32.xlu0 %v1619, 96
        %v3953 = vpop.permute.xlu0 %3952
        %3954 = vrot.lane.b32.xlu0 %v1620, 96
        %v3955 = vpop.permute.xlu0 %3954
        %3956 = vrot.lane.b32.xlu0 %v1621, 96
        %v3957 = vpop.permute.xlu0 %3956
        %3958 = vrot.lane.b32.xlu0 %v1622, 96
        %v3959 = vpop.permute.xlu0 %3958
        %3960 = vrot.lane.b32.xlu0 %v1623, 96
        %v3961 = vpop.permute.xlu0 %3960
        %3962 = vrot.lane.b32.xlu0 %v1624, 96
        %v3963 = vpop.permute.xlu0 %3962
        %3964 = vrot.lane.b32.xlu0 %v1625, 96
        %v3965 = vpop.permute.xlu0 %3964
        %3966 = vrot.lane.b32.xlu0 %v1626, 96
        %v3967 = vpop.permute.xlu0 %3966
        %3968 = vrot.lane.b32.xlu0 %v1627, 96
        %v3969 = vpop.permute.xlu0 %3968
        %3970 = vrot.lane.b32.xlu0 %v1628, 96
        %v3971 = vpop.permute.xlu0 %3970
        %3972 = vrot.lane.b32.xlu0 %v1629, 96
        %v3973 = vpop.permute.xlu0 %3972
        %3974 = vrot.lane.b32.xlu0 %v1630, 96
        %v3975 = vpop.permute.xlu0 %3974
        %3976 = vrot.lane.b32.xlu0 %v1631, 96
        %v3977 = vpop.permute.xlu0 %3976
        %3978 = vrot.lane.b32.xlu0 %v1632, 96
        %v3979 = vpop.permute.xlu0 %3978
        %3980 = vrot.lane.b32.xlu0 %v1633, 96
        %v3981 = vpop.permute.xlu0 %3980
        %3982 = vrot.lane.b32.xlu0 %v1634, 96
        %v3983 = vpop.permute.xlu0 %3982
        %3984 = vrot.lane.b32.xlu0 %v1635, 96
        %v3985 = vpop.permute.xlu0 %3984
        %3986 = vrot.lane.b32.xlu0 %v1636, 96
        %v3987 = vpop.permute.xlu0 %3986
        %3988 = vrot.lane.b32.xlu0 %v1637, 96
        %v3989 = vpop.permute.xlu0 %3988
        %3990 = vrot.lane.b32.xlu0 %v1638, 96
        %v3991 = vpop.permute.xlu0 %3990
        %3992 = vrot.lane.b32.xlu0 %v1639, 96
        %v3993 = vpop.permute.xlu0 %3992
        %3994 = vrot.lane.b32.xlu0 %v1640, 96
        %v3995 = vpop.permute.xlu0 %3994
        %vm3996 = vcmp.lt.s32.totalorder %v1706, 96
        %v3997 = vsel %vm3996, %v3993, %v3995
        %v3998 = vsel %vm3996, %v3991, %v3993
        %v3999 = vsel %vm3996, %v3989, %v3991
        %v4000 = vsel %vm3996, %v3987, %v3989
        %v4001 = vsel %vm3996, %v3985, %v3987
        %v4002 = vsel %vm3996, %v3983, %v3985
        %v4003 = vsel %vm3996, %v3981, %v3983
        %v4004 = vsel %vm3996, %v3979, %v3981
        %v4005 = vsel %vm3996, %v3977, %v3979
        %v4006 = vsel %vm3996, %v3975, %v3977
        %v4007 = vsel %vm3996, %v3973, %v3975
        %v4008 = vsel %vm3996, %v3971, %v3973
        %v4009 = vsel %vm3996, %v3969, %v3971
        %v4010 = vsel %vm3996, %v3967, %v3969
        %v4011 = vsel %vm3996, %v3965, %v3967
        %v4012 = vsel %vm3996, %v3963, %v3965
        %v4013 = vsel %vm3996, %v3961, %v3963
        %v4014 = vsel %vm3996, %v3959, %v3961
        %v4015 = vsel %vm3996, %v3957, %v3959
        %v4016 = vsel %vm3996, %v3955, %v3957
        %v4017 = vsel %vm3996, %v3953, %v3955
        %v4018 = vsel %vm3996, %v3951, %v3953
        %v4019 = vsel %vm3996, %v3949, %v3951
        %v4020 = vsel %vm3996, %v3947, %v3949
        %v4021 = vsel %vm3996, %v3945, %v3947
        %v4022 = vsel %vm3996, %v3943, %v3945
        %v4023 = vsel %vm3996, %v3941, %v3943
        %v4024 = vsel %vm3996, %v3939, %v3941
        %v4025 = vsel %vm3996, %v3937, %v3939
        %v4026 = vsel %vm3996, %v3935, %v3937
        %v4027 = vsel %vm3996, %v3933, %v3935
        %v4028 = vsel %vm3996, %v3995, %v3933
        %s4029 = scalar_lea.vmem [#allocation6], 7
        %v4030 = vld [vmem:[%s4029] ss:$8 sm:$0xf]
        %v4031 = vld [vmem:[%s4029] ss:$8 sm:$0xf0]
        %v4032 = vor.u32 %v4030, %v4031
        %s4033 = scalar_lea.vmem [#allocation6], 71
        %v4034 = vld [vmem:[%s4033] ss:$8 sm:$0xf]
        %v4035 = vld [vmem:[%s4033] ss:$8 sm:$0xf0]
        %v4036 = vor.u32 %v4034, %v4035
        %s4037 = scalar_lea.vmem [#allocation6], 135
        %v4038 = vld [vmem:[%s4037] ss:$8 sm:$0xf]
        %v4039 = vld [vmem:[%s4037] ss:$8 sm:$0xf0]
        %v4040 = vor.u32 %v4038, %v4039
        %s4041 = scalar_lea.vmem [#allocation6], 199
        %v4042 = vld [vmem:[%s4041] ss:$8 sm:$0xf]
        %v4043 = vld [vmem:[%s4041] ss:$8 sm:$0xf0]
        %v4044 = vor.u32 %v4042, %v4043
        %v4049 = vlaneseq
        %v4050 = vshrl.u32 %v4049, 7
        %v4051 = vsub.s32 0, %v4050
        %v4052 = vrot.slane %v4032, %v4051
        %v4053 = vlaneseq
        %v4054 = vshrl.u32 %v4053, 7
        %v4055 = vsub.s32 1, %v4054
        %v4056 = vrot.slane %v4032, %v4055
        %v4057 = vlaneseq
        %v4058 = vshrl.u32 %v4057, 7
        %v4059 = vsub.s32 2, %v4058
        %v4060 = vrot.slane %v4032, %v4059
        %v4061 = vlaneseq
        %v4062 = vshrl.u32 %v4061, 7
        %v4063 = vsub.s32 3, %v4062
        %v4064 = vrot.slane %v4032, %v4063
        %v4065 = vlaneseq
        %v4066 = vshrl.u32 %v4065, 7
        %v4067 = vsub.s32 4, %v4066
        %v4068 = vrot.slane %v4032, %v4067
        %v4069 = vlaneseq
        %v4070 = vshrl.u32 %v4069, 7
        %v4071 = vsub.s32 5, %v4070
        %v4072 = vrot.slane %v4032, %v4071
        %v4073 = vlaneseq
        %v4074 = vshrl.u32 %v4073, 7
        %v4075 = vsub.s32 6, %v4074
        %v4076 = vrot.slane %v4032, %v4075
        %v4077 = vlaneseq
        %v4078 = vshrl.u32 %v4077, 7
        %v4079 = vsub.s32 7, %v4078
        %v4080 = vrot.slane %v4032, %v4079
        %v4081 = vlaneseq
        %v4082 = vshrl.u32 %v4081, 7
        %v4083 = vsub.s32 0, %v4082
        %v4084 = vrot.slane %v4036, %v4083
        %v4085 = vlaneseq
        %v4086 = vshrl.u32 %v4085, 7
        %v4087 = vsub.s32 1, %v4086
        %v4088 = vrot.slane %v4036, %v4087
        %v4089 = vlaneseq
        %v4090 = vshrl.u32 %v4089, 7
        %v4091 = vsub.s32 2, %v4090
        %v4092 = vrot.slane %v4036, %v4091
        %v4093 = vlaneseq
        %v4094 = vshrl.u32 %v4093, 7
        %v4095 = vsub.s32 3, %v4094
        %v4096 = vrot.slane %v4036, %v4095
        %v4097 = vlaneseq
        %v4098 = vshrl.u32 %v4097, 7
        %v4099 = vsub.s32 4, %v4098
        %v4100 = vrot.slane %v4036, %v4099
        %v4101 = vlaneseq
        %v4102 = vshrl.u32 %v4101, 7
        %v4103 = vsub.s32 5, %v4102
        %v4104 = vrot.slane %v4036, %v4103
        %v4105 = vlaneseq
        %v4106 = vshrl.u32 %v4105, 7
        %v4107 = vsub.s32 6, %v4106
        %v4108 = vrot.slane %v4036, %v4107
        %v4109 = vlaneseq
        %v4110 = vshrl.u32 %v4109, 7
        %v4111 = vsub.s32 7, %v4110
        %v4112 = vrot.slane %v4036, %v4111
        %v4113 = vlaneseq
        %v4114 = vshrl.u32 %v4113, 7
        %v4115 = vsub.s32 0, %v4114
        %v4116 = vrot.slane %v4040, %v4115
        %v4117 = vlaneseq
        %v4118 = vshrl.u32 %v4117, 7
        %v4119 = vsub.s32 1, %v4118
        %v4120 = vrot.slane %v4040, %v4119
        %v4121 = vlaneseq
        %v4122 = vshrl.u32 %v4121, 7
        %v4123 = vsub.s32 2, %v4122
        %v4124 = vrot.slane %v4040, %v4123
        %v4125 = vlaneseq
        %v4126 = vshrl.u32 %v4125, 7
        %v4127 = vsub.s32 3, %v4126
        %v4128 = vrot.slane %v4040, %v4127
        %v4129 = vlaneseq
        %v4130 = vshrl.u32 %v4129, 7
        %v4131 = vsub.s32 4, %v4130
        %v4132 = vrot.slane %v4040, %v4131
        %v4133 = vlaneseq
        %v4134 = vshrl.u32 %v4133, 7
        %v4135 = vsub.s32 5, %v4134
        %v4136 = vrot.slane %v4040, %v4135
        %v4137 = vlaneseq
        %v4138 = vshrl.u32 %v4137, 7
        %v4139 = vsub.s32 6, %v4138
        %v4140 = vrot.slane %v4040, %v4139
        %v4141 = vlaneseq
        %v4142 = vshrl.u32 %v4141, 7
        %v4143 = vsub.s32 7, %v4142
        %v4144 = vrot.slane %v4040, %v4143
        %v4145 = vlaneseq
        %v4146 = vshrl.u32 %v4145, 7
        %v4147 = vsub.s32 0, %v4146
        %v4148 = vrot.slane %v4044, %v4147
        %v4149 = vlaneseq
        %v4150 = vshrl.u32 %v4149, 7
        %v4151 = vsub.s32 1, %v4150
        %v4152 = vrot.slane %v4044, %v4151
        %v4153 = vlaneseq
        %v4154 = vshrl.u32 %v4153, 7
        %v4155 = vsub.s32 2, %v4154
        %v4156 = vrot.slane %v4044, %v4155
        %v4157 = vlaneseq
        %v4158 = vshrl.u32 %v4157, 7
        %v4159 = vsub.s32 3, %v4158
        %v4160 = vrot.slane %v4044, %v4159
        %v4161 = vlaneseq
        %v4162 = vshrl.u32 %v4161, 7
        %v4163 = vsub.s32 4, %v4162
        %v4164 = vrot.slane %v4044, %v4163
        %v4165 = vlaneseq
        %v4166 = vshrl.u32 %v4165, 7
        %v4167 = vsub.s32 5, %v4166
        %v4168 = vrot.slane %v4044, %v4167
        %v4169 = vlaneseq
        %v4170 = vshrl.u32 %v4169, 7
        %v4171 = vsub.s32 6, %v4170
        %v4172 = vrot.slane %v4044, %v4171
        %v4173 = vlaneseq
        %v4174 = vshrl.u32 %v4173, 7
        %v4175 = vsub.s32 7, %v4174
        %v4176 = vrot.slane %v4044, %v4175
        %v4209 = vmul.f32 %v3999, %v4052
        %v4210 = vmul.f32 %v3998, %v4056
        %v4211 = vmul.f32 %v3997, %v4060
        %v4212 = vmul.f32 %v4028, %v4064
        %v4213 = vmul.f32 %v4027, %v4068
        %v4214 = vmul.f32 %v4026, %v4072
        %v4215 = vmul.f32 %v4025, %v4076
        %v4216 = vmul.f32 %v4024, %v4080
        %v4217 = vmul.f32 %v4023, %v4084
        %v4218 = vmul.f32 %v4022, %v4088
        %v4219 = vmul.f32 %v4021, %v4092
        %v4220 = vmul.f32 %v4020, %v4096
        %v4221 = vmul.f32 %v4019, %v4100
        %v4222 = vmul.f32 %v4018, %v4104
        %v4223 = vmul.f32 %v4017, %v4108
        %v4224 = vmul.f32 %v4016, %v4112
        %v4225 = vmul.f32 %v4015, %v4116
        %v4226 = vmul.f32 %v4014, %v4120
        %v4227 = vmul.f32 %v4013, %v4124
        %v4228 = vmul.f32 %v4012, %v4128
        %v4229 = vmul.f32 %v4011, %v4132
        %v4230 = vmul.f32 %v4010, %v4136
        %v4231 = vmul.f32 %v4009, %v4140
        %v4232 = vmul.f32 %v4008, %v4144
        %v4233 = vmul.f32 %v4007, %v4148
        %v4234 = vmul.f32 %v4006, %v4152
        %v4235 = vmul.f32 %v4005, %v4156
        %v4236 = vmul.f32 %v4004, %v4160
        %v4237 = vmul.f32 %v4003, %v4164
        %v4238 = vmul.f32 %v4002, %v4168
        %v4239 = vmul.f32 %v4001, %v4172
        %v4240 = vmul.f32 %v4000, %v4176
        %4241 = vst [vmem:[#allocation3 + $0x700] sm:$0xff] %v4209
        %4242 = vst [vmem:[#allocation3 + $0x708] sm:$0xff] %v4210
        %4243 = vst [vmem:[#allocation3 + $0x710] sm:$0xff] %v4211
        %4244 = vst [vmem:[#allocation3 + $0x718] sm:$0xff] %v4212
        %4245 = vst [vmem:[#allocation3 + $0x720] sm:$0xff] %v4213
        %4246 = vst [vmem:[#allocation3 + $0x728] sm:$0xff] %v4214
        %4247 = vst [vmem:[#allocation3 + $0x730] sm:$0xff] %v4215
        %4248 = vst [vmem:[#allocation3 + $0x738] sm:$0xff] %v4216
        %4249 = vst [vmem:[#allocation3 + $0x740] sm:$0xff] %v4217
        %4250 = vst [vmem:[#allocation3 + $0x748] sm:$0xff] %v4218
        %4251 = vst [vmem:[#allocation3 + $0x750] sm:$0xff] %v4219
        %4252 = vst [vmem:[#allocation3 + $0x758] sm:$0xff] %v4220
        %4253 = vst [vmem:[#allocation3 + $0x760] sm:$0xff] %v4221
        %4254 = vst [vmem:[#allocation3 + $0x768] sm:$0xff] %v4222
        %4255 = vst [vmem:[#allocation3 + $0x770] sm:$0xff] %v4223
        %4256 = vst [vmem:[#allocation3 + $0x778] sm:$0xff] %v4224
        %4257 = vst [vmem:[#allocation3 + $0x780] sm:$0xff] %v4225
        %4258 = vst [vmem:[#allocation3 + $0x788] sm:$0xff] %v4226
        %4259 = vst [vmem:[#allocation3 + $0x790] sm:$0xff] %v4227
        %4260 = vst [vmem:[#allocation3 + $0x798] sm:$0xff] %v4228
        %4261 = vst [vmem:[#allocation3 + $0x7a0] sm:$0xff] %v4229
        %4262 = vst [vmem:[#allocation3 + $0x7a8] sm:$0xff] %v4230
        %4263 = vst [vmem:[#allocation3 + $0x7b0] sm:$0xff] %v4231
        %4264 = vst [vmem:[#allocation3 + $0x7b8] sm:$0xff] %v4232
        %4265 = vst [vmem:[#allocation3 + $0x7c0] sm:$0xff] %v4233
        %4266 = vst [vmem:[#allocation3 + $0x7c8] sm:$0xff] %v4234
        %4267 = vst [vmem:[#allocation3 + $0x7d0] sm:$0xff] %v4235
        %4268 = vst [vmem:[#allocation3 + $0x7d8] sm:$0xff] %v4236
        %4269 = vst [vmem:[#allocation3 + $0x7e0] sm:$0xff] %v4237
        %4270 = vst [vmem:[#allocation3 + $0x7e8] sm:$0xff] %v4238
        %4271 = vst [vmem:[#allocation3 + $0x7f0] sm:$0xff] %v4239
        %4272 = vst [vmem:[#allocation3 + $0x7f8] sm:$0xff] %v4240
        %4273 = vrot.lane.b32.xlu0 %v1609, 94
        %v4274 = vpop.permute.xlu0 %4273
        %4275 = vrot.lane.b32.xlu0 %v1610, 94
        %v4276 = vpop.permute.xlu0 %4275
        %4277 = vrot.lane.b32.xlu0 %v1611, 94
        %v4278 = vpop.permute.xlu0 %4277
        %4279 = vrot.lane.b32.xlu0 %v1612, 94
        %v4280 = vpop.permute.xlu0 %4279
        %4281 = vrot.lane.b32.xlu0 %v1613, 94
        %v4282 = vpop.permute.xlu0 %4281
        %4283 = vrot.lane.b32.xlu0 %v1614, 94
        %v4284 = vpop.permute.xlu0 %4283
        %4285 = vrot.lane.b32.xlu0 %v1615, 94
        %v4286 = vpop.permute.xlu0 %4285
        %4287 = vrot.lane.b32.xlu0 %v1616, 94
        %v4288 = vpop.permute.xlu0 %4287
        %4289 = vrot.lane.b32.xlu0 %v1617, 94
        %v4290 = vpop.permute.xlu0 %4289
        %4291 = vrot.lane.b32.xlu0 %v1618, 94
        %v4292 = vpop.permute.xlu0 %4291
        %4293 = vrot.lane.b32.xlu0 %v1619, 94
        %v4294 = vpop.permute.xlu0 %4293
        %4295 = vrot.lane.b32.xlu0 %v1620, 94
        %v4296 = vpop.permute.xlu0 %4295
        %4297 = vrot.lane.b32.xlu0 %v1621, 94
        %v4298 = vpop.permute.xlu0 %4297
        %4299 = vrot.lane.b32.xlu0 %v1622, 94
        %v4300 = vpop.permute.xlu0 %4299
        %4301 = vrot.lane.b32.xlu0 %v1623, 94
        %v4302 = vpop.permute.xlu0 %4301
        %4303 = vrot.lane.b32.xlu0 %v1624, 94
        %v4304 = vpop.permute.xlu0 %4303
        %4305 = vrot.lane.b32.xlu0 %v1625, 94
        %v4306 = vpop.permute.xlu0 %4305
        %4307 = vrot.lane.b32.xlu0 %v1626, 94
        %v4308 = vpop.permute.xlu0 %4307
        %4309 = vrot.lane.b32.xlu0 %v1627, 94
        %v4310 = vpop.permute.xlu0 %4309
        %4311 = vrot.lane.b32.xlu0 %v1628, 94
        %v4312 = vpop.permute.xlu0 %4311
        %4313 = vrot.lane.b32.xlu0 %v1629, 94
        %v4314 = vpop.permute.xlu0 %4313
        %4315 = vrot.lane.b32.xlu0 %v1630, 94
        %v4316 = vpop.permute.xlu0 %4315
        %4317 = vrot.lane.b32.xlu0 %v1631, 94
        %v4318 = vpop.permute.xlu0 %4317
        %4319 = vrot.lane.b32.xlu0 %v1632, 94
        %v4320 = vpop.permute.xlu0 %4319
        %4321 = vrot.lane.b32.xlu0 %v1633, 94
        %v4322 = vpop.permute.xlu0 %4321
        %4323 = vrot.lane.b32.xlu0 %v1634, 94
        %v4324 = vpop.permute.xlu0 %4323
        %4325 = vrot.lane.b32.xlu0 %v1635, 94
        %v4326 = vpop.permute.xlu0 %4325
        %4327 = vrot.lane.b32.xlu0 %v1636, 94
        %v4328 = vpop.permute.xlu0 %4327
        %4329 = vrot.lane.b32.xlu0 %v1637, 94
        %v4330 = vpop.permute.xlu0 %4329
        %4331 = vrot.lane.b32.xlu0 %v1638, 94
        %v4332 = vpop.permute.xlu0 %4331
        %4333 = vrot.lane.b32.xlu0 %v1639, 94
        %v4334 = vpop.permute.xlu0 %4333
        %4335 = vrot.lane.b32.xlu0 %v1640, 94
        %v4336 = vpop.permute.xlu0 %4335
        %vm4337 = vcmp.lt.s32.totalorder %v1706, 94
        %v4338 = vsel %vm4337, %v4334, %v4336
        %v4339 = vsel %vm4337, %v4332, %v4334
        %v4340 = vsel %vm4337, %v4330, %v4332
        %v4341 = vsel %vm4337, %v4328, %v4330
        %v4342 = vsel %vm4337, %v4326, %v4328
        %v4343 = vsel %vm4337, %v4324, %v4326
        %v4344 = vsel %vm4337, %v4322, %v4324
        %v4345 = vsel %vm4337, %v4320, %v4322
        %v4346 = vsel %vm4337, %v4318, %v4320
        %v4347 = vsel %vm4337, %v4316, %v4318
        %v4348 = vsel %vm4337, %v4314, %v4316
        %v4349 = vsel %vm4337, %v4312, %v4314
        %v4350 = vsel %vm4337, %v4310, %v4312
        %v4351 = vsel %vm4337, %v4308, %v4310
        %v4352 = vsel %vm4337, %v4306, %v4308
        %v4353 = vsel %vm4337, %v4304, %v4306
        %v4354 = vsel %vm4337, %v4302, %v4304
        %v4355 = vsel %vm4337, %v4300, %v4302
        %v4356 = vsel %vm4337, %v4298, %v4300
        %v4357 = vsel %vm4337, %v4296, %v4298
        %v4358 = vsel %vm4337, %v4294, %v4296
        %v4359 = vsel %vm4337, %v4292, %v4294
        %v4360 = vsel %vm4337, %v4290, %v4292
        %v4361 = vsel %vm4337, %v4288, %v4290
        %v4362 = vsel %vm4337, %v4286, %v4288
        %v4363 = vsel %vm4337, %v4284, %v4286
        %v4364 = vsel %vm4337, %v4282, %v4284
        %v4365 = vsel %vm4337, %v4280, %v4282
        %v4366 = vsel %vm4337, %v4278, %v4280
        %v4367 = vsel %vm4337, %v4276, %v4278
        %v4368 = vsel %vm4337, %v4274, %v4276
        %v4369 = vsel %vm4337, %v4336, %v4274
        %s4370 = scalar_lea.vmem [#allocation6], 256
        %v4371 = vld [vmem:[%s4370] ss:$8 sm:$0xf]
        %v4372 = vld [vmem:[%s4370] ss:$8 sm:$0xf0]
        %v4373 = vor.u32 %v4371, %v4372
        %s4374 = scalar_lea.vmem [#allocation6], 320
        %v4375 = vld [vmem:[%s4374] ss:$8 sm:$0xf]
        %v4376 = vld [vmem:[%s4374] ss:$8 sm:$0xf0]
        %v4377 = vor.u32 %v4375, %v4376
        %s4378 = scalar_lea.vmem [#allocation6], 384
        %v4379 = vld [vmem:[%s4378] ss:$8 sm:$0xf]
        %v4380 = vld [vmem:[%s4378] ss:$8 sm:$0xf0]
        %v4381 = vor.u32 %v4379, %v4380
        %s4382 = scalar_lea.vmem [#allocation6], 448
        %v4383 = vld [vmem:[%s4382] ss:$8 sm:$0xf]
        %v4384 = vld [vmem:[%s4382] ss:$8 sm:$0xf0]
        %v4385 = vor.u32 %v4383, %v4384
        %v4390 = vlaneseq
        %v4391 = vshrl.u32 %v4390, 7
        %v4392 = vsub.s32 0, %v4391
        %v4393 = vrot.slane %v4373, %v4392
        %v4394 = vlaneseq
        %v4395 = vshrl.u32 %v4394, 7
        %v4396 = vsub.s32 1, %v4395
        %v4397 = vrot.slane %v4373, %v4396
        %v4398 = vlaneseq
        %v4399 = vshrl.u32 %v4398, 7
        %v4400 = vsub.s32 2, %v4399
        %v4401 = vrot.slane %v4373, %v4400
        %v4402 = vlaneseq
        %v4403 = vshrl.u32 %v4402, 7
        %v4404 = vsub.s32 3, %v4403
        %v4405 = vrot.slane %v4373, %v4404
        %v4406 = vlaneseq
        %v4407 = vshrl.u32 %v4406, 7
        %v4408 = vsub.s32 4, %v4407
        %v4409 = vrot.slane %v4373, %v4408
        %v4410 = vlaneseq
        %v4411 = vshrl.u32 %v4410, 7
        %v4412 = vsub.s32 5, %v4411
        %v4413 = vrot.slane %v4373, %v4412
        %v4414 = vlaneseq
        %v4415 = vshrl.u32 %v4414, 7
        %v4416 = vsub.s32 6, %v4415
        %v4417 = vrot.slane %v4373, %v4416
        %v4418 = vlaneseq
        %v4419 = vshrl.u32 %v4418, 7
        %v4420 = vsub.s32 7, %v4419
        %v4421 = vrot.slane %v4373, %v4420
        %v4422 = vlaneseq
        %v4423 = vshrl.u32 %v4422, 7
        %v4424 = vsub.s32 0, %v4423
        %v4425 = vrot.slane %v4377, %v4424
        %v4426 = vlaneseq
        %v4427 = vshrl.u32 %v4426, 7
        %v4428 = vsub.s32 1, %v4427
        %v4429 = vrot.slane %v4377, %v4428
        %v4430 = vlaneseq
        %v4431 = vshrl.u32 %v4430, 7
        %v4432 = vsub.s32 2, %v4431
        %v4433 = vrot.slane %v4377, %v4432
        %v4434 = vlaneseq
        %v4435 = vshrl.u32 %v4434, 7
        %v4436 = vsub.s32 3, %v4435
        %v4437 = vrot.slane %v4377, %v4436
        %v4438 = vlaneseq
        %v4439 = vshrl.u32 %v4438, 7
        %v4440 = vsub.s32 4, %v4439
        %v4441 = vrot.slane %v4377, %v4440
        %v4442 = vlaneseq
        %v4443 = vshrl.u32 %v4442, 7
        %v4444 = vsub.s32 5, %v4443
        %v4445 = vrot.slane %v4377, %v4444
        %v4446 = vlaneseq
        %v4447 = vshrl.u32 %v4446, 7
        %v4448 = vsub.s32 6, %v4447
        %v4449 = vrot.slane %v4377, %v4448
        %v4450 = vlaneseq
        %v4451 = vshrl.u32 %v4450, 7
        %v4452 = vsub.s32 7, %v4451
        %v4453 = vrot.slane %v4377, %v4452
        %v4454 = vlaneseq
        %v4455 = vshrl.u32 %v4454, 7
        %v4456 = vsub.s32 0, %v4455
        %v4457 = vrot.slane %v4381, %v4456
        %v4458 = vlaneseq
        %v4459 = vshrl.u32 %v4458, 7
        %v4460 = vsub.s32 1, %v4459
        %v4461 = vrot.slane %v4381, %v4460
        %v4462 = vlaneseq
        %v4463 = vshrl.u32 %v4462, 7
        %v4464 = vsub.s32 2, %v4463
        %v4465 = vrot.slane %v4381, %v4464
        %v4466 = vlaneseq
        %v4467 = vshrl.u32 %v4466, 7
        %v4468 = vsub.s32 3, %v4467
        %v4469 = vrot.slane %v4381, %v4468
        %v4470 = vlaneseq
        %v4471 = vshrl.u32 %v4470, 7
        %v4472 = vsub.s32 4, %v4471
        %v4473 = vrot.slane %v4381, %v4472
        %v4474 = vlaneseq
        %v4475 = vshrl.u32 %v4474, 7
        %v4476 = vsub.s32 5, %v4475
        %v4477 = vrot.slane %v4381, %v4476
        %v4478 = vlaneseq
        %v4479 = vshrl.u32 %v4478, 7
        %v4480 = vsub.s32 6, %v4479
        %v4481 = vrot.slane %v4381, %v4480
        %v4482 = vlaneseq
        %v4483 = vshrl.u32 %v4482, 7
        %v4484 = vsub.s32 7, %v4483
        %v4485 = vrot.slane %v4381, %v4484
        %v4486 = vlaneseq
        %v4487 = vshrl.u32 %v4486, 7
        %v4488 = vsub.s32 0, %v4487
        %v4489 = vrot.slane %v4385, %v4488
        %v4490 = vlaneseq
        %v4491 = vshrl.u32 %v4490, 7
        %v4492 = vsub.s32 1, %v4491
        %v4493 = vrot.slane %v4385, %v4492
        %v4494 = vlaneseq
        %v4495 = vshrl.u32 %v4494, 7
        %v4496 = vsub.s32 2, %v4495
        %v4497 = vrot.slane %v4385, %v4496
        %v4498 = vlaneseq
        %v4499 = vshrl.u32 %v4498, 7
        %v4500 = vsub.s32 3, %v4499
        %v4501 = vrot.slane %v4385, %v4500
        %v4502 = vlaneseq
        %v4503 = vshrl.u32 %v4502, 7
        %v4504 = vsub.s32 4, %v4503
        %v4505 = vrot.slane %v4385, %v4504
        %v4506 = vlaneseq
        %v4507 = vshrl.u32 %v4506, 7
        %v4508 = vsub.s32 5, %v4507
        %v4509 = vrot.slane %v4385, %v4508
        %v4510 = vlaneseq
        %v4511 = vshrl.u32 %v4510, 7
        %v4512 = vsub.s32 6, %v4511
        %v4513 = vrot.slane %v4385, %v4512
        %v4514 = vlaneseq
        %v4515 = vshrl.u32 %v4514, 7
        %v4516 = vsub.s32 7, %v4515
        %v4517 = vrot.slane %v4385, %v4516
        %v4550 = vmul.f32 %v4340, %v4393
        %v4551 = vmul.f32 %v4339, %v4397
        %v4552 = vmul.f32 %v4338, %v4401
        %v4553 = vmul.f32 %v4369, %v4405
        %v4554 = vmul.f32 %v4368, %v4409
        %v4555 = vmul.f32 %v4367, %v4413
        %v4556 = vmul.f32 %v4366, %v4417
        %v4557 = vmul.f32 %v4365, %v4421
        %v4558 = vmul.f32 %v4364, %v4425
        %v4559 = vmul.f32 %v4363, %v4429
        %v4560 = vmul.f32 %v4362, %v4433
        %v4561 = vmul.f32 %v4361, %v4437
        %v4562 = vmul.f32 %v4360, %v4441
        %v4563 = vmul.f32 %v4359, %v4445
        %v4564 = vmul.f32 %v4358, %v4449
        %v4565 = vmul.f32 %v4357, %v4453
        %v4566 = vmul.f32 %v4356, %v4457
        %v4567 = vmul.f32 %v4355, %v4461
        %v4568 = vmul.f32 %v4354, %v4465
        %v4569 = vmul.f32 %v4353, %v4469
        %v4570 = vmul.f32 %v4352, %v4473
        %v4571 = vmul.f32 %v4351, %v4477
        %v4572 = vmul.f32 %v4350, %v4481
        %v4573 = vmul.f32 %v4349, %v4485
        %v4574 = vmul.f32 %v4348, %v4489
        %v4575 = vmul.f32 %v4347, %v4493
        %v4576 = vmul.f32 %v4346, %v4497
        %v4577 = vmul.f32 %v4345, %v4501
        %v4578 = vmul.f32 %v4344, %v4505
        %v4579 = vmul.f32 %v4343, %v4509
        %v4580 = vmul.f32 %v4342, %v4513
        %v4581 = vmul.f32 %v4341, %v4517
        %4582 = vst [vmem:[#allocation3 + $0x800] sm:$0xff] %v4550
        %4583 = vst [vmem:[#allocation3 + $0x808] sm:$0xff] %v4551
        %4584 = vst [vmem:[#allocation3 + $0x810] sm:$0xff] %v4552
        %4585 = vst [vmem:[#allocation3 + $0x818] sm:$0xff] %v4553
        %4586 = vst [vmem:[#allocation3 + $0x820] sm:$0xff] %v4554
        %4587 = vst [vmem:[#allocation3 + $0x828] sm:$0xff] %v4555
        %4588 = vst [vmem:[#allocation3 + $0x830] sm:$0xff] %v4556
        %4589 = vst [vmem:[#allocation3 + $0x838] sm:$0xff] %v4557
        %4590 = vst [vmem:[#allocation3 + $0x840] sm:$0xff] %v4558
        %4591 = vst [vmem:[#allocation3 + $0x848] sm:$0xff] %v4559
        %4592 = vst [vmem:[#allocation3 + $0x850] sm:$0xff] %v4560
        %4593 = vst [vmem:[#allocation3 + $0x858] sm:$0xff] %v4561
        %4594 = vst [vmem:[#allocation3 + $0x860] sm:$0xff] %v4562
        %4595 = vst [vmem:[#allocation3 + $0x868] sm:$0xff] %v4563
        %4596 = vst [vmem:[#allocation3 + $0x870] sm:$0xff] %v4564
        %4597 = vst [vmem:[#allocation3 + $0x878] sm:$0xff] %v4565
        %4598 = vst [vmem:[#allocation3 + $0x880] sm:$0xff] %v4566
        %4599 = vst [vmem:[#allocation3 + $0x888] sm:$0xff] %v4567
        %4600 = vst [vmem:[#allocation3 + $0x890] sm:$0xff] %v4568
        %4601 = vst [vmem:[#allocation3 + $0x898] sm:$0xff] %v4569
        %4602 = vst [vmem:[#allocation3 + $0x8a0] sm:$0xff] %v4570
        %4603 = vst [vmem:[#allocation3 + $0x8a8] sm:$0xff] %v4571
        %4604 = vst [vmem:[#allocation3 + $0x8b0] sm:$0xff] %v4572
        %4605 = vst [vmem:[#allocation3 + $0x8b8] sm:$0xff] %v4573
        %4606 = vst [vmem:[#allocation3 + $0x8c0] sm:$0xff] %v4574
        %4607 = vst [vmem:[#allocation3 + $0x8c8] sm:$0xff] %v4575
        %4608 = vst [vmem:[#allocation3 + $0x8d0] sm:$0xff] %v4576
        %4609 = vst [vmem:[#allocation3 + $0x8d8] sm:$0xff] %v4577
        %4610 = vst [vmem:[#allocation3 + $0x8e0] sm:$0xff] %v4578
        %4611 = vst [vmem:[#allocation3 + $0x8e8] sm:$0xff] %v4579
        %4612 = vst [vmem:[#allocation3 + $0x8f0] sm:$0xff] %v4580
        %4613 = vst [vmem:[#allocation3 + $0x8f8] sm:$0xff] %v4581
        %s4614 = scalar_lea.vmem [#allocation6], 257
        %v4615 = vld [vmem:[%s4614] ss:$8 sm:$0xf]
        %v4616 = vld [vmem:[%s4614] ss:$8 sm:$0xf0]
        %v4617 = vor.u32 %v4615, %v4616
        %s4618 = scalar_lea.vmem [#allocation6], 321
        %v4619 = vld [vmem:[%s4618] ss:$8 sm:$0xf]
        %v4620 = vld [vmem:[%s4618] ss:$8 sm:$0xf0]
        %v4621 = vor.u32 %v4619, %v4620
        %s4622 = scalar_lea.vmem [#allocation6], 385
        %v4623 = vld [vmem:[%s4622] ss:$8 sm:$0xf]
        %v4624 = vld [vmem:[%s4622] ss:$8 sm:$0xf0]
        %v4625 = vor.u32 %v4623, %v4624
        %s4626 = scalar_lea.vmem [#allocation6], 449
        %v4627 = vld [vmem:[%s4626] ss:$8 sm:$0xf]
        %v4628 = vld [vmem:[%s4626] ss:$8 sm:$0xf0]
        %v4629 = vor.u32 %v4627, %v4628
        %v4634 = vlaneseq
        %v4635 = vshrl.u32 %v4634, 7
        %v4636 = vsub.s32 0, %v4635
        %v4637 = vrot.slane %v4617, %v4636
        %v4638 = vlaneseq
        %v4639 = vshrl.u32 %v4638, 7
        %v4640 = vsub.s32 1, %v4639
        %v4641 = vrot.slane %v4617, %v4640
        %v4642 = vlaneseq
        %v4643 = vshrl.u32 %v4642, 7
        %v4644 = vsub.s32 2, %v4643
        %v4645 = vrot.slane %v4617, %v4644
        %v4646 = vlaneseq
        %v4647 = vshrl.u32 %v4646, 7
        %v4648 = vsub.s32 3, %v4647
        %v4649 = vrot.slane %v4617, %v4648
        %v4650 = vlaneseq
        %v4651 = vshrl.u32 %v4650, 7
        %v4652 = vsub.s32 4, %v4651
        %v4653 = vrot.slane %v4617, %v4652
        %v4654 = vlaneseq
        %v4655 = vshrl.u32 %v4654, 7
        %v4656 = vsub.s32 5, %v4655
        %v4657 = vrot.slane %v4617, %v4656
        %v4658 = vlaneseq
        %v4659 = vshrl.u32 %v4658, 7
        %v4660 = vsub.s32 6, %v4659
        %v4661 = vrot.slane %v4617, %v4660
        %v4662 = vlaneseq
        %v4663 = vshrl.u32 %v4662, 7
        %v4664 = vsub.s32 7, %v4663
        %v4665 = vrot.slane %v4617, %v4664
        %v4666 = vlaneseq
        %v4667 = vshrl.u32 %v4666, 7
        %v4668 = vsub.s32 0, %v4667
        %v4669 = vrot.slane %v4621, %v4668
        %v4670 = vlaneseq
        %v4671 = vshrl.u32 %v4670, 7
        %v4672 = vsub.s32 1, %v4671
        %v4673 = vrot.slane %v4621, %v4672
        %v4674 = vlaneseq
        %v4675 = vshrl.u32 %v4674, 7
        %v4676 = vsub.s32 2, %v4675
        %v4677 = vrot.slane %v4621, %v4676
        %v4678 = vlaneseq
        %v4679 = vshrl.u32 %v4678, 7
        %v4680 = vsub.s32 3, %v4679
        %v4681 = vrot.slane %v4621, %v4680
        %v4682 = vlaneseq
        %v4683 = vshrl.u32 %v4682, 7
        %v4684 = vsub.s32 4, %v4683
        %v4685 = vrot.slane %v4621, %v4684
        %v4686 = vlaneseq
        %v4687 = vshrl.u32 %v4686, 7
        %v4688 = vsub.s32 5, %v4687
        %v4689 = vrot.slane %v4621, %v4688
        %v4690 = vlaneseq
        %v4691 = vshrl.u32 %v4690, 7
        %v4692 = vsub.s32 6, %v4691
        %v4693 = vrot.slane %v4621, %v4692
        %v4694 = vlaneseq
        %v4695 = vshrl.u32 %v4694, 7
        %v4696 = vsub.s32 7, %v4695
        %v4697 = vrot.slane %v4621, %v4696
        %v4698 = vlaneseq
        %v4699 = vshrl.u32 %v4698, 7
        %v4700 = vsub.s32 0, %v4699
        %v4701 = vrot.slane %v4625, %v4700
        %v4702 = vlaneseq
        %v4703 = vshrl.u32 %v4702, 7
        %v4704 = vsub.s32 1, %v4703
        %v4705 = vrot.slane %v4625, %v4704
        %v4706 = vlaneseq
        %v4707 = vshrl.u32 %v4706, 7
        %v4708 = vsub.s32 2, %v4707
        %v4709 = vrot.slane %v4625, %v4708
        %v4710 = vlaneseq
        %v4711 = vshrl.u32 %v4710, 7
        %v4712 = vsub.s32 3, %v4711
        %v4713 = vrot.slane %v4625, %v4712
        %v4714 = vlaneseq
        %v4715 = vshrl.u32 %v4714, 7
        %v4716 = vsub.s32 4, %v4715
        %v4717 = vrot.slane %v4625, %v4716
        %v4718 = vlaneseq
        %v4719 = vshrl.u32 %v4718, 7
        %v4720 = vsub.s32 5, %v4719
        %v4721 = vrot.slane %v4625, %v4720
        %v4722 = vlaneseq
        %v4723 = vshrl.u32 %v4722, 7
        %v4724 = vsub.s32 6, %v4723
        %v4725 = vrot.slane %v4625, %v4724
        %v4726 = vlaneseq
        %v4727 = vshrl.u32 %v4726, 7
        %v4728 = vsub.s32 7, %v4727
        %v4729 = vrot.slane %v4625, %v4728
        %v4730 = vlaneseq
        %v4731 = vshrl.u32 %v4730, 7
        %v4732 = vsub.s32 0, %v4731
        %v4733 = vrot.slane %v4629, %v4732
        %v4734 = vlaneseq
        %v4735 = vshrl.u32 %v4734, 7
        %v4736 = vsub.s32 1, %v4735
        %v4737 = vrot.slane %v4629, %v4736
        %v4738 = vlaneseq
        %v4739 = vshrl.u32 %v4738, 7
        %v4740 = vsub.s32 2, %v4739
        %v4741 = vrot.slane %v4629, %v4740
        %v4742 = vlaneseq
        %v4743 = vshrl.u32 %v4742, 7
        %v4744 = vsub.s32 3, %v4743
        %v4745 = vrot.slane %v4629, %v4744
        %v4746 = vlaneseq
        %v4747 = vshrl.u32 %v4746, 7
        %v4748 = vsub.s32 4, %v4747
        %v4749 = vrot.slane %v4629, %v4748
        %v4750 = vlaneseq
        %v4751 = vshrl.u32 %v4750, 7
        %v4752 = vsub.s32 5, %v4751
        %v4753 = vrot.slane %v4629, %v4752
        %v4754 = vlaneseq
        %v4755 = vshrl.u32 %v4754, 7
        %v4756 = vsub.s32 6, %v4755
        %v4757 = vrot.slane %v4629, %v4756
        %v4758 = vlaneseq
        %v4759 = vshrl.u32 %v4758, 7
        %v4760 = vsub.s32 7, %v4759
        %v4761 = vrot.slane %v4629, %v4760
        %v4794 = vmul.f32 %v1739, %v4637
        %v4795 = vmul.f32 %v1738, %v4641
        %v4796 = vmul.f32 %v1737, %v4645
        %v4797 = vmul.f32 %v1736, %v4649
        %v4798 = vmul.f32 %v1735, %v4653
        %v4799 = vmul.f32 %v1734, %v4657
        %v4800 = vmul.f32 %v1733, %v4661
        %v4801 = vmul.f32 %v1732, %v4665
        %v4802 = vmul.f32 %v1731, %v4669
        %v4803 = vmul.f32 %v1730, %v4673
        %v4804 = vmul.f32 %v1729, %v4677
        %v4805 = vmul.f32 %v1728, %v4681
        %v4806 = vmul.f32 %v1727, %v4685
        %v4807 = vmul.f32 %v1726, %v4689
        %v4808 = vmul.f32 %v1725, %v4693
        %v4809 = vmul.f32 %v1724, %v4697
        %v4810 = vmul.f32 %v1723, %v4701
        %v4811 = vmul.f32 %v1722, %v4705
        %v4812 = vmul.f32 %v1721, %v4709
        %v4813 = vmul.f32 %v1720, %v4713
        %v4814 = vmul.f32 %v1719, %v4717
        %v4815 = vmul.f32 %v1718, %v4721
        %v4816 = vmul.f32 %v1717, %v4725
        %v4817 = vmul.f32 %v1716, %v4729
        %v4818 = vmul.f32 %v1715, %v4733
        %v4819 = vmul.f32 %v1714, %v4737
        %v4820 = vmul.f32 %v1713, %v4741
        %v4821 = vmul.f32 %v1712, %v4745
        %v4822 = vmul.f32 %v1711, %v4749
        %v4823 = vmul.f32 %v1710, %v4753
        %v4824 = vmul.f32 %v1709, %v4757
        %v4825 = vmul.f32 %v1708, %v4761
        %4826 = vst [vmem:[#allocation3 + $0x900] sm:$0xff] %v4794
        %4827 = vst [vmem:[#allocation3 + $0x908] sm:$0xff] %v4795
        %4828 = vst [vmem:[#allocation3 + $0x910] sm:$0xff] %v4796
        %4829 = vst [vmem:[#allocation3 + $0x918] sm:$0xff] %v4797
        %4830 = vst [vmem:[#allocation3 + $0x920] sm:$0xff] %v4798
        %4831 = vst [vmem:[#allocation3 + $0x928] sm:$0xff] %v4799
        %4832 = vst [vmem:[#allocation3 + $0x930] sm:$0xff] %v4800
        %4833 = vst [vmem:[#allocation3 + $0x938] sm:$0xff] %v4801
        %4834 = vst [vmem:[#allocation3 + $0x940] sm:$0xff] %v4802
        %4835 = vst [vmem:[#allocation3 + $0x948] sm:$0xff] %v4803
        %4836 = vst [vmem:[#allocation3 + $0x950] sm:$0xff] %v4804
        %4837 = vst [vmem:[#allocation3 + $0x958] sm:$0xff] %v4805
        %4838 = vst [vmem:[#allocation3 + $0x960] sm:$0xff] %v4806
        %4839 = vst [vmem:[#allocation3 + $0x968] sm:$0xff] %v4807
        %4840 = vst [vmem:[#allocation3 + $0x970] sm:$0xff] %v4808
        %4841 = vst [vmem:[#allocation3 + $0x978] sm:$0xff] %v4809
        %4842 = vst [vmem:[#allocation3 + $0x980] sm:$0xff] %v4810
        %4843 = vst [vmem:[#allocation3 + $0x988] sm:$0xff] %v4811
        %4844 = vst [vmem:[#allocation3 + $0x990] sm:$0xff] %v4812
        %4845 = vst [vmem:[#allocation3 + $0x998] sm:$0xff] %v4813
        %4846 = vst [vmem:[#allocation3 + $0x9a0] sm:$0xff] %v4814
        %4847 = vst [vmem:[#allocation3 + $0x9a8] sm:$0xff] %v4815
        %4848 = vst [vmem:[#allocation3 + $0x9b0] sm:$0xff] %v4816
        %4849 = vst [vmem:[#allocation3 + $0x9b8] sm:$0xff] %v4817
        %4850 = vst [vmem:[#allocation3 + $0x9c0] sm:$0xff] %v4818
        %4851 = vst [vmem:[#allocation3 + $0x9c8] sm:$0xff] %v4819
        %4852 = vst [vmem:[#allocation3 + $0x9d0] sm:$0xff] %v4820
        %4853 = vst [vmem:[#allocation3 + $0x9d8] sm:$0xff] %v4821
        %4854 = vst [vmem:[#allocation3 + $0x9e0] sm:$0xff] %v4822
        %4855 = vst [vmem:[#allocation3 + $0x9e8] sm:$0xff] %v4823
        %4856 = vst [vmem:[#allocation3 + $0x9f0] sm:$0xff] %v4824
        %4857 = vst [vmem:[#allocation3 + $0x9f8] sm:$0xff] %v4825
        %s4858 = scalar_lea.vmem [#allocation6], 258
        %v4859 = vld [vmem:[%s4858] ss:$8 sm:$0xf]
        %v4860 = vld [vmem:[%s4858] ss:$8 sm:$0xf0]
        %v4861 = vor.u32 %v4859, %v4860
        %s4862 = scalar_lea.vmem [#allocation6], 322
        %v4863 = vld [vmem:[%s4862] ss:$8 sm:$0xf]
        %v4864 = vld [vmem:[%s4862] ss:$8 sm:$0xf0]
        %v4865 = vor.u32 %v4863, %v4864
        %s4866 = scalar_lea.vmem [#allocation6], 386
        %v4867 = vld [vmem:[%s4866] ss:$8 sm:$0xf]
        %v4868 = vld [vmem:[%s4866] ss:$8 sm:$0xf0]
        %v4869 = vor.u32 %v4867, %v4868
        %s4870 = scalar_lea.vmem [#allocation6], 450
        %v4871 = vld [vmem:[%s4870] ss:$8 sm:$0xf]
        %v4872 = vld [vmem:[%s4870] ss:$8 sm:$0xf0]
        %v4873 = vor.u32 %v4871, %v4872
        %v4878 = vlaneseq
        %v4879 = vshrl.u32 %v4878, 7
        %v4880 = vsub.s32 0, %v4879
        %v4881 = vrot.slane %v4861, %v4880
        %v4882 = vlaneseq
        %v4883 = vshrl.u32 %v4882, 7
        %v4884 = vsub.s32 1, %v4883
        %v4885 = vrot.slane %v4861, %v4884
        %v4886 = vlaneseq
        %v4887 = vshrl.u32 %v4886, 7
        %v4888 = vsub.s32 2, %v4887
        %v4889 = vrot.slane %v4861, %v4888
        %v4890 = vlaneseq
        %v4891 = vshrl.u32 %v4890, 7
        %v4892 = vsub.s32 3, %v4891
        %v4893 = vrot.slane %v4861, %v4892
        %v4894 = vlaneseq
        %v4895 = vshrl.u32 %v4894, 7
        %v4896 = vsub.s32 4, %v4895
        %v4897 = vrot.slane %v4861, %v4896
        %v4898 = vlaneseq
        %v4899 = vshrl.u32 %v4898, 7
        %v4900 = vsub.s32 5, %v4899
        %v4901 = vrot.slane %v4861, %v4900
        %v4902 = vlaneseq
        %v4903 = vshrl.u32 %v4902, 7
        %v4904 = vsub.s32 6, %v4903
        %v4905 = vrot.slane %v4861, %v4904
        %v4906 = vlaneseq
        %v4907 = vshrl.u32 %v4906, 7
        %v4908 = vsub.s32 7, %v4907
        %v4909 = vrot.slane %v4861, %v4908
        %v4910 = vlaneseq
        %v4911 = vshrl.u32 %v4910, 7
        %v4912 = vsub.s32 0, %v4911
        %v4913 = vrot.slane %v4865, %v4912
        %v4914 = vlaneseq
        %v4915 = vshrl.u32 %v4914, 7
        %v4916 = vsub.s32 1, %v4915
        %v4917 = vrot.slane %v4865, %v4916
        %v4918 = vlaneseq
        %v4919 = vshrl.u32 %v4918, 7
        %v4920 = vsub.s32 2, %v4919
        %v4921 = vrot.slane %v4865, %v4920
        %v4922 = vlaneseq
        %v4923 = vshrl.u32 %v4922, 7
        %v4924 = vsub.s32 3, %v4923
        %v4925 = vrot.slane %v4865, %v4924
        %v4926 = vlaneseq
        %v4927 = vshrl.u32 %v4926, 7
        %v4928 = vsub.s32 4, %v4927
        %v4929 = vrot.slane %v4865, %v4928
        %v4930 = vlaneseq
        %v4931 = vshrl.u32 %v4930, 7
        %v4932 = vsub.s32 5, %v4931
        %v4933 = vrot.slane %v4865, %v4932
        %v4934 = vlaneseq
        %v4935 = vshrl.u32 %v4934, 7
        %v4936 = vsub.s32 6, %v4935
        %v4937 = vrot.slane %v4865, %v4936
        %v4938 = vlaneseq
        %v4939 = vshrl.u32 %v4938, 7
        %v4940 = vsub.s32 7, %v4939
        %v4941 = vrot.slane %v4865, %v4940
        %v4942 = vlaneseq
        %v4943 = vshrl.u32 %v4942, 7
        %v4944 = vsub.s32 0, %v4943
        %v4945 = vrot.slane %v4869, %v4944
        %v4946 = vlaneseq
        %v4947 = vshrl.u32 %v4946, 7
        %v4948 = vsub.s32 1, %v4947
        %v4949 = vrot.slane %v4869, %v4948
        %v4950 = vlaneseq
        %v4951 = vshrl.u32 %v4950, 7
        %v4952 = vsub.s32 2, %v4951
        %v4953 = vrot.slane %v4869, %v4952
        %v4954 = vlaneseq
        %v4955 = vshrl.u32 %v4954, 7
        %v4956 = vsub.s32 3, %v4955
        %v4957 = vrot.slane %v4869, %v4956
        %v4958 = vlaneseq
        %v4959 = vshrl.u32 %v4958, 7
        %v4960 = vsub.s32 4, %v4959
        %v4961 = vrot.slane %v4869, %v4960
        %v4962 = vlaneseq
        %v4963 = vshrl.u32 %v4962, 7
        %v4964 = vsub.s32 5, %v4963
        %v4965 = vrot.slane %v4869, %v4964
        %v4966 = vlaneseq
        %v4967 = vshrl.u32 %v4966, 7
        %v4968 = vsub.s32 6, %v4967
        %v4969 = vrot.slane %v4869, %v4968
        %v4970 = vlaneseq
        %v4971 = vshrl.u32 %v4970, 7
        %v4972 = vsub.s32 7, %v4971
        %v4973 = vrot.slane %v4869, %v4972
        %v4974 = vlaneseq
        %v4975 = vshrl.u32 %v4974, 7
        %v4976 = vsub.s32 0, %v4975
        %v4977 = vrot.slane %v4873, %v4976
        %v4978 = vlaneseq
        %v4979 = vshrl.u32 %v4978, 7
        %v4980 = vsub.s32 1, %v4979
        %v4981 = vrot.slane %v4873, %v4980
        %v4982 = vlaneseq
        %v4983 = vshrl.u32 %v4982, 7
        %v4984 = vsub.s32 2, %v4983
        %v4985 = vrot.slane %v4873, %v4984
        %v4986 = vlaneseq
        %v4987 = vshrl.u32 %v4986, 7
        %v4988 = vsub.s32 3, %v4987
        %v4989 = vrot.slane %v4873, %v4988
        %v4990 = vlaneseq
        %v4991 = vshrl.u32 %v4990, 7
        %v4992 = vsub.s32 4, %v4991
        %v4993 = vrot.slane %v4873, %v4992
        %v4994 = vlaneseq
        %v4995 = vshrl.u32 %v4994, 7
        %v4996 = vsub.s32 5, %v4995
        %v4997 = vrot.slane %v4873, %v4996
        %v4998 = vlaneseq
        %v4999 = vshrl.u32 %v4998, 7
        %v5000 = vsub.s32 6, %v4999
        %v5001 = vrot.slane %v4873, %v5000
        %v5002 = vlaneseq
        %v5003 = vshrl.u32 %v5002, 7
        %v5004 = vsub.s32 7, %v5003
        %v5005 = vrot.slane %v4873, %v5004
        %v5038 = vmul.f32 %v2079, %v4881
        %v5039 = vmul.f32 %v2078, %v4885
        %v5040 = vmul.f32 %v2077, %v4889
        %v5041 = vmul.f32 %v2076, %v4893
        %v5042 = vmul.f32 %v2075, %v4897
        %v5043 = vmul.f32 %v2074, %v4901
        %v5044 = vmul.f32 %v2073, %v4905
        %v5045 = vmul.f32 %v2072, %v4909
        %v5046 = vmul.f32 %v2071, %v4913
        %v5047 = vmul.f32 %v2070, %v4917
        %v5048 = vmul.f32 %v2069, %v4921
        %v5049 = vmul.f32 %v2068, %v4925
        %v5050 = vmul.f32 %v2067, %v4929
        %v5051 = vmul.f32 %v2066, %v4933
        %v5052 = vmul.f32 %v2065, %v4937
        %v5053 = vmul.f32 %v2064, %v4941
        %v5054 = vmul.f32 %v2063, %v4945
        %v5055 = vmul.f32 %v2062, %v4949
        %v5056 = vmul.f32 %v2061, %v4953
        %v5057 = vmul.f32 %v2060, %v4957
        %v5058 = vmul.f32 %v2059, %v4961
        %v5059 = vmul.f32 %v2058, %v4965
        %v5060 = vmul.f32 %v2057, %v4969
        %v5061 = vmul.f32 %v2056, %v4973
        %v5062 = vmul.f32 %v2055, %v4977
        %v5063 = vmul.f32 %v2054, %v4981
        %v5064 = vmul.f32 %v2053, %v4985
        %v5065 = vmul.f32 %v2052, %v4989
        %v5066 = vmul.f32 %v2051, %v4993
        %v5067 = vmul.f32 %v2050, %v4997
        %v5068 = vmul.f32 %v2049, %v5001
        %v5069 = vmul.f32 %v2048, %v5005
        %5070 = vst [vmem:[#allocation3 + $0xa00] sm:$0xff] %v5038
        %5071 = vst [vmem:[#allocation3 + $0xa08] sm:$0xff] %v5039
        %5072 = vst [vmem:[#allocation3 + $0xa10] sm:$0xff] %v5040
        %5073 = vst [vmem:[#allocation3 + $0xa18] sm:$0xff] %v5041
        %5074 = vst [vmem:[#allocation3 + $0xa20] sm:$0xff] %v5042
        %5075 = vst [vmem:[#allocation3 + $0xa28] sm:$0xff] %v5043
        %5076 = vst [vmem:[#allocation3 + $0xa30] sm:$0xff] %v5044
        %5077 = vst [vmem:[#allocation3 + $0xa38] sm:$0xff] %v5045
        %5078 = vst [vmem:[#allocation3 + $0xa40] sm:$0xff] %v5046
        %5079 = vst [vmem:[#allocation3 + $0xa48] sm:$0xff] %v5047
        %5080 = vst [vmem:[#allocation3 + $0xa50] sm:$0xff] %v5048
        %5081 = vst [vmem:[#allocation3 + $0xa58] sm:$0xff] %v5049
        %5082 = vst [vmem:[#allocation3 + $0xa60] sm:$0xff] %v5050
        %5083 = vst [vmem:[#allocation3 + $0xa68] sm:$0xff] %v5051
        %5084 = vst [vmem:[#allocation3 + $0xa70] sm:$0xff] %v5052
        %5085 = vst [vmem:[#allocation3 + $0xa78] sm:$0xff] %v5053
        %5086 = vst [vmem:[#allocation3 + $0xa80] sm:$0xff] %v5054
        %5087 = vst [vmem:[#allocation3 + $0xa88] sm:$0xff] %v5055
        %5088 = vst [vmem:[#allocation3 + $0xa90] sm:$0xff] %v5056
        %5089 = vst [vmem:[#allocation3 + $0xa98] sm:$0xff] %v5057
        %5090 = vst [vmem:[#allocation3 + $0xaa0] sm:$0xff] %v5058
        %5091 = vst [vmem:[#allocation3 + $0xaa8] sm:$0xff] %v5059
        %5092 = vst [vmem:[#allocation3 + $0xab0] sm:$0xff] %v5060
        %5093 = vst [vmem:[#allocation3 + $0xab8] sm:$0xff] %v5061
        %5094 = vst [vmem:[#allocation3 + $0xac0] sm:$0xff] %v5062
        %5095 = vst [vmem:[#allocation3 + $0xac8] sm:$0xff] %v5063
        %5096 = vst [vmem:[#allocation3 + $0xad0] sm:$0xff] %v5064
        %5097 = vst [vmem:[#allocation3 + $0xad8] sm:$0xff] %v5065
        %5098 = vst [vmem:[#allocation3 + $0xae0] sm:$0xff] %v5066
        %5099 = vst [vmem:[#allocation3 + $0xae8] sm:$0xff] %v5067
        %5100 = vst [vmem:[#allocation3 + $0xaf0] sm:$0xff] %v5068
        %5101 = vst [vmem:[#allocation3 + $0xaf8] sm:$0xff] %v5069
        %s5102 = scalar_lea.vmem [#allocation6], 259
        %v5103 = vld [vmem:[%s5102] ss:$8 sm:$0xf]
        %v5104 = vld [vmem:[%s5102] ss:$8 sm:$0xf0]
        %v5105 = vor.u32 %v5103, %v5104
        %s5106 = scalar_lea.vmem [#allocation6], 323
        %v5107 = vld [vmem:[%s5106] ss:$8 sm:$0xf]
        %v5108 = vld [vmem:[%s5106] ss:$8 sm:$0xf0]
        %v5109 = vor.u32 %v5107, %v5108
        %s5110 = scalar_lea.vmem [#allocation6], 387
        %v5111 = vld [vmem:[%s5110] ss:$8 sm:$0xf]
        %v5112 = vld [vmem:[%s5110] ss:$8 sm:$0xf0]
        %v5113 = vor.u32 %v5111, %v5112
        %s5114 = scalar_lea.vmem [#allocation6], 451
        %v5115 = vld [vmem:[%s5114] ss:$8 sm:$0xf]
        %v5116 = vld [vmem:[%s5114] ss:$8 sm:$0xf0]
        %v5117 = vor.u32 %v5115, %v5116
        %v5122 = vlaneseq
        %v5123 = vshrl.u32 %v5122, 7
        %v5124 = vsub.s32 0, %v5123
        %v5125 = vrot.slane %v5105, %v5124
        %v5126 = vlaneseq
        %v5127 = vshrl.u32 %v5126, 7
        %v5128 = vsub.s32 1, %v5127
        %v5129 = vrot.slane %v5105, %v5128
        %v5130 = vlaneseq
        %v5131 = vshrl.u32 %v5130, 7
        %v5132 = vsub.s32 2, %v5131
        %v5133 = vrot.slane %v5105, %v5132
        %v5134 = vlaneseq
        %v5135 = vshrl.u32 %v5134, 7
        %v5136 = vsub.s32 3, %v5135
        %v5137 = vrot.slane %v5105, %v5136
        %v5138 = vlaneseq
        %v5139 = vshrl.u32 %v5138, 7
        %v5140 = vsub.s32 4, %v5139
        %v5141 = vrot.slane %v5105, %v5140
        %v5142 = vlaneseq
        %v5143 = vshrl.u32 %v5142, 7
        %v5144 = vsub.s32 5, %v5143
        %v5145 = vrot.slane %v5105, %v5144
        %v5146 = vlaneseq
        %v5147 = vshrl.u32 %v5146, 7
        %v5148 = vsub.s32 6, %v5147
        %v5149 = vrot.slane %v5105, %v5148
        %v5150 = vlaneseq
        %v5151 = vshrl.u32 %v5150, 7
        %v5152 = vsub.s32 7, %v5151
        %v5153 = vrot.slane %v5105, %v5152
        %v5154 = vlaneseq
        %v5155 = vshrl.u32 %v5154, 7
        %v5156 = vsub.s32 0, %v5155
        %v5157 = vrot.slane %v5109, %v5156
        %v5158 = vlaneseq
        %v5159 = vshrl.u32 %v5158, 7
        %v5160 = vsub.s32 1, %v5159
        %v5161 = vrot.slane %v5109, %v5160
        %v5162 = vlaneseq
        %v5163 = vshrl.u32 %v5162, 7
        %v5164 = vsub.s32 2, %v5163
        %v5165 = vrot.slane %v5109, %v5164
        %v5166 = vlaneseq
        %v5167 = vshrl.u32 %v5166, 7
        %v5168 = vsub.s32 3, %v5167
        %v5169 = vrot.slane %v5109, %v5168
        %v5170 = vlaneseq
        %v5171 = vshrl.u32 %v5170, 7
        %v5172 = vsub.s32 4, %v5171
        %v5173 = vrot.slane %v5109, %v5172
        %v5174 = vlaneseq
        %v5175 = vshrl.u32 %v5174, 7
        %v5176 = vsub.s32 5, %v5175
        %v5177 = vrot.slane %v5109, %v5176
        %v5178 = vlaneseq
        %v5179 = vshrl.u32 %v5178, 7
        %v5180 = vsub.s32 6, %v5179
        %v5181 = vrot.slane %v5109, %v5180
        %v5182 = vlaneseq
        %v5183 = vshrl.u32 %v5182, 7
        %v5184 = vsub.s32 7, %v5183
        %v5185 = vrot.slane %v5109, %v5184
        %v5186 = vlaneseq
        %v5187 = vshrl.u32 %v5186, 7
        %v5188 = vsub.s32 0, %v5187
        %v5189 = vrot.slane %v5113, %v5188
        %v5190 = vlaneseq
        %v5191 = vshrl.u32 %v5190, 7
        %v5192 = vsub.s32 1, %v5191
        %v5193 = vrot.slane %v5113, %v5192
        %v5194 = vlaneseq
        %v5195 = vshrl.u32 %v5194, 7
        %v5196 = vsub.s32 2, %v5195
        %v5197 = vrot.slane %v5113, %v5196
        %v5198 = vlaneseq
        %v5199 = vshrl.u32 %v5198, 7
        %v5200 = vsub.s32 3, %v5199
        %v5201 = vrot.slane %v5113, %v5200
        %v5202 = vlaneseq
        %v5203 = vshrl.u32 %v5202, 7
        %v5204 = vsub.s32 4, %v5203
        %v5205 = vrot.slane %v5113, %v5204
        %v5206 = vlaneseq
        %v5207 = vshrl.u32 %v5206, 7
        %v5208 = vsub.s32 5, %v5207
        %v5209 = vrot.slane %v5113, %v5208
        %v5210 = vlaneseq
        %v5211 = vshrl.u32 %v5210, 7
        %v5212 = vsub.s32 6, %v5211
        %v5213 = vrot.slane %v5113, %v5212
        %v5214 = vlaneseq
        %v5215 = vshrl.u32 %v5214, 7
        %v5216 = vsub.s32 7, %v5215
        %v5217 = vrot.slane %v5113, %v5216
        %v5218 = vlaneseq
        %v5219 = vshrl.u32 %v5218, 7
        %v5220 = vsub.s32 0, %v5219
        %v5221 = vrot.slane %v5117, %v5220
        %v5222 = vlaneseq
        %v5223 = vshrl.u32 %v5222, 7
        %v5224 = vsub.s32 1, %v5223
        %v5225 = vrot.slane %v5117, %v5224
        %v5226 = vlaneseq
        %v5227 = vshrl.u32 %v5226, 7
        %v5228 = vsub.s32 2, %v5227
        %v5229 = vrot.slane %v5117, %v5228
        %v5230 = vlaneseq
        %v5231 = vshrl.u32 %v5230, 7
        %v5232 = vsub.s32 3, %v5231
        %v5233 = vrot.slane %v5117, %v5232
        %v5234 = vlaneseq
        %v5235 = vshrl.u32 %v5234, 7
        %v5236 = vsub.s32 4, %v5235
        %v5237 = vrot.slane %v5117, %v5236
        %v5238 = vlaneseq
        %v5239 = vshrl.u32 %v5238, 7
        %v5240 = vsub.s32 5, %v5239
        %v5241 = vrot.slane %v5117, %v5240
        %v5242 = vlaneseq
        %v5243 = vshrl.u32 %v5242, 7
        %v5244 = vsub.s32 6, %v5243
        %v5245 = vrot.slane %v5117, %v5244
        %v5246 = vlaneseq
        %v5247 = vshrl.u32 %v5246, 7
        %v5248 = vsub.s32 7, %v5247
        %v5249 = vrot.slane %v5117, %v5248
        %v5282 = vmul.f32 %v2420, %v5125
        %v5283 = vmul.f32 %v2419, %v5129
        %v5284 = vmul.f32 %v2418, %v5133
        %v5285 = vmul.f32 %v2417, %v5137
        %v5286 = vmul.f32 %v2416, %v5141
        %v5287 = vmul.f32 %v2415, %v5145
        %v5288 = vmul.f32 %v2414, %v5149
        %v5289 = vmul.f32 %v2413, %v5153
        %v5290 = vmul.f32 %v2412, %v5157
        %v5291 = vmul.f32 %v2411, %v5161
        %v5292 = vmul.f32 %v2410, %v5165
        %v5293 = vmul.f32 %v2409, %v5169
        %v5294 = vmul.f32 %v2408, %v5173
        %v5295 = vmul.f32 %v2407, %v5177
        %v5296 = vmul.f32 %v2406, %v5181
        %v5297 = vmul.f32 %v2405, %v5185
        %v5298 = vmul.f32 %v2404, %v5189
        %v5299 = vmul.f32 %v2403, %v5193
        %v5300 = vmul.f32 %v2402, %v5197
        %v5301 = vmul.f32 %v2401, %v5201
        %v5302 = vmul.f32 %v2400, %v5205
        %v5303 = vmul.f32 %v2399, %v5209
        %v5304 = vmul.f32 %v2398, %v5213
        %v5305 = vmul.f32 %v2397, %v5217
        %v5306 = vmul.f32 %v2396, %v5221
        %v5307 = vmul.f32 %v2395, %v5225
        %v5308 = vmul.f32 %v2394, %v5229
        %v5309 = vmul.f32 %v2393, %v5233
        %v5310 = vmul.f32 %v2392, %v5237
        %v5311 = vmul.f32 %v2391, %v5241
        %v5312 = vmul.f32 %v2390, %v5245
        %v5313 = vmul.f32 %v2389, %v5249
        %5314 = vst [vmem:[#allocation3 + $0xb00] sm:$0xff] %v5282
        %5315 = vst [vmem:[#allocation3 + $0xb08] sm:$0xff] %v5283
        %5316 = vst [vmem:[#allocation3 + $0xb10] sm:$0xff] %v5284
        %5317 = vst [vmem:[#allocation3 + $0xb18] sm:$0xff] %v5285
        %5318 = vst [vmem:[#allocation3 + $0xb20] sm:$0xff] %v5286
        %5319 = vst [vmem:[#allocation3 + $0xb28] sm:$0xff] %v5287
        %5320 = vst [vmem:[#allocation3 + $0xb30] sm:$0xff] %v5288
        %5321 = vst [vmem:[#allocation3 + $0xb38] sm:$0xff] %v5289
        %5322 = vst [vmem:[#allocation3 + $0xb40] sm:$0xff] %v5290
        %5323 = vst [vmem:[#allocation3 + $0xb48] sm:$0xff] %v5291
        %5324 = vst [vmem:[#allocation3 + $0xb50] sm:$0xff] %v5292
        %5325 = vst [vmem:[#allocation3 + $0xb58] sm:$0xff] %v5293
        %5326 = vst [vmem:[#allocation3 + $0xb60] sm:$0xff] %v5294
        %5327 = vst [vmem:[#allocation3 + $0xb68] sm:$0xff] %v5295
        %5328 = vst [vmem:[#allocation3 + $0xb70] sm:$0xff] %v5296
        %5329 = vst [vmem:[#allocation3 + $0xb78] sm:$0xff] %v5297
        %5330 = vst [vmem:[#allocation3 + $0xb80] sm:$0xff] %v5298
        %5331 = vst [vmem:[#allocation3 + $0xb88] sm:$0xff] %v5299
        %5332 = vst [vmem:[#allocation3 + $0xb90] sm:$0xff] %v5300
        %5333 = vst [vmem:[#allocation3 + $0xb98] sm:$0xff] %v5301
        %5334 = vst [vmem:[#allocation3 + $0xba0] sm:$0xff] %v5302
        %5335 = vst [vmem:[#allocation3 + $0xba8] sm:$0xff] %v5303
        %5336 = vst [vmem:[#allocation3 + $0xbb0] sm:$0xff] %v5304
        %5337 = vst [vmem:[#allocation3 + $0xbb8] sm:$0xff] %v5305
        %5338 = vst [vmem:[#allocation3 + $0xbc0] sm:$0xff] %v5306
        %5339 = vst [vmem:[#allocation3 + $0xbc8] sm:$0xff] %v5307
        %5340 = vst [vmem:[#allocation3 + $0xbd0] sm:$0xff] %v5308
        %5341 = vst [vmem:[#allocation3 + $0xbd8] sm:$0xff] %v5309
        %5342 = vst [vmem:[#allocation3 + $0xbe0] sm:$0xff] %v5310
        %5343 = vst [vmem:[#allocation3 + $0xbe8] sm:$0xff] %v5311
        %5344 = vst [vmem:[#allocation3 + $0xbf0] sm:$0xff] %v5312
        %5345 = vst [vmem:[#allocation3 + $0xbf8] sm:$0xff] %v5313
        %s5346 = scalar_lea.vmem [#allocation6], 260
        %v5347 = vld [vmem:[%s5346] ss:$8 sm:$0xf]
        %v5348 = vld [vmem:[%s5346] ss:$8 sm:$0xf0]
        %v5349 = vor.u32 %v5347, %v5348
        %s5350 = scalar_lea.vmem [#allocation6], 324
        %v5351 = vld [vmem:[%s5350] ss:$8 sm:$0xf]
        %v5352 = vld [vmem:[%s5350] ss:$8 sm:$0xf0]
        %v5353 = vor.u32 %v5351, %v5352
        %s5354 = scalar_lea.vmem [#allocation6], 388
        %v5355 = vld [vmem:[%s5354] ss:$8 sm:$0xf]
        %v5356 = vld [vmem:[%s5354] ss:$8 sm:$0xf0]
        %v5357 = vor.u32 %v5355, %v5356
        %s5358 = scalar_lea.vmem [#allocation6], 452
        %v5359 = vld [vmem:[%s5358] ss:$8 sm:$0xf]
        %v5360 = vld [vmem:[%s5358] ss:$8 sm:$0xf0]
        %v5361 = vor.u32 %v5359, %v5360
        %v5366 = vlaneseq
        %v5367 = vshrl.u32 %v5366, 7
        %v5368 = vsub.s32 0, %v5367
        %v5369 = vrot.slane %v5349, %v5368
        %v5370 = vlaneseq
        %v5371 = vshrl.u32 %v5370, 7
        %v5372 = vsub.s32 1, %v5371
        %v5373 = vrot.slane %v5349, %v5372
        %v5374 = vlaneseq
        %v5375 = vshrl.u32 %v5374, 7
        %v5376 = vsub.s32 2, %v5375
        %v5377 = vrot.slane %v5349, %v5376
        %v5378 = vlaneseq
        %v5379 = vshrl.u32 %v5378, 7
        %v5380 = vsub.s32 3, %v5379
        %v5381 = vrot.slane %v5349, %v5380
        %v5382 = vlaneseq
        %v5383 = vshrl.u32 %v5382, 7
        %v5384 = vsub.s32 4, %v5383
        %v5385 = vrot.slane %v5349, %v5384
        %v5386 = vlaneseq
        %v5387 = vshrl.u32 %v5386, 7
        %v5388 = vsub.s32 5, %v5387
        %v5389 = vrot.slane %v5349, %v5388
        %v5390 = vlaneseq
        %v5391 = vshrl.u32 %v5390, 7
        %v5392 = vsub.s32 6, %v5391
        %v5393 = vrot.slane %v5349, %v5392
        %v5394 = vlaneseq
        %v5395 = vshrl.u32 %v5394, 7
        %v5396 = vsub.s32 7, %v5395
        %v5397 = vrot.slane %v5349, %v5396
        %v5398 = vlaneseq
        %v5399 = vshrl.u32 %v5398, 7
        %v5400 = vsub.s32 0, %v5399
        %v5401 = vrot.slane %v5353, %v5400
        %v5402 = vlaneseq
        %v5403 = vshrl.u32 %v5402, 7
        %v5404 = vsub.s32 1, %v5403
        %v5405 = vrot.slane %v5353, %v5404
        %v5406 = vlaneseq
        %v5407 = vshrl.u32 %v5406, 7
        %v5408 = vsub.s32 2, %v5407
        %v5409 = vrot.slane %v5353, %v5408
        %v5410 = vlaneseq
        %v5411 = vshrl.u32 %v5410, 7
        %v5412 = vsub.s32 3, %v5411
        %v5413 = vrot.slane %v5353, %v5412
        %v5414 = vlaneseq
        %v5415 = vshrl.u32 %v5414, 7
        %v5416 = vsub.s32 4, %v5415
        %v5417 = vrot.slane %v5353, %v5416
        %v5418 = vlaneseq
        %v5419 = vshrl.u32 %v5418, 7
        %v5420 = vsub.s32 5, %v5419
        %v5421 = vrot.slane %v5353, %v5420
        %v5422 = vlaneseq
        %v5423 = vshrl.u32 %v5422, 7
        %v5424 = vsub.s32 6, %v5423
        %v5425 = vrot.slane %v5353, %v5424
        %v5426 = vlaneseq
        %v5427 = vshrl.u32 %v5426, 7
        %v5428 = vsub.s32 7, %v5427
        %v5429 = vrot.slane %v5353, %v5428
        %v5430 = vlaneseq
        %v5431 = vshrl.u32 %v5430, 7
        %v5432 = vsub.s32 0, %v5431
        %v5433 = vrot.slane %v5357, %v5432
        %v5434 = vlaneseq
        %v5435 = vshrl.u32 %v5434, 7
        %v5436 = vsub.s32 1, %v5435
        %v5437 = vrot.slane %v5357, %v5436
        %v5438 = vlaneseq
        %v5439 = vshrl.u32 %v5438, 7
        %v5440 = vsub.s32 2, %v5439
        %v5441 = vrot.slane %v5357, %v5440
        %v5442 = vlaneseq
        %v5443 = vshrl.u32 %v5442, 7
        %v5444 = vsub.s32 3, %v5443
        %v5445 = vrot.slane %v5357, %v5444
        %v5446 = vlaneseq
        %v5447 = vshrl.u32 %v5446, 7
        %v5448 = vsub.s32 4, %v5447
        %v5449 = vrot.slane %v5357, %v5448
        %v5450 = vlaneseq
        %v5451 = vshrl.u32 %v5450, 7
        %v5452 = vsub.s32 5, %v5451
        %v5453 = vrot.slane %v5357, %v5452
        %v5454 = vlaneseq
        %v5455 = vshrl.u32 %v5454, 7
        %v5456 = vsub.s32 6, %v5455
        %v5457 = vrot.slane %v5357, %v5456
        %v5458 = vlaneseq
        %v5459 = vshrl.u32 %v5458, 7
        %v5460 = vsub.s32 7, %v5459
        %v5461 = vrot.slane %v5357, %v5460
        %v5462 = vlaneseq
        %v5463 = vshrl.u32 %v5462, 7
        %v5464 = vsub.s32 0, %v5463
        %v5465 = vrot.slane %v5361, %v5464
        %v5466 = vlaneseq
        %v5467 = vshrl.u32 %v5466, 7
        %v5468 = vsub.s32 1, %v5467
        %v5469 = vrot.slane %v5361, %v5468
        %v5470 = vlaneseq
        %v5471 = vshrl.u32 %v5470, 7
        %v5472 = vsub.s32 2, %v5471
        %v5473 = vrot.slane %v5361, %v5472
        %v5474 = vlaneseq
        %v5475 = vshrl.u32 %v5474, 7
        %v5476 = vsub.s32 3, %v5475
        %v5477 = vrot.slane %v5361, %v5476
        %v5478 = vlaneseq
        %v5479 = vshrl.u32 %v5478, 7
        %v5480 = vsub.s32 4, %v5479
        %v5481 = vrot.slane %v5361, %v5480
        %v5482 = vlaneseq
        %v5483 = vshrl.u32 %v5482, 7
        %v5484 = vsub.s32 5, %v5483
        %v5485 = vrot.slane %v5361, %v5484
        %v5486 = vlaneseq
        %v5487 = vshrl.u32 %v5486, 7
        %v5488 = vsub.s32 6, %v5487
        %v5489 = vrot.slane %v5361, %v5488
        %v5490 = vlaneseq
        %v5491 = vshrl.u32 %v5490, 7
        %v5492 = vsub.s32 7, %v5491
        %v5493 = vrot.slane %v5361, %v5492
        %v5526 = vmul.f32 %v2761, %v5369
        %v5527 = vmul.f32 %v2760, %v5373
        %v5528 = vmul.f32 %v2759, %v5377
        %v5529 = vmul.f32 %v2758, %v5381
        %v5530 = vmul.f32 %v2757, %v5385
        %v5531 = vmul.f32 %v2756, %v5389
        %v5532 = vmul.f32 %v2755, %v5393
        %v5533 = vmul.f32 %v2754, %v5397
        %v5534 = vmul.f32 %v2753, %v5401
        %v5535 = vmul.f32 %v2752, %v5405
        %v5536 = vmul.f32 %v2751, %v5409
        %v5537 = vmul.f32 %v2750, %v5413
        %v5538 = vmul.f32 %v2749, %v5417
        %v5539 = vmul.f32 %v2748, %v5421
        %v5540 = vmul.f32 %v2747, %v5425
        %v5541 = vmul.f32 %v2746, %v5429
        %v5542 = vmul.f32 %v2745, %v5433
        %v5543 = vmul.f32 %v2744, %v5437
        %v5544 = vmul.f32 %v2743, %v5441
        %v5545 = vmul.f32 %v2742, %v5445
        %v5546 = vmul.f32 %v2741, %v5449
        %v5547 = vmul.f32 %v2740, %v5453
        %v5548 = vmul.f32 %v2739, %v5457
        %v5549 = vmul.f32 %v2738, %v5461
        %v5550 = vmul.f32 %v2737, %v5465
        %v5551 = vmul.f32 %v2736, %v5469
        %v5552 = vmul.f32 %v2735, %v5473
        %v5553 = vmul.f32 %v2734, %v5477
        %v5554 = vmul.f32 %v2733, %v5481
        %v5555 = vmul.f32 %v2732, %v5485
        %v5556 = vmul.f32 %v2731, %v5489
        %v5557 = vmul.f32 %v2730, %v5493
        %5558 = vst [vmem:[#allocation3 + $0xc00] sm:$0xff] %v5526
        %5559 = vst [vmem:[#allocation3 + $0xc08] sm:$0xff] %v5527
        %5560 = vst [vmem:[#allocation3 + $0xc10] sm:$0xff] %v5528
        %5561 = vst [vmem:[#allocation3 + $0xc18] sm:$0xff] %v5529
        %5562 = vst [vmem:[#allocation3 + $0xc20] sm:$0xff] %v5530
        %5563 = vst [vmem:[#allocation3 + $0xc28] sm:$0xff] %v5531
        %5564 = vst [vmem:[#allocation3 + $0xc30] sm:$0xff] %v5532
        %5565 = vst [vmem:[#allocation3 + $0xc38] sm:$0xff] %v5533
        %5566 = vst [vmem:[#allocation3 + $0xc40] sm:$0xff] %v5534
        %5567 = vst [vmem:[#allocation3 + $0xc48] sm:$0xff] %v5535
        %5568 = vst [vmem:[#allocation3 + $0xc50] sm:$0xff] %v5536
        %5569 = vst [vmem:[#allocation3 + $0xc58] sm:$0xff] %v5537
        %5570 = vst [vmem:[#allocation3 + $0xc60] sm:$0xff] %v5538
        %5571 = vst [vmem:[#allocation3 + $0xc68] sm:$0xff] %v5539
        %5572 = vst [vmem:[#allocation3 + $0xc70] sm:$0xff] %v5540
        %5573 = vst [vmem:[#allocation3 + $0xc78] sm:$0xff] %v5541
        %5574 = vst [vmem:[#allocation3 + $0xc80] sm:$0xff] %v5542
        %5575 = vst [vmem:[#allocation3 + $0xc88] sm:$0xff] %v5543
        %5576 = vst [vmem:[#allocation3 + $0xc90] sm:$0xff] %v5544
        %5577 = vst [vmem:[#allocation3 + $0xc98] sm:$0xff] %v5545
        %5578 = vst [vmem:[#allocation3 + $0xca0] sm:$0xff] %v5546
        %5579 = vst [vmem:[#allocation3 + $0xca8] sm:$0xff] %v5547
        %5580 = vst [vmem:[#allocation3 + $0xcb0] sm:$0xff] %v5548
        %5581 = vst [vmem:[#allocation3 + $0xcb8] sm:$0xff] %v5549
        %5582 = vst [vmem:[#allocation3 + $0xcc0] sm:$0xff] %v5550
        %5583 = vst [vmem:[#allocation3 + $0xcc8] sm:$0xff] %v5551
        %5584 = vst [vmem:[#allocation3 + $0xcd0] sm:$0xff] %v5552
        %5585 = vst [vmem:[#allocation3 + $0xcd8] sm:$0xff] %v5553
        %5586 = vst [vmem:[#allocation3 + $0xce0] sm:$0xff] %v5554
        %5587 = vst [vmem:[#allocation3 + $0xce8] sm:$0xff] %v5555
        %5588 = vst [vmem:[#allocation3 + $0xcf0] sm:$0xff] %v5556
        %5589 = vst [vmem:[#allocation3 + $0xcf8] sm:$0xff] %v5557
        %s5590 = scalar_lea.vmem [#allocation6], 261
        %v5591 = vld [vmem:[%s5590] ss:$8 sm:$0xf]
        %v5592 = vld [vmem:[%s5590] ss:$8 sm:$0xf0]
        %v5593 = vor.u32 %v5591, %v5592
        %s5594 = scalar_lea.vmem [#allocation6], 325
        %v5595 = vld [vmem:[%s5594] ss:$8 sm:$0xf]
        %v5596 = vld [vmem:[%s5594] ss:$8 sm:$0xf0]
        %v5597 = vor.u32 %v5595, %v5596
        %s5598 = scalar_lea.vmem [#allocation6], 389
        %v5599 = vld [vmem:[%s5598] ss:$8 sm:$0xf]
        %v5600 = vld [vmem:[%s5598] ss:$8 sm:$0xf0]
        %v5601 = vor.u32 %v5599, %v5600
        %s5602 = scalar_lea.vmem [#allocation6], 453
        %v5603 = vld [vmem:[%s5602] ss:$8 sm:$0xf]
        %v5604 = vld [vmem:[%s5602] ss:$8 sm:$0xf0]
        %v5605 = vor.u32 %v5603, %v5604
        %v5610 = vlaneseq
        %v5611 = vshrl.u32 %v5610, 7
        %v5612 = vsub.s32 0, %v5611
        %v5613 = vrot.slane %v5593, %v5612
        %v5614 = vlaneseq
        %v5615 = vshrl.u32 %v5614, 7
        %v5616 = vsub.s32 1, %v5615
        %v5617 = vrot.slane %v5593, %v5616
        %v5618 = vlaneseq
        %v5619 = vshrl.u32 %v5618, 7
        %v5620 = vsub.s32 2, %v5619
        %v5621 = vrot.slane %v5593, %v5620
        %v5622 = vlaneseq
        %v5623 = vshrl.u32 %v5622, 7
        %v5624 = vsub.s32 3, %v5623
        %v5625 = vrot.slane %v5593, %v5624
        %v5626 = vlaneseq
        %v5627 = vshrl.u32 %v5626, 7
        %v5628 = vsub.s32 4, %v5627
        %v5629 = vrot.slane %v5593, %v5628
        %v5630 = vlaneseq
        %v5631 = vshrl.u32 %v5630, 7
        %v5632 = vsub.s32 5, %v5631
        %v5633 = vrot.slane %v5593, %v5632
        %v5634 = vlaneseq
        %v5635 = vshrl.u32 %v5634, 7
        %v5636 = vsub.s32 6, %v5635
        %v5637 = vrot.slane %v5593, %v5636
        %v5638 = vlaneseq
        %v5639 = vshrl.u32 %v5638, 7
        %v5640 = vsub.s32 7, %v5639
        %v5641 = vrot.slane %v5593, %v5640
        %v5642 = vlaneseq
        %v5643 = vshrl.u32 %v5642, 7
        %v5644 = vsub.s32 0, %v5643
        %v5645 = vrot.slane %v5597, %v5644
        %v5646 = vlaneseq
        %v5647 = vshrl.u32 %v5646, 7
        %v5648 = vsub.s32 1, %v5647
        %v5649 = vrot.slane %v5597, %v5648
        %v5650 = vlaneseq
        %v5651 = vshrl.u32 %v5650, 7
        %v5652 = vsub.s32 2, %v5651
        %v5653 = vrot.slane %v5597, %v5652
        %v5654 = vlaneseq
        %v5655 = vshrl.u32 %v5654, 7
        %v5656 = vsub.s32 3, %v5655
        %v5657 = vrot.slane %v5597, %v5656
        %v5658 = vlaneseq
        %v5659 = vshrl.u32 %v5658, 7
        %v5660 = vsub.s32 4, %v5659
        %v5661 = vrot.slane %v5597, %v5660
        %v5662 = vlaneseq
        %v5663 = vshrl.u32 %v5662, 7
        %v5664 = vsub.s32 5, %v5663
        %v5665 = vrot.slane %v5597, %v5664
        %v5666 = vlaneseq
        %v5667 = vshrl.u32 %v5666, 7
        %v5668 = vsub.s32 6, %v5667
        %v5669 = vrot.slane %v5597, %v5668
        %v5670 = vlaneseq
        %v5671 = vshrl.u32 %v5670, 7
        %v5672 = vsub.s32 7, %v5671
        %v5673 = vrot.slane %v5597, %v5672
        %v5674 = vlaneseq
        %v5675 = vshrl.u32 %v5674, 7
        %v5676 = vsub.s32 0, %v5675
        %v5677 = vrot.slane %v5601, %v5676
        %v5678 = vlaneseq
        %v5679 = vshrl.u32 %v5678, 7
        %v5680 = vsub.s32 1, %v5679
        %v5681 = vrot.slane %v5601, %v5680
        %v5682 = vlaneseq
        %v5683 = vshrl.u32 %v5682, 7
        %v5684 = vsub.s32 2, %v5683
        %v5685 = vrot.slane %v5601, %v5684
        %v5686 = vlaneseq
        %v5687 = vshrl.u32 %v5686, 7
        %v5688 = vsub.s32 3, %v5687
        %v5689 = vrot.slane %v5601, %v5688
        %v5690 = vlaneseq
        %v5691 = vshrl.u32 %v5690, 7
        %v5692 = vsub.s32 4, %v5691
        %v5693 = vrot.slane %v5601, %v5692
        %v5694 = vlaneseq
        %v5695 = vshrl.u32 %v5694, 7
        %v5696 = vsub.s32 5, %v5695
        %v5697 = vrot.slane %v5601, %v5696
        %v5698 = vlaneseq
        %v5699 = vshrl.u32 %v5698, 7
        %v5700 = vsub.s32 6, %v5699
        %v5701 = vrot.slane %v5601, %v5700
        %v5702 = vlaneseq
        %v5703 = vshrl.u32 %v5702, 7
        %v5704 = vsub.s32 7, %v5703
        %v5705 = vrot.slane %v5601, %v5704
        %v5706 = vlaneseq
        %v5707 = vshrl.u32 %v5706, 7
        %v5708 = vsub.s32 0, %v5707
        %v5709 = vrot.slane %v5605, %v5708
        %v5710 = vlaneseq
        %v5711 = vshrl.u32 %v5710, 7
        %v5712 = vsub.s32 1, %v5711
        %v5713 = vrot.slane %v5605, %v5712
        %v5714 = vlaneseq
        %v5715 = vshrl.u32 %v5714, 7
        %v5716 = vsub.s32 2, %v5715
        %v5717 = vrot.slane %v5605, %v5716
        %v5718 = vlaneseq
        %v5719 = vshrl.u32 %v5718, 7
        %v5720 = vsub.s32 3, %v5719
        %v5721 = vrot.slane %v5605, %v5720
        %v5722 = vlaneseq
        %v5723 = vshrl.u32 %v5722, 7
        %v5724 = vsub.s32 4, %v5723
        %v5725 = vrot.slane %v5605, %v5724
        %v5726 = vlaneseq
        %v5727 = vshrl.u32 %v5726, 7
        %v5728 = vsub.s32 5, %v5727
        %v5729 = vrot.slane %v5605, %v5728
        %v5730 = vlaneseq
        %v5731 = vshrl.u32 %v5730, 7
        %v5732 = vsub.s32 6, %v5731
        %v5733 = vrot.slane %v5605, %v5732
        %v5734 = vlaneseq
        %v5735 = vshrl.u32 %v5734, 7
        %v5736 = vsub.s32 7, %v5735
        %v5737 = vrot.slane %v5605, %v5736
        %v5770 = vmul.f32 %v1609, %v5613
        %v5771 = vmul.f32 %v1610, %v5617
        %v5772 = vmul.f32 %v1611, %v5621
        %v5773 = vmul.f32 %v1612, %v5625
        %v5774 = vmul.f32 %v1613, %v5629
        %v5775 = vmul.f32 %v1614, %v5633
        %v5776 = vmul.f32 %v1615, %v5637
        %v5777 = vmul.f32 %v1616, %v5641
        %v5778 = vmul.f32 %v1617, %v5645
        %v5779 = vmul.f32 %v1618, %v5649
        %v5780 = vmul.f32 %v1619, %v5653
        %v5781 = vmul.f32 %v1620, %v5657
        %v5782 = vmul.f32 %v1621, %v5661
        %v5783 = vmul.f32 %v1622, %v5665
        %v5784 = vmul.f32 %v1623, %v5669
        %v5785 = vmul.f32 %v1624, %v5673
        %v5786 = vmul.f32 %v1625, %v5677
        %v5787 = vmul.f32 %v1626, %v5681
        %v5788 = vmul.f32 %v1627, %v5685
        %v5789 = vmul.f32 %v1628, %v5689
        %v5790 = vmul.f32 %v1629, %v5693
        %v5791 = vmul.f32 %v1630, %v5697
        %v5792 = vmul.f32 %v1631, %v5701
        %v5793 = vmul.f32 %v1632, %v5705
        %v5794 = vmul.f32 %v1633, %v5709
        %v5795 = vmul.f32 %v1634, %v5713
        %v5796 = vmul.f32 %v1635, %v5717
        %v5797 = vmul.f32 %v1636, %v5721
        %v5798 = vmul.f32 %v1637, %v5725
        %v5799 = vmul.f32 %v1638, %v5729
        %v5800 = vmul.f32 %v1639, %v5733
        %v5801 = vmul.f32 %v1640, %v5737
        %5802 = vst [vmem:[#allocation3 + $0xd00] sm:$0xff] %v5770
        %5803 = vst [vmem:[#allocation3 + $0xd08] sm:$0xff] %v5771
        %5804 = vst [vmem:[#allocation3 + $0xd10] sm:$0xff] %v5772
        %5805 = vst [vmem:[#allocation3 + $0xd18] sm:$0xff] %v5773
        %5806 = vst [vmem:[#allocation3 + $0xd20] sm:$0xff] %v5774
        %5807 = vst [vmem:[#allocation3 + $0xd28] sm:$0xff] %v5775
        %5808 = vst [vmem:[#allocation3 + $0xd30] sm:$0xff] %v5776
        %5809 = vst [vmem:[#allocation3 + $0xd38] sm:$0xff] %v5777
        %5810 = vst [vmem:[#allocation3 + $0xd40] sm:$0xff] %v5778
        %5811 = vst [vmem:[#allocation3 + $0xd48] sm:$0xff] %v5779
        %5812 = vst [vmem:[#allocation3 + $0xd50] sm:$0xff] %v5780
        %5813 = vst [vmem:[#allocation3 + $0xd58] sm:$0xff] %v5781
        %5814 = vst [vmem:[#allocation3 + $0xd60] sm:$0xff] %v5782
        %5815 = vst [vmem:[#allocation3 + $0xd68] sm:$0xff] %v5783
        %5816 = vst [vmem:[#allocation3 + $0xd70] sm:$0xff] %v5784
        %5817 = vst [vmem:[#allocation3 + $0xd78] sm:$0xff] %v5785
        %5818 = vst [vmem:[#allocation3 + $0xd80] sm:$0xff] %v5786
        %5819 = vst [vmem:[#allocation3 + $0xd88] sm:$0xff] %v5787
        %5820 = vst [vmem:[#allocation3 + $0xd90] sm:$0xff] %v5788
        %5821 = vst [vmem:[#allocation3 + $0xd98] sm:$0xff] %v5789
        %5822 = vst [vmem:[#allocation3 + $0xda0] sm:$0xff] %v5790
        %5823 = vst [vmem:[#allocation3 + $0xda8] sm:$0xff] %v5791
        %5824 = vst [vmem:[#allocation3 + $0xdb0] sm:$0xff] %v5792
        %5825 = vst [vmem:[#allocation3 + $0xdb8] sm:$0xff] %v5793
        %5826 = vst [vmem:[#allocation3 + $0xdc0] sm:$0xff] %v5794
        %5827 = vst [vmem:[#allocation3 + $0xdc8] sm:$0xff] %v5795
        %5828 = vst [vmem:[#allocation3 + $0xdd0] sm:$0xff] %v5796
        %5829 = vst [vmem:[#allocation3 + $0xdd8] sm:$0xff] %v5797
        %5830 = vst [vmem:[#allocation3 + $0xde0] sm:$0xff] %v5798
        %5831 = vst [vmem:[#allocation3 + $0xde8] sm:$0xff] %v5799
        %5832 = vst [vmem:[#allocation3 + $0xdf0] sm:$0xff] %v5800
        %5833 = vst [vmem:[#allocation3 + $0xdf8] sm:$0xff] %v5801
        %s5834 = scalar_lea.vmem [#allocation6], 262
        %v5835 = vld [vmem:[%s5834] ss:$8 sm:$0xf]
        %v5836 = vld [vmem:[%s5834] ss:$8 sm:$0xf0]
        %v5837 = vor.u32 %v5835, %v5836
        %s5838 = scalar_lea.vmem [#allocation6], 326
        %v5839 = vld [vmem:[%s5838] ss:$8 sm:$0xf]
        %v5840 = vld [vmem:[%s5838] ss:$8 sm:$0xf0]
        %v5841 = vor.u32 %v5839, %v5840
        %s5842 = scalar_lea.vmem [#allocation6], 390
        %v5843 = vld [vmem:[%s5842] ss:$8 sm:$0xf]
        %v5844 = vld [vmem:[%s5842] ss:$8 sm:$0xf0]
        %v5845 = vor.u32 %v5843, %v5844
        %s5846 = scalar_lea.vmem [#allocation6], 454
        %v5847 = vld [vmem:[%s5846] ss:$8 sm:$0xf]
        %v5848 = vld [vmem:[%s5846] ss:$8 sm:$0xf0]
        %v5849 = vor.u32 %v5847, %v5848
        %v5854 = vlaneseq
        %v5855 = vshrl.u32 %v5854, 7
        %v5856 = vsub.s32 0, %v5855
        %v5857 = vrot.slane %v5837, %v5856
        %v5858 = vlaneseq
        %v5859 = vshrl.u32 %v5858, 7
        %v5860 = vsub.s32 1, %v5859
        %v5861 = vrot.slane %v5837, %v5860
        %v5862 = vlaneseq
        %v5863 = vshrl.u32 %v5862, 7
        %v5864 = vsub.s32 2, %v5863
        %v5865 = vrot.slane %v5837, %v5864
        %v5866 = vlaneseq
        %v5867 = vshrl.u32 %v5866, 7
        %v5868 = vsub.s32 3, %v5867
        %v5869 = vrot.slane %v5837, %v5868
        %v5870 = vlaneseq
        %v5871 = vshrl.u32 %v5870, 7
        %v5872 = vsub.s32 4, %v5871
        %v5873 = vrot.slane %v5837, %v5872
        %v5874 = vlaneseq
        %v5875 = vshrl.u32 %v5874, 7
        %v5876 = vsub.s32 5, %v5875
        %v5877 = vrot.slane %v5837, %v5876
        %v5878 = vlaneseq
        %v5879 = vshrl.u32 %v5878, 7
        %v5880 = vsub.s32 6, %v5879
        %v5881 = vrot.slane %v5837, %v5880
        %v5882 = vlaneseq
        %v5883 = vshrl.u32 %v5882, 7
        %v5884 = vsub.s32 7, %v5883
        %v5885 = vrot.slane %v5837, %v5884
        %v5886 = vlaneseq
        %v5887 = vshrl.u32 %v5886, 7
        %v5888 = vsub.s32 0, %v5887
        %v5889 = vrot.slane %v5841, %v5888
        %v5890 = vlaneseq
        %v5891 = vshrl.u32 %v5890, 7
        %v5892 = vsub.s32 1, %v5891
        %v5893 = vrot.slane %v5841, %v5892
        %v5894 = vlaneseq
        %v5895 = vshrl.u32 %v5894, 7
        %v5896 = vsub.s32 2, %v5895
        %v5897 = vrot.slane %v5841, %v5896
        %v5898 = vlaneseq
        %v5899 = vshrl.u32 %v5898, 7
        %v5900 = vsub.s32 3, %v5899
        %v5901 = vrot.slane %v5841, %v5900
        %v5902 = vlaneseq
        %v5903 = vshrl.u32 %v5902, 7
        %v5904 = vsub.s32 4, %v5903
        %v5905 = vrot.slane %v5841, %v5904
        %v5906 = vlaneseq
        %v5907 = vshrl.u32 %v5906, 7
        %v5908 = vsub.s32 5, %v5907
        %v5909 = vrot.slane %v5841, %v5908
        %v5910 = vlaneseq
        %v5911 = vshrl.u32 %v5910, 7
        %v5912 = vsub.s32 6, %v5911
        %v5913 = vrot.slane %v5841, %v5912
        %v5914 = vlaneseq
        %v5915 = vshrl.u32 %v5914, 7
        %v5916 = vsub.s32 7, %v5915
        %v5917 = vrot.slane %v5841, %v5916
        %v5918 = vlaneseq
        %v5919 = vshrl.u32 %v5918, 7
        %v5920 = vsub.s32 0, %v5919
        %v5921 = vrot.slane %v5845, %v5920
        %v5922 = vlaneseq
        %v5923 = vshrl.u32 %v5922, 7
        %v5924 = vsub.s32 1, %v5923
        %v5925 = vrot.slane %v5845, %v5924
        %v5926 = vlaneseq
        %v5927 = vshrl.u32 %v5926, 7
        %v5928 = vsub.s32 2, %v5927
        %v5929 = vrot.slane %v5845, %v5928
        %v5930 = vlaneseq
        %v5931 = vshrl.u32 %v5930, 7
        %v5932 = vsub.s32 3, %v5931
        %v5933 = vrot.slane %v5845, %v5932
        %v5934 = vlaneseq
        %v5935 = vshrl.u32 %v5934, 7
        %v5936 = vsub.s32 4, %v5935
        %v5937 = vrot.slane %v5845, %v5936
        %v5938 = vlaneseq
        %v5939 = vshrl.u32 %v5938, 7
        %v5940 = vsub.s32 5, %v5939
        %v5941 = vrot.slane %v5845, %v5940
        %v5942 = vlaneseq
        %v5943 = vshrl.u32 %v5942, 7
        %v5944 = vsub.s32 6, %v5943
        %v5945 = vrot.slane %v5845, %v5944
        %v5946 = vlaneseq
        %v5947 = vshrl.u32 %v5946, 7
        %v5948 = vsub.s32 7, %v5947
        %v5949 = vrot.slane %v5845, %v5948
        %v5950 = vlaneseq
        %v5951 = vshrl.u32 %v5950, 7
        %v5952 = vsub.s32 0, %v5951
        %v5953 = vrot.slane %v5849, %v5952
        %v5954 = vlaneseq
        %v5955 = vshrl.u32 %v5954, 7
        %v5956 = vsub.s32 1, %v5955
        %v5957 = vrot.slane %v5849, %v5956
        %v5958 = vlaneseq
        %v5959 = vshrl.u32 %v5958, 7
        %v5960 = vsub.s32 2, %v5959
        %v5961 = vrot.slane %v5849, %v5960
        %v5962 = vlaneseq
        %v5963 = vshrl.u32 %v5962, 7
        %v5964 = vsub.s32 3, %v5963
        %v5965 = vrot.slane %v5849, %v5964
        %v5966 = vlaneseq
        %v5967 = vshrl.u32 %v5966, 7
        %v5968 = vsub.s32 4, %v5967
        %v5969 = vrot.slane %v5849, %v5968
        %v5970 = vlaneseq
        %v5971 = vshrl.u32 %v5970, 7
        %v5972 = vsub.s32 5, %v5971
        %v5973 = vrot.slane %v5849, %v5972
        %v5974 = vlaneseq
        %v5975 = vshrl.u32 %v5974, 7
        %v5976 = vsub.s32 6, %v5975
        %v5977 = vrot.slane %v5849, %v5976
        %v5978 = vlaneseq
        %v5979 = vshrl.u32 %v5978, 7
        %v5980 = vsub.s32 7, %v5979
        %v5981 = vrot.slane %v5849, %v5980
        %v6014 = vmul.f32 %v3345, %v5857
        %v6015 = vmul.f32 %v3344, %v5861
        %v6016 = vmul.f32 %v3343, %v5865
        %v6017 = vmul.f32 %v3342, %v5869
        %v6018 = vmul.f32 %v3341, %v5873
        %v6019 = vmul.f32 %v3340, %v5877
        %v6020 = vmul.f32 %v3339, %v5881
        %v6021 = vmul.f32 %v3338, %v5885
        %v6022 = vmul.f32 %v3337, %v5889
        %v6023 = vmul.f32 %v3336, %v5893
        %v6024 = vmul.f32 %v3335, %v5897
        %v6025 = vmul.f32 %v3334, %v5901
        %v6026 = vmul.f32 %v3333, %v5905
        %v6027 = vmul.f32 %v3332, %v5909
        %v6028 = vmul.f32 %v3331, %v5913
        %v6029 = vmul.f32 %v3330, %v5917
        %v6030 = vmul.f32 %v3329, %v5921
        %v6031 = vmul.f32 %v3328, %v5925
        %v6032 = vmul.f32 %v3327, %v5929
        %v6033 = vmul.f32 %v3326, %v5933
        %v6034 = vmul.f32 %v3325, %v5937
        %v6035 = vmul.f32 %v3324, %v5941
        %v6036 = vmul.f32 %v3323, %v5945
        %v6037 = vmul.f32 %v3322, %v5949
        %v6038 = vmul.f32 %v3321, %v5953
        %v6039 = vmul.f32 %v3320, %v5957
        %v6040 = vmul.f32 %v3319, %v5961
        %v6041 = vmul.f32 %v3318, %v5965
        %v6042 = vmul.f32 %v3317, %v5969
        %v6043 = vmul.f32 %v3316, %v5973
        %v6044 = vmul.f32 %v3315, %v5977
        %v6045 = vmul.f32 %v3346, %v5981
        %6046 = vst [vmem:[#allocation3 + $0xe00] sm:$0xff] %v6014
        %6047 = vst [vmem:[#allocation3 + $0xe08] sm:$0xff] %v6015
        %6048 = vst [vmem:[#allocation3 + $0xe10] sm:$0xff] %v6016
        %6049 = vst [vmem:[#allocation3 + $0xe18] sm:$0xff] %v6017
        %6050 = vst [vmem:[#allocation3 + $0xe20] sm:$0xff] %v6018
        %6051 = vst [vmem:[#allocation3 + $0xe28] sm:$0xff] %v6019
        %6052 = vst [vmem:[#allocation3 + $0xe30] sm:$0xff] %v6020
        %6053 = vst [vmem:[#allocation3 + $0xe38] sm:$0xff] %v6021
        %6054 = vst [vmem:[#allocation3 + $0xe40] sm:$0xff] %v6022
        %6055 = vst [vmem:[#allocation3 + $0xe48] sm:$0xff] %v6023
        %6056 = vst [vmem:[#allocation3 + $0xe50] sm:$0xff] %v6024
        %6057 = vst [vmem:[#allocation3 + $0xe58] sm:$0xff] %v6025
        %6058 = vst [vmem:[#allocation3 + $0xe60] sm:$0xff] %v6026
        %6059 = vst [vmem:[#allocation3 + $0xe68] sm:$0xff] %v6027
        %6060 = vst [vmem:[#allocation3 + $0xe70] sm:$0xff] %v6028
        %6061 = vst [vmem:[#allocation3 + $0xe78] sm:$0xff] %v6029
        %6062 = vst [vmem:[#allocation3 + $0xe80] sm:$0xff] %v6030
        %6063 = vst [vmem:[#allocation3 + $0xe88] sm:$0xff] %v6031
        %6064 = vst [vmem:[#allocation3 + $0xe90] sm:$0xff] %v6032
        %6065 = vst [vmem:[#allocation3 + $0xe98] sm:$0xff] %v6033
        %6066 = vst [vmem:[#allocation3 + $0xea0] sm:$0xff] %v6034
        %6067 = vst [vmem:[#allocation3 + $0xea8] sm:$0xff] %v6035
        %6068 = vst [vmem:[#allocation3 + $0xeb0] sm:$0xff] %v6036
        %6069 = vst [vmem:[#allocation3 + $0xeb8] sm:$0xff] %v6037
        %6070 = vst [vmem:[#allocation3 + $0xec0] sm:$0xff] %v6038
        %6071 = vst [vmem:[#allocation3 + $0xec8] sm:$0xff] %v6039
        %6072 = vst [vmem:[#allocation3 + $0xed0] sm:$0xff] %v6040
        %6073 = vst [vmem:[#allocation3 + $0xed8] sm:$0xff] %v6041
        %6074 = vst [vmem:[#allocation3 + $0xee0] sm:$0xff] %v6042
        %6075 = vst [vmem:[#allocation3 + $0xee8] sm:$0xff] %v6043
        %6076 = vst [vmem:[#allocation3 + $0xef0] sm:$0xff] %v6044
        %6077 = vst [vmem:[#allocation3 + $0xef8] sm:$0xff] %v6045
        %s6078 = scalar_lea.vmem [#allocation6], 263
        %v6079 = vld [vmem:[%s6078] ss:$8 sm:$0xf]
        %v6080 = vld [vmem:[%s6078] ss:$8 sm:$0xf0]
        %v6081 = vor.u32 %v6079, %v6080
        %s6082 = scalar_lea.vmem [#allocation6], 327
        %v6083 = vld [vmem:[%s6082] ss:$8 sm:$0xf]
        %v6084 = vld [vmem:[%s6082] ss:$8 sm:$0xf0]
        %v6085 = vor.u32 %v6083, %v6084
        %s6086 = scalar_lea.vmem [#allocation6], 391
        %v6087 = vld [vmem:[%s6086] ss:$8 sm:$0xf]
        %v6088 = vld [vmem:[%s6086] ss:$8 sm:$0xf0]
        %v6089 = vor.u32 %v6087, %v6088
        %s6090 = scalar_lea.vmem [#allocation6], 455
        %v6091 = vld [vmem:[%s6090] ss:$8 sm:$0xf]
        %v6092 = vld [vmem:[%s6090] ss:$8 sm:$0xf0]
        %v6093 = vor.u32 %v6091, %v6092
        %v6098 = vlaneseq
        %v6099 = vshrl.u32 %v6098, 7
        %v6100 = vsub.s32 0, %v6099
        %v6101 = vrot.slane %v6081, %v6100
        %v6102 = vlaneseq
        %v6103 = vshrl.u32 %v6102, 7
        %v6104 = vsub.s32 1, %v6103
        %v6105 = vrot.slane %v6081, %v6104
        %v6106 = vlaneseq
        %v6107 = vshrl.u32 %v6106, 7
        %v6108 = vsub.s32 2, %v6107
        %v6109 = vrot.slane %v6081, %v6108
        %v6110 = vlaneseq
        %v6111 = vshrl.u32 %v6110, 7
        %v6112 = vsub.s32 3, %v6111
        %v6113 = vrot.slane %v6081, %v6112
        %v6114 = vlaneseq
        %v6115 = vshrl.u32 %v6114, 7
        %v6116 = vsub.s32 4, %v6115
        %v6117 = vrot.slane %v6081, %v6116
        %v6118 = vlaneseq
        %v6119 = vshrl.u32 %v6118, 7
        %v6120 = vsub.s32 5, %v6119
        %v6121 = vrot.slane %v6081, %v6120
        %v6122 = vlaneseq
        %v6123 = vshrl.u32 %v6122, 7
        %v6124 = vsub.s32 6, %v6123
        %v6125 = vrot.slane %v6081, %v6124
        %v6126 = vlaneseq
        %v6127 = vshrl.u32 %v6126, 7
        %v6128 = vsub.s32 7, %v6127
        %v6129 = vrot.slane %v6081, %v6128
        %v6130 = vlaneseq
        %v6131 = vshrl.u32 %v6130, 7
        %v6132 = vsub.s32 0, %v6131
        %v6133 = vrot.slane %v6085, %v6132
        %v6134 = vlaneseq
        %v6135 = vshrl.u32 %v6134, 7
        %v6136 = vsub.s32 1, %v6135
        %v6137 = vrot.slane %v6085, %v6136
        %v6138 = vlaneseq
        %v6139 = vshrl.u32 %v6138, 7
        %v6140 = vsub.s32 2, %v6139
        %v6141 = vrot.slane %v6085, %v6140
        %v6142 = vlaneseq
        %v6143 = vshrl.u32 %v6142, 7
        %v6144 = vsub.s32 3, %v6143
        %v6145 = vrot.slane %v6085, %v6144
        %v6146 = vlaneseq
        %v6147 = vshrl.u32 %v6146, 7
        %v6148 = vsub.s32 4, %v6147
        %v6149 = vrot.slane %v6085, %v6148
        %v6150 = vlaneseq
        %v6151 = vshrl.u32 %v6150, 7
        %v6152 = vsub.s32 5, %v6151
        %v6153 = vrot.slane %v6085, %v6152
        %v6154 = vlaneseq
        %v6155 = vshrl.u32 %v6154, 7
        %v6156 = vsub.s32 6, %v6155
        %v6157 = vrot.slane %v6085, %v6156
        %v6158 = vlaneseq
        %v6159 = vshrl.u32 %v6158, 7
        %v6160 = vsub.s32 7, %v6159
        %v6161 = vrot.slane %v6085, %v6160
        %v6162 = vlaneseq
        %v6163 = vshrl.u32 %v6162, 7
        %v6164 = vsub.s32 0, %v6163
        %v6165 = vrot.slane %v6089, %v6164
        %v6166 = vlaneseq
        %v6167 = vshrl.u32 %v6166, 7
        %v6168 = vsub.s32 1, %v6167
        %v6169 = vrot.slane %v6089, %v6168
        %v6170 = vlaneseq
        %v6171 = vshrl.u32 %v6170, 7
        %v6172 = vsub.s32 2, %v6171
        %v6173 = vrot.slane %v6089, %v6172
        %v6174 = vlaneseq
        %v6175 = vshrl.u32 %v6174, 7
        %v6176 = vsub.s32 3, %v6175
        %v6177 = vrot.slane %v6089, %v6176
        %v6178 = vlaneseq
        %v6179 = vshrl.u32 %v6178, 7
        %v6180 = vsub.s32 4, %v6179
        %v6181 = vrot.slane %v6089, %v6180
        %v6182 = vlaneseq
        %v6183 = vshrl.u32 %v6182, 7
        %v6184 = vsub.s32 5, %v6183
        %v6185 = vrot.slane %v6089, %v6184
        %v6186 = vlaneseq
        %v6187 = vshrl.u32 %v6186, 7
        %v6188 = vsub.s32 6, %v6187
        %v6189 = vrot.slane %v6089, %v6188
        %v6190 = vlaneseq
        %v6191 = vshrl.u32 %v6190, 7
        %v6192 = vsub.s32 7, %v6191
        %v6193 = vrot.slane %v6089, %v6192
        %v6194 = vlaneseq
        %v6195 = vshrl.u32 %v6194, 7
        %v6196 = vsub.s32 0, %v6195
        %v6197 = vrot.slane %v6093, %v6196
        %v6198 = vlaneseq
        %v6199 = vshrl.u32 %v6198, 7
        %v6200 = vsub.s32 1, %v6199
        %v6201 = vrot.slane %v6093, %v6200
        %v6202 = vlaneseq
        %v6203 = vshrl.u32 %v6202, 7
        %v6204 = vsub.s32 2, %v6203
        %v6205 = vrot.slane %v6093, %v6204
        %v6206 = vlaneseq
        %v6207 = vshrl.u32 %v6206, 7
        %v6208 = vsub.s32 3, %v6207
        %v6209 = vrot.slane %v6093, %v6208
        %v6210 = vlaneseq
        %v6211 = vshrl.u32 %v6210, 7
        %v6212 = vsub.s32 4, %v6211
        %v6213 = vrot.slane %v6093, %v6212
        %v6214 = vlaneseq
        %v6215 = vshrl.u32 %v6214, 7
        %v6216 = vsub.s32 5, %v6215
        %v6217 = vrot.slane %v6093, %v6216
        %v6218 = vlaneseq
        %v6219 = vshrl.u32 %v6218, 7
        %v6220 = vsub.s32 6, %v6219
        %v6221 = vrot.slane %v6093, %v6220
        %v6222 = vlaneseq
        %v6223 = vshrl.u32 %v6222, 7
        %v6224 = vsub.s32 7, %v6223
        %v6225 = vrot.slane %v6093, %v6224
        %v6258 = vmul.f32 %v3686, %v6101
        %v6259 = vmul.f32 %v3685, %v6105
        %v6260 = vmul.f32 %v3684, %v6109
        %v6261 = vmul.f32 %v3683, %v6113
        %v6262 = vmul.f32 %v3682, %v6117
        %v6263 = vmul.f32 %v3681, %v6121
        %v6264 = vmul.f32 %v3680, %v6125
        %v6265 = vmul.f32 %v3679, %v6129
        %v6266 = vmul.f32 %v3678, %v6133
        %v6267 = vmul.f32 %v3677, %v6137
        %v6268 = vmul.f32 %v3676, %v6141
        %v6269 = vmul.f32 %v3675, %v6145
        %v6270 = vmul.f32 %v3674, %v6149
        %v6271 = vmul.f32 %v3673, %v6153
        %v6272 = vmul.f32 %v3672, %v6157
        %v6273 = vmul.f32 %v3671, %v6161
        %v6274 = vmul.f32 %v3670, %v6165
        %v6275 = vmul.f32 %v3669, %v6169
        %v6276 = vmul.f32 %v3668, %v6173
        %v6277 = vmul.f32 %v3667, %v6177
        %v6278 = vmul.f32 %v3666, %v6181
        %v6279 = vmul.f32 %v3665, %v6185
        %v6280 = vmul.f32 %v3664, %v6189
        %v6281 = vmul.f32 %v3663, %v6193
        %v6282 = vmul.f32 %v3662, %v6197
        %v6283 = vmul.f32 %v3661, %v6201
        %v6284 = vmul.f32 %v3660, %v6205
        %v6285 = vmul.f32 %v3659, %v6209
        %v6286 = vmul.f32 %v3658, %v6213
        %v6287 = vmul.f32 %v3657, %v6217
        %v6288 = vmul.f32 %v3656, %v6221
        %v6289 = vmul.f32 %v3687, %v6225
        %6290 = vst [vmem:[#allocation3 + $0xf00] sm:$0xff] %v6258
        %6291 = vst [vmem:[#allocation3 + $0xf08] sm:$0xff] %v6259
        %6292 = vst [vmem:[#allocation3 + $0xf10] sm:$0xff] %v6260
        %6293 = vst [vmem:[#allocation3 + $0xf18] sm:$0xff] %v6261
        %6294 = vst [vmem:[#allocation3 + $0xf20] sm:$0xff] %v6262
        %6295 = vst [vmem:[#allocation3 + $0xf28] sm:$0xff] %v6263
        %6296 = vst [vmem:[#allocation3 + $0xf30] sm:$0xff] %v6264
        %6297 = vst [vmem:[#allocation3 + $0xf38] sm:$0xff] %v6265
        %6298 = vst [vmem:[#allocation3 + $0xf40] sm:$0xff] %v6266
        %6299 = vst [vmem:[#allocation3 + $0xf48] sm:$0xff] %v6267
        %6300 = vst [vmem:[#allocation3 + $0xf50] sm:$0xff] %v6268
        %6301 = vst [vmem:[#allocation3 + $0xf58] sm:$0xff] %v6269
        %6302 = vst [vmem:[#allocation3 + $0xf60] sm:$0xff] %v6270
        %6303 = vst [vmem:[#allocation3 + $0xf68] sm:$0xff] %v6271
        %6304 = vst [vmem:[#allocation3 + $0xf70] sm:$0xff] %v6272
        %6305 = vst [vmem:[#allocation3 + $0xf78] sm:$0xff] %v6273
        %6306 = vst [vmem:[#allocation3 + $0xf80] sm:$0xff] %v6274
        %6307 = vst [vmem:[#allocation3 + $0xf88] sm:$0xff] %v6275
        %6308 = vst [vmem:[#allocation3 + $0xf90] sm:$0xff] %v6276
        %6309 = vst [vmem:[#allocation3 + $0xf98] sm:$0xff] %v6277
        %6310 = vst [vmem:[#allocation3 + $0xfa0] sm:$0xff] %v6278
        %6311 = vst [vmem:[#allocation3 + $0xfa8] sm:$0xff] %v6279
        %6312 = vst [vmem:[#allocation3 + $0xfb0] sm:$0xff] %v6280
        %6313 = vst [vmem:[#allocation3 + $0xfb8] sm:$0xff] %v6281
        %6314 = vst [vmem:[#allocation3 + $0xfc0] sm:$0xff] %v6282
        %6315 = vst [vmem:[#allocation3 + $0xfc8] sm:$0xff] %v6283
        %6316 = vst [vmem:[#allocation3 + $0xfd0] sm:$0xff] %v6284
        %6317 = vst [vmem:[#allocation3 + $0xfd8] sm:$0xff] %v6285
        %6318 = vst [vmem:[#allocation3 + $0xfe0] sm:$0xff] %v6286
        %6319 = vst [vmem:[#allocation3 + $0xfe8] sm:$0xff] %v6287
        %6320 = vst [vmem:[#allocation3 + $0xff0] sm:$0xff] %v6288
        %6321 = vst [vmem:[#allocation3 + $0xff8] sm:$0xff] %v6289
        %s6322 = scalar_lea.vmem [#allocation6], 512
        %v6323 = vld [vmem:[%s6322] ss:$8 sm:$0xf]
        %v6324 = vld [vmem:[%s6322] ss:$8 sm:$0xf0]
        %v6325 = vor.u32 %v6323, %v6324
        %s6326 = scalar_lea.vmem [#allocation6], 576
        %v6327 = vld [vmem:[%s6326] ss:$8 sm:$0xf]
        %v6328 = vld [vmem:[%s6326] ss:$8 sm:$0xf0]
        %v6329 = vor.u32 %v6327, %v6328
        %s6330 = scalar_lea.vmem [#allocation6], 640
        %v6331 = vld [vmem:[%s6330] ss:$8 sm:$0xf]
        %v6332 = vld [vmem:[%s6330] ss:$8 sm:$0xf0]
        %v6333 = vor.u32 %v6331, %v6332
        %s6334 = scalar_lea.vmem [#allocation6], 704
        %v6335 = vld [vmem:[%s6334] ss:$8 sm:$0xf]
        %v6336 = vld [vmem:[%s6334] ss:$8 sm:$0xf0]
        %v6337 = vor.u32 %v6335, %v6336
        %v6342 = vlaneseq
        %v6343 = vshrl.u32 %v6342, 7
        %v6344 = vsub.s32 0, %v6343
        %v6345 = vrot.slane %v6325, %v6344
        %v6346 = vlaneseq
        %v6347 = vshrl.u32 %v6346, 7
        %v6348 = vsub.s32 1, %v6347
        %v6349 = vrot.slane %v6325, %v6348
        %v6350 = vlaneseq
        %v6351 = vshrl.u32 %v6350, 7
        %v6352 = vsub.s32 2, %v6351
        %v6353 = vrot.slane %v6325, %v6352
        %v6354 = vlaneseq
        %v6355 = vshrl.u32 %v6354, 7
        %v6356 = vsub.s32 3, %v6355
        %v6357 = vrot.slane %v6325, %v6356
        %v6358 = vlaneseq
        %v6359 = vshrl.u32 %v6358, 7
        %v6360 = vsub.s32 4, %v6359
        %v6361 = vrot.slane %v6325, %v6360
        %v6362 = vlaneseq
        %v6363 = vshrl.u32 %v6362, 7
        %v6364 = vsub.s32 5, %v6363
        %v6365 = vrot.slane %v6325, %v6364
        %v6366 = vlaneseq
        %v6367 = vshrl.u32 %v6366, 7
        %v6368 = vsub.s32 6, %v6367
        %v6369 = vrot.slane %v6325, %v6368
        %v6370 = vlaneseq
        %v6371 = vshrl.u32 %v6370, 7
        %v6372 = vsub.s32 7, %v6371
        %v6373 = vrot.slane %v6325, %v6372
        %v6374 = vlaneseq
        %v6375 = vshrl.u32 %v6374, 7
        %v6376 = vsub.s32 0, %v6375
        %v6377 = vrot.slane %v6329, %v6376
        %v6378 = vlaneseq
        %v6379 = vshrl.u32 %v6378, 7
        %v6380 = vsub.s32 1, %v6379
        %v6381 = vrot.slane %v6329, %v6380
        %v6382 = vlaneseq
        %v6383 = vshrl.u32 %v6382, 7
        %v6384 = vsub.s32 2, %v6383
        %v6385 = vrot.slane %v6329, %v6384
        %v6386 = vlaneseq
        %v6387 = vshrl.u32 %v6386, 7
        %v6388 = vsub.s32 3, %v6387
        %v6389 = vrot.slane %v6329, %v6388
        %v6390 = vlaneseq
        %v6391 = vshrl.u32 %v6390, 7
        %v6392 = vsub.s32 4, %v6391
        %v6393 = vrot.slane %v6329, %v6392
        %v6394 = vlaneseq
        %v6395 = vshrl.u32 %v6394, 7
        %v6396 = vsub.s32 5, %v6395
        %v6397 = vrot.slane %v6329, %v6396
        %v6398 = vlaneseq
        %v6399 = vshrl.u32 %v6398, 7
        %v6400 = vsub.s32 6, %v6399
        %v6401 = vrot.slane %v6329, %v6400
        %v6402 = vlaneseq
        %v6403 = vshrl.u32 %v6402, 7
        %v6404 = vsub.s32 7, %v6403
        %v6405 = vrot.slane %v6329, %v6404
        %v6406 = vlaneseq
        %v6407 = vshrl.u32 %v6406, 7
        %v6408 = vsub.s32 0, %v6407
        %v6409 = vrot.slane %v6333, %v6408
        %v6410 = vlaneseq
        %v6411 = vshrl.u32 %v6410, 7
        %v6412 = vsub.s32 1, %v6411
        %v6413 = vrot.slane %v6333, %v6412
        %v6414 = vlaneseq
        %v6415 = vshrl.u32 %v6414, 7
        %v6416 = vsub.s32 2, %v6415
        %v6417 = vrot.slane %v6333, %v6416
        %v6418 = vlaneseq
        %v6419 = vshrl.u32 %v6418, 7
        %v6420 = vsub.s32 3, %v6419
        %v6421 = vrot.slane %v6333, %v6420
        %v6422 = vlaneseq
        %v6423 = vshrl.u32 %v6422, 7
        %v6424 = vsub.s32 4, %v6423
        %v6425 = vrot.slane %v6333, %v6424
        %v6426 = vlaneseq
        %v6427 = vshrl.u32 %v6426, 7
        %v6428 = vsub.s32 5, %v6427
        %v6429 = vrot.slane %v6333, %v6428
        %v6430 = vlaneseq
        %v6431 = vshrl.u32 %v6430, 7
        %v6432 = vsub.s32 6, %v6431
        %v6433 = vrot.slane %v6333, %v6432
        %v6434 = vlaneseq
        %v6435 = vshrl.u32 %v6434, 7
        %v6436 = vsub.s32 7, %v6435
        %v6437 = vrot.slane %v6333, %v6436
        %v6438 = vlaneseq
        %v6439 = vshrl.u32 %v6438, 7
        %v6440 = vsub.s32 0, %v6439
        %v6441 = vrot.slane %v6337, %v6440
        %v6442 = vlaneseq
        %v6443 = vshrl.u32 %v6442, 7
        %v6444 = vsub.s32 1, %v6443
        %v6445 = vrot.slane %v6337, %v6444
        %v6446 = vlaneseq
        %v6447 = vshrl.u32 %v6446, 7
        %v6448 = vsub.s32 2, %v6447
        %v6449 = vrot.slane %v6337, %v6448
        %v6450 = vlaneseq
        %v6451 = vshrl.u32 %v6450, 7
        %v6452 = vsub.s32 3, %v6451
        %v6453 = vrot.slane %v6337, %v6452
        %v6454 = vlaneseq
        %v6455 = vshrl.u32 %v6454, 7
        %v6456 = vsub.s32 4, %v6455
        %v6457 = vrot.slane %v6337, %v6456
        %v6458 = vlaneseq
        %v6459 = vshrl.u32 %v6458, 7
        %v6460 = vsub.s32 5, %v6459
        %v6461 = vrot.slane %v6337, %v6460
        %v6462 = vlaneseq
        %v6463 = vshrl.u32 %v6462, 7
        %v6464 = vsub.s32 6, %v6463
        %v6465 = vrot.slane %v6337, %v6464
        %v6466 = vlaneseq
        %v6467 = vshrl.u32 %v6466, 7
        %v6468 = vsub.s32 7, %v6467
        %v6469 = vrot.slane %v6337, %v6468
        %v6502 = vmul.f32 %v4027, %v6345
        %v6503 = vmul.f32 %v4026, %v6349
        %v6504 = vmul.f32 %v4025, %v6353
        %v6505 = vmul.f32 %v4024, %v6357
        %v6506 = vmul.f32 %v4023, %v6361
        %v6507 = vmul.f32 %v4022, %v6365
        %v6508 = vmul.f32 %v4021, %v6369
        %v6509 = vmul.f32 %v4020, %v6373
        %v6510 = vmul.f32 %v4019, %v6377
        %v6511 = vmul.f32 %v4018, %v6381
        %v6512 = vmul.f32 %v4017, %v6385
        %v6513 = vmul.f32 %v4016, %v6389
        %v6514 = vmul.f32 %v4015, %v6393
        %v6515 = vmul.f32 %v4014, %v6397
        %v6516 = vmul.f32 %v4013, %v6401
        %v6517 = vmul.f32 %v4012, %v6405
        %v6518 = vmul.f32 %v4011, %v6409
        %v6519 = vmul.f32 %v4010, %v6413
        %v6520 = vmul.f32 %v4009, %v6417
        %v6521 = vmul.f32 %v4008, %v6421
        %v6522 = vmul.f32 %v4007, %v6425
        %v6523 = vmul.f32 %v4006, %v6429
        %v6524 = vmul.f32 %v4005, %v6433
        %v6525 = vmul.f32 %v4004, %v6437
        %v6526 = vmul.f32 %v4003, %v6441
        %v6527 = vmul.f32 %v4002, %v6445
        %v6528 = vmul.f32 %v4001, %v6449
        %v6529 = vmul.f32 %v4000, %v6453
        %v6530 = vmul.f32 %v3999, %v6457
        %v6531 = vmul.f32 %v3998, %v6461
        %v6532 = vmul.f32 %v3997, %v6465
        %v6533 = vmul.f32 %v4028, %v6469
        %6534 = vst [vmem:[#allocation3 + $0x1000] sm:$0xff] %v6502
        %6535 = vst [vmem:[#allocation3 + $0x1008] sm:$0xff] %v6503
        %6536 = vst [vmem:[#allocation3 + $0x1010] sm:$0xff] %v6504
        %6537 = vst [vmem:[#allocation3 + $0x1018] sm:$0xff] %v6505
        %6538 = vst [vmem:[#allocation3 + $0x1020] sm:$0xff] %v6506
        %6539 = vst [vmem:[#allocation3 + $0x1028] sm:$0xff] %v6507
        %6540 = vst [vmem:[#allocation3 + $0x1030] sm:$0xff] %v6508
        %6541 = vst [vmem:[#allocation3 + $0x1038] sm:$0xff] %v6509
        %6542 = vst [vmem:[#allocation3 + $0x1040] sm:$0xff] %v6510
        %6543 = vst [vmem:[#allocation3 + $0x1048] sm:$0xff] %v6511
        %6544 = vst [vmem:[#allocation3 + $0x1050] sm:$0xff] %v6512
        %6545 = vst [vmem:[#allocation3 + $0x1058] sm:$0xff] %v6513
        %6546 = vst [vmem:[#allocation3 + $0x1060] sm:$0xff] %v6514
        %6547 = vst [vmem:[#allocation3 + $0x1068] sm:$0xff] %v6515
        %6548 = vst [vmem:[#allocation3 + $0x1070] sm:$0xff] %v6516
        %6549 = vst [vmem:[#allocation3 + $0x1078] sm:$0xff] %v6517
        %6550 = vst [vmem:[#allocation3 + $0x1080] sm:$0xff] %v6518
        %6551 = vst [vmem:[#allocation3 + $0x1088] sm:$0xff] %v6519
        %6552 = vst [vmem:[#allocation3 + $0x1090] sm:$0xff] %v6520
        %6553 = vst [vmem:[#allocation3 + $0x1098] sm:$0xff] %v6521
        %6554 = vst [vmem:[#allocation3 + $0x10a0] sm:$0xff] %v6522
        %6555 = vst [vmem:[#allocation3 + $0x10a8] sm:$0xff] %v6523
        %6556 = vst [vmem:[#allocation3 + $0x10b0] sm:$0xff] %v6524
        %6557 = vst [vmem:[#allocation3 + $0x10b8] sm:$0xff] %v6525
        %6558 = vst [vmem:[#allocation3 + $0x10c0] sm:$0xff] %v6526
        %6559 = vst [vmem:[#allocation3 + $0x10c8] sm:$0xff] %v6527
        %6560 = vst [vmem:[#allocation3 + $0x10d0] sm:$0xff] %v6528
        %6561 = vst [vmem:[#allocation3 + $0x10d8] sm:$0xff] %v6529
        %6562 = vst [vmem:[#allocation3 + $0x10e0] sm:$0xff] %v6530
        %6563 = vst [vmem:[#allocation3 + $0x10e8] sm:$0xff] %v6531
        %6564 = vst [vmem:[#allocation3 + $0x10f0] sm:$0xff] %v6532
        %6565 = vst [vmem:[#allocation3 + $0x10f8] sm:$0xff] %v6533
        %s6566 = scalar_lea.vmem [#allocation6], 513
        %v6567 = vld [vmem:[%s6566] ss:$8 sm:$0xf]
        %v6568 = vld [vmem:[%s6566] ss:$8 sm:$0xf0]
        %v6569 = vor.u32 %v6567, %v6568
        %s6570 = scalar_lea.vmem [#allocation6], 577
        %v6571 = vld [vmem:[%s6570] ss:$8 sm:$0xf]
        %v6572 = vld [vmem:[%s6570] ss:$8 sm:$0xf0]
        %v6573 = vor.u32 %v6571, %v6572
        %s6574 = scalar_lea.vmem [#allocation6], 641
        %v6575 = vld [vmem:[%s6574] ss:$8 sm:$0xf]
        %v6576 = vld [vmem:[%s6574] ss:$8 sm:$0xf0]
        %v6577 = vor.u32 %v6575, %v6576
        %s6578 = scalar_lea.vmem [#allocation6], 705
        %v6579 = vld [vmem:[%s6578] ss:$8 sm:$0xf]
        %v6580 = vld [vmem:[%s6578] ss:$8 sm:$0xf0]
        %v6581 = vor.u32 %v6579, %v6580
        %v6586 = vlaneseq
        %v6587 = vshrl.u32 %v6586, 7
        %v6588 = vsub.s32 0, %v6587
        %v6589 = vrot.slane %v6569, %v6588
        %v6590 = vlaneseq
        %v6591 = vshrl.u32 %v6590, 7
        %v6592 = vsub.s32 1, %v6591
        %v6593 = vrot.slane %v6569, %v6592
        %v6594 = vlaneseq
        %v6595 = vshrl.u32 %v6594, 7
        %v6596 = vsub.s32 2, %v6595
        %v6597 = vrot.slane %v6569, %v6596
        %v6598 = vlaneseq
        %v6599 = vshrl.u32 %v6598, 7
        %v6600 = vsub.s32 3, %v6599
        %v6601 = vrot.slane %v6569, %v6600
        %v6602 = vlaneseq
        %v6603 = vshrl.u32 %v6602, 7
        %v6604 = vsub.s32 4, %v6603
        %v6605 = vrot.slane %v6569, %v6604
        %v6606 = vlaneseq
        %v6607 = vshrl.u32 %v6606, 7
        %v6608 = vsub.s32 5, %v6607
        %v6609 = vrot.slane %v6569, %v6608
        %v6610 = vlaneseq
        %v6611 = vshrl.u32 %v6610, 7
        %v6612 = vsub.s32 6, %v6611
        %v6613 = vrot.slane %v6569, %v6612
        %v6614 = vlaneseq
        %v6615 = vshrl.u32 %v6614, 7
        %v6616 = vsub.s32 7, %v6615
        %v6617 = vrot.slane %v6569, %v6616
        %v6618 = vlaneseq
        %v6619 = vshrl.u32 %v6618, 7
        %v6620 = vsub.s32 0, %v6619
        %v6621 = vrot.slane %v6573, %v6620
        %v6622 = vlaneseq
        %v6623 = vshrl.u32 %v6622, 7
        %v6624 = vsub.s32 1, %v6623
        %v6625 = vrot.slane %v6573, %v6624
        %v6626 = vlaneseq
        %v6627 = vshrl.u32 %v6626, 7
        %v6628 = vsub.s32 2, %v6627
        %v6629 = vrot.slane %v6573, %v6628
        %v6630 = vlaneseq
        %v6631 = vshrl.u32 %v6630, 7
        %v6632 = vsub.s32 3, %v6631
        %v6633 = vrot.slane %v6573, %v6632
        %v6634 = vlaneseq
        %v6635 = vshrl.u32 %v6634, 7
        %v6636 = vsub.s32 4, %v6635
        %v6637 = vrot.slane %v6573, %v6636
        %v6638 = vlaneseq
        %v6639 = vshrl.u32 %v6638, 7
        %v6640 = vsub.s32 5, %v6639
        %v6641 = vrot.slane %v6573, %v6640
        %v6642 = vlaneseq
        %v6643 = vshrl.u32 %v6642, 7
        %v6644 = vsub.s32 6, %v6643
        %v6645 = vrot.slane %v6573, %v6644
        %v6646 = vlaneseq
        %v6647 = vshrl.u32 %v6646, 7
        %v6648 = vsub.s32 7, %v6647
        %v6649 = vrot.slane %v6573, %v6648
        %v6650 = vlaneseq
        %v6651 = vshrl.u32 %v6650, 7
        %v6652 = vsub.s32 0, %v6651
        %v6653 = vrot.slane %v6577, %v6652
        %v6654 = vlaneseq
        %v6655 = vshrl.u32 %v6654, 7
        %v6656 = vsub.s32 1, %v6655
        %v6657 = vrot.slane %v6577, %v6656
        %v6658 = vlaneseq
        %v6659 = vshrl.u32 %v6658, 7
        %v6660 = vsub.s32 2, %v6659
        %v6661 = vrot.slane %v6577, %v6660
        %v6662 = vlaneseq
        %v6663 = vshrl.u32 %v6662, 7
        %v6664 = vsub.s32 3, %v6663
        %v6665 = vrot.slane %v6577, %v6664
        %v6666 = vlaneseq
        %v6667 = vshrl.u32 %v6666, 7
        %v6668 = vsub.s32 4, %v6667
        %v6669 = vrot.slane %v6577, %v6668
        %v6670 = vlaneseq
        %v6671 = vshrl.u32 %v6670, 7
        %v6672 = vsub.s32 5, %v6671
        %v6673 = vrot.slane %v6577, %v6672
        %v6674 = vlaneseq
        %v6675 = vshrl.u32 %v6674, 7
        %v6676 = vsub.s32 6, %v6675
        %v6677 = vrot.slane %v6577, %v6676
        %v6678 = vlaneseq
        %v6679 = vshrl.u32 %v6678, 7
        %v6680 = vsub.s32 7, %v6679
        %v6681 = vrot.slane %v6577, %v6680
        %v6682 = vlaneseq
        %v6683 = vshrl.u32 %v6682, 7
        %v6684 = vsub.s32 0, %v6683
        %v6685 = vrot.slane %v6581, %v6684
        %v6686 = vlaneseq
        %v6687 = vshrl.u32 %v6686, 7
        %v6688 = vsub.s32 1, %v6687
        %v6689 = vrot.slane %v6581, %v6688
        %v6690 = vlaneseq
        %v6691 = vshrl.u32 %v6690, 7
        %v6692 = vsub.s32 2, %v6691
        %v6693 = vrot.slane %v6581, %v6692
        %v6694 = vlaneseq
        %v6695 = vshrl.u32 %v6694, 7
        %v6696 = vsub.s32 3, %v6695
        %v6697 = vrot.slane %v6581, %v6696
        %v6698 = vlaneseq
        %v6699 = vshrl.u32 %v6698, 7
        %v6700 = vsub.s32 4, %v6699
        %v6701 = vrot.slane %v6581, %v6700
        %v6702 = vlaneseq
        %v6703 = vshrl.u32 %v6702, 7
        %v6704 = vsub.s32 5, %v6703
        %v6705 = vrot.slane %v6581, %v6704
        %v6706 = vlaneseq
        %v6707 = vshrl.u32 %v6706, 7
        %v6708 = vsub.s32 6, %v6707
        %v6709 = vrot.slane %v6581, %v6708
        %v6710 = vlaneseq
        %v6711 = vshrl.u32 %v6710, 7
        %v6712 = vsub.s32 7, %v6711
        %v6713 = vrot.slane %v6581, %v6712
        %v6746 = vmul.f32 %v4368, %v6589
        %v6747 = vmul.f32 %v4367, %v6593
        %v6748 = vmul.f32 %v4366, %v6597
        %v6749 = vmul.f32 %v4365, %v6601
        %v6750 = vmul.f32 %v4364, %v6605
        %v6751 = vmul.f32 %v4363, %v6609
        %v6752 = vmul.f32 %v4362, %v6613
        %v6753 = vmul.f32 %v4361, %v6617
        %v6754 = vmul.f32 %v4360, %v6621
        %v6755 = vmul.f32 %v4359, %v6625
        %v6756 = vmul.f32 %v4358, %v6629
        %v6757 = vmul.f32 %v4357, %v6633
        %v6758 = vmul.f32 %v4356, %v6637
        %v6759 = vmul.f32 %v4355, %v6641
        %v6760 = vmul.f32 %v4354, %v6645
        %v6761 = vmul.f32 %v4353, %v6649
        %v6762 = vmul.f32 %v4352, %v6653
        %v6763 = vmul.f32 %v4351, %v6657
        %v6764 = vmul.f32 %v4350, %v6661
        %v6765 = vmul.f32 %v4349, %v6665
        %v6766 = vmul.f32 %v4348, %v6669
        %v6767 = vmul.f32 %v4347, %v6673
        %v6768 = vmul.f32 %v4346, %v6677
        %v6769 = vmul.f32 %v4345, %v6681
        %v6770 = vmul.f32 %v4344, %v6685
        %v6771 = vmul.f32 %v4343, %v6689
        %v6772 = vmul.f32 %v4342, %v6693
        %v6773 = vmul.f32 %v4341, %v6697
        %v6774 = vmul.f32 %v4340, %v6701
        %v6775 = vmul.f32 %v4339, %v6705
        %v6776 = vmul.f32 %v4338, %v6709
        %v6777 = vmul.f32 %v4369, %v6713
        %6778 = vst [vmem:[#allocation3 + $0x1100] sm:$0xff] %v6746
        %6779 = vst [vmem:[#allocation3 + $0x1108] sm:$0xff] %v6747
        %6780 = vst [vmem:[#allocation3 + $0x1110] sm:$0xff] %v6748
        %6781 = vst [vmem:[#allocation3 + $0x1118] sm:$0xff] %v6749
        %6782 = vst [vmem:[#allocation3 + $0x1120] sm:$0xff] %v6750
        %6783 = vst [vmem:[#allocation3 + $0x1128] sm:$0xff] %v6751
        %6784 = vst [vmem:[#allocation3 + $0x1130] sm:$0xff] %v6752
        %6785 = vst [vmem:[#allocation3 + $0x1138] sm:$0xff] %v6753
        %6786 = vst [vmem:[#allocation3 + $0x1140] sm:$0xff] %v6754
        %6787 = vst [vmem:[#allocation3 + $0x1148] sm:$0xff] %v6755
        %6788 = vst [vmem:[#allocation3 + $0x1150] sm:$0xff] %v6756
        %6789 = vst [vmem:[#allocation3 + $0x1158] sm:$0xff] %v6757
        %6790 = vst [vmem:[#allocation3 + $0x1160] sm:$0xff] %v6758
        %6791 = vst [vmem:[#allocation3 + $0x1168] sm:$0xff] %v6759
        %6792 = vst [vmem:[#allocation3 + $0x1170] sm:$0xff] %v6760
        %6793 = vst [vmem:[#allocation3 + $0x1178] sm:$0xff] %v6761
        %6794 = vst [vmem:[#allocation3 + $0x1180] sm:$0xff] %v6762
        %6795 = vst [vmem:[#allocation3 + $0x1188] sm:$0xff] %v6763
        %6796 = vst [vmem:[#allocation3 + $0x1190] sm:$0xff] %v6764
        %6797 = vst [vmem:[#allocation3 + $0x1198] sm:$0xff] %v6765
        %6798 = vst [vmem:[#allocation3 + $0x11a0] sm:$0xff] %v6766
        %6799 = vst [vmem:[#allocation3 + $0x11a8] sm:$0xff] %v6767
        %6800 = vst [vmem:[#allocation3 + $0x11b0] sm:$0xff] %v6768
        %6801 = vst [vmem:[#allocation3 + $0x11b8] sm:$0xff] %v6769
        %6802 = vst [vmem:[#allocation3 + $0x11c0] sm:$0xff] %v6770
        %6803 = vst [vmem:[#allocation3 + $0x11c8] sm:$0xff] %v6771
        %6804 = vst [vmem:[#allocation3 + $0x11d0] sm:$0xff] %v6772
        %6805 = vst [vmem:[#allocation3 + $0x11d8] sm:$0xff] %v6773
        %6806 = vst [vmem:[#allocation3 + $0x11e0] sm:$0xff] %v6774
        %6807 = vst [vmem:[#allocation3 + $0x11e8] sm:$0xff] %v6775
        %6808 = vst [vmem:[#allocation3 + $0x11f0] sm:$0xff] %v6776
        %6809 = vst [vmem:[#allocation3 + $0x11f8] sm:$0xff] %v6777
        %s6810 = scalar_lea.vmem [#allocation6], 514
        %v6811 = vld [vmem:[%s6810] ss:$8 sm:$0xf]
        %v6812 = vld [vmem:[%s6810] ss:$8 sm:$0xf0]
        %v6813 = vor.u32 %v6811, %v6812
        %s6814 = scalar_lea.vmem [#allocation6], 578
        %v6815 = vld [vmem:[%s6814] ss:$8 sm:$0xf]
        %v6816 = vld [vmem:[%s6814] ss:$8 sm:$0xf0]
        %v6817 = vor.u32 %v6815, %v6816
        %s6818 = scalar_lea.vmem [#allocation6], 642
        %v6819 = vld [vmem:[%s6818] ss:$8 sm:$0xf]
        %v6820 = vld [vmem:[%s6818] ss:$8 sm:$0xf0]
        %v6821 = vor.u32 %v6819, %v6820
        %s6822 = scalar_lea.vmem [#allocation6], 706
        %v6823 = vld [vmem:[%s6822] ss:$8 sm:$0xf]
        %v6824 = vld [vmem:[%s6822] ss:$8 sm:$0xf0]
        %v6825 = vor.u32 %v6823, %v6824
        %v6830 = vlaneseq
        %v6831 = vshrl.u32 %v6830, 7
        %v6832 = vsub.s32 0, %v6831
        %v6833 = vrot.slane %v6813, %v6832
        %v6834 = vlaneseq
        %v6835 = vshrl.u32 %v6834, 7
        %v6836 = vsub.s32 1, %v6835
        %v6837 = vrot.slane %v6813, %v6836
        %v6838 = vlaneseq
        %v6839 = vshrl.u32 %v6838, 7
        %v6840 = vsub.s32 2, %v6839
        %v6841 = vrot.slane %v6813, %v6840
        %v6842 = vlaneseq
        %v6843 = vshrl.u32 %v6842, 7
        %v6844 = vsub.s32 3, %v6843
        %v6845 = vrot.slane %v6813, %v6844
        %v6846 = vlaneseq
        %v6847 = vshrl.u32 %v6846, 7
        %v6848 = vsub.s32 4, %v6847
        %v6849 = vrot.slane %v6813, %v6848
        %v6850 = vlaneseq
        %v6851 = vshrl.u32 %v6850, 7
        %v6852 = vsub.s32 5, %v6851
        %v6853 = vrot.slane %v6813, %v6852
        %v6854 = vlaneseq
        %v6855 = vshrl.u32 %v6854, 7
        %v6856 = vsub.s32 6, %v6855
        %v6857 = vrot.slane %v6813, %v6856
        %v6858 = vlaneseq
        %v6859 = vshrl.u32 %v6858, 7
        %v6860 = vsub.s32 7, %v6859
        %v6861 = vrot.slane %v6813, %v6860
        %v6862 = vlaneseq
        %v6863 = vshrl.u32 %v6862, 7
        %v6864 = vsub.s32 0, %v6863
        %v6865 = vrot.slane %v6817, %v6864
        %v6866 = vlaneseq
        %v6867 = vshrl.u32 %v6866, 7
        %v6868 = vsub.s32 1, %v6867
        %v6869 = vrot.slane %v6817, %v6868
        %v6870 = vlaneseq
        %v6871 = vshrl.u32 %v6870, 7
        %v6872 = vsub.s32 2, %v6871
        %v6873 = vrot.slane %v6817, %v6872
        %v6874 = vlaneseq
        %v6875 = vshrl.u32 %v6874, 7
        %v6876 = vsub.s32 3, %v6875
        %v6877 = vrot.slane %v6817, %v6876
        %v6878 = vlaneseq
        %v6879 = vshrl.u32 %v6878, 7
        %v6880 = vsub.s32 4, %v6879
        %v6881 = vrot.slane %v6817, %v6880
        %v6882 = vlaneseq
        %v6883 = vshrl.u32 %v6882, 7
        %v6884 = vsub.s32 5, %v6883
        %v6885 = vrot.slane %v6817, %v6884
        %v6886 = vlaneseq
        %v6887 = vshrl.u32 %v6886, 7
        %v6888 = vsub.s32 6, %v6887
        %v6889 = vrot.slane %v6817, %v6888
        %v6890 = vlaneseq
        %v6891 = vshrl.u32 %v6890, 7
        %v6892 = vsub.s32 7, %v6891
        %v6893 = vrot.slane %v6817, %v6892
        %v6894 = vlaneseq
        %v6895 = vshrl.u32 %v6894, 7
        %v6896 = vsub.s32 0, %v6895
        %v6897 = vrot.slane %v6821, %v6896
        %v6898 = vlaneseq
        %v6899 = vshrl.u32 %v6898, 7
        %v6900 = vsub.s32 1, %v6899
        %v6901 = vrot.slane %v6821, %v6900
        %v6902 = vlaneseq
        %v6903 = vshrl.u32 %v6902, 7
        %v6904 = vsub.s32 2, %v6903
        %v6905 = vrot.slane %v6821, %v6904
        %v6906 = vlaneseq
        %v6907 = vshrl.u32 %v6906, 7
        %v6908 = vsub.s32 3, %v6907
        %v6909 = vrot.slane %v6821, %v6908
        %v6910 = vlaneseq
        %v6911 = vshrl.u32 %v6910, 7
        %v6912 = vsub.s32 4, %v6911
        %v6913 = vrot.slane %v6821, %v6912
        %v6914 = vlaneseq
        %v6915 = vshrl.u32 %v6914, 7
        %v6916 = vsub.s32 5, %v6915
        %v6917 = vrot.slane %v6821, %v6916
        %v6918 = vlaneseq
        %v6919 = vshrl.u32 %v6918, 7
        %v6920 = vsub.s32 6, %v6919
        %v6921 = vrot.slane %v6821, %v6920
        %v6922 = vlaneseq
        %v6923 = vshrl.u32 %v6922, 7
        %v6924 = vsub.s32 7, %v6923
        %v6925 = vrot.slane %v6821, %v6924
        %v6926 = vlaneseq
        %v6927 = vshrl.u32 %v6926, 7
        %v6928 = vsub.s32 0, %v6927
        %v6929 = vrot.slane %v6825, %v6928
        %v6930 = vlaneseq
        %v6931 = vshrl.u32 %v6930, 7
        %v6932 = vsub.s32 1, %v6931
        %v6933 = vrot.slane %v6825, %v6932
        %v6934 = vlaneseq
        %v6935 = vshrl.u32 %v6934, 7
        %v6936 = vsub.s32 2, %v6935
        %v6937 = vrot.slane %v6825, %v6936
        %v6938 = vlaneseq
        %v6939 = vshrl.u32 %v6938, 7
        %v6940 = vsub.s32 3, %v6939
        %v6941 = vrot.slane %v6825, %v6940
        %v6942 = vlaneseq
        %v6943 = vshrl.u32 %v6942, 7
        %v6944 = vsub.s32 4, %v6943
        %v6945 = vrot.slane %v6825, %v6944
        %v6946 = vlaneseq
        %v6947 = vshrl.u32 %v6946, 7
        %v6948 = vsub.s32 5, %v6947
        %v6949 = vrot.slane %v6825, %v6948
        %v6950 = vlaneseq
        %v6951 = vshrl.u32 %v6950, 7
        %v6952 = vsub.s32 6, %v6951
        %v6953 = vrot.slane %v6825, %v6952
        %v6954 = vlaneseq
        %v6955 = vshrl.u32 %v6954, 7
        %v6956 = vsub.s32 7, %v6955
        %v6957 = vrot.slane %v6825, %v6956
        %v6990 = vmul.f32 %v1735, %v6833
        %v6991 = vmul.f32 %v1734, %v6837
        %v6992 = vmul.f32 %v1733, %v6841
        %v6993 = vmul.f32 %v1732, %v6845
        %v6994 = vmul.f32 %v1731, %v6849
        %v6995 = vmul.f32 %v1730, %v6853
        %v6996 = vmul.f32 %v1729, %v6857
        %v6997 = vmul.f32 %v1728, %v6861
        %v6998 = vmul.f32 %v1727, %v6865
        %v6999 = vmul.f32 %v1726, %v6869
        %v7000 = vmul.f32 %v1725, %v6873
        %v7001 = vmul.f32 %v1724, %v6877
        %v7002 = vmul.f32 %v1723, %v6881
        %v7003 = vmul.f32 %v1722, %v6885
        %v7004 = vmul.f32 %v1721, %v6889
        %v7005 = vmul.f32 %v1720, %v6893
        %v7006 = vmul.f32 %v1719, %v6897
        %v7007 = vmul.f32 %v1718, %v6901
        %v7008 = vmul.f32 %v1717, %v6905
        %v7009 = vmul.f32 %v1716, %v6909
        %v7010 = vmul.f32 %v1715, %v6913
        %v7011 = vmul.f32 %v1714, %v6917
        %v7012 = vmul.f32 %v1713, %v6921
        %v7013 = vmul.f32 %v1712, %v6925
        %v7014 = vmul.f32 %v1711, %v6929
        %v7015 = vmul.f32 %v1710, %v6933
        %v7016 = vmul.f32 %v1709, %v6937
        %v7017 = vmul.f32 %v1708, %v6941
        %v7018 = vmul.f32 %v1739, %v6945
        %v7019 = vmul.f32 %v1738, %v6949
        %v7020 = vmul.f32 %v1737, %v6953
        %v7021 = vmul.f32 %v1736, %v6957
        %7022 = vst [vmem:[#allocation3 + $0x1200] sm:$0xff] %v6990
        %7023 = vst [vmem:[#allocation3 + $0x1208] sm:$0xff] %v6991
        %7024 = vst [vmem:[#allocation3 + $0x1210] sm:$0xff] %v6992
        %7025 = vst [vmem:[#allocation3 + $0x1218] sm:$0xff] %v6993
        %7026 = vst [vmem:[#allocation3 + $0x1220] sm:$0xff] %v6994
        %7027 = vst [vmem:[#allocation3 + $0x1228] sm:$0xff] %v6995
        %7028 = vst [vmem:[#allocation3 + $0x1230] sm:$0xff] %v6996
        %7029 = vst [vmem:[#allocation3 + $0x1238] sm:$0xff] %v6997
        %7030 = vst [vmem:[#allocation3 + $0x1240] sm:$0xff] %v6998
        %7031 = vst [vmem:[#allocation3 + $0x1248] sm:$0xff] %v6999
        %7032 = vst [vmem:[#allocation3 + $0x1250] sm:$0xff] %v7000
        %7033 = vst [vmem:[#allocation3 + $0x1258] sm:$0xff] %v7001
        %7034 = vst [vmem:[#allocation3 + $0x1260] sm:$0xff] %v7002
        %7035 = vst [vmem:[#allocation3 + $0x1268] sm:$0xff] %v7003
        %7036 = vst [vmem:[#allocation3 + $0x1270] sm:$0xff] %v7004
        %7037 = vst [vmem:[#allocation3 + $0x1278] sm:$0xff] %v7005
        %7038 = vst [vmem:[#allocation3 + $0x1280] sm:$0xff] %v7006
        %7039 = vst [vmem:[#allocation3 + $0x1288] sm:$0xff] %v7007
        %7040 = vst [vmem:[#allocation3 + $0x1290] sm:$0xff] %v7008
        %7041 = vst [vmem:[#allocation3 + $0x1298] sm:$0xff] %v7009
        %7042 = vst [vmem:[#allocation3 + $0x12a0] sm:$0xff] %v7010
        %7043 = vst [vmem:[#allocation3 + $0x12a8] sm:$0xff] %v7011
        %7044 = vst [vmem:[#allocation3 + $0x12b0] sm:$0xff] %v7012
        %7045 = vst [vmem:[#allocation3 + $0x12b8] sm:$0xff] %v7013
        %7046 = vst [vmem:[#allocation3 + $0x12c0] sm:$0xff] %v7014
        %7047 = vst [vmem:[#allocation3 + $0x12c8] sm:$0xff] %v7015
        %7048 = vst [vmem:[#allocation3 + $0x12d0] sm:$0xff] %v7016
        %7049 = vst [vmem:[#allocation3 + $0x12d8] sm:$0xff] %v7017
        %7050 = vst [vmem:[#allocation3 + $0x12e0] sm:$0xff] %v7018
        %7051 = vst [vmem:[#allocation3 + $0x12e8] sm:$0xff] %v7019
        %7052 = vst [vmem:[#allocation3 + $0x12f0] sm:$0xff] %v7020
        %7053 = vst [vmem:[#allocation3 + $0x12f8] sm:$0xff] %v7021
        %s7054 = scalar_lea.vmem [#allocation6], 515
        %v7055 = vld [vmem:[%s7054] ss:$8 sm:$0xf]
        %v7056 = vld [vmem:[%s7054] ss:$8 sm:$0xf0]
        %v7057 = vor.u32 %v7055, %v7056
        %s7058 = scalar_lea.vmem [#allocation6], 579
        %v7059 = vld [vmem:[%s7058] ss:$8 sm:$0xf]
        %v7060 = vld [vmem:[%s7058] ss:$8 sm:$0xf0]
        %v7061 = vor.u32 %v7059, %v7060
        %s7062 = scalar_lea.vmem [#allocation6], 643
        %v7063 = vld [vmem:[%s7062] ss:$8 sm:$0xf]
        %v7064 = vld [vmem:[%s7062] ss:$8 sm:$0xf0]
        %v7065 = vor.u32 %v7063, %v7064
        %s7066 = scalar_lea.vmem [#allocation6], 707
        %v7067 = vld [vmem:[%s7066] ss:$8 sm:$0xf]
        %v7068 = vld [vmem:[%s7066] ss:$8 sm:$0xf0]
        %v7069 = vor.u32 %v7067, %v7068
        %v7074 = vlaneseq
        %v7075 = vshrl.u32 %v7074, 7
        %v7076 = vsub.s32 0, %v7075
        %v7077 = vrot.slane %v7057, %v7076
        %v7078 = vlaneseq
        %v7079 = vshrl.u32 %v7078, 7
        %v7080 = vsub.s32 1, %v7079
        %v7081 = vrot.slane %v7057, %v7080
        %v7082 = vlaneseq
        %v7083 = vshrl.u32 %v7082, 7
        %v7084 = vsub.s32 2, %v7083
        %v7085 = vrot.slane %v7057, %v7084
        %v7086 = vlaneseq
        %v7087 = vshrl.u32 %v7086, 7
        %v7088 = vsub.s32 3, %v7087
        %v7089 = vrot.slane %v7057, %v7088
        %v7090 = vlaneseq
        %v7091 = vshrl.u32 %v7090, 7
        %v7092 = vsub.s32 4, %v7091
        %v7093 = vrot.slane %v7057, %v7092
        %v7094 = vlaneseq
        %v7095 = vshrl.u32 %v7094, 7
        %v7096 = vsub.s32 5, %v7095
        %v7097 = vrot.slane %v7057, %v7096
        %v7098 = vlaneseq
        %v7099 = vshrl.u32 %v7098, 7
        %v7100 = vsub.s32 6, %v7099
        %v7101 = vrot.slane %v7057, %v7100
        %v7102 = vlaneseq
        %v7103 = vshrl.u32 %v7102, 7
        %v7104 = vsub.s32 7, %v7103
        %v7105 = vrot.slane %v7057, %v7104
        %v7106 = vlaneseq
        %v7107 = vshrl.u32 %v7106, 7
        %v7108 = vsub.s32 0, %v7107
        %v7109 = vrot.slane %v7061, %v7108
        %v7110 = vlaneseq
        %v7111 = vshrl.u32 %v7110, 7
        %v7112 = vsub.s32 1, %v7111
        %v7113 = vrot.slane %v7061, %v7112
        %v7114 = vlaneseq
        %v7115 = vshrl.u32 %v7114, 7
        %v7116 = vsub.s32 2, %v7115
        %v7117 = vrot.slane %v7061, %v7116
        %v7118 = vlaneseq
        %v7119 = vshrl.u32 %v7118, 7
        %v7120 = vsub.s32 3, %v7119
        %v7121 = vrot.slane %v7061, %v7120
        %v7122 = vlaneseq
        %v7123 = vshrl.u32 %v7122, 7
        %v7124 = vsub.s32 4, %v7123
        %v7125 = vrot.slane %v7061, %v7124
        %v7126 = vlaneseq
        %v7127 = vshrl.u32 %v7126, 7
        %v7128 = vsub.s32 5, %v7127
        %v7129 = vrot.slane %v7061, %v7128
        %v7130 = vlaneseq
        %v7131 = vshrl.u32 %v7130, 7
        %v7132 = vsub.s32 6, %v7131
        %v7133 = vrot.slane %v7061, %v7132
        %v7134 = vlaneseq
        %v7135 = vshrl.u32 %v7134, 7
        %v7136 = vsub.s32 7, %v7135
        %v7137 = vrot.slane %v7061, %v7136
        %v7138 = vlaneseq
        %v7139 = vshrl.u32 %v7138, 7
        %v7140 = vsub.s32 0, %v7139
        %v7141 = vrot.slane %v7065, %v7140
        %v7142 = vlaneseq
        %v7143 = vshrl.u32 %v7142, 7
        %v7144 = vsub.s32 1, %v7143
        %v7145 = vrot.slane %v7065, %v7144
        %v7146 = vlaneseq
        %v7147 = vshrl.u32 %v7146, 7
        %v7148 = vsub.s32 2, %v7147
        %v7149 = vrot.slane %v7065, %v7148
        %v7150 = vlaneseq
        %v7151 = vshrl.u32 %v7150, 7
        %v7152 = vsub.s32 3, %v7151
        %v7153 = vrot.slane %v7065, %v7152
        %v7154 = vlaneseq
        %v7155 = vshrl.u32 %v7154, 7
        %v7156 = vsub.s32 4, %v7155
        %v7157 = vrot.slane %v7065, %v7156
        %v7158 = vlaneseq
        %v7159 = vshrl.u32 %v7158, 7
        %v7160 = vsub.s32 5, %v7159
        %v7161 = vrot.slane %v7065, %v7160
        %v7162 = vlaneseq
        %v7163 = vshrl.u32 %v7162, 7
        %v7164 = vsub.s32 6, %v7163
        %v7165 = vrot.slane %v7065, %v7164
        %v7166 = vlaneseq
        %v7167 = vshrl.u32 %v7166, 7
        %v7168 = vsub.s32 7, %v7167
        %v7169 = vrot.slane %v7065, %v7168
        %v7170 = vlaneseq
        %v7171 = vshrl.u32 %v7170, 7
        %v7172 = vsub.s32 0, %v7171
        %v7173 = vrot.slane %v7069, %v7172
        %v7174 = vlaneseq
        %v7175 = vshrl.u32 %v7174, 7
        %v7176 = vsub.s32 1, %v7175
        %v7177 = vrot.slane %v7069, %v7176
        %v7178 = vlaneseq
        %v7179 = vshrl.u32 %v7178, 7
        %v7180 = vsub.s32 2, %v7179
        %v7181 = vrot.slane %v7069, %v7180
        %v7182 = vlaneseq
        %v7183 = vshrl.u32 %v7182, 7
        %v7184 = vsub.s32 3, %v7183
        %v7185 = vrot.slane %v7069, %v7184
        %v7186 = vlaneseq
        %v7187 = vshrl.u32 %v7186, 7
        %v7188 = vsub.s32 4, %v7187
        %v7189 = vrot.slane %v7069, %v7188
        %v7190 = vlaneseq
        %v7191 = vshrl.u32 %v7190, 7
        %v7192 = vsub.s32 5, %v7191
        %v7193 = vrot.slane %v7069, %v7192
        %v7194 = vlaneseq
        %v7195 = vshrl.u32 %v7194, 7
        %v7196 = vsub.s32 6, %v7195
        %v7197 = vrot.slane %v7069, %v7196
        %v7198 = vlaneseq
        %v7199 = vshrl.u32 %v7198, 7
        %v7200 = vsub.s32 7, %v7199
        %v7201 = vrot.slane %v7069, %v7200
        %v7234 = vmul.f32 %v2075, %v7077
        %v7235 = vmul.f32 %v2074, %v7081
        %v7236 = vmul.f32 %v2073, %v7085
        %v7237 = vmul.f32 %v2072, %v7089
        %v7238 = vmul.f32 %v2071, %v7093
        %v7239 = vmul.f32 %v2070, %v7097
        %v7240 = vmul.f32 %v2069, %v7101
        %v7241 = vmul.f32 %v2068, %v7105
        %v7242 = vmul.f32 %v2067, %v7109
        %v7243 = vmul.f32 %v2066, %v7113
        %v7244 = vmul.f32 %v2065, %v7117
        %v7245 = vmul.f32 %v2064, %v7121
        %v7246 = vmul.f32 %v2063, %v7125
        %v7247 = vmul.f32 %v2062, %v7129
        %v7248 = vmul.f32 %v2061, %v7133
        %v7249 = vmul.f32 %v2060, %v7137
        %v7250 = vmul.f32 %v2059, %v7141
        %v7251 = vmul.f32 %v2058, %v7145
        %v7252 = vmul.f32 %v2057, %v7149
        %v7253 = vmul.f32 %v2056, %v7153
        %v7254 = vmul.f32 %v2055, %v7157
        %v7255 = vmul.f32 %v2054, %v7161
        %v7256 = vmul.f32 %v2053, %v7165
        %v7257 = vmul.f32 %v2052, %v7169
        %v7258 = vmul.f32 %v2051, %v7173
        %v7259 = vmul.f32 %v2050, %v7177
        %v7260 = vmul.f32 %v2049, %v7181
        %v7261 = vmul.f32 %v2048, %v7185
        %v7262 = vmul.f32 %v2079, %v7189
        %v7263 = vmul.f32 %v2078, %v7193
        %v7264 = vmul.f32 %v2077, %v7197
        %v7265 = vmul.f32 %v2076, %v7201
        %7266 = vst [vmem:[#allocation3 + $0x1300] sm:$0xff] %v7234
        %7267 = vst [vmem:[#allocation3 + $0x1308] sm:$0xff] %v7235
        %7268 = vst [vmem:[#allocation3 + $0x1310] sm:$0xff] %v7236
        %7269 = vst [vmem:[#allocation3 + $0x1318] sm:$0xff] %v7237
        %7270 = vst [vmem:[#allocation3 + $0x1320] sm:$0xff] %v7238
        %7271 = vst [vmem:[#allocation3 + $0x1328] sm:$0xff] %v7239
        %7272 = vst [vmem:[#allocation3 + $0x1330] sm:$0xff] %v7240
        %7273 = vst [vmem:[#allocation3 + $0x1338] sm:$0xff] %v7241
        %7274 = vst [vmem:[#allocation3 + $0x1340] sm:$0xff] %v7242
        %7275 = vst [vmem:[#allocation3 + $0x1348] sm:$0xff] %v7243
        %7276 = vst [vmem:[#allocation3 + $0x1350] sm:$0xff] %v7244
        %7277 = vst [vmem:[#allocation3 + $0x1358] sm:$0xff] %v7245
        %7278 = vst [vmem:[#allocation3 + $0x1360] sm:$0xff] %v7246
        %7279 = vst [vmem:[#allocation3 + $0x1368] sm:$0xff] %v7247
        %7280 = vst [vmem:[#allocation3 + $0x1370] sm:$0xff] %v7248
        %7281 = vst [vmem:[#allocation3 + $0x1378] sm:$0xff] %v7249
        %7282 = vst [vmem:[#allocation3 + $0x1380] sm:$0xff] %v7250
        %7283 = vst [vmem:[#allocation3 + $0x1388] sm:$0xff] %v7251
        %7284 = vst [vmem:[#allocation3 + $0x1390] sm:$0xff] %v7252
        %7285 = vst [vmem:[#allocation3 + $0x1398] sm:$0xff] %v7253
        %7286 = vst [vmem:[#allocation3 + $0x13a0] sm:$0xff] %v7254
        %7287 = vst [vmem:[#allocation3 + $0x13a8] sm:$0xff] %v7255
        %7288 = vst [vmem:[#allocation3 + $0x13b0] sm:$0xff] %v7256
        %7289 = vst [vmem:[#allocation3 + $0x13b8] sm:$0xff] %v7257
        %7290 = vst [vmem:[#allocation3 + $0x13c0] sm:$0xff] %v7258
        %7291 = vst [vmem:[#allocation3 + $0x13c8] sm:$0xff] %v7259
        %7292 = vst [vmem:[#allocation3 + $0x13d0] sm:$0xff] %v7260
        %7293 = vst [vmem:[#allocation3 + $0x13d8] sm:$0xff] %v7261
        %7294 = vst [vmem:[#allocation3 + $0x13e0] sm:$0xff] %v7262
        %7295 = vst [vmem:[#allocation3 + $0x13e8] sm:$0xff] %v7263
        %7296 = vst [vmem:[#allocation3 + $0x13f0] sm:$0xff] %v7264
        %7297 = vst [vmem:[#allocation3 + $0x13f8] sm:$0xff] %v7265
        %s7298 = scalar_lea.vmem [#allocation6], 516
        %v7299 = vld [vmem:[%s7298] ss:$8 sm:$0xf]
        %v7300 = vld [vmem:[%s7298] ss:$8 sm:$0xf0]
        %v7301 = vor.u32 %v7299, %v7300
        %s7302 = scalar_lea.vmem [#allocation6], 580
        %v7303 = vld [vmem:[%s7302] ss:$8 sm:$0xf]
        %v7304 = vld [vmem:[%s7302] ss:$8 sm:$0xf0]
        %v7305 = vor.u32 %v7303, %v7304
        %s7306 = scalar_lea.vmem [#allocation6], 644
        %v7307 = vld [vmem:[%s7306] ss:$8 sm:$0xf]
        %v7308 = vld [vmem:[%s7306] ss:$8 sm:$0xf0]
        %v7309 = vor.u32 %v7307, %v7308
        %s7310 = scalar_lea.vmem [#allocation6], 708
        %v7311 = vld [vmem:[%s7310] ss:$8 sm:$0xf]
        %v7312 = vld [vmem:[%s7310] ss:$8 sm:$0xf0]
        %v7313 = vor.u32 %v7311, %v7312
        %v7318 = vlaneseq
        %v7319 = vshrl.u32 %v7318, 7
        %v7320 = vsub.s32 0, %v7319
        %v7321 = vrot.slane %v7301, %v7320
        %v7322 = vlaneseq
        %v7323 = vshrl.u32 %v7322, 7
        %v7324 = vsub.s32 1, %v7323
        %v7325 = vrot.slane %v7301, %v7324
        %v7326 = vlaneseq
        %v7327 = vshrl.u32 %v7326, 7
        %v7328 = vsub.s32 2, %v7327
        %v7329 = vrot.slane %v7301, %v7328
        %v7330 = vlaneseq
        %v7331 = vshrl.u32 %v7330, 7
        %v7332 = vsub.s32 3, %v7331
        %v7333 = vrot.slane %v7301, %v7332
        %v7334 = vlaneseq
        %v7335 = vshrl.u32 %v7334, 7
        %v7336 = vsub.s32 4, %v7335
        %v7337 = vrot.slane %v7301, %v7336
        %v7338 = vlaneseq
        %v7339 = vshrl.u32 %v7338, 7
        %v7340 = vsub.s32 5, %v7339
        %v7341 = vrot.slane %v7301, %v7340
        %v7342 = vlaneseq
        %v7343 = vshrl.u32 %v7342, 7
        %v7344 = vsub.s32 6, %v7343
        %v7345 = vrot.slane %v7301, %v7344
        %v7346 = vlaneseq
        %v7347 = vshrl.u32 %v7346, 7
        %v7348 = vsub.s32 7, %v7347
        %v7349 = vrot.slane %v7301, %v7348
        %v7350 = vlaneseq
        %v7351 = vshrl.u32 %v7350, 7
        %v7352 = vsub.s32 0, %v7351
        %v7353 = vrot.slane %v7305, %v7352
        %v7354 = vlaneseq
        %v7355 = vshrl.u32 %v7354, 7
        %v7356 = vsub.s32 1, %v7355
        %v7357 = vrot.slane %v7305, %v7356
        %v7358 = vlaneseq
        %v7359 = vshrl.u32 %v7358, 7
        %v7360 = vsub.s32 2, %v7359
        %v7361 = vrot.slane %v7305, %v7360
        %v7362 = vlaneseq
        %v7363 = vshrl.u32 %v7362, 7
        %v7364 = vsub.s32 3, %v7363
        %v7365 = vrot.slane %v7305, %v7364
        %v7366 = vlaneseq
        %v7367 = vshrl.u32 %v7366, 7
        %v7368 = vsub.s32 4, %v7367
        %v7369 = vrot.slane %v7305, %v7368
        %v7370 = vlaneseq
        %v7371 = vshrl.u32 %v7370, 7
        %v7372 = vsub.s32 5, %v7371
        %v7373 = vrot.slane %v7305, %v7372
        %v7374 = vlaneseq
        %v7375 = vshrl.u32 %v7374, 7
        %v7376 = vsub.s32 6, %v7375
        %v7377 = vrot.slane %v7305, %v7376
        %v7378 = vlaneseq
        %v7379 = vshrl.u32 %v7378, 7
        %v7380 = vsub.s32 7, %v7379
        %v7381 = vrot.slane %v7305, %v7380
        %v7382 = vlaneseq
        %v7383 = vshrl.u32 %v7382, 7
        %v7384 = vsub.s32 0, %v7383
        %v7385 = vrot.slane %v7309, %v7384
        %v7386 = vlaneseq
        %v7387 = vshrl.u32 %v7386, 7
        %v7388 = vsub.s32 1, %v7387
        %v7389 = vrot.slane %v7309, %v7388
        %v7390 = vlaneseq
        %v7391 = vshrl.u32 %v7390, 7
        %v7392 = vsub.s32 2, %v7391
        %v7393 = vrot.slane %v7309, %v7392
        %v7394 = vlaneseq
        %v7395 = vshrl.u32 %v7394, 7
        %v7396 = vsub.s32 3, %v7395
        %v7397 = vrot.slane %v7309, %v7396
        %v7398 = vlaneseq
        %v7399 = vshrl.u32 %v7398, 7
        %v7400 = vsub.s32 4, %v7399
        %v7401 = vrot.slane %v7309, %v7400
        %v7402 = vlaneseq
        %v7403 = vshrl.u32 %v7402, 7
        %v7404 = vsub.s32 5, %v7403
        %v7405 = vrot.slane %v7309, %v7404
        %v7406 = vlaneseq
        %v7407 = vshrl.u32 %v7406, 7
        %v7408 = vsub.s32 6, %v7407
        %v7409 = vrot.slane %v7309, %v7408
        %v7410 = vlaneseq
        %v7411 = vshrl.u32 %v7410, 7
        %v7412 = vsub.s32 7, %v7411
        %v7413 = vrot.slane %v7309, %v7412
        %v7414 = vlaneseq
        %v7415 = vshrl.u32 %v7414, 7
        %v7416 = vsub.s32 0, %v7415
        %v7417 = vrot.slane %v7313, %v7416
        %v7418 = vlaneseq
        %v7419 = vshrl.u32 %v7418, 7
        %v7420 = vsub.s32 1, %v7419
        %v7421 = vrot.slane %v7313, %v7420
        %v7422 = vlaneseq
        %v7423 = vshrl.u32 %v7422, 7
        %v7424 = vsub.s32 2, %v7423
        %v7425 = vrot.slane %v7313, %v7424
        %v7426 = vlaneseq
        %v7427 = vshrl.u32 %v7426, 7
        %v7428 = vsub.s32 3, %v7427
        %v7429 = vrot.slane %v7313, %v7428
        %v7430 = vlaneseq
        %v7431 = vshrl.u32 %v7430, 7
        %v7432 = vsub.s32 4, %v7431
        %v7433 = vrot.slane %v7313, %v7432
        %v7434 = vlaneseq
        %v7435 = vshrl.u32 %v7434, 7
        %v7436 = vsub.s32 5, %v7435
        %v7437 = vrot.slane %v7313, %v7436
        %v7438 = vlaneseq
        %v7439 = vshrl.u32 %v7438, 7
        %v7440 = vsub.s32 6, %v7439
        %v7441 = vrot.slane %v7313, %v7440
        %v7442 = vlaneseq
        %v7443 = vshrl.u32 %v7442, 7
        %v7444 = vsub.s32 7, %v7443
        %v7445 = vrot.slane %v7313, %v7444
        %v7478 = vmul.f32 %v2416, %v7321
        %v7479 = vmul.f32 %v2415, %v7325
        %v7480 = vmul.f32 %v2414, %v7329
        %v7481 = vmul.f32 %v2413, %v7333
        %v7482 = vmul.f32 %v2412, %v7337
        %v7483 = vmul.f32 %v2411, %v7341
        %v7484 = vmul.f32 %v2410, %v7345
        %v7485 = vmul.f32 %v2409, %v7349
        %v7486 = vmul.f32 %v2408, %v7353
        %v7487 = vmul.f32 %v2407, %v7357
        %v7488 = vmul.f32 %v2406, %v7361
        %v7489 = vmul.f32 %v2405, %v7365
        %v7490 = vmul.f32 %v2404, %v7369
        %v7491 = vmul.f32 %v2403, %v7373
        %v7492 = vmul.f32 %v2402, %v7377
        %v7493 = vmul.f32 %v2401, %v7381
        %v7494 = vmul.f32 %v2400, %v7385
        %v7495 = vmul.f32 %v2399, %v7389
        %v7496 = vmul.f32 %v2398, %v7393
        %v7497 = vmul.f32 %v2397, %v7397
        %v7498 = vmul.f32 %v2396, %v7401
        %v7499 = vmul.f32 %v2395, %v7405
        %v7500 = vmul.f32 %v2394, %v7409
        %v7501 = vmul.f32 %v2393, %v7413
        %v7502 = vmul.f32 %v2392, %v7417
        %v7503 = vmul.f32 %v2391, %v7421
        %v7504 = vmul.f32 %v2390, %v7425
        %v7505 = vmul.f32 %v2389, %v7429
        %v7506 = vmul.f32 %v2420, %v7433
        %v7507 = vmul.f32 %v2419, %v7437
        %v7508 = vmul.f32 %v2418, %v7441
        %v7509 = vmul.f32 %v2417, %v7445
        %7510 = vst [vmem:[#allocation3 + $0x1400] sm:$0xff] %v7478
        %7511 = vst [vmem:[#allocation3 + $0x1408] sm:$0xff] %v7479
        %7512 = vst [vmem:[#allocation3 + $0x1410] sm:$0xff] %v7480
        %7513 = vst [vmem:[#allocation3 + $0x1418] sm:$0xff] %v7481
        %7514 = vst [vmem:[#allocation3 + $0x1420] sm:$0xff] %v7482
        %7515 = vst [vmem:[#allocation3 + $0x1428] sm:$0xff] %v7483
        %7516 = vst [vmem:[#allocation3 + $0x1430] sm:$0xff] %v7484
        %7517 = vst [vmem:[#allocation3 + $0x1438] sm:$0xff] %v7485
        %7518 = vst [vmem:[#allocation3 + $0x1440] sm:$0xff] %v7486
        %7519 = vst [vmem:[#allocation3 + $0x1448] sm:$0xff] %v7487
        %7520 = vst [vmem:[#allocation3 + $0x1450] sm:$0xff] %v7488
        %7521 = vst [vmem:[#allocation3 + $0x1458] sm:$0xff] %v7489
        %7522 = vst [vmem:[#allocation3 + $0x1460] sm:$0xff] %v7490
        %7523 = vst [vmem:[#allocation3 + $0x1468] sm:$0xff] %v7491
        %7524 = vst [vmem:[#allocation3 + $0x1470] sm:$0xff] %v7492
        %7525 = vst [vmem:[#allocation3 + $0x1478] sm:$0xff] %v7493
        %7526 = vst [vmem:[#allocation3 + $0x1480] sm:$0xff] %v7494
        %7527 = vst [vmem:[#allocation3 + $0x1488] sm:$0xff] %v7495
        %7528 = vst [vmem:[#allocation3 + $0x1490] sm:$0xff] %v7496
        %7529 = vst [vmem:[#allocation3 + $0x1498] sm:$0xff] %v7497
        %7530 = vst [vmem:[#allocation3 + $0x14a0] sm:$0xff] %v7498
        %7531 = vst [vmem:[#allocation3 + $0x14a8] sm:$0xff] %v7499
        %7532 = vst [vmem:[#allocation3 + $0x14b0] sm:$0xff] %v7500
        %7533 = vst [vmem:[#allocation3 + $0x14b8] sm:$0xff] %v7501
        %7534 = vst [vmem:[#allocation3 + $0x14c0] sm:$0xff] %v7502
        %7535 = vst [vmem:[#allocation3 + $0x14c8] sm:$0xff] %v7503
        %7536 = vst [vmem:[#allocation3 + $0x14d0] sm:$0xff] %v7504
        %7537 = vst [vmem:[#allocation3 + $0x14d8] sm:$0xff] %v7505
        %7538 = vst [vmem:[#allocation3 + $0x14e0] sm:$0xff] %v7506
        %7539 = vst [vmem:[#allocation3 + $0x14e8] sm:$0xff] %v7507
        %7540 = vst [vmem:[#allocation3 + $0x14f0] sm:$0xff] %v7508
        %7541 = vst [vmem:[#allocation3 + $0x14f8] sm:$0xff] %v7509
        %s7542 = scalar_lea.vmem [#allocation6], 517
        %v7543 = vld [vmem:[%s7542] ss:$8 sm:$0xf]
        %v7544 = vld [vmem:[%s7542] ss:$8 sm:$0xf0]
        %v7545 = vor.u32 %v7543, %v7544
        %s7546 = scalar_lea.vmem [#allocation6], 581
        %v7547 = vld [vmem:[%s7546] ss:$8 sm:$0xf]
        %v7548 = vld [vmem:[%s7546] ss:$8 sm:$0xf0]
        %v7549 = vor.u32 %v7547, %v7548
        %s7550 = scalar_lea.vmem [#allocation6], 645
        %v7551 = vld [vmem:[%s7550] ss:$8 sm:$0xf]
        %v7552 = vld [vmem:[%s7550] ss:$8 sm:$0xf0]
        %v7553 = vor.u32 %v7551, %v7552
        %s7554 = scalar_lea.vmem [#allocation6], 709
        %v7555 = vld [vmem:[%s7554] ss:$8 sm:$0xf]
        %v7556 = vld [vmem:[%s7554] ss:$8 sm:$0xf0]
        %v7557 = vor.u32 %v7555, %v7556
        %v7562 = vlaneseq
        %v7563 = vshrl.u32 %v7562, 7
        %v7564 = vsub.s32 0, %v7563
        %v7565 = vrot.slane %v7545, %v7564
        %v7566 = vlaneseq
        %v7567 = vshrl.u32 %v7566, 7
        %v7568 = vsub.s32 1, %v7567
        %v7569 = vrot.slane %v7545, %v7568
        %v7570 = vlaneseq
        %v7571 = vshrl.u32 %v7570, 7
        %v7572 = vsub.s32 2, %v7571
        %v7573 = vrot.slane %v7545, %v7572
        %v7574 = vlaneseq
        %v7575 = vshrl.u32 %v7574, 7
        %v7576 = vsub.s32 3, %v7575
        %v7577 = vrot.slane %v7545, %v7576
        %v7578 = vlaneseq
        %v7579 = vshrl.u32 %v7578, 7
        %v7580 = vsub.s32 4, %v7579
        %v7581 = vrot.slane %v7545, %v7580
        %v7582 = vlaneseq
        %v7583 = vshrl.u32 %v7582, 7
        %v7584 = vsub.s32 5, %v7583
        %v7585 = vrot.slane %v7545, %v7584
        %v7586 = vlaneseq
        %v7587 = vshrl.u32 %v7586, 7
        %v7588 = vsub.s32 6, %v7587
        %v7589 = vrot.slane %v7545, %v7588
        %v7590 = vlaneseq
        %v7591 = vshrl.u32 %v7590, 7
        %v7592 = vsub.s32 7, %v7591
        %v7593 = vrot.slane %v7545, %v7592
        %v7594 = vlaneseq
        %v7595 = vshrl.u32 %v7594, 7
        %v7596 = vsub.s32 0, %v7595
        %v7597 = vrot.slane %v7549, %v7596
        %v7598 = vlaneseq
        %v7599 = vshrl.u32 %v7598, 7
        %v7600 = vsub.s32 1, %v7599
        %v7601 = vrot.slane %v7549, %v7600
        %v7602 = vlaneseq
        %v7603 = vshrl.u32 %v7602, 7
        %v7604 = vsub.s32 2, %v7603
        %v7605 = vrot.slane %v7549, %v7604
        %v7606 = vlaneseq
        %v7607 = vshrl.u32 %v7606, 7
        %v7608 = vsub.s32 3, %v7607
        %v7609 = vrot.slane %v7549, %v7608
        %v7610 = vlaneseq
        %v7611 = vshrl.u32 %v7610, 7
        %v7612 = vsub.s32 4, %v7611
        %v7613 = vrot.slane %v7549, %v7612
        %v7614 = vlaneseq
        %v7615 = vshrl.u32 %v7614, 7
        %v7616 = vsub.s32 5, %v7615
        %v7617 = vrot.slane %v7549, %v7616
        %v7618 = vlaneseq
        %v7619 = vshrl.u32 %v7618, 7
        %v7620 = vsub.s32 6, %v7619
        %v7621 = vrot.slane %v7549, %v7620
        %v7622 = vlaneseq
        %v7623 = vshrl.u32 %v7622, 7
        %v7624 = vsub.s32 7, %v7623
        %v7625 = vrot.slane %v7549, %v7624
        %v7626 = vlaneseq
        %v7627 = vshrl.u32 %v7626, 7
        %v7628 = vsub.s32 0, %v7627
        %v7629 = vrot.slane %v7553, %v7628
        %v7630 = vlaneseq
        %v7631 = vshrl.u32 %v7630, 7
        %v7632 = vsub.s32 1, %v7631
        %v7633 = vrot.slane %v7553, %v7632
        %v7634 = vlaneseq
        %v7635 = vshrl.u32 %v7634, 7
        %v7636 = vsub.s32 2, %v7635
        %v7637 = vrot.slane %v7553, %v7636
        %v7638 = vlaneseq
        %v7639 = vshrl.u32 %v7638, 7
        %v7640 = vsub.s32 3, %v7639
        %v7641 = vrot.slane %v7553, %v7640
        %v7642 = vlaneseq
        %v7643 = vshrl.u32 %v7642, 7
        %v7644 = vsub.s32 4, %v7643
        %v7645 = vrot.slane %v7553, %v7644
        %v7646 = vlaneseq
        %v7647 = vshrl.u32 %v7646, 7
        %v7648 = vsub.s32 5, %v7647
        %v7649 = vrot.slane %v7553, %v7648
        %v7650 = vlaneseq
        %v7651 = vshrl.u32 %v7650, 7
        %v7652 = vsub.s32 6, %v7651
        %v7653 = vrot.slane %v7553, %v7652
        %v7654 = vlaneseq
        %v7655 = vshrl.u32 %v7654, 7
        %v7656 = vsub.s32 7, %v7655
        %v7657 = vrot.slane %v7553, %v7656
        %v7658 = vlaneseq
        %v7659 = vshrl.u32 %v7658, 7
        %v7660 = vsub.s32 0, %v7659
        %v7661 = vrot.slane %v7557, %v7660
        %v7662 = vlaneseq
        %v7663 = vshrl.u32 %v7662, 7
        %v7664 = vsub.s32 1, %v7663
        %v7665 = vrot.slane %v7557, %v7664
        %v7666 = vlaneseq
        %v7667 = vshrl.u32 %v7666, 7
        %v7668 = vsub.s32 2, %v7667
        %v7669 = vrot.slane %v7557, %v7668
        %v7670 = vlaneseq
        %v7671 = vshrl.u32 %v7670, 7
        %v7672 = vsub.s32 3, %v7671
        %v7673 = vrot.slane %v7557, %v7672
        %v7674 = vlaneseq
        %v7675 = vshrl.u32 %v7674, 7
        %v7676 = vsub.s32 4, %v7675
        %v7677 = vrot.slane %v7557, %v7676
        %v7678 = vlaneseq
        %v7679 = vshrl.u32 %v7678, 7
        %v7680 = vsub.s32 5, %v7679
        %v7681 = vrot.slane %v7557, %v7680
        %v7682 = vlaneseq
        %v7683 = vshrl.u32 %v7682, 7
        %v7684 = vsub.s32 6, %v7683
        %v7685 = vrot.slane %v7557, %v7684
        %v7686 = vlaneseq
        %v7687 = vshrl.u32 %v7686, 7
        %v7688 = vsub.s32 7, %v7687
        %v7689 = vrot.slane %v7557, %v7688
        %v7722 = vmul.f32 %v2757, %v7565
        %v7723 = vmul.f32 %v2756, %v7569
        %v7724 = vmul.f32 %v2755, %v7573
        %v7725 = vmul.f32 %v2754, %v7577
        %v7726 = vmul.f32 %v2753, %v7581
        %v7727 = vmul.f32 %v2752, %v7585
        %v7728 = vmul.f32 %v2751, %v7589
        %v7729 = vmul.f32 %v2750, %v7593
        %v7730 = vmul.f32 %v2749, %v7597
        %v7731 = vmul.f32 %v2748, %v7601
        %v7732 = vmul.f32 %v2747, %v7605
        %v7733 = vmul.f32 %v2746, %v7609
        %v7734 = vmul.f32 %v2745, %v7613
        %v7735 = vmul.f32 %v2744, %v7617
        %v7736 = vmul.f32 %v2743, %v7621
        %v7737 = vmul.f32 %v2742, %v7625
        %v7738 = vmul.f32 %v2741, %v7629
        %v7739 = vmul.f32 %v2740, %v7633
        %v7740 = vmul.f32 %v2739, %v7637
        %v7741 = vmul.f32 %v2738, %v7641
        %v7742 = vmul.f32 %v2737, %v7645
        %v7743 = vmul.f32 %v2736, %v7649
        %v7744 = vmul.f32 %v2735, %v7653
        %v7745 = vmul.f32 %v2734, %v7657
        %v7746 = vmul.f32 %v2733, %v7661
        %v7747 = vmul.f32 %v2732, %v7665
        %v7748 = vmul.f32 %v2731, %v7669
        %v7749 = vmul.f32 %v2730, %v7673
        %v7750 = vmul.f32 %v2761, %v7677
        %v7751 = vmul.f32 %v2760, %v7681
        %v7752 = vmul.f32 %v2759, %v7685
        %v7753 = vmul.f32 %v2758, %v7689
        %7754 = vst [vmem:[#allocation3 + $0x1500] sm:$0xff] %v7722
        %7755 = vst [vmem:[#allocation3 + $0x1508] sm:$0xff] %v7723
        %7756 = vst [vmem:[#allocation3 + $0x1510] sm:$0xff] %v7724
        %7757 = vst [vmem:[#allocation3 + $0x1518] sm:$0xff] %v7725
        %7758 = vst [vmem:[#allocation3 + $0x1520] sm:$0xff] %v7726
        %7759 = vst [vmem:[#allocation3 + $0x1528] sm:$0xff] %v7727
        %7760 = vst [vmem:[#allocation3 + $0x1530] sm:$0xff] %v7728
        %7761 = vst [vmem:[#allocation3 + $0x1538] sm:$0xff] %v7729
        %7762 = vst [vmem:[#allocation3 + $0x1540] sm:$0xff] %v7730
        %7763 = vst [vmem:[#allocation3 + $0x1548] sm:$0xff] %v7731
        %7764 = vst [vmem:[#allocation3 + $0x1550] sm:$0xff] %v7732
        %7765 = vst [vmem:[#allocation3 + $0x1558] sm:$0xff] %v7733
        %7766 = vst [vmem:[#allocation3 + $0x1560] sm:$0xff] %v7734
        %7767 = vst [vmem:[#allocation3 + $0x1568] sm:$0xff] %v7735
        %7768 = vst [vmem:[#allocation3 + $0x1570] sm:$0xff] %v7736
        %7769 = vst [vmem:[#allocation3 + $0x1578] sm:$0xff] %v7737
        %7770 = vst [vmem:[#allocation3 + $0x1580] sm:$0xff] %v7738
        %7771 = vst [vmem:[#allocation3 + $0x1588] sm:$0xff] %v7739
        %7772 = vst [vmem:[#allocation3 + $0x1590] sm:$0xff] %v7740
        %7773 = vst [vmem:[#allocation3 + $0x1598] sm:$0xff] %v7741
        %7774 = vst [vmem:[#allocation3 + $0x15a0] sm:$0xff] %v7742
        %7775 = vst [vmem:[#allocation3 + $0x15a8] sm:$0xff] %v7743
        %7776 = vst [vmem:[#allocation3 + $0x15b0] sm:$0xff] %v7744
        %7777 = vst [vmem:[#allocation3 + $0x15b8] sm:$0xff] %v7745
        %7778 = vst [vmem:[#allocation3 + $0x15c0] sm:$0xff] %v7746
        %7779 = vst [vmem:[#allocation3 + $0x15c8] sm:$0xff] %v7747
        %7780 = vst [vmem:[#allocation3 + $0x15d0] sm:$0xff] %v7748
        %7781 = vst [vmem:[#allocation3 + $0x15d8] sm:$0xff] %v7749
        %7782 = vst [vmem:[#allocation3 + $0x15e0] sm:$0xff] %v7750
        %7783 = vst [vmem:[#allocation3 + $0x15e8] sm:$0xff] %v7751
        %7784 = vst [vmem:[#allocation3 + $0x15f0] sm:$0xff] %v7752
        %7785 = vst [vmem:[#allocation3 + $0x15f8] sm:$0xff] %v7753
        %s7786 = scalar_lea.vmem [#allocation6], 518
        %v7787 = vld [vmem:[%s7786] ss:$8 sm:$0xf]
        %v7788 = vld [vmem:[%s7786] ss:$8 sm:$0xf0]
        %v7789 = vor.u32 %v7787, %v7788
        %s7790 = scalar_lea.vmem [#allocation6], 582
        %v7791 = vld [vmem:[%s7790] ss:$8 sm:$0xf]
        %v7792 = vld [vmem:[%s7790] ss:$8 sm:$0xf0]
        %v7793 = vor.u32 %v7791, %v7792
        %s7794 = scalar_lea.vmem [#allocation6], 646
        %v7795 = vld [vmem:[%s7794] ss:$8 sm:$0xf]
        %v7796 = vld [vmem:[%s7794] ss:$8 sm:$0xf0]
        %v7797 = vor.u32 %v7795, %v7796
        %s7798 = scalar_lea.vmem [#allocation6], 710
        %v7799 = vld [vmem:[%s7798] ss:$8 sm:$0xf]
        %v7800 = vld [vmem:[%s7798] ss:$8 sm:$0xf0]
        %v7801 = vor.u32 %v7799, %v7800
        %v7806 = vlaneseq
        %v7807 = vshrl.u32 %v7806, 7
        %v7808 = vsub.s32 0, %v7807
        %v7809 = vrot.slane %v7789, %v7808
        %v7810 = vlaneseq
        %v7811 = vshrl.u32 %v7810, 7
        %v7812 = vsub.s32 1, %v7811
        %v7813 = vrot.slane %v7789, %v7812
        %v7814 = vlaneseq
        %v7815 = vshrl.u32 %v7814, 7
        %v7816 = vsub.s32 2, %v7815
        %v7817 = vrot.slane %v7789, %v7816
        %v7818 = vlaneseq
        %v7819 = vshrl.u32 %v7818, 7
        %v7820 = vsub.s32 3, %v7819
        %v7821 = vrot.slane %v7789, %v7820
        %v7822 = vlaneseq
        %v7823 = vshrl.u32 %v7822, 7
        %v7824 = vsub.s32 4, %v7823
        %v7825 = vrot.slane %v7789, %v7824
        %v7826 = vlaneseq
        %v7827 = vshrl.u32 %v7826, 7
        %v7828 = vsub.s32 5, %v7827
        %v7829 = vrot.slane %v7789, %v7828
        %v7830 = vlaneseq
        %v7831 = vshrl.u32 %v7830, 7
        %v7832 = vsub.s32 6, %v7831
        %v7833 = vrot.slane %v7789, %v7832
        %v7834 = vlaneseq
        %v7835 = vshrl.u32 %v7834, 7
        %v7836 = vsub.s32 7, %v7835
        %v7837 = vrot.slane %v7789, %v7836
        %v7838 = vlaneseq
        %v7839 = vshrl.u32 %v7838, 7
        %v7840 = vsub.s32 0, %v7839
        %v7841 = vrot.slane %v7793, %v7840
        %v7842 = vlaneseq
        %v7843 = vshrl.u32 %v7842, 7
        %v7844 = vsub.s32 1, %v7843
        %v7845 = vrot.slane %v7793, %v7844
        %v7846 = vlaneseq
        %v7847 = vshrl.u32 %v7846, 7
        %v7848 = vsub.s32 2, %v7847
        %v7849 = vrot.slane %v7793, %v7848
        %v7850 = vlaneseq
        %v7851 = vshrl.u32 %v7850, 7
        %v7852 = vsub.s32 3, %v7851
        %v7853 = vrot.slane %v7793, %v7852
        %v7854 = vlaneseq
        %v7855 = vshrl.u32 %v7854, 7
        %v7856 = vsub.s32 4, %v7855
        %v7857 = vrot.slane %v7793, %v7856
        %v7858 = vlaneseq
        %v7859 = vshrl.u32 %v7858, 7
        %v7860 = vsub.s32 5, %v7859
        %v7861 = vrot.slane %v7793, %v7860
        %v7862 = vlaneseq
        %v7863 = vshrl.u32 %v7862, 7
        %v7864 = vsub.s32 6, %v7863
        %v7865 = vrot.slane %v7793, %v7864
        %v7866 = vlaneseq
        %v7867 = vshrl.u32 %v7866, 7
        %v7868 = vsub.s32 7, %v7867
        %v7869 = vrot.slane %v7793, %v7868
        %v7870 = vlaneseq
        %v7871 = vshrl.u32 %v7870, 7
        %v7872 = vsub.s32 0, %v7871
        %v7873 = vrot.slane %v7797, %v7872
        %v7874 = vlaneseq
        %v7875 = vshrl.u32 %v7874, 7
        %v7876 = vsub.s32 1, %v7875
        %v7877 = vrot.slane %v7797, %v7876
        %v7878 = vlaneseq
        %v7879 = vshrl.u32 %v7878, 7
        %v7880 = vsub.s32 2, %v7879
        %v7881 = vrot.slane %v7797, %v7880
        %v7882 = vlaneseq
        %v7883 = vshrl.u32 %v7882, 7
        %v7884 = vsub.s32 3, %v7883
        %v7885 = vrot.slane %v7797, %v7884
        %v7886 = vlaneseq
        %v7887 = vshrl.u32 %v7886, 7
        %v7888 = vsub.s32 4, %v7887
        %v7889 = vrot.slane %v7797, %v7888
        %v7890 = vlaneseq
        %v7891 = vshrl.u32 %v7890, 7
        %v7892 = vsub.s32 5, %v7891
        %v7893 = vrot.slane %v7797, %v7892
        %v7894 = vlaneseq
        %v7895 = vshrl.u32 %v7894, 7
        %v7896 = vsub.s32 6, %v7895
        %v7897 = vrot.slane %v7797, %v7896
        %v7898 = vlaneseq
        %v7899 = vshrl.u32 %v7898, 7
        %v7900 = vsub.s32 7, %v7899
        %v7901 = vrot.slane %v7797, %v7900
        %v7902 = vlaneseq
        %v7903 = vshrl.u32 %v7902, 7
        %v7904 = vsub.s32 0, %v7903
        %v7905 = vrot.slane %v7801, %v7904
        %v7906 = vlaneseq
        %v7907 = vshrl.u32 %v7906, 7
        %v7908 = vsub.s32 1, %v7907
        %v7909 = vrot.slane %v7801, %v7908
        %v7910 = vlaneseq
        %v7911 = vshrl.u32 %v7910, 7
        %v7912 = vsub.s32 2, %v7911
        %v7913 = vrot.slane %v7801, %v7912
        %v7914 = vlaneseq
        %v7915 = vshrl.u32 %v7914, 7
        %v7916 = vsub.s32 3, %v7915
        %v7917 = vrot.slane %v7801, %v7916
        %v7918 = vlaneseq
        %v7919 = vshrl.u32 %v7918, 7
        %v7920 = vsub.s32 4, %v7919
        %v7921 = vrot.slane %v7801, %v7920
        %v7922 = vlaneseq
        %v7923 = vshrl.u32 %v7922, 7
        %v7924 = vsub.s32 5, %v7923
        %v7925 = vrot.slane %v7801, %v7924
        %v7926 = vlaneseq
        %v7927 = vshrl.u32 %v7926, 7
        %v7928 = vsub.s32 6, %v7927
        %v7929 = vrot.slane %v7801, %v7928
        %v7930 = vlaneseq
        %v7931 = vshrl.u32 %v7930, 7
        %v7932 = vsub.s32 7, %v7931
        %v7933 = vrot.slane %v7801, %v7932
        %v7966 = vmul.f32 %v1613, %v7809
        %v7967 = vmul.f32 %v1614, %v7813
        %v7968 = vmul.f32 %v1615, %v7817
        %v7969 = vmul.f32 %v1616, %v7821
        %v7970 = vmul.f32 %v1617, %v7825
        %v7971 = vmul.f32 %v1618, %v7829
        %v7972 = vmul.f32 %v1619, %v7833
        %v7973 = vmul.f32 %v1620, %v7837
        %v7974 = vmul.f32 %v1621, %v7841
        %v7975 = vmul.f32 %v1622, %v7845
        %v7976 = vmul.f32 %v1623, %v7849
        %v7977 = vmul.f32 %v1624, %v7853
        %v7978 = vmul.f32 %v1625, %v7857
        %v7979 = vmul.f32 %v1626, %v7861
        %v7980 = vmul.f32 %v1627, %v7865
        %v7981 = vmul.f32 %v1628, %v7869
        %v7982 = vmul.f32 %v1629, %v7873
        %v7983 = vmul.f32 %v1630, %v7877
        %v7984 = vmul.f32 %v1631, %v7881
        %v7985 = vmul.f32 %v1632, %v7885
        %v7986 = vmul.f32 %v1633, %v7889
        %v7987 = vmul.f32 %v1634, %v7893
        %v7988 = vmul.f32 %v1635, %v7897
        %v7989 = vmul.f32 %v1636, %v7901
        %v7990 = vmul.f32 %v1637, %v7905
        %v7991 = vmul.f32 %v1638, %v7909
        %v7992 = vmul.f32 %v1639, %v7913
        %v7993 = vmul.f32 %v1640, %v7917
        %v7994 = vmul.f32 %v1609, %v7921
        %v7995 = vmul.f32 %v1610, %v7925
        %v7996 = vmul.f32 %v1611, %v7929
        %v7997 = vmul.f32 %v1612, %v7933
        %7998 = vst [vmem:[#allocation3 + $0x1600] sm:$0xff] %v7966
        %7999 = vst [vmem:[#allocation3 + $0x1608] sm:$0xff] %v7967
        %8000 = vst [vmem:[#allocation3 + $0x1610] sm:$0xff] %v7968
        %8001 = vst [vmem:[#allocation3 + $0x1618] sm:$0xff] %v7969
        %8002 = vst [vmem:[#allocation3 + $0x1620] sm:$0xff] %v7970
        %8003 = vst [vmem:[#allocation3 + $0x1628] sm:$0xff] %v7971
        %8004 = vst [vmem:[#allocation3 + $0x1630] sm:$0xff] %v7972
        %8005 = vst [vmem:[#allocation3 + $0x1638] sm:$0xff] %v7973
        %8006 = vst [vmem:[#allocation3 + $0x1640] sm:$0xff] %v7974
        %8007 = vst [vmem:[#allocation3 + $0x1648] sm:$0xff] %v7975
        %8008 = vst [vmem:[#allocation3 + $0x1650] sm:$0xff] %v7976
        %8009 = vst [vmem:[#allocation3 + $0x1658] sm:$0xff] %v7977
        %8010 = vst [vmem:[#allocation3 + $0x1660] sm:$0xff] %v7978
        %8011 = vst [vmem:[#allocation3 + $0x1668] sm:$0xff] %v7979
        %8012 = vst [vmem:[#allocation3 + $0x1670] sm:$0xff] %v7980
        %8013 = vst [vmem:[#allocation3 + $0x1678] sm:$0xff] %v7981
        %8014 = vst [vmem:[#allocation3 + $0x1680] sm:$0xff] %v7982
        %8015 = vst [vmem:[#allocation3 + $0x1688] sm:$0xff] %v7983
        %8016 = vst [vmem:[#allocation3 + $0x1690] sm:$0xff] %v7984
        %8017 = vst [vmem:[#allocation3 + $0x1698] sm:$0xff] %v7985
        %8018 = vst [vmem:[#allocation3 + $0x16a0] sm:$0xff] %v7986
        %8019 = vst [vmem:[#allocation3 + $0x16a8] sm:$0xff] %v7987
        %8020 = vst [vmem:[#allocation3 + $0x16b0] sm:$0xff] %v7988
        %8021 = vst [vmem:[#allocation3 + $0x16b8] sm:$0xff] %v7989
        %8022 = vst [vmem:[#allocation3 + $0x16c0] sm:$0xff] %v7990
        %8023 = vst [vmem:[#allocation3 + $0x16c8] sm:$0xff] %v7991
        %8024 = vst [vmem:[#allocation3 + $0x16d0] sm:$0xff] %v7992
        %8025 = vst [vmem:[#allocation3 + $0x16d8] sm:$0xff] %v7993
        %8026 = vst [vmem:[#allocation3 + $0x16e0] sm:$0xff] %v7994
        %8027 = vst [vmem:[#allocation3 + $0x16e8] sm:$0xff] %v7995
        %8028 = vst [vmem:[#allocation3 + $0x16f0] sm:$0xff] %v7996
        %8029 = vst [vmem:[#allocation3 + $0x16f8] sm:$0xff] %v7997
        %s8030 = scalar_lea.vmem [#allocation6], 519
        %v8031 = vld [vmem:[%s8030] ss:$8 sm:$0xf]
        %v8032 = vld [vmem:[%s8030] ss:$8 sm:$0xf0]
        %v8033 = vor.u32 %v8031, %v8032
        %s8034 = scalar_lea.vmem [#allocation6], 583
        %v8035 = vld [vmem:[%s8034] ss:$8 sm:$0xf]
        %v8036 = vld [vmem:[%s8034] ss:$8 sm:$0xf0]
        %v8037 = vor.u32 %v8035, %v8036
        %s8038 = scalar_lea.vmem [#allocation6], 647
        %v8039 = vld [vmem:[%s8038] ss:$8 sm:$0xf]
        %v8040 = vld [vmem:[%s8038] ss:$8 sm:$0xf0]
        %v8041 = vor.u32 %v8039, %v8040
        %s8042 = scalar_lea.vmem [#allocation6], 711
        %v8043 = vld [vmem:[%s8042] ss:$8 sm:$0xf]
        %v8044 = vld [vmem:[%s8042] ss:$8 sm:$0xf0]
        %v8045 = vor.u32 %v8043, %v8044
        %v8050 = vlaneseq
        %v8051 = vshrl.u32 %v8050, 7
        %v8052 = vsub.s32 0, %v8051
        %v8053 = vrot.slane %v8033, %v8052
        %v8054 = vlaneseq
        %v8055 = vshrl.u32 %v8054, 7
        %v8056 = vsub.s32 1, %v8055
        %v8057 = vrot.slane %v8033, %v8056
        %v8058 = vlaneseq
        %v8059 = vshrl.u32 %v8058, 7
        %v8060 = vsub.s32 2, %v8059
        %v8061 = vrot.slane %v8033, %v8060
        %v8062 = vlaneseq
        %v8063 = vshrl.u32 %v8062, 7
        %v8064 = vsub.s32 3, %v8063
        %v8065 = vrot.slane %v8033, %v8064
        %v8066 = vlaneseq
        %v8067 = vshrl.u32 %v8066, 7
        %v8068 = vsub.s32 4, %v8067
        %v8069 = vrot.slane %v8033, %v8068
        %v8070 = vlaneseq
        %v8071 = vshrl.u32 %v8070, 7
        %v8072 = vsub.s32 5, %v8071
        %v8073 = vrot.slane %v8033, %v8072
        %v8074 = vlaneseq
        %v8075 = vshrl.u32 %v8074, 7
        %v8076 = vsub.s32 6, %v8075
        %v8077 = vrot.slane %v8033, %v8076
        %v8078 = vlaneseq
        %v8079 = vshrl.u32 %v8078, 7
        %v8080 = vsub.s32 7, %v8079
        %v8081 = vrot.slane %v8033, %v8080
        %v8082 = vlaneseq
        %v8083 = vshrl.u32 %v8082, 7
        %v8084 = vsub.s32 0, %v8083
        %v8085 = vrot.slane %v8037, %v8084
        %v8086 = vlaneseq
        %v8087 = vshrl.u32 %v8086, 7
        %v8088 = vsub.s32 1, %v8087
        %v8089 = vrot.slane %v8037, %v8088
        %v8090 = vlaneseq
        %v8091 = vshrl.u32 %v8090, 7
        %v8092 = vsub.s32 2, %v8091
        %v8093 = vrot.slane %v8037, %v8092
        %v8094 = vlaneseq
        %v8095 = vshrl.u32 %v8094, 7
        %v8096 = vsub.s32 3, %v8095
        %v8097 = vrot.slane %v8037, %v8096
        %v8098 = vlaneseq
        %v8099 = vshrl.u32 %v8098, 7
        %v8100 = vsub.s32 4, %v8099
        %v8101 = vrot.slane %v8037, %v8100
        %v8102 = vlaneseq
        %v8103 = vshrl.u32 %v8102, 7
        %v8104 = vsub.s32 5, %v8103
        %v8105 = vrot.slane %v8037, %v8104
        %v8106 = vlaneseq
        %v8107 = vshrl.u32 %v8106, 7
        %v8108 = vsub.s32 6, %v8107
        %v8109 = vrot.slane %v8037, %v8108
        %v8110 = vlaneseq
        %v8111 = vshrl.u32 %v8110, 7
        %v8112 = vsub.s32 7, %v8111
        %v8113 = vrot.slane %v8037, %v8112
        %v8114 = vlaneseq
        %v8115 = vshrl.u32 %v8114, 7
        %v8116 = vsub.s32 0, %v8115
        %v8117 = vrot.slane %v8041, %v8116
        %v8118 = vlaneseq
        %v8119 = vshrl.u32 %v8118, 7
        %v8120 = vsub.s32 1, %v8119
        %v8121 = vrot.slane %v8041, %v8120
        %v8122 = vlaneseq
        %v8123 = vshrl.u32 %v8122, 7
        %v8124 = vsub.s32 2, %v8123
        %v8125 = vrot.slane %v8041, %v8124
        %v8126 = vlaneseq
        %v8127 = vshrl.u32 %v8126, 7
        %v8128 = vsub.s32 3, %v8127
        %v8129 = vrot.slane %v8041, %v8128
        %v8130 = vlaneseq
        %v8131 = vshrl.u32 %v8130, 7
        %v8132 = vsub.s32 4, %v8131
        %v8133 = vrot.slane %v8041, %v8132
        %v8134 = vlaneseq
        %v8135 = vshrl.u32 %v8134, 7
        %v8136 = vsub.s32 5, %v8135
        %v8137 = vrot.slane %v8041, %v8136
        %v8138 = vlaneseq
        %v8139 = vshrl.u32 %v8138, 7
        %v8140 = vsub.s32 6, %v8139
        %v8141 = vrot.slane %v8041, %v8140
        %v8142 = vlaneseq
        %v8143 = vshrl.u32 %v8142, 7
        %v8144 = vsub.s32 7, %v8143
        %v8145 = vrot.slane %v8041, %v8144
        %v8146 = vlaneseq
        %v8147 = vshrl.u32 %v8146, 7
        %v8148 = vsub.s32 0, %v8147
        %v8149 = vrot.slane %v8045, %v8148
        %v8150 = vlaneseq
        %v8151 = vshrl.u32 %v8150, 7
        %v8152 = vsub.s32 1, %v8151
        %v8153 = vrot.slane %v8045, %v8152
        %v8154 = vlaneseq
        %v8155 = vshrl.u32 %v8154, 7
        %v8156 = vsub.s32 2, %v8155
        %v8157 = vrot.slane %v8045, %v8156
        %v8158 = vlaneseq
        %v8159 = vshrl.u32 %v8158, 7
        %v8160 = vsub.s32 3, %v8159
        %v8161 = vrot.slane %v8045, %v8160
        %v8162 = vlaneseq
        %v8163 = vshrl.u32 %v8162, 7
        %v8164 = vsub.s32 4, %v8163
        %v8165 = vrot.slane %v8045, %v8164
        %v8166 = vlaneseq
        %v8167 = vshrl.u32 %v8166, 7
        %v8168 = vsub.s32 5, %v8167
        %v8169 = vrot.slane %v8045, %v8168
        %v8170 = vlaneseq
        %v8171 = vshrl.u32 %v8170, 7
        %v8172 = vsub.s32 6, %v8171
        %v8173 = vrot.slane %v8045, %v8172
        %v8174 = vlaneseq
        %v8175 = vshrl.u32 %v8174, 7
        %v8176 = vsub.s32 7, %v8175
        %v8177 = vrot.slane %v8045, %v8176
        %v8210 = vmul.f32 %v3341, %v8053
        %v8211 = vmul.f32 %v3340, %v8057
        %v8212 = vmul.f32 %v3339, %v8061
        %v8213 = vmul.f32 %v3338, %v8065
        %v8214 = vmul.f32 %v3337, %v8069
        %v8215 = vmul.f32 %v3336, %v8073
        %v8216 = vmul.f32 %v3335, %v8077
        %v8217 = vmul.f32 %v3334, %v8081
        %v8218 = vmul.f32 %v3333, %v8085
        %v8219 = vmul.f32 %v3332, %v8089
        %v8220 = vmul.f32 %v3331, %v8093
        %v8221 = vmul.f32 %v3330, %v8097
        %v8222 = vmul.f32 %v3329, %v8101
        %v8223 = vmul.f32 %v3328, %v8105
        %v8224 = vmul.f32 %v3327, %v8109
        %v8225 = vmul.f32 %v3326, %v8113
        %v8226 = vmul.f32 %v3325, %v8117
        %v8227 = vmul.f32 %v3324, %v8121
        %v8228 = vmul.f32 %v3323, %v8125
        %v8229 = vmul.f32 %v3322, %v8129
        %v8230 = vmul.f32 %v3321, %v8133
        %v8231 = vmul.f32 %v3320, %v8137
        %v8232 = vmul.f32 %v3319, %v8141
        %v8233 = vmul.f32 %v3318, %v8145
        %v8234 = vmul.f32 %v3317, %v8149
        %v8235 = vmul.f32 %v3316, %v8153
        %v8236 = vmul.f32 %v3315, %v8157
        %v8237 = vmul.f32 %v3346, %v8161
        %v8238 = vmul.f32 %v3345, %v8165
        %v8239 = vmul.f32 %v3344, %v8169
        %v8240 = vmul.f32 %v3343, %v8173
        %v8241 = vmul.f32 %v3342, %v8177
        %8242 = vst [vmem:[#allocation3 + $0x1700] sm:$0xff] %v8210
        %8243 = vst [vmem:[#allocation3 + $0x1708] sm:$0xff] %v8211
        %8244 = vst [vmem:[#allocation3 + $0x1710] sm:$0xff] %v8212
        %8245 = vst [vmem:[#allocation3 + $0x1718] sm:$0xff] %v8213
        %8246 = vst [vmem:[#allocation3 + $0x1720] sm:$0xff] %v8214
        %8247 = vst [vmem:[#allocation3 + $0x1728] sm:$0xff] %v8215
        %8248 = vst [vmem:[#allocation3 + $0x1730] sm:$0xff] %v8216
        %8249 = vst [vmem:[#allocation3 + $0x1738] sm:$0xff] %v8217
        %8250 = vst [vmem:[#allocation3 + $0x1740] sm:$0xff] %v8218
        %8251 = vst [vmem:[#allocation3 + $0x1748] sm:$0xff] %v8219
        %8252 = vst [vmem:[#allocation3 + $0x1750] sm:$0xff] %v8220
        %8253 = vst [vmem:[#allocation3 + $0x1758] sm:$0xff] %v8221
        %8254 = vst [vmem:[#allocation3 + $0x1760] sm:$0xff] %v8222
        %8255 = vst [vmem:[#allocation3 + $0x1768] sm:$0xff] %v8223
        %8256 = vst [vmem:[#allocation3 + $0x1770] sm:$0xff] %v8224
        %8257 = vst [vmem:[#allocation3 + $0x1778] sm:$0xff] %v8225
        %8258 = vst [vmem:[#allocation3 + $0x1780] sm:$0xff] %v8226
        %8259 = vst [vmem:[#allocation3 + $0x1788] sm:$0xff] %v8227
        %8260 = vst [vmem:[#allocation3 + $0x1790] sm:$0xff] %v8228
        %8261 = vst [vmem:[#allocation3 + $0x1798] sm:$0xff] %v8229
        %8262 = vst [vmem:[#allocation3 + $0x17a0] sm:$0xff] %v8230
        %8263 = vst [vmem:[#allocation3 + $0x17a8] sm:$0xff] %v8231
        %8264 = vst [vmem:[#allocation3 + $0x17b0] sm:$0xff] %v8232
        %8265 = vst [vmem:[#allocation3 + $0x17b8] sm:$0xff] %v8233
        %8266 = vst [vmem:[#allocation3 + $0x17c0] sm:$0xff] %v8234
        %8267 = vst [vmem:[#allocation3 + $0x17c8] sm:$0xff] %v8235
        %8268 = vst [vmem:[#allocation3 + $0x17d0] sm:$0xff] %v8236
        %8269 = vst [vmem:[#allocation3 + $0x17d8] sm:$0xff] %v8237
        %8270 = vst [vmem:[#allocation3 + $0x17e0] sm:$0xff] %v8238
        %8271 = vst [vmem:[#allocation3 + $0x17e8] sm:$0xff] %v8239
        %8272 = vst [vmem:[#allocation3 + $0x17f0] sm:$0xff] %v8240
        %8273 = vst [vmem:[#allocation3 + $0x17f8] sm:$0xff] %v8241
        %s8274 = scalar_lea.vmem [#allocation6], 768
        %v8275 = vld [vmem:[%s8274] ss:$8 sm:$0xf]
        %v8276 = vld [vmem:[%s8274] ss:$8 sm:$0xf0]
        %v8277 = vor.u32 %v8275, %v8276
        %s8278 = scalar_lea.vmem [#allocation6], 832
        %v8279 = vld [vmem:[%s8278] ss:$8 sm:$0xf]
        %v8280 = vld [vmem:[%s8278] ss:$8 sm:$0xf0]
        %v8281 = vor.u32 %v8279, %v8280
        %s8282 = scalar_lea.vmem [#allocation6], 896
        %v8283 = vld [vmem:[%s8282] ss:$8 sm:$0xf]
        %v8284 = vld [vmem:[%s8282] ss:$8 sm:$0xf0]
        %v8285 = vor.u32 %v8283, %v8284
        %s8286 = scalar_lea.vmem [#allocation6], 960
        %v8287 = vld [vmem:[%s8286] ss:$8 sm:$0xf]
        %v8288 = vld [vmem:[%s8286] ss:$8 sm:$0xf0]
        %v8289 = vor.u32 %v8287, %v8288
        %v8294 = vlaneseq
        %v8295 = vshrl.u32 %v8294, 7
        %v8296 = vsub.s32 0, %v8295
        %v8297 = vrot.slane %v8277, %v8296
        %v8298 = vlaneseq
        %v8299 = vshrl.u32 %v8298, 7
        %v8300 = vsub.s32 1, %v8299
        %v8301 = vrot.slane %v8277, %v8300
        %v8302 = vlaneseq
        %v8303 = vshrl.u32 %v8302, 7
        %v8304 = vsub.s32 2, %v8303
        %v8305 = vrot.slane %v8277, %v8304
        %v8306 = vlaneseq
        %v8307 = vshrl.u32 %v8306, 7
        %v8308 = vsub.s32 3, %v8307
        %v8309 = vrot.slane %v8277, %v8308
        %v8310 = vlaneseq
        %v8311 = vshrl.u32 %v8310, 7
        %v8312 = vsub.s32 4, %v8311
        %v8313 = vrot.slane %v8277, %v8312
        %v8314 = vlaneseq
        %v8315 = vshrl.u32 %v8314, 7
        %v8316 = vsub.s32 5, %v8315
        %v8317 = vrot.slane %v8277, %v8316
        %v8318 = vlaneseq
        %v8319 = vshrl.u32 %v8318, 7
        %v8320 = vsub.s32 6, %v8319
        %v8321 = vrot.slane %v8277, %v8320
        %v8322 = vlaneseq
        %v8323 = vshrl.u32 %v8322, 7
        %v8324 = vsub.s32 7, %v8323
        %v8325 = vrot.slane %v8277, %v8324
        %v8326 = vlaneseq
        %v8327 = vshrl.u32 %v8326, 7
        %v8328 = vsub.s32 0, %v8327
        %v8329 = vrot.slane %v8281, %v8328
        %v8330 = vlaneseq
        %v8331 = vshrl.u32 %v8330, 7
        %v8332 = vsub.s32 1, %v8331
        %v8333 = vrot.slane %v8281, %v8332
        %v8334 = vlaneseq
        %v8335 = vshrl.u32 %v8334, 7
        %v8336 = vsub.s32 2, %v8335
        %v8337 = vrot.slane %v8281, %v8336
        %v8338 = vlaneseq
        %v8339 = vshrl.u32 %v8338, 7
        %v8340 = vsub.s32 3, %v8339
        %v8341 = vrot.slane %v8281, %v8340
        %v8342 = vlaneseq
        %v8343 = vshrl.u32 %v8342, 7
        %v8344 = vsub.s32 4, %v8343
        %v8345 = vrot.slane %v8281, %v8344
        %v8346 = vlaneseq
        %v8347 = vshrl.u32 %v8346, 7
        %v8348 = vsub.s32 5, %v8347
        %v8349 = vrot.slane %v8281, %v8348
        %v8350 = vlaneseq
        %v8351 = vshrl.u32 %v8350, 7
        %v8352 = vsub.s32 6, %v8351
        %v8353 = vrot.slane %v8281, %v8352
        %v8354 = vlaneseq
        %v8355 = vshrl.u32 %v8354, 7
        %v8356 = vsub.s32 7, %v8355
        %v8357 = vrot.slane %v8281, %v8356
        %v8358 = vlaneseq
        %v8359 = vshrl.u32 %v8358, 7
        %v8360 = vsub.s32 0, %v8359
        %v8361 = vrot.slane %v8285, %v8360
        %v8362 = vlaneseq
        %v8363 = vshrl.u32 %v8362, 7
        %v8364 = vsub.s32 1, %v8363
        %v8365 = vrot.slane %v8285, %v8364
        %v8366 = vlaneseq
        %v8367 = vshrl.u32 %v8366, 7
        %v8368 = vsub.s32 2, %v8367
        %v8369 = vrot.slane %v8285, %v8368
        %v8370 = vlaneseq
        %v8371 = vshrl.u32 %v8370, 7
        %v8372 = vsub.s32 3, %v8371
        %v8373 = vrot.slane %v8285, %v8372
        %v8374 = vlaneseq
        %v8375 = vshrl.u32 %v8374, 7
        %v8376 = vsub.s32 4, %v8375
        %v8377 = vrot.slane %v8285, %v8376
        %v8378 = vlaneseq
        %v8379 = vshrl.u32 %v8378, 7
        %v8380 = vsub.s32 5, %v8379
        %v8381 = vrot.slane %v8285, %v8380
        %v8382 = vlaneseq
        %v8383 = vshrl.u32 %v8382, 7
        %v8384 = vsub.s32 6, %v8383
        %v8385 = vrot.slane %v8285, %v8384
        %v8386 = vlaneseq
        %v8387 = vshrl.u32 %v8386, 7
        %v8388 = vsub.s32 7, %v8387
        %v8389 = vrot.slane %v8285, %v8388
        %v8390 = vlaneseq
        %v8391 = vshrl.u32 %v8390, 7
        %v8392 = vsub.s32 0, %v8391
        %v8393 = vrot.slane %v8289, %v8392
        %v8394 = vlaneseq
        %v8395 = vshrl.u32 %v8394, 7
        %v8396 = vsub.s32 1, %v8395
        %v8397 = vrot.slane %v8289, %v8396
        %v8398 = vlaneseq
        %v8399 = vshrl.u32 %v8398, 7
        %v8400 = vsub.s32 2, %v8399
        %v8401 = vrot.slane %v8289, %v8400
        %v8402 = vlaneseq
        %v8403 = vshrl.u32 %v8402, 7
        %v8404 = vsub.s32 3, %v8403
        %v8405 = vrot.slane %v8289, %v8404
        %v8406 = vlaneseq
        %v8407 = vshrl.u32 %v8406, 7
        %v8408 = vsub.s32 4, %v8407
        %v8409 = vrot.slane %v8289, %v8408
        %v8410 = vlaneseq
        %v8411 = vshrl.u32 %v8410, 7
        %v8412 = vsub.s32 5, %v8411
        %v8413 = vrot.slane %v8289, %v8412
        %v8414 = vlaneseq
        %v8415 = vshrl.u32 %v8414, 7
        %v8416 = vsub.s32 6, %v8415
        %v8417 = vrot.slane %v8289, %v8416
        %v8418 = vlaneseq
        %v8419 = vshrl.u32 %v8418, 7
        %v8420 = vsub.s32 7, %v8419
        %v8421 = vrot.slane %v8289, %v8420
        %v8454 = vmul.f32 %v3682, %v8297
        %v8455 = vmul.f32 %v3681, %v8301
        %v8456 = vmul.f32 %v3680, %v8305
        %v8457 = vmul.f32 %v3679, %v8309
        %v8458 = vmul.f32 %v3678, %v8313
        %v8459 = vmul.f32 %v3677, %v8317
        %v8460 = vmul.f32 %v3676, %v8321
        %v8461 = vmul.f32 %v3675, %v8325
        %v8462 = vmul.f32 %v3674, %v8329
        %v8463 = vmul.f32 %v3673, %v8333
        %v8464 = vmul.f32 %v3672, %v8337
        %v8465 = vmul.f32 %v3671, %v8341
        %v8466 = vmul.f32 %v3670, %v8345
        %v8467 = vmul.f32 %v3669, %v8349
        %v8468 = vmul.f32 %v3668, %v8353
        %v8469 = vmul.f32 %v3667, %v8357
        %v8470 = vmul.f32 %v3666, %v8361
        %v8471 = vmul.f32 %v3665, %v8365
        %v8472 = vmul.f32 %v3664, %v8369
        %v8473 = vmul.f32 %v3663, %v8373
        %v8474 = vmul.f32 %v3662, %v8377
        %v8475 = vmul.f32 %v3661, %v8381
        %v8476 = vmul.f32 %v3660, %v8385
        %v8477 = vmul.f32 %v3659, %v8389
        %v8478 = vmul.f32 %v3658, %v8393
        %v8479 = vmul.f32 %v3657, %v8397
        %v8480 = vmul.f32 %v3656, %v8401
        %v8481 = vmul.f32 %v3687, %v8405
        %v8482 = vmul.f32 %v3686, %v8409
        %v8483 = vmul.f32 %v3685, %v8413
        %v8484 = vmul.f32 %v3684, %v8417
        %v8485 = vmul.f32 %v3683, %v8421
        %8486 = vst [vmem:[#allocation3 + $0x1800] sm:$0xff] %v8454
        %8487 = vst [vmem:[#allocation3 + $0x1808] sm:$0xff] %v8455
        %8488 = vst [vmem:[#allocation3 + $0x1810] sm:$0xff] %v8456
        %8489 = vst [vmem:[#allocation3 + $0x1818] sm:$0xff] %v8457
        %8490 = vst [vmem:[#allocation3 + $0x1820] sm:$0xff] %v8458
        %8491 = vst [vmem:[#allocation3 + $0x1828] sm:$0xff] %v8459
        %8492 = vst [vmem:[#allocation3 + $0x1830] sm:$0xff] %v8460
        %8493 = vst [vmem:[#allocation3 + $0x1838] sm:$0xff] %v8461
        %8494 = vst [vmem:[#allocation3 + $0x1840] sm:$0xff] %v8462
        %8495 = vst [vmem:[#allocation3 + $0x1848] sm:$0xff] %v8463
        %8496 = vst [vmem:[#allocation3 + $0x1850] sm:$0xff] %v8464
        %8497 = vst [vmem:[#allocation3 + $0x1858] sm:$0xff] %v8465
        %8498 = vst [vmem:[#allocation3 + $0x1860] sm:$0xff] %v8466
        %8499 = vst [vmem:[#allocation3 + $0x1868] sm:$0xff] %v8467
        %8500 = vst [vmem:[#allocation3 + $0x1870] sm:$0xff] %v8468
        %8501 = vst [vmem:[#allocation3 + $0x1878] sm:$0xff] %v8469
        %8502 = vst [vmem:[#allocation3 + $0x1880] sm:$0xff] %v8470
        %8503 = vst [vmem:[#allocation3 + $0x1888] sm:$0xff] %v8471
        %8504 = vst [vmem:[#allocation3 + $0x1890] sm:$0xff] %v8472
        %8505 = vst [vmem:[#allocation3 + $0x1898] sm:$0xff] %v8473
        %8506 = vst [vmem:[#allocation3 + $0x18a0] sm:$0xff] %v8474
        %8507 = vst [vmem:[#allocation3 + $0x18a8] sm:$0xff] %v8475
        %8508 = vst [vmem:[#allocation3 + $0x18b0] sm:$0xff] %v8476
        %8509 = vst [vmem:[#allocation3 + $0x18b8] sm:$0xff] %v8477
        %8510 = vst [vmem:[#allocation3 + $0x18c0] sm:$0xff] %v8478
        %8511 = vst [vmem:[#allocation3 + $0x18c8] sm:$0xff] %v8479
        %8512 = vst [vmem:[#allocation3 + $0x18d0] sm:$0xff] %v8480
        %8513 = vst [vmem:[#allocation3 + $0x18d8] sm:$0xff] %v8481
        %8514 = vst [vmem:[#allocation3 + $0x18e0] sm:$0xff] %v8482
        %8515 = vst [vmem:[#allocation3 + $0x18e8] sm:$0xff] %v8483
        %8516 = vst [vmem:[#allocation3 + $0x18f0] sm:$0xff] %v8484
        %8517 = vst [vmem:[#allocation3 + $0x18f8] sm:$0xff] %v8485
        %s8518 = scalar_lea.vmem [#allocation6], 769
        %v8519 = vld [vmem:[%s8518] ss:$8 sm:$0xf]
        %v8520 = vld [vmem:[%s8518] ss:$8 sm:$0xf0]
        %v8521 = vor.u32 %v8519, %v8520
        %s8522 = scalar_lea.vmem [#allocation6], 833
        %v8523 = vld [vmem:[%s8522] ss:$8 sm:$0xf]
        %v8524 = vld [vmem:[%s8522] ss:$8 sm:$0xf0]
        %v8525 = vor.u32 %v8523, %v8524
        %s8526 = scalar_lea.vmem [#allocation6], 897
        %v8527 = vld [vmem:[%s8526] ss:$8 sm:$0xf]
        %v8528 = vld [vmem:[%s8526] ss:$8 sm:$0xf0]
        %v8529 = vor.u32 %v8527, %v8528
        %s8530 = scalar_lea.vmem [#allocation6], 961
        %v8531 = vld [vmem:[%s8530] ss:$8 sm:$0xf]
        %v8532 = vld [vmem:[%s8530] ss:$8 sm:$0xf0]
        %v8533 = vor.u32 %v8531, %v8532
        %v8538 = vlaneseq
        %v8539 = vshrl.u32 %v8538, 7
        %v8540 = vsub.s32 0, %v8539
        %v8541 = vrot.slane %v8521, %v8540
        %v8542 = vlaneseq
        %v8543 = vshrl.u32 %v8542, 7
        %v8544 = vsub.s32 1, %v8543
        %v8545 = vrot.slane %v8521, %v8544
        %v8546 = vlaneseq
        %v8547 = vshrl.u32 %v8546, 7
        %v8548 = vsub.s32 2, %v8547
        %v8549 = vrot.slane %v8521, %v8548
        %v8550 = vlaneseq
        %v8551 = vshrl.u32 %v8550, 7
        %v8552 = vsub.s32 3, %v8551
        %v8553 = vrot.slane %v8521, %v8552
        %v8554 = vlaneseq
        %v8555 = vshrl.u32 %v8554, 7
        %v8556 = vsub.s32 4, %v8555
        %v8557 = vrot.slane %v8521, %v8556
        %v8558 = vlaneseq
        %v8559 = vshrl.u32 %v8558, 7
        %v8560 = vsub.s32 5, %v8559
        %v8561 = vrot.slane %v8521, %v8560
        %v8562 = vlaneseq
        %v8563 = vshrl.u32 %v8562, 7
        %v8564 = vsub.s32 6, %v8563
        %v8565 = vrot.slane %v8521, %v8564
        %v8566 = vlaneseq
        %v8567 = vshrl.u32 %v8566, 7
        %v8568 = vsub.s32 7, %v8567
        %v8569 = vrot.slane %v8521, %v8568
        %v8570 = vlaneseq
        %v8571 = vshrl.u32 %v8570, 7
        %v8572 = vsub.s32 0, %v8571
        %v8573 = vrot.slane %v8525, %v8572
        %v8574 = vlaneseq
        %v8575 = vshrl.u32 %v8574, 7
        %v8576 = vsub.s32 1, %v8575
        %v8577 = vrot.slane %v8525, %v8576
        %v8578 = vlaneseq
        %v8579 = vshrl.u32 %v8578, 7
        %v8580 = vsub.s32 2, %v8579
        %v8581 = vrot.slane %v8525, %v8580
        %v8582 = vlaneseq
        %v8583 = vshrl.u32 %v8582, 7
        %v8584 = vsub.s32 3, %v8583
        %v8585 = vrot.slane %v8525, %v8584
        %v8586 = vlaneseq
        %v8587 = vshrl.u32 %v8586, 7
        %v8588 = vsub.s32 4, %v8587
        %v8589 = vrot.slane %v8525, %v8588
        %v8590 = vlaneseq
        %v8591 = vshrl.u32 %v8590, 7
        %v8592 = vsub.s32 5, %v8591
        %v8593 = vrot.slane %v8525, %v8592
        %v8594 = vlaneseq
        %v8595 = vshrl.u32 %v8594, 7
        %v8596 = vsub.s32 6, %v8595
        %v8597 = vrot.slane %v8525, %v8596
        %v8598 = vlaneseq
        %v8599 = vshrl.u32 %v8598, 7
        %v8600 = vsub.s32 7, %v8599
        %v8601 = vrot.slane %v8525, %v8600
        %v8602 = vlaneseq
        %v8603 = vshrl.u32 %v8602, 7
        %v8604 = vsub.s32 0, %v8603
        %v8605 = vrot.slane %v8529, %v8604
        %v8606 = vlaneseq
        %v8607 = vshrl.u32 %v8606, 7
        %v8608 = vsub.s32 1, %v8607
        %v8609 = vrot.slane %v8529, %v8608
        %v8610 = vlaneseq
        %v8611 = vshrl.u32 %v8610, 7
        %v8612 = vsub.s32 2, %v8611
        %v8613 = vrot.slane %v8529, %v8612
        %v8614 = vlaneseq
        %v8615 = vshrl.u32 %v8614, 7
        %v8616 = vsub.s32 3, %v8615
        %v8617 = vrot.slane %v8529, %v8616
        %v8618 = vlaneseq
        %v8619 = vshrl.u32 %v8618, 7
        %v8620 = vsub.s32 4, %v8619
        %v8621 = vrot.slane %v8529, %v8620
        %v8622 = vlaneseq
        %v8623 = vshrl.u32 %v8622, 7
        %v8624 = vsub.s32 5, %v8623
        %v8625 = vrot.slane %v8529, %v8624
        %v8626 = vlaneseq
        %v8627 = vshrl.u32 %v8626, 7
        %v8628 = vsub.s32 6, %v8627
        %v8629 = vrot.slane %v8529, %v8628
        %v8630 = vlaneseq
        %v8631 = vshrl.u32 %v8630, 7
        %v8632 = vsub.s32 7, %v8631
        %v8633 = vrot.slane %v8529, %v8632
        %v8634 = vlaneseq
        %v8635 = vshrl.u32 %v8634, 7
        %v8636 = vsub.s32 0, %v8635
        %v8637 = vrot.slane %v8533, %v8636
        %v8638 = vlaneseq
        %v8639 = vshrl.u32 %v8638, 7
        %v8640 = vsub.s32 1, %v8639
        %v8641 = vrot.slane %v8533, %v8640
        %v8642 = vlaneseq
        %v8643 = vshrl.u32 %v8642, 7
        %v8644 = vsub.s32 2, %v8643
        %v8645 = vrot.slane %v8533, %v8644
        %v8646 = vlaneseq
        %v8647 = vshrl.u32 %v8646, 7
        %v8648 = vsub.s32 3, %v8647
        %v8649 = vrot.slane %v8533, %v8648
        %v8650 = vlaneseq
        %v8651 = vshrl.u32 %v8650, 7
        %v8652 = vsub.s32 4, %v8651
        %v8653 = vrot.slane %v8533, %v8652
        %v8654 = vlaneseq
        %v8655 = vshrl.u32 %v8654, 7
        %v8656 = vsub.s32 5, %v8655
        %v8657 = vrot.slane %v8533, %v8656
        %v8658 = vlaneseq
        %v8659 = vshrl.u32 %v8658, 7
        %v8660 = vsub.s32 6, %v8659
        %v8661 = vrot.slane %v8533, %v8660
        %v8662 = vlaneseq
        %v8663 = vshrl.u32 %v8662, 7
        %v8664 = vsub.s32 7, %v8663
        %v8665 = vrot.slane %v8533, %v8664
        %v8698 = vmul.f32 %v4023, %v8541
        %v8699 = vmul.f32 %v4022, %v8545
        %v8700 = vmul.f32 %v4021, %v8549
        %v8701 = vmul.f32 %v4020, %v8553
        %v8702 = vmul.f32 %v4019, %v8557
        %v8703 = vmul.f32 %v4018, %v8561
        %v8704 = vmul.f32 %v4017, %v8565
        %v8705 = vmul.f32 %v4016, %v8569
        %v8706 = vmul.f32 %v4015, %v8573
        %v8707 = vmul.f32 %v4014, %v8577
        %v8708 = vmul.f32 %v4013, %v8581
        %v8709 = vmul.f32 %v4012, %v8585
        %v8710 = vmul.f32 %v4011, %v8589
        %v8711 = vmul.f32 %v4010, %v8593
        %v8712 = vmul.f32 %v4009, %v8597
        %v8713 = vmul.f32 %v4008, %v8601
        %v8714 = vmul.f32 %v4007, %v8605
        %v8715 = vmul.f32 %v4006, %v8609
        %v8716 = vmul.f32 %v4005, %v8613
        %v8717 = vmul.f32 %v4004, %v8617
        %v8718 = vmul.f32 %v4003, %v8621
        %v8719 = vmul.f32 %v4002, %v8625
        %v8720 = vmul.f32 %v4001, %v8629
        %v8721 = vmul.f32 %v4000, %v8633
        %v8722 = vmul.f32 %v3999, %v8637
        %v8723 = vmul.f32 %v3998, %v8641
        %v8724 = vmul.f32 %v3997, %v8645
        %v8725 = vmul.f32 %v4028, %v8649
        %v8726 = vmul.f32 %v4027, %v8653
        %v8727 = vmul.f32 %v4026, %v8657
        %v8728 = vmul.f32 %v4025, %v8661
        %v8729 = vmul.f32 %v4024, %v8665
        %8730 = vst [vmem:[#allocation3 + $0x1900] sm:$0xff] %v8698
        %8731 = vst [vmem:[#allocation3 + $0x1908] sm:$0xff] %v8699
        %8732 = vst [vmem:[#allocation3 + $0x1910] sm:$0xff] %v8700
        %8733 = vst [vmem:[#allocation3 + $0x1918] sm:$0xff] %v8701
        %8734 = vst [vmem:[#allocation3 + $0x1920] sm:$0xff] %v8702
        %8735 = vst [vmem:[#allocation3 + $0x1928] sm:$0xff] %v8703
        %8736 = vst [vmem:[#allocation3 + $0x1930] sm:$0xff] %v8704
        %8737 = vst [vmem:[#allocation3 + $0x1938] sm:$0xff] %v8705
        %8738 = vst [vmem:[#allocation3 + $0x1940] sm:$0xff] %v8706
        %8739 = vst [vmem:[#allocation3 + $0x1948] sm:$0xff] %v8707
        %8740 = vst [vmem:[#allocation3 + $0x1950] sm:$0xff] %v8708
        %8741 = vst [vmem:[#allocation3 + $0x1958] sm:$0xff] %v8709
        %8742 = vst [vmem:[#allocation3 + $0x1960] sm:$0xff] %v8710
        %8743 = vst [vmem:[#allocation3 + $0x1968] sm:$0xff] %v8711
        %8744 = vst [vmem:[#allocation3 + $0x1970] sm:$0xff] %v8712
        %8745 = vst [vmem:[#allocation3 + $0x1978] sm:$0xff] %v8713
        %8746 = vst [vmem:[#allocation3 + $0x1980] sm:$0xff] %v8714
        %8747 = vst [vmem:[#allocation3 + $0x1988] sm:$0xff] %v8715
        %8748 = vst [vmem:[#allocation3 + $0x1990] sm:$0xff] %v8716
        %8749 = vst [vmem:[#allocation3 + $0x1998] sm:$0xff] %v8717
        %8750 = vst [vmem:[#allocation3 + $0x19a0] sm:$0xff] %v8718
        %8751 = vst [vmem:[#allocation3 + $0x19a8] sm:$0xff] %v8719
        %8752 = vst [vmem:[#allocation3 + $0x19b0] sm:$0xff] %v8720
        %8753 = vst [vmem:[#allocation3 + $0x19b8] sm:$0xff] %v8721
        %8754 = vst [vmem:[#allocation3 + $0x19c0] sm:$0xff] %v8722
        %8755 = vst [vmem:[#allocation3 + $0x19c8] sm:$0xff] %v8723
        %8756 = vst [vmem:[#allocation3 + $0x19d0] sm:$0xff] %v8724
        %8757 = vst [vmem:[#allocation3 + $0x19d8] sm:$0xff] %v8725
        %8758 = vst [vmem:[#allocation3 + $0x19e0] sm:$0xff] %v8726
        %8759 = vst [vmem:[#allocation3 + $0x19e8] sm:$0xff] %v8727
        %8760 = vst [vmem:[#allocation3 + $0x19f0] sm:$0xff] %v8728
        %8761 = vst [vmem:[#allocation3 + $0x19f8] sm:$0xff] %v8729
        %s8762 = scalar_lea.vmem [#allocation6], 770
        %v8763 = vld [vmem:[%s8762] ss:$8 sm:$0xf]
        %v8764 = vld [vmem:[%s8762] ss:$8 sm:$0xf0]
        %v8765 = vor.u32 %v8763, %v8764
        %s8766 = scalar_lea.vmem [#allocation6], 834
        %v8767 = vld [vmem:[%s8766] ss:$8 sm:$0xf]
        %v8768 = vld [vmem:[%s8766] ss:$8 sm:$0xf0]
        %v8769 = vor.u32 %v8767, %v8768
        %s8770 = scalar_lea.vmem [#allocation6], 898
        %v8771 = vld [vmem:[%s8770] ss:$8 sm:$0xf]
        %v8772 = vld [vmem:[%s8770] ss:$8 sm:$0xf0]
        %v8773 = vor.u32 %v8771, %v8772
        %s8774 = scalar_lea.vmem [#allocation6], 962
        %v8775 = vld [vmem:[%s8774] ss:$8 sm:$0xf]
        %v8776 = vld [vmem:[%s8774] ss:$8 sm:$0xf0]
        %v8777 = vor.u32 %v8775, %v8776
        %v8782 = vlaneseq
        %v8783 = vshrl.u32 %v8782, 7
        %v8784 = vsub.s32 0, %v8783
        %v8785 = vrot.slane %v8765, %v8784
        %v8786 = vlaneseq
        %v8787 = vshrl.u32 %v8786, 7
        %v8788 = vsub.s32 1, %v8787
        %v8789 = vrot.slane %v8765, %v8788
        %v8790 = vlaneseq
        %v8791 = vshrl.u32 %v8790, 7
        %v8792 = vsub.s32 2, %v8791
        %v8793 = vrot.slane %v8765, %v8792
        %v8794 = vlaneseq
        %v8795 = vshrl.u32 %v8794, 7
        %v8796 = vsub.s32 3, %v8795
        %v8797 = vrot.slane %v8765, %v8796
        %v8798 = vlaneseq
        %v8799 = vshrl.u32 %v8798, 7
        %v8800 = vsub.s32 4, %v8799
        %v8801 = vrot.slane %v8765, %v8800
        %v8802 = vlaneseq
        %v8803 = vshrl.u32 %v8802, 7
        %v8804 = vsub.s32 5, %v8803
        %v8805 = vrot.slane %v8765, %v8804
        %v8806 = vlaneseq
        %v8807 = vshrl.u32 %v8806, 7
        %v8808 = vsub.s32 6, %v8807
        %v8809 = vrot.slane %v8765, %v8808
        %v8810 = vlaneseq
        %v8811 = vshrl.u32 %v8810, 7
        %v8812 = vsub.s32 7, %v8811
        %v8813 = vrot.slane %v8765, %v8812
        %v8814 = vlaneseq
        %v8815 = vshrl.u32 %v8814, 7
        %v8816 = vsub.s32 0, %v8815
        %v8817 = vrot.slane %v8769, %v8816
        %v8818 = vlaneseq
        %v8819 = vshrl.u32 %v8818, 7
        %v8820 = vsub.s32 1, %v8819
        %v8821 = vrot.slane %v8769, %v8820
        %v8822 = vlaneseq
        %v8823 = vshrl.u32 %v8822, 7
        %v8824 = vsub.s32 2, %v8823
        %v8825 = vrot.slane %v8769, %v8824
        %v8826 = vlaneseq
        %v8827 = vshrl.u32 %v8826, 7
        %v8828 = vsub.s32 3, %v8827
        %v8829 = vrot.slane %v8769, %v8828
        %v8830 = vlaneseq
        %v8831 = vshrl.u32 %v8830, 7
        %v8832 = vsub.s32 4, %v8831
        %v8833 = vrot.slane %v8769, %v8832
        %v8834 = vlaneseq
        %v8835 = vshrl.u32 %v8834, 7
        %v8836 = vsub.s32 5, %v8835
        %v8837 = vrot.slane %v8769, %v8836
        %v8838 = vlaneseq
        %v8839 = vshrl.u32 %v8838, 7
        %v8840 = vsub.s32 6, %v8839
        %v8841 = vrot.slane %v8769, %v8840
        %v8842 = vlaneseq
        %v8843 = vshrl.u32 %v8842, 7
        %v8844 = vsub.s32 7, %v8843
        %v8845 = vrot.slane %v8769, %v8844
        %v8846 = vlaneseq
        %v8847 = vshrl.u32 %v8846, 7
        %v8848 = vsub.s32 0, %v8847
        %v8849 = vrot.slane %v8773, %v8848
        %v8850 = vlaneseq
        %v8851 = vshrl.u32 %v8850, 7
        %v8852 = vsub.s32 1, %v8851
        %v8853 = vrot.slane %v8773, %v8852
        %v8854 = vlaneseq
        %v8855 = vshrl.u32 %v8854, 7
        %v8856 = vsub.s32 2, %v8855
        %v8857 = vrot.slane %v8773, %v8856
        %v8858 = vlaneseq
        %v8859 = vshrl.u32 %v8858, 7
        %v8860 = vsub.s32 3, %v8859
        %v8861 = vrot.slane %v8773, %v8860
        %v8862 = vlaneseq
        %v8863 = vshrl.u32 %v8862, 7
        %v8864 = vsub.s32 4, %v8863
        %v8865 = vrot.slane %v8773, %v8864
        %v8866 = vlaneseq
        %v8867 = vshrl.u32 %v8866, 7
        %v8868 = vsub.s32 5, %v8867
        %v8869 = vrot.slane %v8773, %v8868
        %v8870 = vlaneseq
        %v8871 = vshrl.u32 %v8870, 7
        %v8872 = vsub.s32 6, %v8871
        %v8873 = vrot.slane %v8773, %v8872
        %v8874 = vlaneseq
        %v8875 = vshrl.u32 %v8874, 7
        %v8876 = vsub.s32 7, %v8875
        %v8877 = vrot.slane %v8773, %v8876
        %v8878 = vlaneseq
        %v8879 = vshrl.u32 %v8878, 7
        %v8880 = vsub.s32 0, %v8879
        %v8881 = vrot.slane %v8777, %v8880
        %v8882 = vlaneseq
        %v8883 = vshrl.u32 %v8882, 7
        %v8884 = vsub.s32 1, %v8883
        %v8885 = vrot.slane %v8777, %v8884
        %v8886 = vlaneseq
        %v8887 = vshrl.u32 %v8886, 7
        %v8888 = vsub.s32 2, %v8887
        %v8889 = vrot.slane %v8777, %v8888
        %v8890 = vlaneseq
        %v8891 = vshrl.u32 %v8890, 7
        %v8892 = vsub.s32 3, %v8891
        %v8893 = vrot.slane %v8777, %v8892
        %v8894 = vlaneseq
        %v8895 = vshrl.u32 %v8894, 7
        %v8896 = vsub.s32 4, %v8895
        %v8897 = vrot.slane %v8777, %v8896
        %v8898 = vlaneseq
        %v8899 = vshrl.u32 %v8898, 7
        %v8900 = vsub.s32 5, %v8899
        %v8901 = vrot.slane %v8777, %v8900
        %v8902 = vlaneseq
        %v8903 = vshrl.u32 %v8902, 7
        %v8904 = vsub.s32 6, %v8903
        %v8905 = vrot.slane %v8777, %v8904
        %v8906 = vlaneseq
        %v8907 = vshrl.u32 %v8906, 7
        %v8908 = vsub.s32 7, %v8907
        %v8909 = vrot.slane %v8777, %v8908
        %v8942 = vmul.f32 %v4364, %v8785
        %v8943 = vmul.f32 %v4363, %v8789
        %v8944 = vmul.f32 %v4362, %v8793
        %v8945 = vmul.f32 %v4361, %v8797
        %v8946 = vmul.f32 %v4360, %v8801
        %v8947 = vmul.f32 %v4359, %v8805
        %v8948 = vmul.f32 %v4358, %v8809
        %v8949 = vmul.f32 %v4357, %v8813
        %v8950 = vmul.f32 %v4356, %v8817
        %v8951 = vmul.f32 %v4355, %v8821
        %v8952 = vmul.f32 %v4354, %v8825
        %v8953 = vmul.f32 %v4353, %v8829
        %v8954 = vmul.f32 %v4352, %v8833
        %v8955 = vmul.f32 %v4351, %v8837
        %v8956 = vmul.f32 %v4350, %v8841
        %v8957 = vmul.f32 %v4349, %v8845
        %v8958 = vmul.f32 %v4348, %v8849
        %v8959 = vmul.f32 %v4347, %v8853
        %v8960 = vmul.f32 %v4346, %v8857
        %v8961 = vmul.f32 %v4345, %v8861
        %v8962 = vmul.f32 %v4344, %v8865
        %v8963 = vmul.f32 %v4343, %v8869
        %v8964 = vmul.f32 %v4342, %v8873
        %v8965 = vmul.f32 %v4341, %v8877
        %v8966 = vmul.f32 %v4340, %v8881
        %v8967 = vmul.f32 %v4339, %v8885
        %v8968 = vmul.f32 %v4338, %v8889
        %v8969 = vmul.f32 %v4369, %v8893
        %v8970 = vmul.f32 %v4368, %v8897
        %v8971 = vmul.f32 %v4367, %v8901
        %v8972 = vmul.f32 %v4366, %v8905
        %v8973 = vmul.f32 %v4365, %v8909
        %8974 = vst [vmem:[#allocation3 + $0x1a00] sm:$0xff] %v8942
        %8975 = vst [vmem:[#allocation3 + $0x1a08] sm:$0xff] %v8943
        %8976 = vst [vmem:[#allocation3 + $0x1a10] sm:$0xff] %v8944
        %8977 = vst [vmem:[#allocation3 + $0x1a18] sm:$0xff] %v8945
        %8978 = vst [vmem:[#allocation3 + $0x1a20] sm:$0xff] %v8946
        %8979 = vst [vmem:[#allocation3 + $0x1a28] sm:$0xff] %v8947
        %8980 = vst [vmem:[#allocation3 + $0x1a30] sm:$0xff] %v8948
        %8981 = vst [vmem:[#allocation3 + $0x1a38] sm:$0xff] %v8949
        %8982 = vst [vmem:[#allocation3 + $0x1a40] sm:$0xff] %v8950
        %8983 = vst [vmem:[#allocation3 + $0x1a48] sm:$0xff] %v8951
        %8984 = vst [vmem:[#allocation3 + $0x1a50] sm:$0xff] %v8952
        %8985 = vst [vmem:[#allocation3 + $0x1a58] sm:$0xff] %v8953
        %8986 = vst [vmem:[#allocation3 + $0x1a60] sm:$0xff] %v8954
        %8987 = vst [vmem:[#allocation3 + $0x1a68] sm:$0xff] %v8955
        %8988 = vst [vmem:[#allocation3 + $0x1a70] sm:$0xff] %v8956
        %8989 = vst [vmem:[#allocation3 + $0x1a78] sm:$0xff] %v8957
        %8990 = vst [vmem:[#allocation3 + $0x1a80] sm:$0xff] %v8958
        %8991 = vst [vmem:[#allocation3 + $0x1a88] sm:$0xff] %v8959
        %8992 = vst [vmem:[#allocation3 + $0x1a90] sm:$0xff] %v8960
        %8993 = vst [vmem:[#allocation3 + $0x1a98] sm:$0xff] %v8961
        %8994 = vst [vmem:[#allocation3 + $0x1aa0] sm:$0xff] %v8962
        %8995 = vst [vmem:[#allocation3 + $0x1aa8] sm:$0xff] %v8963
        %8996 = vst [vmem:[#allocation3 + $0x1ab0] sm:$0xff] %v8964
        %8997 = vst [vmem:[#allocation3 + $0x1ab8] sm:$0xff] %v8965
        %8998 = vst [vmem:[#allocation3 + $0x1ac0] sm:$0xff] %v8966
        %8999 = vst [vmem:[#allocation3 + $0x1ac8] sm:$0xff] %v8967
        %9000 = vst [vmem:[#allocation3 + $0x1ad0] sm:$0xff] %v8968
        %9001 = vst [vmem:[#allocation3 + $0x1ad8] sm:$0xff] %v8969
        %9002 = vst [vmem:[#allocation3 + $0x1ae0] sm:$0xff] %v8970
        %9003 = vst [vmem:[#allocation3 + $0x1ae8] sm:$0xff] %v8971
        %9004 = vst [vmem:[#allocation3 + $0x1af0] sm:$0xff] %v8972
        %9005 = vst [vmem:[#allocation3 + $0x1af8] sm:$0xff] %v8973
        %v9006 = vld [vmem:[%s3] sm:$0xff]
        %v9007 = vld [vmem:[%s3 + $0x8] sm:$0xff]
        %v9008 = vld [vmem:[#allocation3] sm:$0xff]
        %v9009 = vld [vmem:[#allocation3 + $0x8] sm:$0xff]
        %v9010 = vld [vmem:[#allocation3 + $0x10] sm:$0xff]
        %v9011 = vld [vmem:[#allocation3 + $0x18] sm:$0xff]
        %v9012 = vld [vmem:[#allocation3 + $0x20] sm:$0xff]
        %v9013 = vld [vmem:[#allocation3 + $0x28] sm:$0xff]
        %v9014 = vld [vmem:[#allocation3 + $0x30] sm:$0xff]
        %v9015 = vld [vmem:[#allocation3 + $0x38] sm:$0xff]
        %v9016 = vld [vmem:[#allocation3 + $0x40] sm:$0xff]
        %v9017 = vld [vmem:[#allocation3 + $0x48] sm:$0xff]
        %v9018 = vld [vmem:[#allocation3 + $0x50] sm:$0xff]
        %v9019 = vld [vmem:[#allocation3 + $0x58] sm:$0xff]
        %v9020 = vld [vmem:[#allocation3 + $0x60] sm:$0xff]
        %v9021 = vld [vmem:[#allocation3 + $0x68] sm:$0xff]
        %v9022 = vld [vmem:[#allocation3 + $0x70] sm:$0xff]
        %v9023 = vld [vmem:[#allocation3 + $0x78] sm:$0xff]
        %v9024 = vld [vmem:[#allocation3 + $0x80] sm:$0xff]
        %v9025 = vld [vmem:[#allocation3 + $0x88] sm:$0xff]
        %v9026 = vld [vmem:[#allocation3 + $0x90] sm:$0xff]
        %v9027 = vld [vmem:[#allocation3 + $0x98] sm:$0xff]
        %v9028 = vld [vmem:[#allocation3 + $0xa0] sm:$0xff]
        %v9029 = vld [vmem:[#allocation3 + $0xa8] sm:$0xff]
        %v9030 = vld [vmem:[#allocation3 + $0xb0] sm:$0xff]
        %v9031 = vld [vmem:[#allocation3 + $0xb8] sm:$0xff]
        %v9032 = vld [vmem:[#allocation3 + $0xc0] sm:$0xff]
        %v9033 = vld [vmem:[#allocation3 + $0xc8] sm:$0xff]
        %v9034 = vld [vmem:[#allocation3 + $0xd0] sm:$0xff]
        %v9035 = vld [vmem:[#allocation3 + $0xd8] sm:$0xff]
        %v9036 = vld [vmem:[#allocation3 + $0xe0] sm:$0xff]
        %v9037 = vld [vmem:[#allocation3 + $0xe8] sm:$0xff]
        %v9038 = vld [vmem:[#allocation3 + $0xf0] sm:$0xff]
        %v9039 = vld [vmem:[#allocation3 + $0xf8] sm:$0xff]
        %v9040 = vld [vmem:[#allocation3 + $0x100] sm:$0xff]
        %v9041 = vld [vmem:[#allocation3 + $0x108] sm:$0xff]
        %v9042 = vld [vmem:[#allocation3 + $0x110] sm:$0xff]
        %v9043 = vld [vmem:[#allocation3 + $0x118] sm:$0xff]
        %v9044 = vld [vmem:[#allocation3 + $0x120] sm:$0xff]
        %v9045 = vld [vmem:[#allocation3 + $0x128] sm:$0xff]
        %v9046 = vld [vmem:[#allocation3 + $0x130] sm:$0xff]
        %v9047 = vld [vmem:[#allocation3 + $0x138] sm:$0xff]
        %v9048 = vld [vmem:[#allocation3 + $0x140] sm:$0xff]
        %v9049 = vld [vmem:[#allocation3 + $0x148] sm:$0xff]
        %v9050 = vld [vmem:[#allocation3 + $0x150] sm:$0xff]
        %v9051 = vld [vmem:[#allocation3 + $0x158] sm:$0xff]
        %v9052 = vld [vmem:[#allocation3 + $0x160] sm:$0xff]
        %v9053 = vld [vmem:[#allocation3 + $0x168] sm:$0xff]
        %v9054 = vld [vmem:[#allocation3 + $0x170] sm:$0xff]
        %v9055 = vld [vmem:[#allocation3 + $0x178] sm:$0xff]
        %v9056 = vld [vmem:[#allocation3 + $0x180] sm:$0xff]
        %v9057 = vld [vmem:[#allocation3 + $0x188] sm:$0xff]
        %v9058 = vld [vmem:[#allocation3 + $0x190] sm:$0xff]
        %v9059 = vld [vmem:[#allocation3 + $0x198] sm:$0xff]
        %v9060 = vld [vmem:[#allocation3 + $0x1a0] sm:$0xff]
        %v9061 = vld [vmem:[#allocation3 + $0x1a8] sm:$0xff]
        %v9062 = vld [vmem:[#allocation3 + $0x1b0] sm:$0xff]
        %v9063 = vld [vmem:[#allocation3 + $0x1b8] sm:$0xff]
        %v9064 = vld [vmem:[#allocation3 + $0x1c0] sm:$0xff]
        %v9065 = vld [vmem:[#allocation3 + $0x1c8] sm:$0xff]
        %v9066 = vld [vmem:[#allocation3 + $0x1d0] sm:$0xff]
        %v9067 = vld [vmem:[#allocation3 + $0x1d8] sm:$0xff]
        %v9068 = vld [vmem:[#allocation3 + $0x1e0] sm:$0xff]
        %v9069 = vld [vmem:[#allocation3 + $0x1e8] sm:$0xff]
        %v9070 = vld [vmem:[#allocation3 + $0x1f0] sm:$0xff]
        %v9071 = vld [vmem:[#allocation3 + $0x1f8] sm:$0xff]
        %v9072 = vld [vmem:[#allocation3 + $0x200] sm:$0xff]
        %v9073 = vld [vmem:[#allocation3 + $0x208] sm:$0xff]
        %v9074 = vld [vmem:[#allocation3 + $0x210] sm:$0xff]
        %v9075 = vld [vmem:[#allocation3 + $0x218] sm:$0xff]
        %v9076 = vld [vmem:[#allocation3 + $0x220] sm:$0xff]
        %v9077 = vld [vmem:[#allocation3 + $0x228] sm:$0xff]
        %v9078 = vld [vmem:[#allocation3 + $0x230] sm:$0xff]
        %v9079 = vld [vmem:[#allocation3 + $0x238] sm:$0xff]
        %v9080 = vld [vmem:[#allocation3 + $0x240] sm:$0xff]
        %v9081 = vld [vmem:[#allocation3 + $0x248] sm:$0xff]
        %v9082 = vld [vmem:[#allocation3 + $0x250] sm:$0xff]
        %v9083 = vld [vmem:[#allocation3 + $0x258] sm:$0xff]
        %v9084 = vld [vmem:[#allocation3 + $0x260] sm:$0xff]
        %v9085 = vld [vmem:[#allocation3 + $0x268] sm:$0xff]
        %v9086 = vld [vmem:[#allocation3 + $0x270] sm:$0xff]
        %v9087 = vld [vmem:[#allocation3 + $0x278] sm:$0xff]
        %v9088 = vld [vmem:[#allocation3 + $0x280] sm:$0xff]
        %v9089 = vld [vmem:[#allocation3 + $0x288] sm:$0xff]
        %v9090 = vld [vmem:[#allocation3 + $0x290] sm:$0xff]
        %v9091 = vld [vmem:[#allocation3 + $0x298] sm:$0xff]
        %v9092 = vld [vmem:[#allocation3 + $0x2a0] sm:$0xff]
        %v9093 = vld [vmem:[#allocation3 + $0x2a8] sm:$0xff]
        %v9094 = vld [vmem:[#allocation3 + $0x2b0] sm:$0xff]
        %v9095 = vld [vmem:[#allocation3 + $0x2b8] sm:$0xff]
        %v9096 = vld [vmem:[#allocation3 + $0x2c0] sm:$0xff]
        %v9097 = vld [vmem:[#allocation3 + $0x2c8] sm:$0xff]
        %v9098 = vld [vmem:[#allocation3 + $0x2d0] sm:$0xff]
        %v9099 = vld [vmem:[#allocation3 + $0x2d8] sm:$0xff]
        %v9100 = vld [vmem:[#allocation3 + $0x2e0] sm:$0xff]
        %v9101 = vld [vmem:[#allocation3 + $0x2e8] sm:$0xff]
        %v9102 = vld [vmem:[#allocation3 + $0x2f0] sm:$0xff]
        %v9103 = vld [vmem:[#allocation3 + $0x2f8] sm:$0xff]
        %v9104 = vld [vmem:[#allocation3 + $0x300] sm:$0xff]
        %v9105 = vld [vmem:[#allocation3 + $0x308] sm:$0xff]
        %v9106 = vld [vmem:[#allocation3 + $0x310] sm:$0xff]
        %v9107 = vld [vmem:[#allocation3 + $0x318] sm:$0xff]
        %v9108 = vld [vmem:[#allocation3 + $0x320] sm:$0xff]
        %v9109 = vld [vmem:[#allocation3 + $0x328] sm:$0xff]
        %v9110 = vld [vmem:[#allocation3 + $0x330] sm:$0xff]
        %v9111 = vld [vmem:[#allocation3 + $0x338] sm:$0xff]
        %v9112 = vld [vmem:[#allocation3 + $0x340] sm:$0xff]
        %v9113 = vld [vmem:[#allocation3 + $0x348] sm:$0xff]
        %v9114 = vld [vmem:[#allocation3 + $0x350] sm:$0xff]
        %v9115 = vld [vmem:[#allocation3 + $0x358] sm:$0xff]
        %v9116 = vld [vmem:[#allocation3 + $0x360] sm:$0xff]
        %v9117 = vld [vmem:[#allocation3 + $0x368] sm:$0xff]
        %v9118 = vld [vmem:[#allocation3 + $0x370] sm:$0xff]
        %v9119 = vld [vmem:[#allocation3 + $0x378] sm:$0xff]
        %v9120 = vld [vmem:[#allocation3 + $0x380] sm:$0xff]
        %v9121 = vld [vmem:[#allocation3 + $0x388] sm:$0xff]
        %v9122 = vld [vmem:[#allocation3 + $0x390] sm:$0xff]
        %v9123 = vld [vmem:[#allocation3 + $0x398] sm:$0xff]
        %v9124 = vld [vmem:[#allocation3 + $0x3a0] sm:$0xff]
        %v9125 = vld [vmem:[#allocation3 + $0x3a8] sm:$0xff]
        %v9126 = vld [vmem:[#allocation3 + $0x3b0] sm:$0xff]
        %v9127 = vld [vmem:[#allocation3 + $0x3b8] sm:$0xff]
        %v9128 = vld [vmem:[#allocation3 + $0x3c0] sm:$0xff]
        %v9129 = vld [vmem:[#allocation3 + $0x3c8] sm:$0xff]
        %v9130 = vld [vmem:[#allocation3 + $0x3d0] sm:$0xff]
        %v9131 = vld [vmem:[#allocation3 + $0x3d8] sm:$0xff]
        %v9132 = vld [vmem:[#allocation3 + $0x3e0] sm:$0xff]
        %v9133 = vld [vmem:[#allocation3 + $0x3e8] sm:$0xff]
        %v9134 = vld [vmem:[#allocation3 + $0x3f0] sm:$0xff]
        %v9135 = vld [vmem:[#allocation3 + $0x3f8] sm:$0xff]
        %v9136 = vld [vmem:[#allocation3 + $0x400] sm:$0xff]
        %v9137 = vld [vmem:[#allocation3 + $0x408] sm:$0xff]
        %v9138 = vld [vmem:[#allocation3 + $0x410] sm:$0xff]
        %v9139 = vld [vmem:[#allocation3 + $0x418] sm:$0xff]
        %v9140 = vld [vmem:[#allocation3 + $0x420] sm:$0xff]
        %v9141 = vld [vmem:[#allocation3 + $0x428] sm:$0xff]
        %v9142 = vld [vmem:[#allocation3 + $0x430] sm:$0xff]
        %v9143 = vld [vmem:[#allocation3 + $0x438] sm:$0xff]
        %v9144 = vld [vmem:[#allocation3 + $0x440] sm:$0xff]
        %v9145 = vld [vmem:[#allocation3 + $0x448] sm:$0xff]
        %v9146 = vld [vmem:[#allocation3 + $0x450] sm:$0xff]
        %v9147 = vld [vmem:[#allocation3 + $0x458] sm:$0xff]
        %v9148 = vld [vmem:[#allocation3 + $0x460] sm:$0xff]
        %v9149 = vld [vmem:[#allocation3 + $0x468] sm:$0xff]
        %v9150 = vld [vmem:[#allocation3 + $0x470] sm:$0xff]
        %v9151 = vld [vmem:[#allocation3 + $0x478] sm:$0xff]
        %v9152 = vld [vmem:[#allocation3 + $0x480] sm:$0xff]
        %v9153 = vld [vmem:[#allocation3 + $0x488] sm:$0xff]
        %v9154 = vld [vmem:[#allocation3 + $0x490] sm:$0xff]
        %v9155 = vld [vmem:[#allocation3 + $0x498] sm:$0xff]
        %v9156 = vld [vmem:[#allocation3 + $0x4a0] sm:$0xff]
        %v9157 = vld [vmem:[#allocation3 + $0x4a8] sm:$0xff]
        %v9158 = vld [vmem:[#allocation3 + $0x4b0] sm:$0xff]
        %v9159 = vld [vmem:[#allocation3 + $0x4b8] sm:$0xff]
        %v9160 = vld [vmem:[#allocation3 + $0x4c0] sm:$0xff]
        %v9161 = vld [vmem:[#allocation3 + $0x4c8] sm:$0xff]
        %v9162 = vld [vmem:[#allocation3 + $0x4d0] sm:$0xff]
        %v9163 = vld [vmem:[#allocation3 + $0x4d8] sm:$0xff]
        %v9164 = vld [vmem:[#allocation3 + $0x4e0] sm:$0xff]
        %v9165 = vld [vmem:[#allocation3 + $0x4e8] sm:$0xff]
        %v9166 = vld [vmem:[#allocation3 + $0x4f0] sm:$0xff]
        %v9167 = vld [vmem:[#allocation3 + $0x4f8] sm:$0xff]
        %v9168 = vld [vmem:[#allocation3 + $0x500] sm:$0xff]
        %v9169 = vld [vmem:[#allocation3 + $0x508] sm:$0xff]
        %v9170 = vld [vmem:[#allocation3 + $0x510] sm:$0xff]
        %v9171 = vld [vmem:[#allocation3 + $0x518] sm:$0xff]
        %v9172 = vld [vmem:[#allocation3 + $0x520] sm:$0xff]
        %v9173 = vld [vmem:[#allocation3 + $0x528] sm:$0xff]
        %v9174 = vld [vmem:[#allocation3 + $0x530] sm:$0xff]
        %v9175 = vld [vmem:[#allocation3 + $0x538] sm:$0xff]
        %v9176 = vld [vmem:[#allocation3 + $0x540] sm:$0xff]
        %v9177 = vld [vmem:[#allocation3 + $0x548] sm:$0xff]
        %v9178 = vld [vmem:[#allocation3 + $0x550] sm:$0xff]
        %v9179 = vld [vmem:[#allocation3 + $0x558] sm:$0xff]
        %v9180 = vld [vmem:[#allocation3 + $0x560] sm:$0xff]
        %v9181 = vld [vmem:[#allocation3 + $0x568] sm:$0xff]
        %v9182 = vld [vmem:[#allocation3 + $0x570] sm:$0xff]
        %v9183 = vld [vmem:[#allocation3 + $0x578] sm:$0xff]
        %v9184 = vld [vmem:[#allocation3 + $0x580] sm:$0xff]
        %v9185 = vld [vmem:[#allocation3 + $0x588] sm:$0xff]
        %v9186 = vld [vmem:[#allocation3 + $0x590] sm:$0xff]
        %v9187 = vld [vmem:[#allocation3 + $0x598] sm:$0xff]
        %v9188 = vld [vmem:[#allocation3 + $0x5a0] sm:$0xff]
        %v9189 = vld [vmem:[#allocation3 + $0x5a8] sm:$0xff]
        %v9190 = vld [vmem:[#allocation3 + $0x5b0] sm:$0xff]
        %v9191 = vld [vmem:[#allocation3 + $0x5b8] sm:$0xff]
        %v9192 = vld [vmem:[#allocation3 + $0x5c0] sm:$0xff]
        %v9193 = vld [vmem:[#allocation3 + $0x5c8] sm:$0xff]
        %v9194 = vld [vmem:[#allocation3 + $0x5d0] sm:$0xff]
        %v9195 = vld [vmem:[#allocation3 + $0x5d8] sm:$0xff]
        %v9196 = vld [vmem:[#allocation3 + $0x5e0] sm:$0xff]
        %v9197 = vld [vmem:[#allocation3 + $0x5e8] sm:$0xff]
        %v9198 = vld [vmem:[#allocation3 + $0x5f0] sm:$0xff]
        %v9199 = vld [vmem:[#allocation3 + $0x5f8] sm:$0xff]
        %v9200 = vld [vmem:[#allocation3 + $0x600] sm:$0xff]
        %v9201 = vld [vmem:[#allocation3 + $0x608] sm:$0xff]
        %v9202 = vld [vmem:[#allocation3 + $0x610] sm:$0xff]
        %v9203 = vld [vmem:[#allocation3 + $0x618] sm:$0xff]
        %v9204 = vld [vmem:[#allocation3 + $0x620] sm:$0xff]
        %v9205 = vld [vmem:[#allocation3 + $0x628] sm:$0xff]
        %v9206 = vld [vmem:[#allocation3 + $0x630] sm:$0xff]
        %v9207 = vld [vmem:[#allocation3 + $0x638] sm:$0xff]
        %v9208 = vld [vmem:[#allocation3 + $0x640] sm:$0xff]
        %v9209 = vld [vmem:[#allocation3 + $0x648] sm:$0xff]
        %v9210 = vld [vmem:[#allocation3 + $0x650] sm:$0xff]
        %v9211 = vld [vmem:[#allocation3 + $0x658] sm:$0xff]
        %v9212 = vld [vmem:[#allocation3 + $0x660] sm:$0xff]
        %v9213 = vld [vmem:[#allocation3 + $0x668] sm:$0xff]
        %v9214 = vld [vmem:[#allocation3 + $0x670] sm:$0xff]
        %v9215 = vld [vmem:[#allocation3 + $0x678] sm:$0xff]
        %v9216 = vld [vmem:[#allocation3 + $0x680] sm:$0xff]
        %v9217 = vld [vmem:[#allocation3 + $0x688] sm:$0xff]
        %v9218 = vld [vmem:[#allocation3 + $0x690] sm:$0xff]
        %v9219 = vld [vmem:[#allocation3 + $0x698] sm:$0xff]
        %v9220 = vld [vmem:[#allocation3 + $0x6a0] sm:$0xff]
        %v9221 = vld [vmem:[#allocation3 + $0x6a8] sm:$0xff]
        %v9222 = vld [vmem:[#allocation3 + $0x6b0] sm:$0xff]
        %v9223 = vld [vmem:[#allocation3 + $0x6b8] sm:$0xff]
        %v9224 = vld [vmem:[#allocation3 + $0x6c0] sm:$0xff]
        %v9225 = vld [vmem:[#allocation3 + $0x6c8] sm:$0xff]
        %v9226 = vld [vmem:[#allocation3 + $0x6d0] sm:$0xff]
        %v9227 = vld [vmem:[#allocation3 + $0x6d8] sm:$0xff]
        %v9228 = vld [vmem:[#allocation3 + $0x6e0] sm:$0xff]
        %v9229 = vld [vmem:[#allocation3 + $0x6e8] sm:$0xff]
        %v9230 = vld [vmem:[#allocation3 + $0x6f0] sm:$0xff]
        %v9231 = vld [vmem:[#allocation3 + $0x6f8] sm:$0xff]
        %v9232 = vld [vmem:[#allocation3 + $0x700] sm:$0xff]
        %v9233 = vld [vmem:[#allocation3 + $0x708] sm:$0xff]
        %v9234 = vld [vmem:[#allocation3 + $0x710] sm:$0xff]
        %v9235 = vld [vmem:[#allocation3 + $0x718] sm:$0xff]
        %v9236 = vld [vmem:[#allocation3 + $0x720] sm:$0xff]
        %v9237 = vld [vmem:[#allocation3 + $0x728] sm:$0xff]
        %v9238 = vld [vmem:[#allocation3 + $0x730] sm:$0xff]
        %v9239 = vld [vmem:[#allocation3 + $0x738] sm:$0xff]
        %v9240 = vld [vmem:[#allocation3 + $0x740] sm:$0xff]
        %v9241 = vld [vmem:[#allocation3 + $0x748] sm:$0xff]
        %v9242 = vld [vmem:[#allocation3 + $0x750] sm:$0xff]
        %v9243 = vld [vmem:[#allocation3 + $0x758] sm:$0xff]
        %v9244 = vld [vmem:[#allocation3 + $0x760] sm:$0xff]
        %v9245 = vld [vmem:[#allocation3 + $0x768] sm:$0xff]
        %v9246 = vld [vmem:[#allocation3 + $0x770] sm:$0xff]
        %v9247 = vld [vmem:[#allocation3 + $0x778] sm:$0xff]
        %v9248 = vld [vmem:[#allocation3 + $0x780] sm:$0xff]
        %v9249 = vld [vmem:[#allocation3 + $0x788] sm:$0xff]
        %v9250 = vld [vmem:[#allocation3 + $0x790] sm:$0xff]
        %v9251 = vld [vmem:[#allocation3 + $0x798] sm:$0xff]
        %v9252 = vld [vmem:[#allocation3 + $0x7a0] sm:$0xff]
        %v9253 = vld [vmem:[#allocation3 + $0x7a8] sm:$0xff]
        %v9254 = vld [vmem:[#allocation3 + $0x7b0] sm:$0xff]
        %v9255 = vld [vmem:[#allocation3 + $0x7b8] sm:$0xff]
        %v9256 = vld [vmem:[#allocation3 + $0x7c0] sm:$0xff]
        %v9257 = vld [vmem:[#allocation3 + $0x7c8] sm:$0xff]
        %v9258 = vld [vmem:[#allocation3 + $0x7d0] sm:$0xff]
        %v9259 = vld [vmem:[#allocation3 + $0x7d8] sm:$0xff]
        %v9260 = vld [vmem:[#allocation3 + $0x7e0] sm:$0xff]
        %v9261 = vld [vmem:[#allocation3 + $0x7e8] sm:$0xff]
        %v9262 = vld [vmem:[#allocation3 + $0x7f0] sm:$0xff]
        %v9263 = vld [vmem:[#allocation3 + $0x7f8] sm:$0xff]
        %v9264 = vld [vmem:[#allocation3 + $0x800] sm:$0xff]
        %v9265 = vld [vmem:[#allocation3 + $0x808] sm:$0xff]
        %v9266 = vld [vmem:[#allocation3 + $0x810] sm:$0xff]
        %v9267 = vld [vmem:[#allocation3 + $0x818] sm:$0xff]
        %v9268 = vld [vmem:[#allocation3 + $0x820] sm:$0xff]
        %v9269 = vld [vmem:[#allocation3 + $0x828] sm:$0xff]
        %v9270 = vld [vmem:[#allocation3 + $0x830] sm:$0xff]
        %v9271 = vld [vmem:[#allocation3 + $0x838] sm:$0xff]
        %v9272 = vld [vmem:[#allocation3 + $0x840] sm:$0xff]
        %v9273 = vld [vmem:[#allocation3 + $0x848] sm:$0xff]
        %v9274 = vld [vmem:[#allocation3 + $0x850] sm:$0xff]
        %v9275 = vld [vmem:[#allocation3 + $0x858] sm:$0xff]
        %v9276 = vld [vmem:[#allocation3 + $0x860] sm:$0xff]
        %v9277 = vld [vmem:[#allocation3 + $0x868] sm:$0xff]
        %v9278 = vld [vmem:[#allocation3 + $0x870] sm:$0xff]
        %v9279 = vld [vmem:[#allocation3 + $0x878] sm:$0xff]
        %v9280 = vld [vmem:[#allocation3 + $0x880] sm:$0xff]
        %v9281 = vld [vmem:[#allocation3 + $0x888] sm:$0xff]
        %v9282 = vld [vmem:[#allocation3 + $0x890] sm:$0xff]
        %v9283 = vld [vmem:[#allocation3 + $0x898] sm:$0xff]
        %v9284 = vld [vmem:[#allocation3 + $0x8a0] sm:$0xff]
        %v9285 = vld [vmem:[#allocation3 + $0x8a8] sm:$0xff]
        %v9286 = vld [vmem:[#allocation3 + $0x8b0] sm:$0xff]
        %v9287 = vld [vmem:[#allocation3 + $0x8b8] sm:$0xff]
        %v9288 = vld [vmem:[#allocation3 + $0x8c0] sm:$0xff]
        %v9289 = vld [vmem:[#allocation3 + $0x8c8] sm:$0xff]
        %v9290 = vld [vmem:[#allocation3 + $0x8d0] sm:$0xff]
        %v9291 = vld [vmem:[#allocation3 + $0x8d8] sm:$0xff]
        %v9292 = vld [vmem:[#allocation3 + $0x8e0] sm:$0xff]
        %v9293 = vld [vmem:[#allocation3 + $0x8e8] sm:$0xff]
        %v9294 = vld [vmem:[#allocation3 + $0x8f0] sm:$0xff]
        %v9295 = vld [vmem:[#allocation3 + $0x8f8] sm:$0xff]
        %v9296 = vld [vmem:[#allocation3 + $0x900] sm:$0xff]
        %v9297 = vld [vmem:[#allocation3 + $0x908] sm:$0xff]
        %v9298 = vld [vmem:[#allocation3 + $0x910] sm:$0xff]
        %v9299 = vld [vmem:[#allocation3 + $0x918] sm:$0xff]
        %v9300 = vld [vmem:[#allocation3 + $0x920] sm:$0xff]
        %v9301 = vld [vmem:[#allocation3 + $0x928] sm:$0xff]
        %v9302 = vld [vmem:[#allocation3 + $0x930] sm:$0xff]
        %v9303 = vld [vmem:[#allocation3 + $0x938] sm:$0xff]
        %v9304 = vld [vmem:[#allocation3 + $0x940] sm:$0xff]
        %v9305 = vld [vmem:[#allocation3 + $0x948] sm:$0xff]
        %v9306 = vld [vmem:[#allocation3 + $0x950] sm:$0xff]
        %v9307 = vld [vmem:[#allocation3 + $0x958] sm:$0xff]
        %v9308 = vld [vmem:[#allocation3 + $0x960] sm:$0xff]
        %v9309 = vld [vmem:[#allocation3 + $0x968] sm:$0xff]
        %v9310 = vld [vmem:[#allocation3 + $0x970] sm:$0xff]
        %v9311 = vld [vmem:[#allocation3 + $0x978] sm:$0xff]
        %v9312 = vld [vmem:[#allocation3 + $0x980] sm:$0xff]
        %v9313 = vld [vmem:[#allocation3 + $0x988] sm:$0xff]
        %v9314 = vld [vmem:[#allocation3 + $0x990] sm:$0xff]
        %v9315 = vld [vmem:[#allocation3 + $0x998] sm:$0xff]
        %v9316 = vld [vmem:[#allocation3 + $0x9a0] sm:$0xff]
        %v9317 = vld [vmem:[#allocation3 + $0x9a8] sm:$0xff]
        %v9318 = vld [vmem:[#allocation3 + $0x9b0] sm:$0xff]
        %v9319 = vld [vmem:[#allocation3 + $0x9b8] sm:$0xff]
        %v9320 = vld [vmem:[#allocation3 + $0x9c0] sm:$0xff]
        %v9321 = vld [vmem:[#allocation3 + $0x9c8] sm:$0xff]
        %v9322 = vld [vmem:[#allocation3 + $0x9d0] sm:$0xff]
        %v9323 = vld [vmem:[#allocation3 + $0x9d8] sm:$0xff]
        %v9324 = vld [vmem:[#allocation3 + $0x9e0] sm:$0xff]
        %v9325 = vld [vmem:[#allocation3 + $0x9e8] sm:$0xff]
        %v9326 = vld [vmem:[#allocation3 + $0x9f0] sm:$0xff]
        %v9327 = vld [vmem:[#allocation3 + $0x9f8] sm:$0xff]
        %v9328 = vld [vmem:[#allocation3 + $0xa00] sm:$0xff]
        %v9329 = vld [vmem:[#allocation3 + $0xa08] sm:$0xff]
        %v9330 = vld [vmem:[#allocation3 + $0xa10] sm:$0xff]
        %v9331 = vld [vmem:[#allocation3 + $0xa18] sm:$0xff]
        %v9332 = vld [vmem:[#allocation3 + $0xa20] sm:$0xff]
        %v9333 = vld [vmem:[#allocation3 + $0xa28] sm:$0xff]
        %v9334 = vld [vmem:[#allocation3 + $0xa30] sm:$0xff]
        %v9335 = vld [vmem:[#allocation3 + $0xa38] sm:$0xff]
        %v9336 = vld [vmem:[#allocation3 + $0xa40] sm:$0xff]
        %v9337 = vld [vmem:[#allocation3 + $0xa48] sm:$0xff]
        %v9338 = vld [vmem:[#allocation3 + $0xa50] sm:$0xff]
        %v9339 = vld [vmem:[#allocation3 + $0xa58] sm:$0xff]
        %v9340 = vld [vmem:[#allocation3 + $0xa60] sm:$0xff]
        %v9341 = vld [vmem:[#allocation3 + $0xa68] sm:$0xff]
        %v9342 = vld [vmem:[#allocation3 + $0xa70] sm:$0xff]
        %v9343 = vld [vmem:[#allocation3 + $0xa78] sm:$0xff]
        %v9344 = vld [vmem:[#allocation3 + $0xa80] sm:$0xff]
        %v9345 = vld [vmem:[#allocation3 + $0xa88] sm:$0xff]
        %v9346 = vld [vmem:[#allocation3 + $0xa90] sm:$0xff]
        %v9347 = vld [vmem:[#allocation3 + $0xa98] sm:$0xff]
        %v9348 = vld [vmem:[#allocation3 + $0xaa0] sm:$0xff]
        %v9349 = vld [vmem:[#allocation3 + $0xaa8] sm:$0xff]
        %v9350 = vld [vmem:[#allocation3 + $0xab0] sm:$0xff]
        %v9351 = vld [vmem:[#allocation3 + $0xab8] sm:$0xff]
        %v9352 = vld [vmem:[#allocation3 + $0xac0] sm:$0xff]
        %v9353 = vld [vmem:[#allocation3 + $0xac8] sm:$0xff]
        %v9354 = vld [vmem:[#allocation3 + $0xad0] sm:$0xff]
        %v9355 = vld [vmem:[#allocation3 + $0xad8] sm:$0xff]
        %v9356 = vld [vmem:[#allocation3 + $0xae0] sm:$0xff]
        %v9357 = vld [vmem:[#allocation3 + $0xae8] sm:$0xff]
        %v9358 = vld [vmem:[#allocation3 + $0xaf0] sm:$0xff]
        %v9359 = vld [vmem:[#allocation3 + $0xaf8] sm:$0xff]
        %v9360 = vld [vmem:[#allocation3 + $0xb00] sm:$0xff]
        %v9361 = vld [vmem:[#allocation3 + $0xb08] sm:$0xff]
        %v9362 = vld [vmem:[#allocation3 + $0xb10] sm:$0xff]
        %v9363 = vld [vmem:[#allocation3 + $0xb18] sm:$0xff]
        %v9364 = vld [vmem:[#allocation3 + $0xb20] sm:$0xff]
        %v9365 = vld [vmem:[#allocation3 + $0xb28] sm:$0xff]
        %v9366 = vld [vmem:[#allocation3 + $0xb30] sm:$0xff]
        %v9367 = vld [vmem:[#allocation3 + $0xb38] sm:$0xff]
        %v9368 = vld [vmem:[#allocation3 + $0xb40] sm:$0xff]
        %v9369 = vld [vmem:[#allocation3 + $0xb48] sm:$0xff]
        %v9370 = vld [vmem:[#allocation3 + $0xb50] sm:$0xff]
        %v9371 = vld [vmem:[#allocation3 + $0xb58] sm:$0xff]
        %v9372 = vld [vmem:[#allocation3 + $0xb60] sm:$0xff]
        %v9373 = vld [vmem:[#allocation3 + $0xb68] sm:$0xff]
        %v9374 = vld [vmem:[#allocation3 + $0xb70] sm:$0xff]
        %v9375 = vld [vmem:[#allocation3 + $0xb78] sm:$0xff]
        %v9376 = vld [vmem:[#allocation3 + $0xb80] sm:$0xff]
        %v9377 = vld [vmem:[#allocation3 + $0xb88] sm:$0xff]
        %v9378 = vld [vmem:[#allocation3 + $0xb90] sm:$0xff]
        %v9379 = vld [vmem:[#allocation3 + $0xb98] sm:$0xff]
        %v9380 = vld [vmem:[#allocation3 + $0xba0] sm:$0xff]
        %v9381 = vld [vmem:[#allocation3 + $0xba8] sm:$0xff]
        %v9382 = vld [vmem:[#allocation3 + $0xbb0] sm:$0xff]
        %v9383 = vld [vmem:[#allocation3 + $0xbb8] sm:$0xff]
        %v9384 = vld [vmem:[#allocation3 + $0xbc0] sm:$0xff]
        %v9385 = vld [vmem:[#allocation3 + $0xbc8] sm:$0xff]
        %v9386 = vld [vmem:[#allocation3 + $0xbd0] sm:$0xff]
        %v9387 = vld [vmem:[#allocation3 + $0xbd8] sm:$0xff]
        %v9388 = vld [vmem:[#allocation3 + $0xbe0] sm:$0xff]
        %v9389 = vld [vmem:[#allocation3 + $0xbe8] sm:$0xff]
        %v9390 = vld [vmem:[#allocation3 + $0xbf0] sm:$0xff]
        %v9391 = vld [vmem:[#allocation3 + $0xbf8] sm:$0xff]
        %v9392 = vld [vmem:[#allocation3 + $0xc00] sm:$0xff]
        %v9393 = vld [vmem:[#allocation3 + $0xc08] sm:$0xff]
        %v9394 = vld [vmem:[#allocation3 + $0xc10] sm:$0xff]
        %v9395 = vld [vmem:[#allocation3 + $0xc18] sm:$0xff]
        %v9396 = vld [vmem:[#allocation3 + $0xc20] sm:$0xff]
        %v9397 = vld [vmem:[#allocation3 + $0xc28] sm:$0xff]
        %v9398 = vld [vmem:[#allocation3 + $0xc30] sm:$0xff]
        %v9399 = vld [vmem:[#allocation3 + $0xc38] sm:$0xff]
        %v9400 = vld [vmem:[#allocation3 + $0xc40] sm:$0xff]
        %v9401 = vld [vmem:[#allocation3 + $0xc48] sm:$0xff]
        %v9402 = vld [vmem:[#allocation3 + $0xc50] sm:$0xff]
        %v9403 = vld [vmem:[#allocation3 + $0xc58] sm:$0xff]
        %v9404 = vld [vmem:[#allocation3 + $0xc60] sm:$0xff]
        %v9405 = vld [vmem:[#allocation3 + $0xc68] sm:$0xff]
        %v9406 = vld [vmem:[#allocation3 + $0xc70] sm:$0xff]
        %v9407 = vld [vmem:[#allocation3 + $0xc78] sm:$0xff]
        %v9408 = vld [vmem:[#allocation3 + $0xc80] sm:$0xff]
        %v9409 = vld [vmem:[#allocation3 + $0xc88] sm:$0xff]
        %v9410 = vld [vmem:[#allocation3 + $0xc90] sm:$0xff]
        %v9411 = vld [vmem:[#allocation3 + $0xc98] sm:$0xff]
        %v9412 = vld [vmem:[#allocation3 + $0xca0] sm:$0xff]
        %v9413 = vld [vmem:[#allocation3 + $0xca8] sm:$0xff]
        %v9414 = vld [vmem:[#allocation3 + $0xcb0] sm:$0xff]
        %v9415 = vld [vmem:[#allocation3 + $0xcb8] sm:$0xff]
        %v9416 = vld [vmem:[#allocation3 + $0xcc0] sm:$0xff]
        %v9417 = vld [vmem:[#allocation3 + $0xcc8] sm:$0xff]
        %v9418 = vld [vmem:[#allocation3 + $0xcd0] sm:$0xff]
        %v9419 = vld [vmem:[#allocation3 + $0xcd8] sm:$0xff]
        %v9420 = vld [vmem:[#allocation3 + $0xce0] sm:$0xff]
        %v9421 = vld [vmem:[#allocation3 + $0xce8] sm:$0xff]
        %v9422 = vld [vmem:[#allocation3 + $0xcf0] sm:$0xff]
        %v9423 = vld [vmem:[#allocation3 + $0xcf8] sm:$0xff]
        %v9424 = vld [vmem:[#allocation3 + $0xd00] sm:$0xff]
        %v9425 = vld [vmem:[#allocation3 + $0xd08] sm:$0xff]
        %v9426 = vld [vmem:[#allocation3 + $0xd10] sm:$0xff]
        %v9427 = vld [vmem:[#allocation3 + $0xd18] sm:$0xff]
        %v9428 = vld [vmem:[#allocation3 + $0xd20] sm:$0xff]
        %v9429 = vld [vmem:[#allocation3 + $0xd28] sm:$0xff]
        %v9430 = vld [vmem:[#allocation3 + $0xd30] sm:$0xff]
        %v9431 = vld [vmem:[#allocation3 + $0xd38] sm:$0xff]
        %v9432 = vld [vmem:[#allocation3 + $0xd40] sm:$0xff]
        %v9433 = vld [vmem:[#allocation3 + $0xd48] sm:$0xff]
        %v9434 = vld [vmem:[#allocation3 + $0xd50] sm:$0xff]
        %v9435 = vld [vmem:[#allocation3 + $0xd58] sm:$0xff]
        %v9436 = vld [vmem:[#allocation3 + $0xd60] sm:$0xff]
        %v9437 = vld [vmem:[#allocation3 + $0xd68] sm:$0xff]
        %v9438 = vld [vmem:[#allocation3 + $0xd70] sm:$0xff]
        %v9439 = vld [vmem:[#allocation3 + $0xd78] sm:$0xff]
        %v9440 = vld [vmem:[#allocation3 + $0xd80] sm:$0xff]
        %v9441 = vld [vmem:[#allocation3 + $0xd88] sm:$0xff]
        %v9442 = vld [vmem:[#allocation3 + $0xd90] sm:$0xff]
        %v9443 = vld [vmem:[#allocation3 + $0xd98] sm:$0xff]
        %v9444 = vld [vmem:[#allocation3 + $0xda0] sm:$0xff]
        %v9445 = vld [vmem:[#allocation3 + $0xda8] sm:$0xff]
        %v9446 = vld [vmem:[#allocation3 + $0xdb0] sm:$0xff]
        %v9447 = vld [vmem:[#allocation3 + $0xdb8] sm:$0xff]
        %v9448 = vld [vmem:[#allocation3 + $0xdc0] sm:$0xff]
        %v9449 = vld [vmem:[#allocation3 + $0xdc8] sm:$0xff]
        %v9450 = vld [vmem:[#allocation3 + $0xdd0] sm:$0xff]
        %v9451 = vld [vmem:[#allocation3 + $0xdd8] sm:$0xff]
        %v9452 = vld [vmem:[#allocation3 + $0xde0] sm:$0xff]
        %v9453 = vld [vmem:[#allocation3 + $0xde8] sm:$0xff]
        %v9454 = vld [vmem:[#allocation3 + $0xdf0] sm:$0xff]
        %v9455 = vld [vmem:[#allocation3 + $0xdf8] sm:$0xff]
        %v9456 = vld [vmem:[#allocation3 + $0xe00] sm:$0xff]
        %v9457 = vld [vmem:[#allocation3 + $0xe08] sm:$0xff]
        %v9458 = vld [vmem:[#allocation3 + $0xe10] sm:$0xff]
        %v9459 = vld [vmem:[#allocation3 + $0xe18] sm:$0xff]
        %v9460 = vld [vmem:[#allocation3 + $0xe20] sm:$0xff]
        %v9461 = vld [vmem:[#allocation3 + $0xe28] sm:$0xff]
        %v9462 = vld [vmem:[#allocation3 + $0xe30] sm:$0xff]
        %v9463 = vld [vmem:[#allocation3 + $0xe38] sm:$0xff]
        %v9464 = vld [vmem:[#allocation3 + $0xe40] sm:$0xff]
        %v9465 = vld [vmem:[#allocation3 + $0xe48] sm:$0xff]
        %v9466 = vld [vmem:[#allocation3 + $0xe50] sm:$0xff]
        %v9467 = vld [vmem:[#allocation3 + $0xe58] sm:$0xff]
        %v9468 = vld [vmem:[#allocation3 + $0xe60] sm:$0xff]
        %v9469 = vld [vmem:[#allocation3 + $0xe68] sm:$0xff]
        %v9470 = vld [vmem:[#allocation3 + $0xe70] sm:$0xff]
        %v9471 = vld [vmem:[#allocation3 + $0xe78] sm:$0xff]
        %v9472 = vld [vmem:[#allocation3 + $0xe80] sm:$0xff]
        %v9473 = vld [vmem:[#allocation3 + $0xe88] sm:$0xff]
        %v9474 = vld [vmem:[#allocation3 + $0xe90] sm:$0xff]
        %v9475 = vld [vmem:[#allocation3 + $0xe98] sm:$0xff]
        %v9476 = vld [vmem:[#allocation3 + $0xea0] sm:$0xff]
        %v9477 = vld [vmem:[#allocation3 + $0xea8] sm:$0xff]
        %v9478 = vld [vmem:[#allocation3 + $0xeb0] sm:$0xff]
        %v9479 = vld [vmem:[#allocation3 + $0xeb8] sm:$0xff]
        %v9480 = vld [vmem:[#allocation3 + $0xec0] sm:$0xff]
        %v9481 = vld [vmem:[#allocation3 + $0xec8] sm:$0xff]
        %v9482 = vld [vmem:[#allocation3 + $0xed0] sm:$0xff]
        %v9483 = vld [vmem:[#allocation3 + $0xed8] sm:$0xff]
        %v9484 = vld [vmem:[#allocation3 + $0xee0] sm:$0xff]
        %v9485 = vld [vmem:[#allocation3 + $0xee8] sm:$0xff]
        %v9486 = vld [vmem:[#allocation3 + $0xef0] sm:$0xff]
        %v9487 = vld [vmem:[#allocation3 + $0xef8] sm:$0xff]
        %v9488 = vld [vmem:[#allocation3 + $0xf00] sm:$0xff]
        %v9489 = vld [vmem:[#allocation3 + $0xf08] sm:$0xff]
        %v9490 = vld [vmem:[#allocation3 + $0xf10] sm:$0xff]
        %v9491 = vld [vmem:[#allocation3 + $0xf18] sm:$0xff]
        %v9492 = vld [vmem:[#allocation3 + $0xf20] sm:$0xff]
        %v9493 = vld [vmem:[#allocation3 + $0xf28] sm:$0xff]
        %v9494 = vld [vmem:[#allocation3 + $0xf30] sm:$0xff]
        %v9495 = vld [vmem:[#allocation3 + $0xf38] sm:$0xff]
        %v9496 = vld [vmem:[#allocation3 + $0xf40] sm:$0xff]
        %v9497 = vld [vmem:[#allocation3 + $0xf48] sm:$0xff]
        %v9498 = vld [vmem:[#allocation3 + $0xf50] sm:$0xff]
        %v9499 = vld [vmem:[#allocation3 + $0xf58] sm:$0xff]
        %v9500 = vld [vmem:[#allocation3 + $0xf60] sm:$0xff]
        %v9501 = vld [vmem:[#allocation3 + $0xf68] sm:$0xff]
        %v9502 = vld [vmem:[#allocation3 + $0xf70] sm:$0xff]
        %v9503 = vld [vmem:[#allocation3 + $0xf78] sm:$0xff]
        %v9504 = vld [vmem:[#allocation3 + $0xf80] sm:$0xff]
        %v9505 = vld [vmem:[#allocation3 + $0xf88] sm:$0xff]
        %v9506 = vld [vmem:[#allocation3 + $0xf90] sm:$0xff]
        %v9507 = vld [vmem:[#allocation3 + $0xf98] sm:$0xff]
        %v9508 = vld [vmem:[#allocation3 + $0xfa0] sm:$0xff]
        %v9509 = vld [vmem:[#allocation3 + $0xfa8] sm:$0xff]
        %v9510 = vld [vmem:[#allocation3 + $0xfb0] sm:$0xff]
        %v9511 = vld [vmem:[#allocation3 + $0xfb8] sm:$0xff]
        %v9512 = vld [vmem:[#allocation3 + $0xfc0] sm:$0xff]
        %v9513 = vld [vmem:[#allocation3 + $0xfc8] sm:$0xff]
        %v9514 = vld [vmem:[#allocation3 + $0xfd0] sm:$0xff]
        %v9515 = vld [vmem:[#allocation3 + $0xfd8] sm:$0xff]
        %v9516 = vld [vmem:[#allocation3 + $0xfe0] sm:$0xff]
        %v9517 = vld [vmem:[#allocation3 + $0xfe8] sm:$0xff]
        %v9518 = vld [vmem:[#allocation3 + $0xff0] sm:$0xff]
        %v9519 = vld [vmem:[#allocation3 + $0xff8] sm:$0xff]
        %v9520 = vld [vmem:[#allocation3 + $0x1000] sm:$0xff]
        %v9521 = vld [vmem:[#allocation3 + $0x1008] sm:$0xff]
        %v9522 = vld [vmem:[#allocation3 + $0x1010] sm:$0xff]
        %v9523 = vld [vmem:[#allocation3 + $0x1018] sm:$0xff]
        %v9524 = vld [vmem:[#allocation3 + $0x1020] sm:$0xff]
        %v9525 = vld [vmem:[#allocation3 + $0x1028] sm:$0xff]
        %v9526 = vld [vmem:[#allocation3 + $0x1030] sm:$0xff]
        %v9527 = vld [vmem:[#allocation3 + $0x1038] sm:$0xff]
        %v9528 = vld [vmem:[#allocation3 + $0x1040] sm:$0xff]
        %v9529 = vld [vmem:[#allocation3 + $0x1048] sm:$0xff]
        %v9530 = vld [vmem:[#allocation3 + $0x1050] sm:$0xff]
        %v9531 = vld [vmem:[#allocation3 + $0x1058] sm:$0xff]
        %v9532 = vld [vmem:[#allocation3 + $0x1060] sm:$0xff]
        %v9533 = vld [vmem:[#allocation3 + $0x1068] sm:$0xff]
        %v9534 = vld [vmem:[#allocation3 + $0x1070] sm:$0xff]
        %v9535 = vld [vmem:[#allocation3 + $0x1078] sm:$0xff]
        %v9536 = vld [vmem:[#allocation3 + $0x1080] sm:$0xff]
        %v9537 = vld [vmem:[#allocation3 + $0x1088] sm:$0xff]
        %v9538 = vld [vmem:[#allocation3 + $0x1090] sm:$0xff]
        %v9539 = vld [vmem:[#allocation3 + $0x1098] sm:$0xff]
        %v9540 = vld [vmem:[#allocation3 + $0x10a0] sm:$0xff]
        %v9541 = vld [vmem:[#allocation3 + $0x10a8] sm:$0xff]
        %v9542 = vld [vmem:[#allocation3 + $0x10b0] sm:$0xff]
        %v9543 = vld [vmem:[#allocation3 + $0x10b8] sm:$0xff]
        %v9544 = vld [vmem:[#allocation3 + $0x10c0] sm:$0xff]
        %v9545 = vld [vmem:[#allocation3 + $0x10c8] sm:$0xff]
        %v9546 = vld [vmem:[#allocation3 + $0x10d0] sm:$0xff]
        %v9547 = vld [vmem:[#allocation3 + $0x10d8] sm:$0xff]
        %v9548 = vld [vmem:[#allocation3 + $0x10e0] sm:$0xff]
        %v9549 = vld [vmem:[#allocation3 + $0x10e8] sm:$0xff]
        %v9550 = vld [vmem:[#allocation3 + $0x10f0] sm:$0xff]
        %v9551 = vld [vmem:[#allocation3 + $0x10f8] sm:$0xff]
        %v9552 = vld [vmem:[#allocation3 + $0x1100] sm:$0xff]
        %v9553 = vld [vmem:[#allocation3 + $0x1108] sm:$0xff]
        %v9554 = vld [vmem:[#allocation3 + $0x1110] sm:$0xff]
        %v9555 = vld [vmem:[#allocation3 + $0x1118] sm:$0xff]
        %v9556 = vld [vmem:[#allocation3 + $0x1120] sm:$0xff]
        %v9557 = vld [vmem:[#allocation3 + $0x1128] sm:$0xff]
        %v9558 = vld [vmem:[#allocation3 + $0x1130] sm:$0xff]
        %v9559 = vld [vmem:[#allocation3 + $0x1138] sm:$0xff]
        %v9560 = vld [vmem:[#allocation3 + $0x1140] sm:$0xff]
        %v9561 = vld [vmem:[#allocation3 + $0x1148] sm:$0xff]
        %v9562 = vld [vmem:[#allocation3 + $0x1150] sm:$0xff]
        %v9563 = vld [vmem:[#allocation3 + $0x1158] sm:$0xff]
        %v9564 = vld [vmem:[#allocation3 + $0x1160] sm:$0xff]
        %v9565 = vld [vmem:[#allocation3 + $0x1168] sm:$0xff]
        %v9566 = vld [vmem:[#allocation3 + $0x1170] sm:$0xff]
        %v9567 = vld [vmem:[#allocation3 + $0x1178] sm:$0xff]
        %v9568 = vld [vmem:[#allocation3 + $0x1180] sm:$0xff]
        %v9569 = vld [vmem:[#allocation3 + $0x1188] sm:$0xff]
        %v9570 = vld [vmem:[#allocation3 + $0x1190] sm:$0xff]
        %v9571 = vld [vmem:[#allocation3 + $0x1198] sm:$0xff]
        %v9572 = vld [vmem:[#allocation3 + $0x11a0] sm:$0xff]
        %v9573 = vld [vmem:[#allocation3 + $0x11a8] sm:$0xff]
        %v9574 = vld [vmem:[#allocation3 + $0x11b0] sm:$0xff]
        %v9575 = vld [vmem:[#allocation3 + $0x11b8] sm:$0xff]
        %v9576 = vld [vmem:[#allocation3 + $0x11c0] sm:$0xff]
        %v9577 = vld [vmem:[#allocation3 + $0x11c8] sm:$0xff]
        %v9578 = vld [vmem:[#allocation3 + $0x11d0] sm:$0xff]
        %v9579 = vld [vmem:[#allocation3 + $0x11d8] sm:$0xff]
        %v9580 = vld [vmem:[#allocation3 + $0x11e0] sm:$0xff]
        %v9581 = vld [vmem:[#allocation3 + $0x11e8] sm:$0xff]
        %v9582 = vld [vmem:[#allocation3 + $0x11f0] sm:$0xff]
        %v9583 = vld [vmem:[#allocation3 + $0x11f8] sm:$0xff]
        %v9584 = vld [vmem:[#allocation3 + $0x1200] sm:$0xff]
        %v9585 = vld [vmem:[#allocation3 + $0x1208] sm:$0xff]
        %v9586 = vld [vmem:[#allocation3 + $0x1210] sm:$0xff]
        %v9587 = vld [vmem:[#allocation3 + $0x1218] sm:$0xff]
        %v9588 = vld [vmem:[#allocation3 + $0x1220] sm:$0xff]
        %v9589 = vld [vmem:[#allocation3 + $0x1228] sm:$0xff]
        %v9590 = vld [vmem:[#allocation3 + $0x1230] sm:$0xff]
        %v9591 = vld [vmem:[#allocation3 + $0x1238] sm:$0xff]
        %v9592 = vld [vmem:[#allocation3 + $0x1240] sm:$0xff]
        %v9593 = vld [vmem:[#allocation3 + $0x1248] sm:$0xff]
        %v9594 = vld [vmem:[#allocation3 + $0x1250] sm:$0xff]
        %v9595 = vld [vmem:[#allocation3 + $0x1258] sm:$0xff]
        %v9596 = vld [vmem:[#allocation3 + $0x1260] sm:$0xff]
        %v9597 = vld [vmem:[#allocation3 + $0x1268] sm:$0xff]
        %v9598 = vld [vmem:[#allocation3 + $0x1270] sm:$0xff]
        %v9599 = vld [vmem:[#allocation3 + $0x1278] sm:$0xff]
        %v9600 = vld [vmem:[#allocation3 + $0x1280] sm:$0xff]
        %v9601 = vld [vmem:[#allocation3 + $0x1288] sm:$0xff]
        %v9602 = vld [vmem:[#allocation3 + $0x1290] sm:$0xff]
        %v9603 = vld [vmem:[#allocation3 + $0x1298] sm:$0xff]
        %v9604 = vld [vmem:[#allocation3 + $0x12a0] sm:$0xff]
        %v9605 = vld [vmem:[#allocation3 + $0x12a8] sm:$0xff]
        %v9606 = vld [vmem:[#allocation3 + $0x12b0] sm:$0xff]
        %v9607 = vld [vmem:[#allocation3 + $0x12b8] sm:$0xff]
        %v9608 = vld [vmem:[#allocation3 + $0x12c0] sm:$0xff]
        %v9609 = vld [vmem:[#allocation3 + $0x12c8] sm:$0xff]
        %v9610 = vld [vmem:[#allocation3 + $0x12d0] sm:$0xff]
        %v9611 = vld [vmem:[#allocation3 + $0x12d8] sm:$0xff]
        %v9612 = vld [vmem:[#allocation3 + $0x12e0] sm:$0xff]
        %v9613 = vld [vmem:[#allocation3 + $0x12e8] sm:$0xff]
        %v9614 = vld [vmem:[#allocation3 + $0x12f0] sm:$0xff]
        %v9615 = vld [vmem:[#allocation3 + $0x12f8] sm:$0xff]
        %v9616 = vld [vmem:[#allocation3 + $0x1300] sm:$0xff]
        %v9617 = vld [vmem:[#allocation3 + $0x1308] sm:$0xff]
        %v9618 = vld [vmem:[#allocation3 + $0x1310] sm:$0xff]
        %v9619 = vld [vmem:[#allocation3 + $0x1318] sm:$0xff]
        %v9620 = vld [vmem:[#allocation3 + $0x1320] sm:$0xff]
        %v9621 = vld [vmem:[#allocation3 + $0x1328] sm:$0xff]
        %v9622 = vld [vmem:[#allocation3 + $0x1330] sm:$0xff]
        %v9623 = vld [vmem:[#allocation3 + $0x1338] sm:$0xff]
        %v9624 = vld [vmem:[#allocation3 + $0x1340] sm:$0xff]
        %v9625 = vld [vmem:[#allocation3 + $0x1348] sm:$0xff]
        %v9626 = vld [vmem:[#allocation3 + $0x1350] sm:$0xff]
        %v9627 = vld [vmem:[#allocation3 + $0x1358] sm:$0xff]
        %v9628 = vld [vmem:[#allocation3 + $0x1360] sm:$0xff]
        %v9629 = vld [vmem:[#allocation3 + $0x1368] sm:$0xff]
        %v9630 = vld [vmem:[#allocation3 + $0x1370] sm:$0xff]
        %v9631 = vld [vmem:[#allocation3 + $0x1378] sm:$0xff]
        %v9632 = vld [vmem:[#allocation3 + $0x1380] sm:$0xff]
        %v9633 = vld [vmem:[#allocation3 + $0x1388] sm:$0xff]
        %v9634 = vld [vmem:[#allocation3 + $0x1390] sm:$0xff]
        %v9635 = vld [vmem:[#allocation3 + $0x1398] sm:$0xff]
        %v9636 = vld [vmem:[#allocation3 + $0x13a0] sm:$0xff]
        %v9637 = vld [vmem:[#allocation3 + $0x13a8] sm:$0xff]
        %v9638 = vld [vmem:[#allocation3 + $0x13b0] sm:$0xff]
        %v9639 = vld [vmem:[#allocation3 + $0x13b8] sm:$0xff]
        %v9640 = vld [vmem:[#allocation3 + $0x13c0] sm:$0xff]
        %v9641 = vld [vmem:[#allocation3 + $0x13c8] sm:$0xff]
        %v9642 = vld [vmem:[#allocation3 + $0x13d0] sm:$0xff]
        %v9643 = vld [vmem:[#allocation3 + $0x13d8] sm:$0xff]
        %v9644 = vld [vmem:[#allocation3 + $0x13e0] sm:$0xff]
        %v9645 = vld [vmem:[#allocation3 + $0x13e8] sm:$0xff]
        %v9646 = vld [vmem:[#allocation3 + $0x13f0] sm:$0xff]
        %v9647 = vld [vmem:[#allocation3 + $0x13f8] sm:$0xff]
        %v9648 = vld [vmem:[#allocation3 + $0x1400] sm:$0xff]
        %v9649 = vld [vmem:[#allocation3 + $0x1408] sm:$0xff]
        %v9650 = vld [vmem:[#allocation3 + $0x1410] sm:$0xff]
        %v9651 = vld [vmem:[#allocation3 + $0x1418] sm:$0xff]
        %v9652 = vld [vmem:[#allocation3 + $0x1420] sm:$0xff]
        %v9653 = vld [vmem:[#allocation3 + $0x1428] sm:$0xff]
        %v9654 = vld [vmem:[#allocation3 + $0x1430] sm:$0xff]
        %v9655 = vld [vmem:[#allocation3 + $0x1438] sm:$0xff]
        %v9656 = vld [vmem:[#allocation3 + $0x1440] sm:$0xff]
        %v9657 = vld [vmem:[#allocation3 + $0x1448] sm:$0xff]
        %v9658 = vld [vmem:[#allocation3 + $0x1450] sm:$0xff]
        %v9659 = vld [vmem:[#allocation3 + $0x1458] sm:$0xff]
        %v9660 = vld [vmem:[#allocation3 + $0x1460] sm:$0xff]
        %v9661 = vld [vmem:[#allocation3 + $0x1468] sm:$0xff]
        %v9662 = vld [vmem:[#allocation3 + $0x1470] sm:$0xff]
        %v9663 = vld [vmem:[#allocation3 + $0x1478] sm:$0xff]
        %v9664 = vld [vmem:[#allocation3 + $0x1480] sm:$0xff]
        %v9665 = vld [vmem:[#allocation3 + $0x1488] sm:$0xff]
        %v9666 = vld [vmem:[#allocation3 + $0x1490] sm:$0xff]
        %v9667 = vld [vmem:[#allocation3 + $0x1498] sm:$0xff]
        %v9668 = vld [vmem:[#allocation3 + $0x14a0] sm:$0xff]
        %v9669 = vld [vmem:[#allocation3 + $0x14a8] sm:$0xff]
        %v9670 = vld [vmem:[#allocation3 + $0x14b0] sm:$0xff]
        %v9671 = vld [vmem:[#allocation3 + $0x14b8] sm:$0xff]
        %v9672 = vld [vmem:[#allocation3 + $0x14c0] sm:$0xff]
        %v9673 = vld [vmem:[#allocation3 + $0x14c8] sm:$0xff]
        %v9674 = vld [vmem:[#allocation3 + $0x14d0] sm:$0xff]
        %v9675 = vld [vmem:[#allocation3 + $0x14d8] sm:$0xff]
        %v9676 = vld [vmem:[#allocation3 + $0x14e0] sm:$0xff]
        %v9677 = vld [vmem:[#allocation3 + $0x14e8] sm:$0xff]
        %v9678 = vld [vmem:[#allocation3 + $0x14f0] sm:$0xff]
        %v9679 = vld [vmem:[#allocation3 + $0x14f8] sm:$0xff]
        %v9680 = vld [vmem:[#allocation3 + $0x1500] sm:$0xff]
        %v9681 = vld [vmem:[#allocation3 + $0x1508] sm:$0xff]
        %v9682 = vld [vmem:[#allocation3 + $0x1510] sm:$0xff]
        %v9683 = vld [vmem:[#allocation3 + $0x1518] sm:$0xff]
        %v9684 = vld [vmem:[#allocation3 + $0x1520] sm:$0xff]
        %v9685 = vld [vmem:[#allocation3 + $0x1528] sm:$0xff]
        %v9686 = vld [vmem:[#allocation3 + $0x1530] sm:$0xff]
        %v9687 = vld [vmem:[#allocation3 + $0x1538] sm:$0xff]
        %v9688 = vld [vmem:[#allocation3 + $0x1540] sm:$0xff]
        %v9689 = vld [vmem:[#allocation3 + $0x1548] sm:$0xff]
        %v9690 = vld [vmem:[#allocation3 + $0x1550] sm:$0xff]
        %v9691 = vld [vmem:[#allocation3 + $0x1558] sm:$0xff]
        %v9692 = vld [vmem:[#allocation3 + $0x1560] sm:$0xff]
        %v9693 = vld [vmem:[#allocation3 + $0x1568] sm:$0xff]
        %v9694 = vld [vmem:[#allocation3 + $0x1570] sm:$0xff]
        %v9695 = vld [vmem:[#allocation3 + $0x1578] sm:$0xff]
        %v9696 = vld [vmem:[#allocation3 + $0x1580] sm:$0xff]
        %v9697 = vld [vmem:[#allocation3 + $0x1588] sm:$0xff]
        %v9698 = vld [vmem:[#allocation3 + $0x1590] sm:$0xff]
        %v9699 = vld [vmem:[#allocation3 + $0x1598] sm:$0xff]
        %v9700 = vld [vmem:[#allocation3 + $0x15a0] sm:$0xff]
        %v9701 = vld [vmem:[#allocation3 + $0x15a8] sm:$0xff]
        %v9702 = vld [vmem:[#allocation3 + $0x15b0] sm:$0xff]
        %v9703 = vld [vmem:[#allocation3 + $0x15b8] sm:$0xff]
        %v9704 = vld [vmem:[#allocation3 + $0x15c0] sm:$0xff]
        %v9705 = vld [vmem:[#allocation3 + $0x15c8] sm:$0xff]
        %v9706 = vld [vmem:[#allocation3 + $0x15d0] sm:$0xff]
        %v9707 = vld [vmem:[#allocation3 + $0x15d8] sm:$0xff]
        %v9708 = vld [vmem:[#allocation3 + $0x15e0] sm:$0xff]
        %v9709 = vld [vmem:[#allocation3 + $0x15e8] sm:$0xff]
        %v9710 = vld [vmem:[#allocation3 + $0x15f0] sm:$0xff]
        %v9711 = vld [vmem:[#allocation3 + $0x15f8] sm:$0xff]
        %v9712 = vld [vmem:[#allocation3 + $0x1600] sm:$0xff]
        %v9713 = vld [vmem:[#allocation3 + $0x1608] sm:$0xff]
        %v9714 = vld [vmem:[#allocation3 + $0x1610] sm:$0xff]
        %v9715 = vld [vmem:[#allocation3 + $0x1618] sm:$0xff]
        %v9716 = vld [vmem:[#allocation3 + $0x1620] sm:$0xff]
        %v9717 = vld [vmem:[#allocation3 + $0x1628] sm:$0xff]
        %v9718 = vld [vmem:[#allocation3 + $0x1630] sm:$0xff]
        %v9719 = vld [vmem:[#allocation3 + $0x1638] sm:$0xff]
        %v9720 = vld [vmem:[#allocation3 + $0x1640] sm:$0xff]
        %v9721 = vld [vmem:[#allocation3 + $0x1648] sm:$0xff]
        %v9722 = vld [vmem:[#allocation3 + $0x1650] sm:$0xff]
        %v9723 = vld [vmem:[#allocation3 + $0x1658] sm:$0xff]
        %v9724 = vld [vmem:[#allocation3 + $0x1660] sm:$0xff]
        %v9725 = vld [vmem:[#allocation3 + $0x1668] sm:$0xff]
        %v9726 = vld [vmem:[#allocation3 + $0x1670] sm:$0xff]
        %v9727 = vld [vmem:[#allocation3 + $0x1678] sm:$0xff]
        %v9728 = vld [vmem:[#allocation3 + $0x1680] sm:$0xff]
        %v9729 = vld [vmem:[#allocation3 + $0x1688] sm:$0xff]
        %v9730 = vld [vmem:[#allocation3 + $0x1690] sm:$0xff]
        %v9731 = vld [vmem:[#allocation3 + $0x1698] sm:$0xff]
        %v9732 = vld [vmem:[#allocation3 + $0x16a0] sm:$0xff]
        %v9733 = vld [vmem:[#allocation3 + $0x16a8] sm:$0xff]
        %v9734 = vld [vmem:[#allocation3 + $0x16b0] sm:$0xff]
        %v9735 = vld [vmem:[#allocation3 + $0x16b8] sm:$0xff]
        %v9736 = vld [vmem:[#allocation3 + $0x16c0] sm:$0xff]
        %v9737 = vld [vmem:[#allocation3 + $0x16c8] sm:$0xff]
        %v9738 = vld [vmem:[#allocation3 + $0x16d0] sm:$0xff]
        %v9739 = vld [vmem:[#allocation3 + $0x16d8] sm:$0xff]
        %v9740 = vld [vmem:[#allocation3 + $0x16e0] sm:$0xff]
        %v9741 = vld [vmem:[#allocation3 + $0x16e8] sm:$0xff]
        %v9742 = vld [vmem:[#allocation3 + $0x16f0] sm:$0xff]
        %v9743 = vld [vmem:[#allocation3 + $0x16f8] sm:$0xff]
        %v9744 = vld [vmem:[#allocation3 + $0x1700] sm:$0xff]
        %v9745 = vld [vmem:[#allocation3 + $0x1708] sm:$0xff]
        %v9746 = vld [vmem:[#allocation3 + $0x1710] sm:$0xff]
        %v9747 = vld [vmem:[#allocation3 + $0x1718] sm:$0xff]
        %v9748 = vld [vmem:[#allocation3 + $0x1720] sm:$0xff]
        %v9749 = vld [vmem:[#allocation3 + $0x1728] sm:$0xff]
        %v9750 = vld [vmem:[#allocation3 + $0x1730] sm:$0xff]
        %v9751 = vld [vmem:[#allocation3 + $0x1738] sm:$0xff]
        %v9752 = vld [vmem:[#allocation3 + $0x1740] sm:$0xff]
        %v9753 = vld [vmem:[#allocation3 + $0x1748] sm:$0xff]
        %v9754 = vld [vmem:[#allocation3 + $0x1750] sm:$0xff]
        %v9755 = vld [vmem:[#allocation3 + $0x1758] sm:$0xff]
        %v9756 = vld [vmem:[#allocation3 + $0x1760] sm:$0xff]
        %v9757 = vld [vmem:[#allocation3 + $0x1768] sm:$0xff]
        %v9758 = vld [vmem:[#allocation3 + $0x1770] sm:$0xff]
        %v9759 = vld [vmem:[#allocation3 + $0x1778] sm:$0xff]
        %v9760 = vld [vmem:[#allocation3 + $0x1780] sm:$0xff]
        %v9761 = vld [vmem:[#allocation3 + $0x1788] sm:$0xff]
        %v9762 = vld [vmem:[#allocation3 + $0x1790] sm:$0xff]
        %v9763 = vld [vmem:[#allocation3 + $0x1798] sm:$0xff]
        %v9764 = vld [vmem:[#allocation3 + $0x17a0] sm:$0xff]
        %v9765 = vld [vmem:[#allocation3 + $0x17a8] sm:$0xff]
        %v9766 = vld [vmem:[#allocation3 + $0x17b0] sm:$0xff]
        %v9767 = vld [vmem:[#allocation3 + $0x17b8] sm:$0xff]
        %v9768 = vld [vmem:[#allocation3 + $0x17c0] sm:$0xff]
        %v9769 = vld [vmem:[#allocation3 + $0x17c8] sm:$0xff]
        %v9770 = vld [vmem:[#allocation3 + $0x17d0] sm:$0xff]
        %v9771 = vld [vmem:[#allocation3 + $0x17d8] sm:$0xff]
        %v9772 = vld [vmem:[#allocation3 + $0x17e0] sm:$0xff]
        %v9773 = vld [vmem:[#allocation3 + $0x17e8] sm:$0xff]
        %v9774 = vld [vmem:[#allocation3 + $0x17f0] sm:$0xff]
        %v9775 = vld [vmem:[#allocation3 + $0x17f8] sm:$0xff]
        %v9776 = vld [vmem:[#allocation3 + $0x1800] sm:$0xff]
        %v9777 = vld [vmem:[#allocation3 + $0x1808] sm:$0xff]
        %v9778 = vld [vmem:[#allocation3 + $0x1810] sm:$0xff]
        %v9779 = vld [vmem:[#allocation3 + $0x1818] sm:$0xff]
        %v9780 = vld [vmem:[#allocation3 + $0x1820] sm:$0xff]
        %v9781 = vld [vmem:[#allocation3 + $0x1828] sm:$0xff]
        %v9782 = vld [vmem:[#allocation3 + $0x1830] sm:$0xff]
        %v9783 = vld [vmem:[#allocation3 + $0x1838] sm:$0xff]
        %v9784 = vld [vmem:[#allocation3 + $0x1840] sm:$0xff]
        %v9785 = vld [vmem:[#allocation3 + $0x1848] sm:$0xff]
        %v9786 = vld [vmem:[#allocation3 + $0x1850] sm:$0xff]
        %v9787 = vld [vmem:[#allocation3 + $0x1858] sm:$0xff]
        %v9788 = vld [vmem:[#allocation3 + $0x1860] sm:$0xff]
        %v9789 = vld [vmem:[#allocation3 + $0x1868] sm:$0xff]
        %v9790 = vld [vmem:[#allocation3 + $0x1870] sm:$0xff]
        %v9791 = vld [vmem:[#allocation3 + $0x1878] sm:$0xff]
        %v9792 = vld [vmem:[#allocation3 + $0x1880] sm:$0xff]
        %v9793 = vld [vmem:[#allocation3 + $0x1888] sm:$0xff]
        %v9794 = vld [vmem:[#allocation3 + $0x1890] sm:$0xff]
        %v9795 = vld [vmem:[#allocation3 + $0x1898] sm:$0xff]
        %v9796 = vld [vmem:[#allocation3 + $0x18a0] sm:$0xff]
        %v9797 = vld [vmem:[#allocation3 + $0x18a8] sm:$0xff]
        %v9798 = vld [vmem:[#allocation3 + $0x18b0] sm:$0xff]
        %v9799 = vld [vmem:[#allocation3 + $0x18b8] sm:$0xff]
        %v9800 = vld [vmem:[#allocation3 + $0x18c0] sm:$0xff]
        %v9801 = vld [vmem:[#allocation3 + $0x18c8] sm:$0xff]
        %v9802 = vld [vmem:[#allocation3 + $0x18d0] sm:$0xff]
        %v9803 = vld [vmem:[#allocation3 + $0x18d8] sm:$0xff]
        %v9804 = vld [vmem:[#allocation3 + $0x18e0] sm:$0xff]
        %v9805 = vld [vmem:[#allocation3 + $0x18e8] sm:$0xff]
        %v9806 = vld [vmem:[#allocation3 + $0x18f0] sm:$0xff]
        %v9807 = vld [vmem:[#allocation3 + $0x18f8] sm:$0xff]
        %v9808 = vld [vmem:[#allocation3 + $0x1900] sm:$0xff]
        %v9809 = vld [vmem:[#allocation3 + $0x1908] sm:$0xff]
        %v9810 = vld [vmem:[#allocation3 + $0x1910] sm:$0xff]
        %v9811 = vld [vmem:[#allocation3 + $0x1918] sm:$0xff]
        %v9812 = vld [vmem:[#allocation3 + $0x1920] sm:$0xff]
        %v9813 = vld [vmem:[#allocation3 + $0x1928] sm:$0xff]
        %v9814 = vld [vmem:[#allocation3 + $0x1930] sm:$0xff]
        %v9815 = vld [vmem:[#allocation3 + $0x1938] sm:$0xff]
        %v9816 = vld [vmem:[#allocation3 + $0x1940] sm:$0xff]
        %v9817 = vld [vmem:[#allocation3 + $0x1948] sm:$0xff]
        %v9818 = vld [vmem:[#allocation3 + $0x1950] sm:$0xff]
        %v9819 = vld [vmem:[#allocation3 + $0x1958] sm:$0xff]
        %v9820 = vld [vmem:[#allocation3 + $0x1960] sm:$0xff]
        %v9821 = vld [vmem:[#allocation3 + $0x1968] sm:$0xff]
        %v9822 = vld [vmem:[#allocation3 + $0x1970] sm:$0xff]
        %v9823 = vld [vmem:[#allocation3 + $0x1978] sm:$0xff]
        %v9824 = vld [vmem:[#allocation3 + $0x1980] sm:$0xff]
        %v9825 = vld [vmem:[#allocation3 + $0x1988] sm:$0xff]
        %v9826 = vld [vmem:[#allocation3 + $0x1990] sm:$0xff]
        %v9827 = vld [vmem:[#allocation3 + $0x1998] sm:$0xff]
        %v9828 = vld [vmem:[#allocation3 + $0x19a0] sm:$0xff]
        %v9829 = vld [vmem:[#allocation3 + $0x19a8] sm:$0xff]
        %v9830 = vld [vmem:[#allocation3 + $0x19b0] sm:$0xff]
        %v9831 = vld [vmem:[#allocation3 + $0x19b8] sm:$0xff]
        %v9832 = vld [vmem:[#allocation3 + $0x19c0] sm:$0xff]
        %v9833 = vld [vmem:[#allocation3 + $0x19c8] sm:$0xff]
        %v9834 = vld [vmem:[#allocation3 + $0x19d0] sm:$0xff]
        %v9835 = vld [vmem:[#allocation3 + $0x19d8] sm:$0xff]
        %v9836 = vld [vmem:[#allocation3 + $0x19e0] sm:$0xff]
        %v9837 = vld [vmem:[#allocation3 + $0x19e8] sm:$0xff]
        %v9838 = vld [vmem:[#allocation3 + $0x19f0] sm:$0xff]
        %v9839 = vld [vmem:[#allocation3 + $0x19f8] sm:$0xff]
        %v9840 = vld [vmem:[#allocation3 + $0x1a00] sm:$0xff]
        %v9841 = vld [vmem:[#allocation3 + $0x1a08] sm:$0xff]
        %v9842 = vld [vmem:[#allocation3 + $0x1a10] sm:$0xff]
        %v9843 = vld [vmem:[#allocation3 + $0x1a18] sm:$0xff]
        %v9844 = vld [vmem:[#allocation3 + $0x1a20] sm:$0xff]
        %v9845 = vld [vmem:[#allocation3 + $0x1a28] sm:$0xff]
        %v9846 = vld [vmem:[#allocation3 + $0x1a30] sm:$0xff]
        %v9847 = vld [vmem:[#allocation3 + $0x1a38] sm:$0xff]
        %v9848 = vld [vmem:[#allocation3 + $0x1a40] sm:$0xff]
        %v9849 = vld [vmem:[#allocation3 + $0x1a48] sm:$0xff]
        %v9850 = vld [vmem:[#allocation3 + $0x1a50] sm:$0xff]
        %v9851 = vld [vmem:[#allocation3 + $0x1a58] sm:$0xff]
        %v9852 = vld [vmem:[#allocation3 + $0x1a60] sm:$0xff]
        %v9853 = vld [vmem:[#allocation3 + $0x1a68] sm:$0xff]
        %v9854 = vld [vmem:[#allocation3 + $0x1a70] sm:$0xff]
        %v9855 = vld [vmem:[#allocation3 + $0x1a78] sm:$0xff]
        %v9856 = vld [vmem:[#allocation3 + $0x1a80] sm:$0xff]
        %v9857 = vld [vmem:[#allocation3 + $0x1a88] sm:$0xff]
        %v9858 = vld [vmem:[#allocation3 + $0x1a90] sm:$0xff]
        %v9859 = vld [vmem:[#allocation3 + $0x1a98] sm:$0xff]
        %v9860 = vld [vmem:[#allocation3 + $0x1aa0] sm:$0xff]
        %v9861 = vld [vmem:[#allocation3 + $0x1aa8] sm:$0xff]
        %v9862 = vld [vmem:[#allocation3 + $0x1ab0] sm:$0xff]
        %v9863 = vld [vmem:[#allocation3 + $0x1ab8] sm:$0xff]
        %v9864 = vld [vmem:[#allocation3 + $0x1ac0] sm:$0xff]
        %v9865 = vld [vmem:[#allocation3 + $0x1ac8] sm:$0xff]
        %v9866 = vld [vmem:[#allocation3 + $0x1ad0] sm:$0xff]
        %v9867 = vld [vmem:[#allocation3 + $0x1ad8] sm:$0xff]
        %v9868 = vld [vmem:[#allocation3 + $0x1ae0] sm:$0xff]
        %v9869 = vld [vmem:[#allocation3 + $0x1ae8] sm:$0xff]
        %v9870 = vld [vmem:[#allocation3 + $0x1af0] sm:$0xff]
        %v9871 = vld [vmem:[#allocation3 + $0x1af8] sm:$0xff]
        %v9872 = vld [vmem:[%s4] sm:$0xff]
        %9874 = vset.pattern.permute.xlu0 0
        %9875 = vperm.xlu0 %9874, %v9872
        %v9876 = vpop.permute.xlu0 %9875
        %vm9878 = vcmask 719872
        %v9880 = vsel %vm9878, %v9007, 0
        %9882 = vmatprep.subr.mxu0 %v9009
        %9883 = vmatpush1.msra.mxu0 %v9008
        %9884 = vmatprep.subr.mxu0 %v9041
        %9885 = vmatpush1.msra.mxu0 %v9040
        %9886 = vmatprep.subr.mxu0 %v9073
        %9887 = vmatpush1.msra.mxu0 %v9072
        %9888 = vmatprep.subr.mxu0 %v9105
        %9889 = vmatpush1.msra.mxu0 %v9104
        %9890 = vmatprep.subr.mxu0 %v9137
        %9891 = vmatpush1.msra.mxu0 %v9136
        %9892 = vmatprep.subr.mxu0 %v9169
        %9893 = vmatpush1.msra.mxu0 %v9168
        %9894 = vmatprep.subr.mxu0 %v9201
        %9895 = vmatpush1.msra.mxu0 %v9200
        %9896 = vmatprep.subr.mxu0 %v9233
        %9897 = vmatpush1.msra.mxu0 %v9232
        %9898 = vmatprep.subr.mxu0 %v9265
        %9899 = vmatpush1.msra.mxu0 %v9264
        %9900 = vmatprep.subr.mxu0 %v9297
        %9901 = vmatpush1.msra.mxu0 %v9296
        %9902 = vmatprep.subr.mxu0 %v9329
        %9903 = vmatpush1.msra.mxu0 %v9328
        %9904 = vmatprep.subr.mxu0 %v9361
        %9905 = vmatpush1.msra.mxu0 %v9360
        %9906 = vmatprep.subr.mxu0 %v9393
        %9907 = vmatpush1.msra.mxu0 %v9392
        %9908 = vmatprep.subr.mxu0 %v9425
        %9909 = vmatpush1.msra.mxu0 %v9424
        %9910 = vmatprep.subr.mxu0 %v9457
        %9911 = vmatpush1.msra.mxu0 %v9456
        %9912 = vmatprep.subr.mxu0 %v9489
        %9913 = vmatpush1.msra.mxu0 %v9488
        %9914 = vmatprep.subr.mxu0 %v9521
        %9915 = vmatpush1.msra.mxu0 %v9520
        %9916 = vmatprep.subr.mxu0 %v9553
        %9917 = vmatpush1.msra.mxu0 %v9552
        %9918 = vmatprep.subr.mxu0 %v9585
        %9919 = vmatpush1.msra.mxu0 %v9584
        %9920 = vmatprep.subr.mxu0 %v9617
        %9921 = vmatpush1.msra.mxu0 %v9616
        %9922 = vmatprep.subr.mxu0 %v9649
        %9923 = vmatpush1.msra.mxu0 %v9648
        %9924 = vmatprep.subr.mxu0 %v9681
        %9925 = vmatpush1.msra.mxu0 %v9680
        %9926 = vmatprep.subr.mxu0 %v9713
        %9927 = vmatpush1.msra.mxu0 %v9712
        %9928 = vmatprep.subr.mxu0 %v9745
        %9929 = vmatpush1.msra.mxu0 %v9744
        %9930 = vmatprep.subr.mxu0 %v9777
        %9931 = vmatpush1.msra.mxu0 %v9776
        %9932 = vmatprep.subr.mxu0 %v9809
        %9933 = vmatpush1.msra.mxu0 %v9808
        %9934 = vmatprep.subr.mxu0 %v9841
        %9935 = vmatpush1.msra.mxu0 %v9840
        %9936 = vmatprep.subr.mxu0 0.0
        %9937 = vmatpush1.msra.mxu0 0.0
        %9938 = vmatprep.subr.mxu0 0.0
        %9939 = vmatpush1.msra.mxu0 0.0
        %9940 = vmatprep.subr.mxu0 0.0
        %9941 = vmatpush1.msra.mxu0 0.0
        %9942 = vmatprep.subr.mxu0 0.0
        %9943 = vmatpush1.msra.mxu0 0.0
        %9944 = vmatprep.subr.mxu0 0.0
        %9945 = vmatpush1.msra.mxu0 0.0
        %9946 = vmatprep.mubr.f32.mxu0 %v9880
        %9947 = vmatmul.mubr.f32.gmra.mrb[0].mxu0 %v9006
        %v9948 = vpop.f32.mrb[0].mxu0
        %v9949 = vadd.f32 %v9876, %v9948
        %v9950 = vpop.f32.mrb[0].mxu0
        %v9951 = vadd.f32 %v9876, %v9950
        %9952 = vdwg.mxu0
        %9953 = vmatprep.subr.mxu0 %v9011
        %9954 = vmatpush1.msra.mxu0 %v9010
        %9955 = vmatprep.subr.mxu0 %v9043
        %9956 = vmatpush1.msra.mxu0 %v9042
        %9957 = vmatprep.subr.mxu0 %v9075
        %9958 = vmatpush1.msra.mxu0 %v9074
        %9959 = vmatprep.subr.mxu0 %v9107
        %9960 = vmatpush1.msra.mxu0 %v9106
        %9961 = vmatprep.subr.mxu0 %v9139
        %9962 = vmatpush1.msra.mxu0 %v9138
        %9963 = vmatprep.subr.mxu0 %v9171
        %9964 = vmatpush1.msra.mxu0 %v9170
        %9965 = vmatprep.subr.mxu0 %v9203
        %9966 = vmatpush1.msra.mxu0 %v9202
        %9967 = vmatprep.subr.mxu0 %v9235
        %9968 = vmatpush1.msra.mxu0 %v9234
        %9969 = vmatprep.subr.mxu0 %v9267
        %9970 = vmatpush1.msra.mxu0 %v9266
        %9971 = vmatprep.subr.mxu0 %v9299
        %9972 = vmatpush1.msra.mxu0 %v9298
        %9973 = vmatprep.subr.mxu0 %v9331
        %9974 = vmatpush1.msra.mxu0 %v9330
        %9975 = vmatprep.subr.mxu0 %v9363
        %9976 = vmatpush1.msra.mxu0 %v9362
        %9977 = vmatprep.subr.mxu0 %v9395
        %9978 = vmatpush1.msra.mxu0 %v9394
        %9979 = vmatprep.subr.mxu0 %v9427
        %9980 = vmatpush1.msra.mxu0 %v9426
        %9981 = vmatprep.subr.mxu0 %v9459
        %9982 = vmatpush1.msra.mxu0 %v9458
        %9983 = vmatprep.subr.mxu0 %v9491
        %9984 = vmatpush1.msra.mxu0 %v9490
        %9985 = vmatprep.subr.mxu0 %v9523
        %9986 = vmatpush1.msra.mxu0 %v9522
        %9987 = vmatprep.subr.mxu0 %v9555
        %9988 = vmatpush1.msra.mxu0 %v9554
        %9989 = vmatprep.subr.mxu0 %v9587
        %9990 = vmatpush1.msra.mxu0 %v9586
        %9991 = vmatprep.subr.mxu0 %v9619
        %9992 = vmatpush1.msra.mxu0 %v9618
        %9993 = vmatprep.subr.mxu0 %v9651
        %9994 = vmatpush1.msra.mxu0 %v9650
        %9995 = vmatprep.subr.mxu0 %v9683
        %9996 = vmatpush1.msra.mxu0 %v9682
        %9997 = vmatprep.subr.mxu0 %v9715
        %9998 = vmatpush1.msra.mxu0 %v9714
        %9999 = vmatprep.subr.mxu0 %v9747
        %10000 = vmatpush1.msra.mxu0 %v9746
        %10001 = vmatprep.subr.mxu0 %v9779
        %10002 = vmatpush1.msra.mxu0 %v9778
        %10003 = vmatprep.subr.mxu0 %v9811
        %10004 = vmatpush1.msra.mxu0 %v9810
        %10005 = vmatprep.subr.mxu0 %v9843
        %10006 = vmatpush1.msra.mxu0 %v9842
        %10007 = vmatprep.subr.mxu0 0.0
        %10008 = vmatpush1.msra.mxu0 0.0
        %10009 = vmatprep.subr.mxu0 0.0
        %10010 = vmatpush1.msra.mxu0 0.0
        %10011 = vmatprep.subr.mxu0 0.0
        %10012 = vmatpush1.msra.mxu0 0.0
        %10013 = vmatprep.subr.mxu0 0.0
        %10014 = vmatpush1.msra.mxu0 0.0
        %10015 = vmatprep.subr.mxu0 0.0
        %10016 = vmatpush1.msra.mxu0 0.0
        %10017 = vmatprep.mubr.f32.mxu0 %v9880
        %10018 = vmatmul.mubr.f32.gmra.mrb[0].mxu0 %v9006
        %v10019 = vpop.f32.mrb[0].mxu0
        %v10020 = vadd.f32 %v9876, %v10019
        %v10021 = vpop.f32.mrb[0].mxu0
        %v10022 = vadd.f32 %v9876, %v10021
        %10023 = vdwg.mxu0
        %10024 = vmatprep.subr.mxu0 %v9013
        %10025 = vmatpush1.msra.mxu0 %v9012
        %10026 = vmatprep.subr.mxu0 %v9045
        %10027 = vmatpush1.msra.mxu0 %v9044
        %10028 = vmatprep.subr.mxu0 %v9077
        %10029 = vmatpush1.msra.mxu0 %v9076
        %10030 = vmatprep.subr.mxu0 %v9109
        %10031 = vmatpush1.msra.mxu0 %v9108
        %10032 = vmatprep.subr.mxu0 %v9141
        %10033 = vmatpush1.msra.mxu0 %v9140
        %10034 = vmatprep.subr.mxu0 %v9173
        %10035 = vmatpush1.msra.mxu0 %v9172
        %10036 = vmatprep.subr.mxu0 %v9205
        %10037 = vmatpush1.msra.mxu0 %v9204
        %10038 = vmatprep.subr.mxu0 %v9237
        %10039 = vmatpush1.msra.mxu0 %v9236
        %10040 = vmatprep.subr.mxu0 %v9269
        %10041 = vmatpush1.msra.mxu0 %v9268
        %10042 = vmatprep.subr.mxu0 %v9301
        %10043 = vmatpush1.msra.mxu0 %v9300
        %10044 = vmatprep.subr.mxu0 %v9333
        %10045 = vmatpush1.msra.mxu0 %v9332
        %10046 = vmatprep.subr.mxu0 %v9365
        %10047 = vmatpush1.msra.mxu0 %v9364
        %10048 = vmatprep.subr.mxu0 %v9397
        %10049 = vmatpush1.msra.mxu0 %v9396
        %10050 = vmatprep.subr.mxu0 %v9429
        %10051 = vmatpush1.msra.mxu0 %v9428
        %10052 = vmatprep.subr.mxu0 %v9461
        %10053 = vmatpush1.msra.mxu0 %v9460
        %10054 = vmatprep.subr.mxu0 %v9493
        %10055 = vmatpush1.msra.mxu0 %v9492
        %10056 = vmatprep.subr.mxu0 %v9525
        %10057 = vmatpush1.msra.mxu0 %v9524
        %10058 = vmatprep.subr.mxu0 %v9557
        %10059 = vmatpush1.msra.mxu0 %v9556
        %10060 = vmatprep.subr.mxu0 %v9589
        %10061 = vmatpush1.msra.mxu0 %v9588
        %10062 = vmatprep.subr.mxu0 %v9621
        %10063 = vmatpush1.msra.mxu0 %v9620
        %10064 = vmatprep.subr.mxu0 %v9653
        %10065 = vmatpush1.msra.mxu0 %v9652
        %10066 = vmatprep.subr.mxu0 %v9685
        %10067 = vmatpush1.msra.mxu0 %v9684
        %10068 = vmatprep.subr.mxu0 %v9717
        %10069 = vmatpush1.msra.mxu0 %v9716
        %10070 = vmatprep.subr.mxu0 %v9749
        %10071 = vmatpush1.msra.mxu0 %v9748
        %10072 = vmatprep.subr.mxu0 %v9781
        %10073 = vmatpush1.msra.mxu0 %v9780
        %10074 = vmatprep.subr.mxu0 %v9813
        %10075 = vmatpush1.msra.mxu0 %v9812
        %10076 = vmatprep.subr.mxu0 %v9845
        %10077 = vmatpush1.msra.mxu0 %v9844
        %10078 = vmatprep.subr.mxu0 0.0
        %10079 = vmatpush1.msra.mxu0 0.0
        %10080 = vmatprep.subr.mxu0 0.0
        %10081 = vmatpush1.msra.mxu0 0.0
        %10082 = vmatprep.subr.mxu0 0.0
        %10083 = vmatpush1.msra.mxu0 0.0
        %10084 = vmatprep.subr.mxu0 0.0
        %10085 = vmatpush1.msra.mxu0 0.0
        %10086 = vmatprep.subr.mxu0 0.0
        %10087 = vmatpush1.msra.mxu0 0.0
        %10088 = vmatprep.mubr.f32.mxu0 %v9880
        %10089 = vmatmul.mubr.f32.gmra.mrb[0].mxu0 %v9006
        %v10090 = vpop.f32.mrb[0].mxu0
        %v10091 = vadd.f32 %v9876, %v10090
        %v10092 = vpop.f32.mrb[0].mxu0
        %v10093 = vadd.f32 %v9876, %v10092
        %10094 = vdwg.mxu0
        %10095 = vmatprep.subr.mxu0 %v9015
        %10096 = vmatpush1.msra.mxu0 %v9014
        %10097 = vmatprep.subr.mxu0 %v9047
        %10098 = vmatpush1.msra.mxu0 %v9046
        %10099 = vmatprep.subr.mxu0 %v9079
        %10100 = vmatpush1.msra.mxu0 %v9078
        %10101 = vmatprep.subr.mxu0 %v9111
        %10102 = vmatpush1.msra.mxu0 %v9110
        %10103 = vmatprep.subr.mxu0 %v9143
        %10104 = vmatpush1.msra.mxu0 %v9142
        %10105 = vmatprep.subr.mxu0 %v9175
        %10106 = vmatpush1.msra.mxu0 %v9174
        %10107 = vmatprep.subr.mxu0 %v9207
        %10108 = vmatpush1.msra.mxu0 %v9206
        %10109 = vmatprep.subr.mxu0 %v9239
        %10110 = vmatpush1.msra.mxu0 %v9238
        %10111 = vmatprep.subr.mxu0 %v9271
        %10112 = vmatpush1.msra.mxu0 %v9270
        %10113 = vmatprep.subr.mxu0 %v9303
        %10114 = vmatpush1.msra.mxu0 %v9302
        %10115 = vmatprep.subr.mxu0 %v9335
        %10116 = vmatpush1.msra.mxu0 %v9334
        %10117 = vmatprep.subr.mxu0 %v9367
        %10118 = vmatpush1.msra.mxu0 %v9366
        %10119 = vmatprep.subr.mxu0 %v9399
        %10120 = vmatpush1.msra.mxu0 %v9398
        %10121 = vmatprep.subr.mxu0 %v9431
        %10122 = vmatpush1.msra.mxu0 %v9430
        %10123 = vmatprep.subr.mxu0 %v9463
        %10124 = vmatpush1.msra.mxu0 %v9462
        %10125 = vmatprep.subr.mxu0 %v9495
        %10126 = vmatpush1.msra.mxu0 %v9494
        %10127 = vmatprep.subr.mxu0 %v9527
        %10128 = vmatpush1.msra.mxu0 %v9526
        %10129 = vmatprep.subr.mxu0 %v9559
        %10130 = vmatpush1.msra.mxu0 %v9558
        %10131 = vmatprep.subr.mxu0 %v9591
        %10132 = vmatpush1.msra.mxu0 %v9590
        %10133 = vmatprep.subr.mxu0 %v9623
        %10134 = vmatpush1.msra.mxu0 %v9622
        %10135 = vmatprep.subr.mxu0 %v9655
        %10136 = vmatpush1.msra.mxu0 %v9654
        %10137 = vmatprep.subr.mxu0 %v9687
        %10138 = vmatpush1.msra.mxu0 %v9686
        %10139 = vmatprep.subr.mxu0 %v9719
        %10140 = vmatpush1.msra.mxu0 %v9718
        %10141 = vmatprep.subr.mxu0 %v9751
        %10142 = vmatpush1.msra.mxu0 %v9750
        %10143 = vmatprep.subr.mxu0 %v9783
        %10144 = vmatpush1.msra.mxu0 %v9782
        %10145 = vmatprep.subr.mxu0 %v9815
        %10146 = vmatpush1.msra.mxu0 %v9814
        %10147 = vmatprep.subr.mxu0 %v9847
        %10148 = vmatpush1.msra.mxu0 %v9846
        %10149 = vmatprep.subr.mxu0 0.0
        %10150 = vmatpush1.msra.mxu0 0.0
        %10151 = vmatprep.subr.mxu0 0.0
        %10152 = vmatpush1.msra.mxu0 0.0
        %10153 = vmatprep.subr.mxu0 0.0
        %10154 = vmatpush1.msra.mxu0 0.0
        %10155 = vmatprep.subr.mxu0 0.0
        %10156 = vmatpush1.msra.mxu0 0.0
        %10157 = vmatprep.subr.mxu0 0.0
        %10158 = vmatpush1.msra.mxu0 0.0
        %10159 = vmatprep.mubr.f32.mxu0 %v9880
        %10160 = vmatmul.mubr.f32.gmra.mrb[0].mxu0 %v9006
        %v10161 = vpop.f32.mrb[0].mxu0
        %v10162 = vadd.f32 %v9876, %v10161
        %v10163 = vpop.f32.mrb[0].mxu0
        %v10164 = vadd.f32 %v9876, %v10163
        %10165 = vdwg.mxu0
        %10166 = vmatprep.subr.mxu0 %v9017
        %10167 = vmatpush1.msra.mxu0 %v9016
        %10168 = vmatprep.subr.mxu0 %v9049
        %10169 = vmatpush1.msra.mxu0 %v9048
        %10170 = vmatprep.subr.mxu0 %v9081
        %10171 = vmatpush1.msra.mxu0 %v9080
        %10172 = vmatprep.subr.mxu0 %v9113
        %10173 = vmatpush1.msra.mxu0 %v9112
        %10174 = vmatprep.subr.mxu0 %v9145
        %10175 = vmatpush1.msra.mxu0 %v9144
        %10176 = vmatprep.subr.mxu0 %v9177
        %10177 = vmatpush1.msra.mxu0 %v9176
        %10178 = vmatprep.subr.mxu0 %v9209
        %10179 = vmatpush1.msra.mxu0 %v9208
        %10180 = vmatprep.subr.mxu0 %v9241
        %10181 = vmatpush1.msra.mxu0 %v9240
        %10182 = vmatprep.subr.mxu0 %v9273
        %10183 = vmatpush1.msra.mxu0 %v9272
        %10184 = vmatprep.subr.mxu0 %v9305
        %10185 = vmatpush1.msra.mxu0 %v9304
        %10186 = vmatprep.subr.mxu0 %v9337
        %10187 = vmatpush1.msra.mxu0 %v9336
        %10188 = vmatprep.subr.mxu0 %v9369
        %10189 = vmatpush1.msra.mxu0 %v9368
        %10190 = vmatprep.subr.mxu0 %v9401
        %10191 = vmatpush1.msra.mxu0 %v9400
        %10192 = vmatprep.subr.mxu0 %v9433
        %10193 = vmatpush1.msra.mxu0 %v9432
        %10194 = vmatprep.subr.mxu0 %v9465
        %10195 = vmatpush1.msra.mxu0 %v9464
        %10196 = vmatprep.subr.mxu0 %v9497
        %10197 = vmatpush1.msra.mxu0 %v9496
        %10198 = vmatprep.subr.mxu0 %v9529
        %10199 = vmatpush1.msra.mxu0 %v9528
        %10200 = vmatprep.subr.mxu0 %v9561
        %10201 = vmatpush1.msra.mxu0 %v9560
        %10202 = vmatprep.subr.mxu0 %v9593
        %10203 = vmatpush1.msra.mxu0 %v9592
        %10204 = vmatprep.subr.mxu0 %v9625
        %10205 = vmatpush1.msra.mxu0 %v9624
        %10206 = vmatprep.subr.mxu0 %v9657
        %10207 = vmatpush1.msra.mxu0 %v9656
        %10208 = vmatprep.subr.mxu0 %v9689
        %10209 = vmatpush1.msra.mxu0 %v9688
        %10210 = vmatprep.subr.mxu0 %v9721
        %10211 = vmatpush1.msra.mxu0 %v9720
        %10212 = vmatprep.subr.mxu0 %v9753
        %10213 = vmatpush1.msra.mxu0 %v9752
        %10214 = vmatprep.subr.mxu0 %v9785
        %10215 = vmatpush1.msra.mxu0 %v9784
        %10216 = vmatprep.subr.mxu0 %v9817
        %10217 = vmatpush1.msra.mxu0 %v9816
        %10218 = vmatprep.subr.mxu0 %v9849
        %10219 = vmatpush1.msra.mxu0 %v9848
        %10220 = vmatprep.subr.mxu0 0.0
        %10221 = vmatpush1.msra.mxu0 0.0
        %10222 = vmatprep.subr.mxu0 0.0
        %10223 = vmatpush1.msra.mxu0 0.0
        %10224 = vmatprep.subr.mxu0 0.0
        %10225 = vmatpush1.msra.mxu0 0.0
        %10226 = vmatprep.subr.mxu0 0.0
        %10227 = vmatpush1.msra.mxu0 0.0
        %10228 = vmatprep.subr.mxu0 0.0
        %10229 = vmatpush1.msra.mxu0 0.0
        %10230 = vmatprep.mubr.f32.mxu0 %v9880
        %10231 = vmatmul.mubr.f32.gmra.mrb[0].mxu0 %v9006
        %v10232 = vpop.f32.mrb[0].mxu0
        %v10233 = vadd.f32 %v9876, %v10232
        %v10234 = vpop.f32.mrb[0].mxu0
        %v10235 = vadd.f32 %v9876, %v10234
        %10236 = vdwg.mxu0
        %10237 = vmatprep.subr.mxu0 %v9019
        %10238 = vmatpush1.msra.mxu0 %v9018
        %10239 = vmatprep.subr.mxu0 %v9051
        %10240 = vmatpush1.msra.mxu0 %v9050
        %10241 = vmatprep.subr.mxu0 %v9083
        %10242 = vmatpush1.msra.mxu0 %v9082
        %10243 = vmatprep.subr.mxu0 %v9115
        %10244 = vmatpush1.msra.mxu0 %v9114
        %10245 = vmatprep.subr.mxu0 %v9147
        %10246 = vmatpush1.msra.mxu0 %v9146
        %10247 = vmatprep.subr.mxu0 %v9179
        %10248 = vmatpush1.msra.mxu0 %v9178
        %10249 = vmatprep.subr.mxu0 %v9211
        %10250 = vmatpush1.msra.mxu0 %v9210
        %10251 = vmatprep.subr.mxu0 %v9243
        %10252 = vmatpush1.msra.mxu0 %v9242
        %10253 = vmatprep.subr.mxu0 %v9275
        %10254 = vmatpush1.msra.mxu0 %v9274
        %10255 = vmatprep.subr.mxu0 %v9307
        %10256 = vmatpush1.msra.mxu0 %v9306
        %10257 = vmatprep.subr.mxu0 %v9339
        %10258 = vmatpush1.msra.mxu0 %v9338
        %10259 = vmatprep.subr.mxu0 %v9371
        %10260 = vmatpush1.msra.mxu0 %v9370
        %10261 = vmatprep.subr.mxu0 %v9403
        %10262 = vmatpush1.msra.mxu0 %v9402
        %10263 = vmatprep.subr.mxu0 %v9435
        %10264 = vmatpush1.msra.mxu0 %v9434
        %10265 = vmatprep.subr.mxu0 %v9467
        %10266 = vmatpush1.msra.mxu0 %v9466
        %10267 = vmatprep.subr.mxu0 %v9499
        %10268 = vmatpush1.msra.mxu0 %v9498
        %10269 = vmatprep.subr.mxu0 %v9531
        %10270 = vmatpush1.msra.mxu0 %v9530
        %10271 = vmatprep.subr.mxu0 %v9563
        %10272 = vmatpush1.msra.mxu0 %v9562
        %10273 = vmatprep.subr.mxu0 %v9595
        %10274 = vmatpush1.msra.mxu0 %v9594
        %10275 = vmatprep.subr.mxu0 %v9627
        %10276 = vmatpush1.msra.mxu0 %v9626
        %10277 = vmatprep.subr.mxu0 %v9659
        %10278 = vmatpush1.msra.mxu0 %v9658
        %10279 = vmatprep.subr.mxu0 %v9691
        %10280 = vmatpush1.msra.mxu0 %v9690
        %10281 = vmatprep.subr.mxu0 %v9723
        %10282 = vmatpush1.msra.mxu0 %v9722
        %10283 = vmatprep.subr.mxu0 %v9755
        %10284 = vmatpush1.msra.mxu0 %v9754
        %10285 = vmatprep.subr.mxu0 %v9787
        %10286 = vmatpush1.msra.mxu0 %v9786
        %10287 = vmatprep.subr.mxu0 %v9819
        %10288 = vmatpush1.msra.mxu0 %v9818
        %10289 = vmatprep.subr.mxu0 %v9851
        %10290 = vmatpush1.msra.mxu0 %v9850
        %10291 = vmatprep.subr.mxu0 0.0
        %10292 = vmatpush1.msra.mxu0 0.0
        %10293 = vmatprep.subr.mxu0 0.0
        %10294 = vmatpush1.msra.mxu0 0.0
        %10295 = vmatprep.subr.mxu0 0.0
        %10296 = vmatpush1.msra.mxu0 0.0
        %10297 = vmatprep.subr.mxu0 0.0
        %10298 = vmatpush1.msra.mxu0 0.0
        %10299 = vmatprep.subr.mxu0 0.0
        %10300 = vmatpush1.msra.mxu0 0.0
        %10301 = vmatprep.mubr.f32.mxu0 %v9880
        %10302 = vmatmul.mubr.f32.gmra.mrb[0].mxu0 %v9006
        %v10303 = vpop.f32.mrb[0].mxu0
        %v10304 = vadd.f32 %v9876, %v10303
        %v10305 = vpop.f32.mrb[0].mxu0
        %v10306 = vadd.f32 %v9876, %v10305
        %10307 = vdwg.mxu0
        %10308 = vmatprep.subr.mxu0 %v9021
        %10309 = vmatpush1.msra.mxu0 %v9020
        %10310 = vmatprep.subr.mxu0 %v9053
        %10311 = vmatpush1.msra.mxu0 %v9052
        %10312 = vmatprep.subr.mxu0 %v9085
        %10313 = vmatpush1.msra.mxu0 %v9084
        %10314 = vmatprep.subr.mxu0 %v9117
        %10315 = vmatpush1.msra.mxu0 %v9116
        %10316 = vmatprep.subr.mxu0 %v9149
        %10317 = vmatpush1.msra.mxu0 %v9148
        %10318 = vmatprep.subr.mxu0 %v9181
        %10319 = vmatpush1.msra.mxu0 %v9180
        %10320 = vmatprep.subr.mxu0 %v9213
        %10321 = vmatpush1.msra.mxu0 %v9212
        %10322 = vmatprep.subr.mxu0 %v9245
        %10323 = vmatpush1.msra.mxu0 %v9244
        %10324 = vmatprep.subr.mxu0 %v9277
        %10325 = vmatpush1.msra.mxu0 %v9276
        %10326 = vmatprep.subr.mxu0 %v9309
        %10327 = vmatpush1.msra.mxu0 %v9308
        %10328 = vmatprep.subr.mxu0 %v9341
        %10329 = vmatpush1.msra.mxu0 %v9340
        %10330 = vmatprep.subr.mxu0 %v9373
        %10331 = vmatpush1.msra.mxu0 %v9372
        %10332 = vmatprep.subr.mxu0 %v9405
        %10333 = vmatpush1.msra.mxu0 %v9404
        %10334 = vmatprep.subr.mxu0 %v9437
        %10335 = vmatpush1.msra.mxu0 %v9436
        %10336 = vmatprep.subr.mxu0 %v9469
        %10337 = vmatpush1.msra.mxu0 %v9468
        %10338 = vmatprep.subr.mxu0 %v9501
        %10339 = vmatpush1.msra.mxu0 %v9500
        %10340 = vmatprep.subr.mxu0 %v9533
        %10341 = vmatpush1.msra.mxu0 %v9532
        %10342 = vmatprep.subr.mxu0 %v9565
        %10343 = vmatpush1.msra.mxu0 %v9564
        %10344 = vmatprep.subr.mxu0 %v9597
        %10345 = vmatpush1.msra.mxu0 %v9596
        %10346 = vmatprep.subr.mxu0 %v9629
        %10347 = vmatpush1.msra.mxu0 %v9628
        %10348 = vmatprep.subr.mxu0 %v9661
        %10349 = vmatpush1.msra.mxu0 %v9660
        %10350 = vmatprep.subr.mxu0 %v9693
        %10351 = vmatpush1.msra.mxu0 %v9692
        %10352 = vmatprep.subr.mxu0 %v9725
        %10353 = vmatpush1.msra.mxu0 %v9724
        %10354 = vmatprep.subr.mxu0 %v9757
        %10355 = vmatpush1.msra.mxu0 %v9756
        %10356 = vmatprep.subr.mxu0 %v9789
        %10357 = vmatpush1.msra.mxu0 %v9788
        %10358 = vmatprep.subr.mxu0 %v9821
        %10359 = vmatpush1.msra.mxu0 %v9820
        %10360 = vmatprep.subr.mxu0 %v9853
        %10361 = vmatpush1.msra.mxu0 %v9852
        %10362 = vmatprep.subr.mxu0 0.0
        %10363 = vmatpush1.msra.mxu0 0.0
        %10364 = vmatprep.subr.mxu0 0.0
        %10365 = vmatpush1.msra.mxu0 0.0
        %10366 = vmatprep.subr.mxu0 0.0
        %10367 = vmatpush1.msra.mxu0 0.0
        %10368 = vmatprep.subr.mxu0 0.0
        %10369 = vmatpush1.msra.mxu0 0.0
        %10370 = vmatprep.subr.mxu0 0.0
        %10371 = vmatpush1.msra.mxu0 0.0
        %10372 = vmatprep.mubr.f32.mxu0 %v9880
        %10373 = vmatmul.mubr.f32.gmra.mrb[0].mxu0 %v9006
        %v10374 = vpop.f32.mrb[0].mxu0
        %v10375 = vadd.f32 %v9876, %v10374
        %v10376 = vpop.f32.mrb[0].mxu0
        %v10377 = vadd.f32 %v9876, %v10376
        %10378 = vdwg.mxu0
        %10379 = vmatprep.subr.mxu0 %v9023
        %10380 = vmatpush1.msra.mxu0 %v9022
        %10381 = vmatprep.subr.mxu0 %v9055
        %10382 = vmatpush1.msra.mxu0 %v9054
        %10383 = vmatprep.subr.mxu0 %v9087
        %10384 = vmatpush1.msra.mxu0 %v9086
        %10385 = vmatprep.subr.mxu0 %v9119
        %10386 = vmatpush1.msra.mxu0 %v9118
        %10387 = vmatprep.subr.mxu0 %v9151
        %10388 = vmatpush1.msra.mxu0 %v9150
        %10389 = vmatprep.subr.mxu0 %v9183
        %10390 = vmatpush1.msra.mxu0 %v9182
        %10391 = vmatprep.subr.mxu0 %v9215
        %10392 = vmatpush1.msra.mxu0 %v9214
        %10393 = vmatprep.subr.mxu0 %v9247
        %10394 = vmatpush1.msra.mxu0 %v9246
        %10395 = vmatprep.subr.mxu0 %v9279
        %10396 = vmatpush1.msra.mxu0 %v9278
        %10397 = vmatprep.subr.mxu0 %v9311
        %10398 = vmatpush1.msra.mxu0 %v9310
        %10399 = vmatprep.subr.mxu0 %v9343
        %10400 = vmatpush1.msra.mxu0 %v9342
        %10401 = vmatprep.subr.mxu0 %v9375
        %10402 = vmatpush1.msra.mxu0 %v9374
        %10403 = vmatprep.subr.mxu0 %v9407
        %10404 = vmatpush1.msra.mxu0 %v9406
        %10405 = vmatprep.subr.mxu0 %v9439
        %10406 = vmatpush1.msra.mxu0 %v9438
        %10407 = vmatprep.subr.mxu0 %v9471
        %10408 = vmatpush1.msra.mxu0 %v9470
        %10409 = vmatprep.subr.mxu0 %v9503
        %10410 = vmatpush1.msra.mxu0 %v9502
        %10411 = vmatprep.subr.mxu0 %v9535
        %10412 = vmatpush1.msra.mxu0 %v9534
        %10413 = vmatprep.subr.mxu0 %v9567
        %10414 = vmatpush1.msra.mxu0 %v9566
        %10415 = vmatprep.subr.mxu0 %v9599
        %10416 = vmatpush1.msra.mxu0 %v9598
        %10417 = vmatprep.subr.mxu0 %v9631
        %10418 = vmatpush1.msra.mxu0 %v9630
        %10419 = vmatprep.subr.mxu0 %v9663
        %10420 = vmatpush1.msra.mxu0 %v9662
        %10421 = vmatprep.subr.mxu0 %v9695
        %10422 = vmatpush1.msra.mxu0 %v9694
        %10423 = vmatprep.subr.mxu0 %v9727
        %10424 = vmatpush1.msra.mxu0 %v9726
        %10425 = vmatprep.subr.mxu0 %v9759
        %10426 = vmatpush1.msra.mxu0 %v9758
        %10427 = vmatprep.subr.mxu0 %v9791
        %10428 = vmatpush1.msra.mxu0 %v9790
        %10429 = vmatprep.subr.mxu0 %v9823
        %10430 = vmatpush1.msra.mxu0 %v9822
        %10431 = vmatprep.subr.mxu0 %v9855
        %10432 = vmatpush1.msra.mxu0 %v9854
        %10433 = vmatprep.subr.mxu0 0.0
        %10434 = vmatpush1.msra.mxu0 0.0
        %10435 = vmatprep.subr.mxu0 0.0
        %10436 = vmatpush1.msra.mxu0 0.0
        %10437 = vmatprep.subr.mxu0 0.0
        %10438 = vmatpush1.msra.mxu0 0.0
        %10439 = vmatprep.subr.mxu0 0.0
        %10440 = vmatpush1.msra.mxu0 0.0
        %10441 = vmatprep.subr.mxu0 0.0
        %10442 = vmatpush1.msra.mxu0 0.0
        %10443 = vmatprep.mubr.f32.mxu0 %v9880
        %10444 = vmatmul.mubr.f32.gmra.mrb[0].mxu0 %v9006
        %v10445 = vpop.f32.mrb[0].mxu0
        %v10446 = vadd.f32 %v9876, %v10445
        %v10447 = vpop.f32.mrb[0].mxu0
        %v10448 = vadd.f32 %v9876, %v10447
        %10449 = vdwg.mxu0
        %10450 = vmatprep.subr.mxu0 %v9025
        %10451 = vmatpush1.msra.mxu0 %v9024
        %10452 = vmatprep.subr.mxu0 %v9057
        %10453 = vmatpush1.msra.mxu0 %v9056
        %10454 = vmatprep.subr.mxu0 %v9089
        %10455 = vmatpush1.msra.mxu0 %v9088
        %10456 = vmatprep.subr.mxu0 %v9121
        %10457 = vmatpush1.msra.mxu0 %v9120
        %10458 = vmatprep.subr.mxu0 %v9153
        %10459 = vmatpush1.msra.mxu0 %v9152
        %10460 = vmatprep.subr.mxu0 %v9185
        %10461 = vmatpush1.msra.mxu0 %v9184
        %10462 = vmatprep.subr.mxu0 %v9217
        %10463 = vmatpush1.msra.mxu0 %v9216
        %10464 = vmatprep.subr.mxu0 %v9249
        %10465 = vmatpush1.msra.mxu0 %v9248
        %10466 = vmatprep.subr.mxu0 %v9281
        %10467 = vmatpush1.msra.mxu0 %v9280
        %10468 = vmatprep.subr.mxu0 %v9313
        %10469 = vmatpush1.msra.mxu0 %v9312
        %10470 = vmatprep.subr.mxu0 %v9345
        %10471 = vmatpush1.msra.mxu0 %v9344
        %10472 = vmatprep.subr.mxu0 %v9377
        %10473 = vmatpush1.msra.mxu0 %v9376
        %10474 = vmatprep.subr.mxu0 %v9409
        %10475 = vmatpush1.msra.mxu0 %v9408
        %10476 = vmatprep.subr.mxu0 %v9441
        %10477 = vmatpush1.msra.mxu0 %v9440
        %10478 = vmatprep.subr.mxu0 %v9473
        %10479 = vmatpush1.msra.mxu0 %v9472
        %10480 = vmatprep.subr.mxu0 %v9505
        %10481 = vmatpush1.msra.mxu0 %v9504
        %10482 = vmatprep.subr.mxu0 %v9537
        %10483 = vmatpush1.msra.mxu0 %v9536
        %10484 = vmatprep.subr.mxu0 %v9569
        %10485 = vmatpush1.msra.mxu0 %v9568
        %10486 = vmatprep.subr.mxu0 %v9601
        %10487 = vmatpush1.msra.mxu0 %v9600
        %10488 = vmatprep.subr.mxu0 %v9633
        %10489 = vmatpush1.msra.mxu0 %v9632
        %10490 = vmatprep.subr.mxu0 %v9665
        %10491 = vmatpush1.msra.mxu0 %v9664
        %10492 = vmatprep.subr.mxu0 %v9697
        %10493 = vmatpush1.msra.mxu0 %v9696
        %10494 = vmatprep.subr.mxu0 %v9729
        %10495 = vmatpush1.msra.mxu0 %v9728
        %10496 = vmatprep.subr.mxu0 %v9761
        %10497 = vmatpush1.msra.mxu0 %v9760
        %10498 = vmatprep.subr.mxu0 %v9793
        %10499 = vmatpush1.msra.mxu0 %v9792
        %10500 = vmatprep.subr.mxu0 %v9825
        %10501 = vmatpush1.msra.mxu0 %v9824
        %10502 = vmatprep.subr.mxu0 %v9857
        %10503 = vmatpush1.msra.mxu0 %v9856
        %10504 = vmatprep.subr.mxu0 0.0
        %10505 = vmatpush1.msra.mxu0 0.0
        %10506 = vmatprep.subr.mxu0 0.0
        %10507 = vmatpush1.msra.mxu0 0.0
        %10508 = vmatprep.subr.mxu0 0.0
        %10509 = vmatpush1.msra.mxu0 0.0
        %10510 = vmatprep.subr.mxu0 0.0
        %10511 = vmatpush1.msra.mxu0 0.0
        %10512 = vmatprep.subr.mxu0 0.0
        %10513 = vmatpush1.msra.mxu0 0.0
        %10514 = vmatprep.mubr.f32.mxu0 %v9880
        %10515 = vmatmul.mubr.f32.gmra.mrb[0].mxu0 %v9006
        %v10516 = vpop.f32.mrb[0].mxu0
        %v10517 = vadd.f32 %v9876, %v10516
        %v10518 = vpop.f32.mrb[0].mxu0
        %v10519 = vadd.f32 %v9876, %v10518
        %10520 = vdwg.mxu0
        %10521 = vmatprep.subr.mxu0 %v9027
        %10522 = vmatpush1.msra.mxu0 %v9026
        %10523 = vmatprep.subr.mxu0 %v9059
        %10524 = vmatpush1.msra.mxu0 %v9058
        %10525 = vmatprep.subr.mxu0 %v9091
        %10526 = vmatpush1.msra.mxu0 %v9090
        %10527 = vmatprep.subr.mxu0 %v9123
        %10528 = vmatpush1.msra.mxu0 %v9122
        %10529 = vmatprep.subr.mxu0 %v9155
        %10530 = vmatpush1.msra.mxu0 %v9154
        %10531 = vmatprep.subr.mxu0 %v9187
        %10532 = vmatpush1.msra.mxu0 %v9186
        %10533 = vmatprep.subr.mxu0 %v9219
        %10534 = vmatpush1.msra.mxu0 %v9218
        %10535 = vmatprep.subr.mxu0 %v9251
        %10536 = vmatpush1.msra.mxu0 %v9250
        %10537 = vmatprep.subr.mxu0 %v9283
        %10538 = vmatpush1.msra.mxu0 %v9282
        %10539 = vmatprep.subr.mxu0 %v9315
        %10540 = vmatpush1.msra.mxu0 %v9314
        %10541 = vmatprep.subr.mxu0 %v9347
        %10542 = vmatpush1.msra.mxu0 %v9346
        %10543 = vmatprep.subr.mxu0 %v9379
        %10544 = vmatpush1.msra.mxu0 %v9378
        %10545 = vmatprep.subr.mxu0 %v9411
        %10546 = vmatpush1.msra.mxu0 %v9410
        %10547 = vmatprep.subr.mxu0 %v9443
        %10548 = vmatpush1.msra.mxu0 %v9442
        %10549 = vmatprep.subr.mxu0 %v9475
        %10550 = vmatpush1.msra.mxu0 %v9474
        %10551 = vmatprep.subr.mxu0 %v9507
        %10552 = vmatpush1.msra.mxu0 %v9506
        %10553 = vmatprep.subr.mxu0 %v9539
        %10554 = vmatpush1.msra.mxu0 %v9538
        %10555 = vmatprep.subr.mxu0 %v9571
        %10556 = vmatpush1.msra.mxu0 %v9570
        %10557 = vmatprep.subr.mxu0 %v9603
        %10558 = vmatpush1.msra.mxu0 %v9602
        %10559 = vmatprep.subr.mxu0 %v9635
        %10560 = vmatpush1.msra.mxu0 %v9634
        %10561 = vmatprep.subr.mxu0 %v9667
        %10562 = vmatpush1.msra.mxu0 %v9666
        %10563 = vmatprep.subr.mxu0 %v9699
        %10564 = vmatpush1.msra.mxu0 %v9698
        %10565 = vmatprep.subr.mxu0 %v9731
        %10566 = vmatpush1.msra.mxu0 %v9730
        %10567 = vmatprep.subr.mxu0 %v9763
        %10568 = vmatpush1.msra.mxu0 %v9762
        %10569 = vmatprep.subr.mxu0 %v9795
        %10570 = vmatpush1.msra.mxu0 %v9794
        %10571 = vmatprep.subr.mxu0 %v9827
        %10572 = vmatpush1.msra.mxu0 %v9826
        %10573 = vmatprep.subr.mxu0 %v9859
        %10574 = vmatpush1.msra.mxu0 %v9858
        %10575 = vmatprep.subr.mxu0 0.0
        %10576 = vmatpush1.msra.mxu0 0.0
        %10577 = vmatprep.subr.mxu0 0.0
        %10578 = vmatpush1.msra.mxu0 0.0
        %10579 = vmatprep.subr.mxu0 0.0
        %10580 = vmatpush1.msra.mxu0 0.0
        %10581 = vmatprep.subr.mxu0 0.0
        %10582 = vmatpush1.msra.mxu0 0.0
        %10583 = vmatprep.subr.mxu0 0.0
        %10584 = vmatpush1.msra.mxu0 0.0
        %10585 = vmatprep.mubr.f32.mxu0 %v9880
        %10586 = vmatmul.mubr.f32.gmra.mrb[0].mxu0 %v9006
        %v10587 = vpop.f32.mrb[0].mxu0
        %v10588 = vadd.f32 %v9876, %v10587
        %v10589 = vpop.f32.mrb[0].mxu0
        %v10590 = vadd.f32 %v9876, %v10589
        %10591 = vdwg.mxu0
        %10592 = vmatprep.subr.mxu0 %v9029
        %10593 = vmatpush1.msra.mxu0 %v9028
        %10594 = vmatprep.subr.mxu0 %v9061
        %10595 = vmatpush1.msra.mxu0 %v9060
        %10596 = vmatprep.subr.mxu0 %v9093
        %10597 = vmatpush1.msra.mxu0 %v9092
        %10598 = vmatprep.subr.mxu0 %v9125
        %10599 = vmatpush1.msra.mxu0 %v9124
        %10600 = vmatprep.subr.mxu0 %v9157
        %10601 = vmatpush1.msra.mxu0 %v9156
        %10602 = vmatprep.subr.mxu0 %v9189
        %10603 = vmatpush1.msra.mxu0 %v9188
        %10604 = vmatprep.subr.mxu0 %v9221
        %10605 = vmatpush1.msra.mxu0 %v9220
        %10606 = vmatprep.subr.mxu0 %v9253
        %10607 = vmatpush1.msra.mxu0 %v9252
        %10608 = vmatprep.subr.mxu0 %v9285
        %10609 = vmatpush1.msra.mxu0 %v9284
        %10610 = vmatprep.subr.mxu0 %v9317
        %10611 = vmatpush1.msra.mxu0 %v9316
        %10612 = vmatprep.subr.mxu0 %v9349
        %10613 = vmatpush1.msra.mxu0 %v9348
        %10614 = vmatprep.subr.mxu0 %v9381
        %10615 = vmatpush1.msra.mxu0 %v9380
        %10616 = vmatprep.subr.mxu0 %v9413
        %10617 = vmatpush1.msra.mxu0 %v9412
        %10618 = vmatprep.subr.mxu0 %v9445
        %10619 = vmatpush1.msra.mxu0 %v9444
        %10620 = vmatprep.subr.mxu0 %v9477
        %10621 = vmatpush1.msra.mxu0 %v9476
        %10622 = vmatprep.subr.mxu0 %v9509
        %10623 = vmatpush1.msra.mxu0 %v9508
        %10624 = vmatprep.subr.mxu0 %v9541
        %10625 = vmatpush1.msra.mxu0 %v9540
        %10626 = vmatprep.subr.mxu0 %v9573
        %10627 = vmatpush1.msra.mxu0 %v9572
        %10628 = vmatprep.subr.mxu0 %v9605
        %10629 = vmatpush1.msra.mxu0 %v9604
        %10630 = vmatprep.subr.mxu0 %v9637
        %10631 = vmatpush1.msra.mxu0 %v9636
        %10632 = vmatprep.subr.mxu0 %v9669
        %10633 = vmatpush1.msra.mxu0 %v9668
        %10634 = vmatprep.subr.mxu0 %v9701
        %10635 = vmatpush1.msra.mxu0 %v9700
        %10636 = vmatprep.subr.mxu0 %v9733
        %10637 = vmatpush1.msra.mxu0 %v9732
        %10638 = vmatprep.subr.mxu0 %v9765
        %10639 = vmatpush1.msra.mxu0 %v9764
        %10640 = vmatprep.subr.mxu0 %v9797
        %10641 = vmatpush1.msra.mxu0 %v9796
        %10642 = vmatprep.subr.mxu0 %v9829
        %10643 = vmatpush1.msra.mxu0 %v9828
        %10644 = vmatprep.subr.mxu0 %v9861
        %10645 = vmatpush1.msra.mxu0 %v9860
        %10646 = vmatprep.subr.mxu0 0.0
        %10647 = vmatpush1.msra.mxu0 0.0
        %10648 = vmatprep.subr.mxu0 0.0
        %10649 = vmatpush1.msra.mxu0 0.0
        %10650 = vmatprep.subr.mxu0 0.0
        %10651 = vmatpush1.msra.mxu0 0.0
        %10652 = vmatprep.subr.mxu0 0.0
        %10653 = vmatpush1.msra.mxu0 0.0
        %10654 = vmatprep.subr.mxu0 0.0
        %10655 = vmatpush1.msra.mxu0 0.0
        %10656 = vmatprep.mubr.f32.mxu0 %v9880
        %10657 = vmatmul.mubr.f32.gmra.mrb[0].mxu0 %v9006
        %v10658 = vpop.f32.mrb[0].mxu0
        %v10659 = vadd.f32 %v9876, %v10658
        %v10660 = vpop.f32.mrb[0].mxu0
        %v10661 = vadd.f32 %v9876, %v10660
        %10662 = vdwg.mxu0
        %10663 = vmatprep.subr.mxu0 %v9031
        %10664 = vmatpush1.msra.mxu0 %v9030
        %10665 = vmatprep.subr.mxu0 %v9063
        %10666 = vmatpush1.msra.mxu0 %v9062
        %10667 = vmatprep.subr.mxu0 %v9095
        %10668 = vmatpush1.msra.mxu0 %v9094
        %10669 = vmatprep.subr.mxu0 %v9127
        %10670 = vmatpush1.msra.mxu0 %v9126
        %10671 = vmatprep.subr.mxu0 %v9159
        %10672 = vmatpush1.msra.mxu0 %v9158
        %10673 = vmatprep.subr.mxu0 %v9191
        %10674 = vmatpush1.msra.mxu0 %v9190
        %10675 = vmatprep.subr.mxu0 %v9223
        %10676 = vmatpush1.msra.mxu0 %v9222
        %10677 = vmatprep.subr.mxu0 %v9255
        %10678 = vmatpush1.msra.mxu0 %v9254
        %10679 = vmatprep.subr.mxu0 %v9287
        %10680 = vmatpush1.msra.mxu0 %v9286
        %10681 = vmatprep.subr.mxu0 %v9319
        %10682 = vmatpush1.msra.mxu0 %v9318
        %10683 = vmatprep.subr.mxu0 %v9351
        %10684 = vmatpush1.msra.mxu0 %v9350
        %10685 = vmatprep.subr.mxu0 %v9383
        %10686 = vmatpush1.msra.mxu0 %v9382
        %10687 = vmatprep.subr.mxu0 %v9415
        %10688 = vmatpush1.msra.mxu0 %v9414
        %10689 = vmatprep.subr.mxu0 %v9447
        %10690 = vmatpush1.msra.mxu0 %v9446
        %10691 = vmatprep.subr.mxu0 %v9479
        %10692 = vmatpush1.msra.mxu0 %v9478
        %10693 = vmatprep.subr.mxu0 %v9511
        %10694 = vmatpush1.msra.mxu0 %v9510
        %10695 = vmatprep.subr.mxu0 %v9543
        %10696 = vmatpush1.msra.mxu0 %v9542
        %10697 = vmatprep.subr.mxu0 %v9575
        %10698 = vmatpush1.msra.mxu0 %v9574
        %10699 = vmatprep.subr.mxu0 %v9607
        %10700 = vmatpush1.msra.mxu0 %v9606
        %10701 = vmatprep.subr.mxu0 %v9639
        %10702 = vmatpush1.msra.mxu0 %v9638
        %10703 = vmatprep.subr.mxu0 %v9671
        %10704 = vmatpush1.msra.mxu0 %v9670
        %10705 = vmatprep.subr.mxu0 %v9703
        %10706 = vmatpush1.msra.mxu0 %v9702
        %10707 = vmatprep.subr.mxu0 %v9735
        %10708 = vmatpush1.msra.mxu0 %v9734
        %10709 = vmatprep.subr.mxu0 %v9767
        %10710 = vmatpush1.msra.mxu0 %v9766
        %10711 = vmatprep.subr.mxu0 %v9799
        %10712 = vmatpush1.msra.mxu0 %v9798
        %10713 = vmatprep.subr.mxu0 %v9831
        %10714 = vmatpush1.msra.mxu0 %v9830
        %10715 = vmatprep.subr.mxu0 %v9863
        %10716 = vmatpush1.msra.mxu0 %v9862
        %10717 = vmatprep.subr.mxu0 0.0
        %10718 = vmatpush1.msra.mxu0 0.0
        %10719 = vmatprep.subr.mxu0 0.0
        %10720 = vmatpush1.msra.mxu0 0.0
        %10721 = vmatprep.subr.mxu0 0.0
        %10722 = vmatpush1.msra.mxu0 0.0
        %10723 = vmatprep.subr.mxu0 0.0
        %10724 = vmatpush1.msra.mxu0 0.0
        %10725 = vmatprep.subr.mxu0 0.0
        %10726 = vmatpush1.msra.mxu0 0.0
        %10727 = vmatprep.mubr.f32.mxu0 %v9880
        %10728 = vmatmul.mubr.f32.gmra.mrb[0].mxu0 %v9006
        %v10729 = vpop.f32.mrb[0].mxu0
        %v10730 = vadd.f32 %v9876, %v10729
        %v10731 = vpop.f32.mrb[0].mxu0
        %v10732 = vadd.f32 %v9876, %v10731
        %10733 = vdwg.mxu0
        %10734 = vmatprep.subr.mxu0 %v9033
        %10735 = vmatpush1.msra.mxu0 %v9032
        %10736 = vmatprep.subr.mxu0 %v9065
        %10737 = vmatpush1.msra.mxu0 %v9064
        %10738 = vmatprep.subr.mxu0 %v9097
        %10739 = vmatpush1.msra.mxu0 %v9096
        %10740 = vmatprep.subr.mxu0 %v9129
        %10741 = vmatpush1.msra.mxu0 %v9128
        %10742 = vmatprep.subr.mxu0 %v9161
        %10743 = vmatpush1.msra.mxu0 %v9160
        %10744 = vmatprep.subr.mxu0 %v9193
        %10745 = vmatpush1.msra.mxu0 %v9192
        %10746 = vmatprep.subr.mxu0 %v9225
        %10747 = vmatpush1.msra.mxu0 %v9224
        %10748 = vmatprep.subr.mxu0 %v9257
        %10749 = vmatpush1.msra.mxu0 %v9256
        %10750 = vmatprep.subr.mxu0 %v9289
        %10751 = vmatpush1.msra.mxu0 %v9288
        %10752 = vmatprep.subr.mxu0 %v9321
        %10753 = vmatpush1.msra.mxu0 %v9320
        %10754 = vmatprep.subr.mxu0 %v9353
        %10755 = vmatpush1.msra.mxu0 %v9352
        %10756 = vmatprep.subr.mxu0 %v9385
        %10757 = vmatpush1.msra.mxu0 %v9384
        %10758 = vmatprep.subr.mxu0 %v9417
        %10759 = vmatpush1.msra.mxu0 %v9416
        %10760 = vmatprep.subr.mxu0 %v9449
        %10761 = vmatpush1.msra.mxu0 %v9448
        %10762 = vmatprep.subr.mxu0 %v9481
        %10763 = vmatpush1.msra.mxu0 %v9480
        %10764 = vmatprep.subr.mxu0 %v9513
        %10765 = vmatpush1.msra.mxu0 %v9512
        %10766 = vmatprep.subr.mxu0 %v9545
        %10767 = vmatpush1.msra.mxu0 %v9544
        %10768 = vmatprep.subr.mxu0 %v9577
        %10769 = vmatpush1.msra.mxu0 %v9576
        %10770 = vmatprep.subr.mxu0 %v9609
        %10771 = vmatpush1.msra.mxu0 %v9608
        %10772 = vmatprep.subr.mxu0 %v9641
        %10773 = vmatpush1.msra.mxu0 %v9640
        %10774 = vmatprep.subr.mxu0 %v9673
        %10775 = vmatpush1.msra.mxu0 %v9672
        %10776 = vmatprep.subr.mxu0 %v9705
        %10777 = vmatpush1.msra.mxu0 %v9704
        %10778 = vmatprep.subr.mxu0 %v9737
        %10779 = vmatpush1.msra.mxu0 %v9736
        %10780 = vmatprep.subr.mxu0 %v9769
        %10781 = vmatpush1.msra.mxu0 %v9768
        %10782 = vmatprep.subr.mxu0 %v9801
        %10783 = vmatpush1.msra.mxu0 %v9800
        %10784 = vmatprep.subr.mxu0 %v9833
        %10785 = vmatpush1.msra.mxu0 %v9832
        %10786 = vmatprep.subr.mxu0 %v9865
        %10787 = vmatpush1.msra.mxu0 %v9864
        %10788 = vmatprep.subr.mxu0 0.0
        %10789 = vmatpush1.msra.mxu0 0.0
        %10790 = vmatprep.subr.mxu0 0.0
        %10791 = vmatpush1.msra.mxu0 0.0
        %10792 = vmatprep.subr.mxu0 0.0
        %10793 = vmatpush1.msra.mxu0 0.0
        %10794 = vmatprep.subr.mxu0 0.0
        %10795 = vmatpush1.msra.mxu0 0.0
        %10796 = vmatprep.subr.mxu0 0.0
        %10797 = vmatpush1.msra.mxu0 0.0
        %10798 = vmatprep.mubr.f32.mxu0 %v9880
        %10799 = vmatmul.mubr.f32.gmra.mrb[0].mxu0 %v9006
        %v10800 = vpop.f32.mrb[0].mxu0
        %v10801 = vadd.f32 %v9876, %v10800
        %v10802 = vpop.f32.mrb[0].mxu0
        %v10803 = vadd.f32 %v9876, %v10802
        %10804 = vdwg.mxu0
        %10805 = vmatprep.subr.mxu0 %v9035
        %10806 = vmatpush1.msra.mxu0 %v9034
        %10807 = vmatprep.subr.mxu0 %v9067
        %10808 = vmatpush1.msra.mxu0 %v9066
        %10809 = vmatprep.subr.mxu0 %v9099
        %10810 = vmatpush1.msra.mxu0 %v9098
        %10811 = vmatprep.subr.mxu0 %v9131
        %10812 = vmatpush1.msra.mxu0 %v9130
        %10813 = vmatprep.subr.mxu0 %v9163
        %10814 = vmatpush1.msra.mxu0 %v9162
        %10815 = vmatprep.subr.mxu0 %v9195
        %10816 = vmatpush1.msra.mxu0 %v9194
        %10817 = vmatprep.subr.mxu0 %v9227
        %10818 = vmatpush1.msra.mxu0 %v9226
        %10819 = vmatprep.subr.mxu0 %v9259
        %10820 = vmatpush1.msra.mxu0 %v9258
        %10821 = vmatprep.subr.mxu0 %v9291
        %10822 = vmatpush1.msra.mxu0 %v9290
        %10823 = vmatprep.subr.mxu0 %v9323
        %10824 = vmatpush1.msra.mxu0 %v9322
        %10825 = vmatprep.subr.mxu0 %v9355
        %10826 = vmatpush1.msra.mxu0 %v9354
        %10827 = vmatprep.subr.mxu0 %v9387
        %10828 = vmatpush1.msra.mxu0 %v9386
        %10829 = vmatprep.subr.mxu0 %v9419
        %10830 = vmatpush1.msra.mxu0 %v9418
        %10831 = vmatprep.subr.mxu0 %v9451
        %10832 = vmatpush1.msra.mxu0 %v9450
        %10833 = vmatprep.subr.mxu0 %v9483
        %10834 = vmatpush1.msra.mxu0 %v9482
        %10835 = vmatprep.subr.mxu0 %v9515
        %10836 = vmatpush1.msra.mxu0 %v9514
        %10837 = vmatprep.subr.mxu0 %v9547
        %10838 = vmatpush1.msra.mxu0 %v9546
        %10839 = vmatprep.subr.mxu0 %v9579
        %10840 = vmatpush1.msra.mxu0 %v9578
        %10841 = vmatprep.subr.mxu0 %v9611
        %10842 = vmatpush1.msra.mxu0 %v9610
        %10843 = vmatprep.subr.mxu0 %v9643
        %10844 = vmatpush1.msra.mxu0 %v9642
        %10845 = vmatprep.subr.mxu0 %v9675
        %10846 = vmatpush1.msra.mxu0 %v9674
        %10847 = vmatprep.subr.mxu0 %v9707
        %10848 = vmatpush1.msra.mxu0 %v9706
        %10849 = vmatprep.subr.mxu0 %v9739
        %10850 = vmatpush1.msra.mxu0 %v9738
        %10851 = vmatprep.subr.mxu0 %v9771
        %10852 = vmatpush1.msra.mxu0 %v9770
        %10853 = vmatprep.subr.mxu0 %v9803
        %10854 = vmatpush1.msra.mxu0 %v9802
        %10855 = vmatprep.subr.mxu0 %v9835
        %10856 = vmatpush1.msra.mxu0 %v9834
        %10857 = vmatprep.subr.mxu0 %v9867
        %10858 = vmatpush1.msra.mxu0 %v9866
        %10859 = vmatprep.subr.mxu0 0.0
        %10860 = vmatpush1.msra.mxu0 0.0
        %10861 = vmatprep.subr.mxu0 0.0
        %10862 = vmatpush1.msra.mxu0 0.0
        %10863 = vmatprep.subr.mxu0 0.0
        %10864 = vmatpush1.msra.mxu0 0.0
        %10865 = vmatprep.subr.mxu0 0.0
        %10866 = vmatpush1.msra.mxu0 0.0
        %10867 = vmatprep.subr.mxu0 0.0
        %10868 = vmatpush1.msra.mxu0 0.0
        %10869 = vmatprep.mubr.f32.mxu0 %v9880
        %10870 = vmatmul.mubr.f32.gmra.mrb[0].mxu0 %v9006
        %v10871 = vpop.f32.mrb[0].mxu0
        %v10872 = vadd.f32 %v9876, %v10871
        %v10873 = vpop.f32.mrb[0].mxu0
        %v10874 = vadd.f32 %v9876, %v10873
        %10875 = vdwg.mxu0
        %10876 = vmatprep.subr.mxu0 %v9037
        %10877 = vmatpush1.msra.mxu0 %v9036
        %10878 = vmatprep.subr.mxu0 %v9069
        %10879 = vmatpush1.msra.mxu0 %v9068
        %10880 = vmatprep.subr.mxu0 %v9101
        %10881 = vmatpush1.msra.mxu0 %v9100
        %10882 = vmatprep.subr.mxu0 %v9133
        %10883 = vmatpush1.msra.mxu0 %v9132
        %10884 = vmatprep.subr.mxu0 %v9165
        %10885 = vmatpush1.msra.mxu0 %v9164
        %10886 = vmatprep.subr.mxu0 %v9197
        %10887 = vmatpush1.msra.mxu0 %v9196
        %10888 = vmatprep.subr.mxu0 %v9229
        %10889 = vmatpush1.msra.mxu0 %v9228
        %10890 = vmatprep.subr.mxu0 %v9261
        %10891 = vmatpush1.msra.mxu0 %v9260
        %10892 = vmatprep.subr.mxu0 %v9293
        %10893 = vmatpush1.msra.mxu0 %v9292
        %10894 = vmatprep.subr.mxu0 %v9325
        %10895 = vmatpush1.msra.mxu0 %v9324
        %10896 = vmatprep.subr.mxu0 %v9357
        %10897 = vmatpush1.msra.mxu0 %v9356
        %10898 = vmatprep.subr.mxu0 %v9389
        %10899 = vmatpush1.msra.mxu0 %v9388
        %10900 = vmatprep.subr.mxu0 %v9421
        %10901 = vmatpush1.msra.mxu0 %v9420
        %10902 = vmatprep.subr.mxu0 %v9453
        %10903 = vmatpush1.msra.mxu0 %v9452
        %10904 = vmatprep.subr.mxu0 %v9485
        %10905 = vmatpush1.msra.mxu0 %v9484
        %10906 = vmatprep.subr.mxu0 %v9517
        %10907 = vmatpush1.msra.mxu0 %v9516
        %10908 = vmatprep.subr.mxu0 %v9549
        %10909 = vmatpush1.msra.mxu0 %v9548
        %10910 = vmatprep.subr.mxu0 %v9581
        %10911 = vmatpush1.msra.mxu0 %v9580
        %10912 = vmatprep.subr.mxu0 %v9613
        %10913 = vmatpush1.msra.mxu0 %v9612
        %10914 = vmatprep.subr.mxu0 %v9645
        %10915 = vmatpush1.msra.mxu0 %v9644
        %10916 = vmatprep.subr.mxu0 %v9677
        %10917 = vmatpush1.msra.mxu0 %v9676
        %10918 = vmatprep.subr.mxu0 %v9709
        %10919 = vmatpush1.msra.mxu0 %v9708
        %10920 = vmatprep.subr.mxu0 %v9741
        %10921 = vmatpush1.msra.mxu0 %v9740
        %10922 = vmatprep.subr.mxu0 %v9773
        %10923 = vmatpush1.msra.mxu0 %v9772
        %10924 = vmatprep.subr.mxu0 %v9805
        %10925 = vmatpush1.msra.mxu0 %v9804
        %10926 = vmatprep.subr.mxu0 %v9837
        %10927 = vmatpush1.msra.mxu0 %v9836
        %10928 = vmatprep.subr.mxu0 %v9869
        %10929 = vmatpush1.msra.mxu0 %v9868
        %10930 = vmatprep.subr.mxu0 0.0
        %10931 = vmatpush1.msra.mxu0 0.0
        %10932 = vmatprep.subr.mxu0 0.0
        %10933 = vmatpush1.msra.mxu0 0.0
        %10934 = vmatprep.subr.mxu0 0.0
        %10935 = vmatpush1.msra.mxu0 0.0
        %10936 = vmatprep.subr.mxu0 0.0
        %10937 = vmatpush1.msra.mxu0 0.0
        %10938 = vmatprep.subr.mxu0 0.0
        %10939 = vmatpush1.msra.mxu0 0.0
        %10940 = vmatprep.mubr.f32.mxu0 %v9880
        %10941 = vmatmul.mubr.f32.gmra.mrb[0].mxu0 %v9006
        %v10942 = vpop.f32.mrb[0].mxu0
        %v10943 = vadd.f32 %v9876, %v10942
        %v10944 = vpop.f32.mrb[0].mxu0
        %v10945 = vadd.f32 %v9876, %v10944
        %10946 = vdwg.mxu0
        %10947 = vmatprep.subr.mxu0 %v9039
        %10948 = vmatpush1.msra.mxu0 %v9038
        %10949 = vmatprep.subr.mxu0 %v9071
        %10950 = vmatpush1.msra.mxu0 %v9070
        %10951 = vmatprep.subr.mxu0 %v9103
        %10952 = vmatpush1.msra.mxu0 %v9102
        %10953 = vmatprep.subr.mxu0 %v9135
        %10954 = vmatpush1.msra.mxu0 %v9134
        %10955 = vmatprep.subr.mxu0 %v9167
        %10956 = vmatpush1.msra.mxu0 %v9166
        %10957 = vmatprep.subr.mxu0 %v9199
        %10958 = vmatpush1.msra.mxu0 %v9198
        %10959 = vmatprep.subr.mxu0 %v9231
        %10960 = vmatpush1.msra.mxu0 %v9230
        %10961 = vmatprep.subr.mxu0 %v9263
        %10962 = vmatpush1.msra.mxu0 %v9262
        %10963 = vmatprep.subr.mxu0 %v9295
        %10964 = vmatpush1.msra.mxu0 %v9294
        %10965 = vmatprep.subr.mxu0 %v9327
        %10966 = vmatpush1.msra.mxu0 %v9326
        %10967 = vmatprep.subr.mxu0 %v9359
        %10968 = vmatpush1.msra.mxu0 %v9358
        %10969 = vmatprep.subr.mxu0 %v9391
        %10970 = vmatpush1.msra.mxu0 %v9390
        %10971 = vmatprep.subr.mxu0 %v9423
        %10972 = vmatpush1.msra.mxu0 %v9422
        %10973 = vmatprep.subr.mxu0 %v9455
        %10974 = vmatpush1.msra.mxu0 %v9454
        %10975 = vmatprep.subr.mxu0 %v9487
        %10976 = vmatpush1.msra.mxu0 %v9486
        %10977 = vmatprep.subr.mxu0 %v9519
        %10978 = vmatpush1.msra.mxu0 %v9518
        %10979 = vmatprep.subr.mxu0 %v9551
        %10980 = vmatpush1.msra.mxu0 %v9550
        %10981 = vmatprep.subr.mxu0 %v9583
        %10982 = vmatpush1.msra.mxu0 %v9582
        %10983 = vmatprep.subr.mxu0 %v9615
        %10984 = vmatpush1.msra.mxu0 %v9614
        %10985 = vmatprep.subr.mxu0 %v9647
        %10986 = vmatpush1.msra.mxu0 %v9646
        %10987 = vmatprep.subr.mxu0 %v9679
        %10988 = vmatpush1.msra.mxu0 %v9678
        %10989 = vmatprep.subr.mxu0 %v9711
        %10990 = vmatpush1.msra.mxu0 %v9710
        %10991 = vmatprep.subr.mxu0 %v9743
        %10992 = vmatpush1.msra.mxu0 %v9742
        %10993 = vmatprep.subr.mxu0 %v9775
        %10994 = vmatpush1.msra.mxu0 %v9774
        %10995 = vmatprep.subr.mxu0 %v9807
        %10996 = vmatpush1.msra.mxu0 %v9806
        %10997 = vmatprep.subr.mxu0 %v9839
        %10998 = vmatpush1.msra.mxu0 %v9838
        %10999 = vmatprep.subr.mxu0 %v9871
        %11000 = vmatpush1.msra.mxu0 %v9870
        %11001 = vmatprep.subr.mxu0 0.0
        %11002 = vmatpush1.msra.mxu0 0.0
        %11003 = vmatprep.subr.mxu0 0.0
        %11004 = vmatpush1.msra.mxu0 0.0
        %11005 = vmatprep.subr.mxu0 0.0
        %11006 = vmatpush1.msra.mxu0 0.0
        %11007 = vmatprep.subr.mxu0 0.0
        %11008 = vmatpush1.msra.mxu0 0.0
        %11009 = vmatprep.subr.mxu0 0.0
        %11010 = vmatpush1.msra.mxu0 0.0
        %11011 = vmatprep.mubr.f32.mxu0 %v9880
        %11012 = vmatmul.mubr.f32.gmra.mrb[0].mxu0 %v9006
        %v11013 = vpop.f32.mrb[0].mxu0
        %v11014 = vadd.f32 %v9876, %v11013
        %v11015 = vpop.f32.mrb[0].mxu0
        %v11016 = vadd.f32 %v9876, %v11015
        %11017 = vdwg.mxu0
        %v11018 = vmax.f32 %v9949, 0.0
        %v11019 = vmax.f32 %v9951, 0.0
        %v11020 = vmax.f32 %v10020, 0.0
        %v11021 = vmax.f32 %v10022, 0.0
        %v11022 = vmax.f32 %v10091, 0.0
        %v11023 = vmax.f32 %v10093, 0.0
        %v11024 = vmax.f32 %v10162, 0.0
        %v11025 = vmax.f32 %v10164, 0.0
        %v11026 = vmax.f32 %v10233, 0.0
        %v11027 = vmax.f32 %v10235, 0.0
        %v11028 = vmax.f32 %v10304, 0.0
        %v11029 = vmax.f32 %v10306, 0.0
        %v11030 = vmax.f32 %v10375, 0.0
        %v11031 = vmax.f32 %v10377, 0.0
        %v11032 = vmax.f32 %v10446, 0.0
        %v11033 = vmax.f32 %v10448, 0.0
        %v11034 = vmax.f32 %v10517, 0.0
        %v11035 = vmax.f32 %v10519, 0.0
        %v11036 = vmax.f32 %v10588, 0.0
        %v11037 = vmax.f32 %v10590, 0.0
        %v11038 = vmax.f32 %v10659, 0.0
        %v11039 = vmax.f32 %v10661, 0.0
        %v11040 = vmax.f32 %v10730, 0.0
        %v11041 = vmax.f32 %v10732, 0.0
        %v11042 = vmax.f32 %v10801, 0.0
        %v11043 = vmax.f32 %v10803, 0.0
        %v11044 = vmax.f32 %v10872, 0.0
        %v11045 = vmax.f32 %v10874, 0.0
        %v11046 = vmax.f32 %v10943, 0.0
        %v11047 = vmax.f32 %v10945, 0.0
        %v11048 = vmax.f32 %v11014, 0.0
        %v11049 = vmax.f32 %v11016, 0.0
        %11050 = vst [vmem:[%s284] sm:$0xff] %v11018
        %11051 = vst [vmem:[%s284 + $0x8] sm:$0xff] %v11019
        %11052 = vst [vmem:[%s284 + $0x10] sm:$0xff] %v11020
        %11053 = vst [vmem:[%s284 + $0x18] sm:$0xff] %v11021
        %11054 = vst [vmem:[%s284 + $0x20] sm:$0xff] %v11022
        %11055 = vst [vmem:[%s284 + $0x28] sm:$0xff] %v11023
        %11056 = vst [vmem:[%s284 + $0x30] sm:$0xff] %v11024
        %11057 = vst [vmem:[%s284 + $0x38] sm:$0xff] %v11025
        %11058 = vst [vmem:[%s284 + $0x40] sm:$0xff] %v11026
        %11059 = vst [vmem:[%s284 + $0x48] sm:$0xff] %v11027
        %11060 = vst [vmem:[%s284 + $0x50] sm:$0xff] %v11028
        %11061 = vst [vmem:[%s284 + $0x58] sm:$0xff] %v11029
        %11062 = vst [vmem:[%s284 + $0x60] sm:$0xff] %v11030
        %11063 = vst [vmem:[%s284 + $0x68] sm:$0xff] %v11031
        %11064 = vst [vmem:[%s284 + $0x70] sm:$0xff] %v11032
        %11065 = vst [vmem:[%s284 + $0x78] sm:$0xff] %v11033
        %11066 = vst [vmem:[%s284 + $0x80] sm:$0xff] %v11034
        %11067 = vst [vmem:[%s284 + $0x88] sm:$0xff] %v11035
        %11068 = vst [vmem:[%s284 + $0x90] sm:$0xff] %v11036
        %11069 = vst [vmem:[%s284 + $0x98] sm:$0xff] %v11037
        %11070 = vst [vmem:[%s284 + $0xa0] sm:$0xff] %v11038
        %11071 = vst [vmem:[%s284 + $0xa8] sm:$0xff] %v11039
        %11072 = vst [vmem:[%s284 + $0xb0] sm:$0xff] %v11040
        %11073 = vst [vmem:[%s284 + $0xb8] sm:$0xff] %v11041
        %11074 = vst [vmem:[%s284 + $0xc0] sm:$0xff] %v11042
        %11075 = vst [vmem:[%s284 + $0xc8] sm:$0xff] %v11043
        %11076 = vst [vmem:[%s284 + $0xd0] sm:$0xff] %v11044
        %11077 = vst [vmem:[%s284 + $0xd8] sm:$0xff] %v11045
        %11078 = vst [vmem:[%s284 + $0xe0] sm:$0xff] %v11046
        %11079 = vst [vmem:[%s284 + $0xe8] sm:$0xff] %v11047
        %11080 = vst [vmem:[%s284 + $0xf0] sm:$0xff] %v11048
        %11081 = vst [vmem:[%s284 + $0xf8] sm:$0xff] %v11049
        %v11082 = vld [vmem:[%s247] sm:$0xff]
        %v11083 = vld [vmem:[%s247 + $0x8] sm:$0xff]
        %v11084 = vld [vmem:[%s247 + $0x10] sm:$0xff]
        %v11085 = vld [vmem:[%s247 + $0x18] sm:$0xff]
        %v11086 = vld [vmem:[%s247 + $0x20] sm:$0xff]
        %v11087 = vld [vmem:[%s247 + $0x28] sm:$0xff]
        %v11088 = vld [vmem:[%s247 + $0x30] sm:$0xff]
        %v11089 = vld [vmem:[%s247 + $0x38] sm:$0xff]
        %v11090 = vld [vmem:[%s247 + $0x40] sm:$0xff]
        %v11091 = vld [vmem:[%s247 + $0x48] sm:$0xff]
        %v11092 = vld [vmem:[%s247 + $0x50] sm:$0xff]
        %v11093 = vld [vmem:[%s247 + $0x58] sm:$0xff]
        %v11094 = vld [vmem:[%s247 + $0x60] sm:$0xff]
        %v11095 = vld [vmem:[%s247 + $0x68] sm:$0xff]
        %v11096 = vld [vmem:[%s247 + $0x70] sm:$0xff]
        %v11097 = vld [vmem:[%s247 + $0x78] sm:$0xff]
        %v11098 = vmax.f32 %v11082, 0.0
        %v11099 = vmax.f32 %v11083, 0.0
        %v11100 = vmax.f32 %v11084, 0.0
        %v11101 = vmax.f32 %v11085, 0.0
        %v11102 = vmax.f32 %v11086, 0.0
        %v11103 = vmax.f32 %v11087, 0.0
        %v11104 = vmax.f32 %v11088, 0.0
        %v11105 = vmax.f32 %v11089, 0.0
        %v11106 = vmax.f32 %v11090, 0.0
        %v11107 = vmax.f32 %v11091, 0.0
        %v11108 = vmax.f32 %v11092, 0.0
        %v11109 = vmax.f32 %v11093, 0.0
        %v11110 = vmax.f32 %v11094, 0.0
        %v11111 = vmax.f32 %v11095, 0.0
        %v11112 = vmax.f32 %v11096, 0.0
        %v11113 = vmax.f32 %v11097, 0.0
        %v11130 = vcombine.high %v11098, %v11098
        %v11131 = vcombine.high %v11099, %v11099
        %v11132 = vcombine.high %v11100, %v11100
        %v11133 = vcombine.high %v11101, %v11101
        %v11134 = vcombine.high %v11102, %v11102
        %v11135 = vcombine.high %v11103, %v11103
        %v11136 = vcombine.high %v11104, %v11104
        %v11137 = vcombine.high %v11105, %v11105
        %v11138 = vcombine.high %v11106, %v11106
        %v11139 = vcombine.high %v11107, %v11107
        %v11140 = vcombine.high %v11108, %v11108
        %v11141 = vcombine.high %v11109, %v11109
        %v11142 = vcombine.high %v11110, %v11110
        %v11143 = vcombine.high %v11111, %v11111
        %v11144 = vcombine.high %v11112, %v11112
        %v11145 = vcombine.high %v11113, %v11113
        %11162 = vst [vmem:[%s284 + $0x100] sm:$0xf] %v11098
        %11163 = vst [vmem:[%s284 + $0x108] sm:$0xf] %v11130
        %11164 = vst [vmem:[%s284 + $0x110] sm:$0xf] %v11099
        %11165 = vst [vmem:[%s284 + $0x118] sm:$0xf] %v11131
        %11166 = vst [vmem:[%s284 + $0x120] sm:$0xf] %v11100
        %11167 = vst [vmem:[%s284 + $0x128] sm:$0xf] %v11132
        %11168 = vst [vmem:[%s284 + $0x130] sm:$0xf] %v11101
        %11169 = vst [vmem:[%s284 + $0x138] sm:$0xf] %v11133
        %11170 = vst [vmem:[%s284 + $0x140] sm:$0xf] %v11102
        %11171 = vst [vmem:[%s284 + $0x148] sm:$0xf] %v11134
        %11172 = vst [vmem:[%s284 + $0x150] sm:$0xf] %v11103
        %11173 = vst [vmem:[%s284 + $0x158] sm:$0xf] %v11135
        %11174 = vst [vmem:[%s284 + $0x160] sm:$0xf] %v11104
        %11175 = vst [vmem:[%s284 + $0x168] sm:$0xf] %v11136
        %11176 = vst [vmem:[%s284 + $0x170] sm:$0xf] %v11105
        %11177 = vst [vmem:[%s284 + $0x178] sm:$0xf] %v11137
        %11178 = vst [vmem:[%s284 + $0x180] sm:$0xf] %v11106
        %11179 = vst [vmem:[%s284 + $0x188] sm:$0xf] %v11138
        %11180 = vst [vmem:[%s284 + $0x190] sm:$0xf] %v11107
        %11181 = vst [vmem:[%s284 + $0x198] sm:$0xf] %v11139
        %11182 = vst [vmem:[%s284 + $0x1a0] sm:$0xf] %v11108
        %11183 = vst [vmem:[%s284 + $0x1a8] sm:$0xf] %v11140
        %11184 = vst [vmem:[%s284 + $0x1b0] sm:$0xf] %v11109
        %11185 = vst [vmem:[%s284 + $0x1b8] sm:$0xf] %v11141
        %11186 = vst [vmem:[%s284 + $0x1c0] sm:$0xf] %v11110
        %11187 = vst [vmem:[%s284 + $0x1c8] sm:$0xf] %v11142
        %11188 = vst [vmem:[%s284 + $0x1d0] sm:$0xf] %v11111
        %11189 = vst [vmem:[%s284 + $0x1d8] sm:$0xf] %v11143
        %11190 = vst [vmem:[%s284 + $0x1e0] sm:$0xf] %v11112
        %11191 = vst [vmem:[%s284 + $0x1e8] sm:$0xf] %v11144
        %11192 = vst [vmem:[%s284 + $0x1f0] sm:$0xf] %v11113
        %11193 = vst [vmem:[%s284 + $0x1f8] sm:$0xf] %v11145
        %p11194 = scmp.lt.s32.totalorder %s21, 1
        %s11195 = scalar_select %p11194, %s21, 1
        %s11196 = smul.addr %s11195, 64
        %s11197 = smul.addr %s11196, 8
        %s11198 = scalar_lea.vmem %s6, %s11197
        // Predicated region
        $region53: #{tpu_custom_call.1} parent=43 // pred_check
          %p11199 = pneg %p170
        $region54: #{tpu_custom_call.1} parent=43 // pred_check_branch
          %11201 = sbr.rel (%p11199) target = $region56
        $region55: #{tpu_custom_call.1} parent=43 // pred_region
          _
        $region56: #{tpu_custom_call.1} parent=43 // pred_fallthru
          _
      $region44: #{tpu_custom_call.1} parent=5 // pred_fallthru
        _
      %p11202 = scmp.le.s32.totalorder 2, %s16
      // Predicated region
      $region57: #{tpu_custom_call.1} parent=5 // pred_check
        %p11203 = pneg %p11202
      $region58: #{tpu_custom_call.1} parent=5 // pred_check_branch
        %11205 = sbr.rel (%p11203) target = $region60
      $region59: #{tpu_custom_call.1} parent=5 // pred_region
        %s11206 = ssub.s32 %s16, 2
        // Predicated region
        $region61: #{tpu_custom_call.1} parent=59 // pred_check
          %p11207 = pneg %p176
        $region62: #{tpu_custom_call.1} parent=59 // pred_check_branch
          %11209 = sbr.rel (%p11207) target = $region64
        $region63: #{tpu_custom_call.1} parent=59 // pred_region
          %p11210 = scmp.lt.s32.totalorder %s22, 1
          %s11211 = scalar_select %p11210, %s22, 1
          %s11212 = smul.addr %s11211, 64
          %s11213 = smul.addr %s11212, 8
          %s11214 = scalar_lea.vmem %s6, %s11213
        $region64: #{tpu_custom_call.1} parent=59 // pred_fallthru
          _
      $region60: #{tpu_custom_call.1} parent=5 // pred_fallthru
        _
    $region6: #{tpu_custom_call.1} parent=1 // loop_footer
      %s20 = sadd.s32 1, %s16
    $region7: #{tpu_custom_call.1} parent=1 // loop_footer_branch
      %15 = sbr.rel target = $region3
    $region8: #{tpu_custom_call.1} parent=1 // loop_exit
      _
    %11215 = vsyncpa [#allocation5], 1
    %s11216 = scalar_lea.sflag [#allocation5], 1
    %11217 = vsyncpa %s11216, 1
    %11218 = vsyncpa [#allocation7], 1

</llo_original>
